<compile_context>
chip_gen: v7x
topology: tpu7x:2x2x1
jax: 0.10.0
libtpu: 0.0.40
codegen_flags: <defaults>
</compile_context>

<pallas_src>
import functools

import jax
import jax.numpy as jnp
from jax.experimental import pallas as pl
from jax.experimental.pallas import tpu as pltpu

_LANE = 128


def _round_up(x, m):
    return (x + m - 1) // m * m


def _chip_budgets():
    """(max rows per grid step, VMEM limit cap) per chip generation."""
    try:
        vmem = int(pltpu.get_tpu_info().vmem_capacity_bytes)
    except Exception:            # conservative fallback (v7x per-core budget)
        vmem = 64 << 20
    if vmem >= (100 << 20):      # v5e / v6e: 128 MiB VMEM per core
        return 2048, min(96 << 20, vmem * 3 // 4)
    return 1024, min(48 << 20, vmem * 3 // 4)      # v7x: 64 MiB per core


def _pick_group(n, ho, wo, max_rows):
    """Images per grid step.  Prefers >= 2 grid steps (v7x dual-TensorCore),
    then rows % 16 == 0 (bf16 sublane pack), then the largest group."""
    cands = [nb for nb in range(1, n + 1)
             if n % nb == 0 and (nb * ho * wo) % 8 == 0
             and nb * ho * wo <= max_rows]
    assert cands, "no valid image group (need rows % 8 == 0)"

    def score(nb):
        rows = nb * ho * wo
        return (n // nb >= 2, rows % 16 == 0, rows)

    return max(cands, key=score)


# ---------------- Pallas kernels ----------------

def _conv3x3_bn_kernel(*refs, stride, fuse_bn_relu, Ho, Wo):
    """3x3 conv (pad=1) + per-channel partial sum / sum-of-squares.

    If fuse_bn_relu, the previous layer's BatchNorm (scale, bias) + ReLU is
    applied while the input tile is staged into VMEM (no extra HBM pass).
    """
    if fuse_bn_relu:
        (x_ref, w_ref, scale_ref, bias_ref,
         y_ref, s_ref, q_ref, a_ref) = refs
    else:
        (x_ref, w_ref, y_ref, s_ref, q_ref, a_ref) = refs
        scale_ref = bias_ref = None

    nb, hin, win, cin = x_ref.shape
    cout = y_ref.shape[1]
    rows = nb * Ho * Wo
    hband, wband = a_ref.shape[1], a_ref.shape[2]

    # 1) Zero only the 1-pixel border strips of the padded band; the interior
    #    is fully overwritten below and the extra right padding is never read.
    zrow = jnp.zeros((nb, 1, wband, cin), a_ref.dtype)
    a_ref[:, 0:1, :, :] = zrow
    a_ref[:, hin + 1:hin + 2, :, :] = zrow
    zcol = jnp.zeros((nb, hband, 1, cin), a_ref.dtype)
    a_ref[:, :, 0:1, :] = zcol
    a_ref[:, :, win + 1:win + 2, :] = zcol

    # 2) Stage the activation into the band interior; the previous layer's
    #    BN + ReLU is fused here so it never round-trips through HBM.
    xv = x_ref[...]
    if fuse_bn_relu:
        xv = jnp.maximum(xv.astype(jnp.float32) * scale_ref[0, :]
                         + bias_ref[0, :], 0.0)
    a_ref[:, 1:hin + 1, 1:win + 1, :] = xv.astype(a_ref.dtype)

    # 3) Nine accumulating MXU matmuls, one per 3x3 tap (no materialized
    #    im2col).  Weight slices start at multiples of Cin (>= 128), so the
    #    B operand stays sublane/lane aligned.
    #    NOTE: for stages with true Cin < 128 the channel padding means the
    #    MXU does ~(128/Cin)x excess work (only matters for the stem conv).
    acc = None
    for di in range(3):
        for dj in range(3):
            t = di * 3 + dj
            if stride == 1:
                tap = a_ref[:, di:di + Ho, dj:dj + Wo, :]
            else:
                # TODO(synk): stride > 1 tap gather is correct but not perf-tuned.
                tap = a_ref[:, di:di + (Ho - 1) * stride + 1,
                            dj:dj + (Wo - 1) * stride + 1, :]
                tap = tap[:, ::stride, ::stride, :]
            part = jnp.dot(tap.reshape(rows, cin),
                           w_ref[t * cin:(t + 1) * cin, :],
                           preferred_element_type=jnp.float32)
            acc = part if acc is None else acc + part

    # 4) Per-grid-step partial BN stats straight from the accumulator value
    #    (no scratch round-trip); 8 sublanes are kept and the reduction is
    #    finished on the host so the grid axis stays 'parallel'.
    s_ref[0] = jnp.sum(acc.reshape(rows // 8, 8, cout), axis=0)
    q_ref[0] = jnp.sum((acc * acc).reshape(rows // 8, 8, cout), axis=0)

    # 5) Raw conv output in bf16; BN is applied by the consumer.
    y_ref[...] = acc.astype(y_ref.dtype)


def _bn_apply_kernel(x_ref, scale_ref, bias_ref, o_ref):
    o_ref[...] = (x_ref[...].astype(jnp.float32) * scale_ref[0, :]
                  + bias_ref[0, :]).astype(o_ref.dtype)


# ---------------- pallas_call wrappers ----------------

def _conv3x3_bn(x_nhwc, w_mat, gamma, beta, *, stride,
                scale_in=None, bias_in=None, eps=1e-5):
    """One 3x3 conv + batch-stat collection.

    Returns (raw conv output in bf16 NHWC, scale, bias) where (scale, bias)
    fold this conv's train-mode BatchNorm for its consumer.
    """
    n, hin, win, cin = x_nhwc.shape
    cout = w_mat.shape[-1]
    ho = (hin - 1) // stride + 1
    wo = (win - 1) // stride + 1
    max_rows, vmem_cap = _chip_budgets()
    nb = _pick_group(n, ho, wo, max_rows)
    g = n // nb
    rows = nb * ho * wo
    wband = _round_up(win + 2, 16)   # bf16 sublane-pack friendly band width

    fuse = scale_in is not None
    kernel = functools.partial(_conv3x3_bn_kernel, stride=stride,
                               fuse_bn_relu=fuse, Ho=ho, Wo=wo)

    # NOTE: weight / scale / bias are grid-invariant; they are re-used across
    # steps (constant index_map) but keep the default pipeline buffering.
    in_specs = [pl.BlockSpec((nb, hin, win, cin), lambda i: (i, 0, 0, 0)),
                pl.BlockSpec((9 * cin, cout), lambda i: (0, 0))]
    inputs = [x_nhwc, w_mat]
    if fuse:
        in_specs += [pl.BlockSpec((1, cin), lambda i: (0, 0)),
                     pl.BlockSpec((1, cin), lambda i: (0, 0))]
        inputs += [scale_in.reshape(1, cin).astype(jnp.float32),
                   bias_in.reshape(1, cin).astype(jnp.float32)]

    out_shape = (jax.ShapeDtypeStruct((n * ho * wo, cout), jnp.bfloat16),
                 jax.ShapeDtypeStruct((g, 8, cout), jnp.float32),
                 jax.ShapeDtypeStruct((g, 8, cout), jnp.float32))
    out_specs = [pl.BlockSpec((rows, cout), lambda i: (i, 0)),
                 pl.BlockSpec((1, 8, cout), lambda i: (i, 0, 0)),
                 pl.BlockSpec((1, 8, cout), lambda i: (i, 0, 0))]

    scratch_shapes = [
        pltpu.VMEM((nb, hin + 2, wband, cin), jnp.bfloat16),  # padded band
    ]

    # VMEM budget from the actual tile sizes (with headroom), capped per chip.
    est = (2 * (nb * hin * win * cin * 2 + rows * cout * 2
                + 9 * cin * cout * 2 + 2 * 8 * cout * 4 + 2 * cin * 4)
           + nb * (hin + 2) * wband * cin * 2
           + rows * cout * 4)                       # f32 accumulator value
    vmem_limit = int(min(max(3 * est, 16 << 20), vmem_cap))

    y, psum, psq = pl.pallas_call(
        kernel,
        out_shape=out_shape,
        grid_spec=pltpu.PrefetchScalarGridSpec(
            num_scalar_prefetch=0,
            grid=(g,),
            in_specs=in_specs,
            out_specs=out_specs,
            scratch_shapes=scratch_shapes),
        compiler_params=pltpu.CompilerParams(
            dimension_semantics=("parallel",),
            vmem_limit_bytes=vmem_limit),
    )(*inputs)

    # Finish the BN statistics on the host (tiny (G, 8, C) arrays, f32).
    count = jnp.float32(n * ho * wo)
    s = jnp.sum(psum, axis=(0, 1))
    q = jnp.sum(psq, axis=(0, 1))
    mean = s / count
    var = jnp.maximum(q / count - mean * mean, 0.0)  # f32 stats; fine at BN scale
    scale = gamma / jnp.sqrt(var + eps)
    bias = beta - mean * scale
    return y.reshape(n, ho, wo, cout), scale, bias


def _bn_apply(y2d, scale, bias, rows):
    p, c = y2d.shape
    g = p // rows
    return pl.pallas_call(
        _bn_apply_kernel,
        out_shape=jax.ShapeDtypeStruct((p, c), jnp.float32),
        grid_spec=pltpu.PrefetchScalarGridSpec(
            num_scalar_prefetch=0,
            grid=(g,),
            in_specs=[pl.BlockSpec((rows, c), lambda i: (i, 0)),
                      pl.BlockSpec((1, c), lambda i: (0, 0)),
                      pl.BlockSpec((1, c), lambda i: (0, 0))],
            out_specs=pl.BlockSpec((rows, c), lambda i: (i, 0))),
        compiler_params=pltpu.CompilerParams(
            dimension_semantics=("parallel",)),
    )(y2d, scale.reshape(1, c).astype(jnp.float32),
      bias.reshape(1, c).astype(jnp.float32))


# ---------------- glue (weight / channel padding) ----------------

def _prep_weight(w_oihw, cin_p, cout_p):
    cout, cin = w_oihw.shape[0], w_oihw.shape[1]
    w = jnp.transpose(w_oihw, (2, 3, 1, 0))                     # (3,3,Cin,Cout)
    w = jnp.pad(w, ((0, 0), (0, 0), (0, cin_p - cin), (0, cout_p - cout)))
    return w.reshape(9 * cin_p, cout_p).astype(jnp.bfloat16)


def _pad_channels(v, c_p):
    return jnp.pad(v, (0, c_p - v.shape[0]))


@functools.partial(jax.jit, static_argnames=("stride",))
def basic_block_forward(x_nchw, params, stride=1):
    eps = 1e-5
    n, cin, _, _ = x_nchw.shape
    planes = params["conv1_w"].shape[0]
    cin_p = _round_up(cin, _LANE)
    cmid_p = _round_up(planes, _LANE)
    cout_p = _round_up(planes, _LANE)

    # NCHW -> NHWC, bf16, lane-dense channel padding (padded lanes stay zero).
    x = jnp.transpose(x_nchw, (0, 2, 3, 1)).astype(jnp.bfloat16)
    x = jnp.pad(x, ((0, 0), (0, 0), (0, 0), (0, cin_p - cin)))

    w1 = _prep_weight(params["conv1_w"], cin_p, cmid_p)
    w2 = _prep_weight(params["conv2_w"], cmid_p, cout_p)
    g1 = _pad_channels(params["bn1_gamma"].astype(jnp.float32), cmid_p)
    b1 = _pad_channels(params["bn1_beta"].astype(jnp.float32), cmid_p)
    g2 = _pad_channels(params["bn2_gamma"].astype(jnp.float32), cout_p)
    b2 = _pad_channels(params["bn2_beta"].astype(jnp.float32), cout_p)

    # conv1 (+ BN1 batch stats); BN1+ReLU application is fused into conv2.
    y1, scale1, bias1 = _conv3x3_bn(x, w1, g1, b1, stride=stride, eps=eps)
    # conv2 with fused BN1+ReLU on its input (+ BN2 batch stats).
    y2, scale2, bias2 = _conv3x3_bn(y1, w2, g2, b2, stride=1,
                                    scale_in=scale1, bias_in=bias1, eps=eps)

    # Final BN2 application (lane-dense elementwise kernel, f32 output to
    # match the reference module's dtype).
    n2, ho, wo, _ = y2.shape
    max_rows, _ = _chip_budgets()
    rows = _pick_group(n2, ho, wo, max_rows) * ho * wo
    out = _bn_apply(y2.reshape(n2 * ho * wo, cout_p), scale2, bias2, rows)
    out = out.reshape(n2, ho, wo, cout_p)[..., :planes]
    return jnp.transpose(out, (0, 3, 1, 2))                      # NHWC -> NCHW


# ---------------- pure-JAX reference ----------------

def _reference(x_nchw, params, stride, eps=1e-5):
    x = jnp.transpose(x_nchw, (0, 2, 3, 1))

    def conv(x, w, s):
        w_hwio = jnp.transpose(w, (2, 3, 1, 0))
        return jax.lax.conv_general_dilated(
            x, w_hwio, (s, s), [(1, 1), (1, 1)],
            dimension_numbers=("NHWC", "HWIO", "NHWC"),
            precision=jax.lax.Precision.HIGHEST)

    def bn(x, gamma, beta):
        mean = jnp.mean(x, axis=(0, 1, 2))
        var = jnp.mean((x - mean) ** 2, axis=(0, 1, 2))
        return (x - mean) / jnp.sqrt(var + eps) * gamma + beta

    y = jax.nn.relu(bn(conv(x, params["conv1_w"], stride),
                       params["bn1_gamma"], params["bn1_beta"]))
    y = bn(conv(y, params["conv2_w"], 1), params["bn2_gamma"], params["bn2_beta"])
    return jnp.transpose(y, (0, 3, 1, 2))


# ---------------- main ----------------

if __name__ == "__main__":
    key = jax.random.PRNGKey(0)
    n, inplanes, planes, h, w, stride = 2, 4, 8, 16, 16, 1

    k_x, k_w1, k_w2 = jax.random.split(key, 3)
    x = jax.random.normal(k_x, (n, inplanes, h, w), dtype=jnp.float32)

    params = {
        "conv1_w": jax.random.normal(k_w1, (planes, inplanes, 3, 3), jnp.float32) * 0.1,
        "bn1_gamma": jnp.ones((planes,), jnp.float32),
        "bn1_beta": jnp.zeros((planes,), jnp.float32),
        "conv2_w": jax.random.normal(k_w2, (planes, planes, 3, 3), jnp.float32) * 0.1,
        "bn2_gamma": jnp.ones((planes,), jnp.float32),
        "bn2_beta": jnp.zeros((planes,), jnp.float32),
    }

    out = jax.block_until_ready(basic_block_forward(x, params, stride=stride))
    ref = jax.block_until_ready(_reference(x, params, stride))

    assert out.shape == ref.shape, (out.shape, ref.shape)
    # bf16 MXU operands + bf16 intermediates => slightly looser tolerance than
    # the all-f32 pipeline; the math is otherwise identical to the reference.
    err = float(jnp.max(jnp.abs(out - ref)))
    assert jnp.allclose(out, ref, atol=3e-2, rtol=3e-2), err

    print("KERNEL_OK")
</pallas_src>

<mosaic_0001>
module attributes {stable_mosaic.version = 11 : i64} {
  func.func @_conv3x3_bn_kernel(%arg0: i32, %arg1: memref<1x16x16x128xbf16, #tpu.memory_space<vmem>>, %arg2: memref<1152x128xbf16, #tpu.memory_space<vmem>>, %arg3: memref<256x128xbf16, #tpu.memory_space<vmem>>, %arg4: memref<1x8x128xf32, #tpu.memory_space<vmem>>, %arg5: memref<1x8x128xf32, #tpu.memory_space<vmem>>, %arg6: memref<1x18x32x128xbf16, #tpu.memory_space<vmem>>) attributes {dimension_semantics = [#tpu.dimension_semantics<parallel>], iteration_bounds = array<i64: 2>, scalar_prefetch = 0 : i64, scratch_operands = 1 : i64, tpu.core_type = #tpu.core_type<tc>, window_params = [{transform_indices = @transform_0, window_bounds = array<i64: 1, 16, 16, 128>}, {pipeline_mode = #tpu.pipeline_mode<synchronous>, transform_indices = @transform_1, window_bounds = array<i64: 1152, 128>}, {transform_indices = @transform_2, window_bounds = array<i64: 256, 128>}, {transform_indices = @transform_3, window_bounds = array<i64: 1, 8, 128>}, {transform_indices = @transform_4, window_bounds = array<i64: 1, 8, 128>}]} {
    %cst = arith.constant 0.000000e+00 : bf16
    %0 = vector.broadcast %cst : bf16 to vector<1x1x32x128xbf16>
    %c0 = arith.constant 0 : index
    %c0_0 = arith.constant 0 : index
    %c0_1 = arith.constant 0 : index
    %c0_2 = arith.constant 0 : index
    %1 = vector.load %arg6[%c0, %c0_0, %c0_1, %c0_2] : memref<1x18x32x128xbf16, #tpu.memory_space<vmem>>, vector<1x1x32x128xbf16>
    tpu.vector_store %arg6[%c0, %c0_0, %c0_1, %c0_2], %0 {strides = array<i32>} : memref<1x18x32x128xbf16, #tpu.memory_space<vmem>>, vector<1x1x32x128xbf16>,
    %c0_3 = arith.constant 0 : index
    %c17 = arith.constant 17 : index
    %c0_4 = arith.constant 0 : index
    %c0_5 = arith.constant 0 : index
    %2 = vector.load %arg6[%c0_3, %c17, %c0_4, %c0_5] : memref<1x18x32x128xbf16, #tpu.memory_space<vmem>>, vector<1x1x32x128xbf16>
    tpu.vector_store %arg6[%c0_3, %c17, %c0_4, %c0_5], %0 {strides = array<i32>} : memref<1x18x32x128xbf16, #tpu.memory_space<vmem>>, vector<1x1x32x128xbf16>,
    %cst_6 = arith.constant 0.000000e+00 : bf16
    %3 = vector.broadcast %cst_6 : bf16 to vector<1x18x1x128xbf16>
    %c0_7 = arith.constant 0 : index
    %c0_8 = arith.constant 0 : index
    %c0_9 = arith.constant 0 : index
    %c0_10 = arith.constant 0 : index
    %4 = vector.load %arg6[%c0_7, %c0_8, %c0_9, %c0_10] : memref<1x18x32x128xbf16, #tpu.memory_space<vmem>>, vector<1x18x1x128xbf16>
    tpu.vector_store %arg6[%c0_7, %c0_8, %c0_9, %c0_10], %3 {strides = array<i32>} : memref<1x18x32x128xbf16, #tpu.memory_space<vmem>>, vector<1x18x1x128xbf16>,
    %c0_11 = arith.constant 0 : index
    %c0_12 = arith.constant 0 : index
    %c17_13 = arith.constant 17 : index
    %c0_14 = arith.constant 0 : index
    %5 = vector.load %arg6[%c0_11, %c0_12, %c17_13, %c0_14] : memref<1x18x32x128xbf16, #tpu.memory_space<vmem>>, vector<1x18x1x128xbf16>
    tpu.vector_store %arg6[%c0_11, %c0_12, %c17_13, %c0_14], %3 {strides = array<i32>} : memref<1x18x32x128xbf16, #tpu.memory_space<vmem>>, vector<1x18x1x128xbf16>,
    %c0_15 = arith.constant 0 : index
    %c0_16 = arith.constant 0 : index
    %c0_17 = arith.constant 0 : index
    %c0_18 = arith.constant 0 : index
    %6 = vector.load %arg1[%c0_15, %c0_16, %c0_17, %c0_18] : memref<1x16x16x128xbf16, #tpu.memory_space<vmem>>, vector<1x16x16x128xbf16>
    %c0_19 = arith.constant 0 : index
    %c1 = arith.constant 1 : index
    %c1_20 = arith.constant 1 : index
    %c0_21 = arith.constant 0 : index
    %7 = vector.load %arg6[%c0_19, %c1, %c1_20, %c0_21] : memref<1x18x32x128xbf16, #tpu.memory_space<vmem>>, vector<1x16x16x128xbf16>
    tpu.vector_store %arg6[%c0_19, %c1, %c1_20, %c0_21], %6 {strides = array<i32>} : memref<1x18x32x128xbf16, #tpu.memory_space<vmem>>, vector<1x16x16x128xbf16>,
    %c0_22 = arith.constant 0 : index
    %c0_23 = arith.constant 0 : index
    %c0_24 = arith.constant 0 : index
    %c0_25 = arith.constant 0 : index
    %8 = vector.load %arg6[%c0_22, %c0_23, %c0_24, %c0_25] : memref<1x18x32x128xbf16, #tpu.memory_space<vmem>>, vector<1x16x16x128xbf16>
    %9 = vector.shape_cast %8 : vector<1x16x16x128xbf16> to vector<256x128xbf16>
    %c0_26 = arith.constant 0 : index
    %c0_27 = arith.constant 0 : index
    %10 = vector.load %arg2[%c0_26, %c0_27] : memref<1152x128xbf16, #tpu.memory_space<vmem>>, vector<128x128xbf16>
    %cst_28 = arith.constant dense<0.000000e+00> : vector<256x128xf32>
    %11 = tpu.matmul %9, %10, %cst_28 {dimension_numbers = #tpu.dot_dimension_numbers<[1], [0], [0], [1], [0, 0, 1, 1], [], []>} : vector<256x128xbf16>, vector<128x128xbf16>, vector<256x128xf32> -> vector<256x128xf32>
    %c0_29 = arith.constant 0 : index
    %c0_30 = arith.constant 0 : index
    %c1_31 = arith.constant 1 : index
    %c0_32 = arith.constant 0 : index
    %12 = vector.load %arg6[%c0_29, %c0_30, %c1_31, %c0_32] : memref<1x18x32x128xbf16, #tpu.memory_space<vmem>>, vector<1x16x16x128xbf16>
    %13 = vector.shape_cast %12 : vector<1x16x16x128xbf16> to vector<256x128xbf16>
    %c128 = arith.constant 128 : index
    %c0_33 = arith.constant 0 : index
    %14 = vector.load %arg2[%c128, %c0_33] : memref<1152x128xbf16, #tpu.memory_space<vmem>>, vector<128x128xbf16>
    %cst_34 = arith.constant dense<0.000000e+00> : vector<256x128xf32>
    %15 = tpu.matmul %13, %14, %cst_34 {dimension_numbers = #tpu.dot_dimension_numbers<[1], [0], [0], [1], [0, 0, 1, 1], [], []>} : vector<256x128xbf16>, vector<128x128xbf16>, vector<256x128xf32> -> vector<256x128xf32>
    %16 = arith.addf %11, %15 : vector<256x128xf32>
    %c0_35 = arith.constant 0 : index
    %c0_36 = arith.constant 0 : index
    %c2 = arith.constant 2 : index
    %c0_37 = arith.constant 0 : index
    %17 = vector.load %arg6[%c0_35, %c0_36, %c2, %c0_37] : memref<1x18x32x128xbf16, #tpu.memory_space<vmem>>, vector<1x16x16x128xbf16>
    %18 = vector.shape_cast %17 : vector<1x16x16x128xbf16> to vector<256x128xbf16>
    %c256 = arith.constant 256 : index
    %c0_38 = arith.constant 0 : index
    %19 = vector.load %arg2[%c256, %c0_38] : memref<1152x128xbf16, #tpu.memory_space<vmem>>, vector<128x128xbf16>
    %cst_39 = arith.constant dense<0.000000e+00> : vector<256x128xf32>
    %20 = tpu.matmul %18, %19, %cst_39 {dimension_numbers = #tpu.dot_dimension_numbers<[1], [0], [0], [1], [0, 0, 1, 1], [], []>} : vector<256x128xbf16>, vector<128x128xbf16>, vector<256x128xf32> -> vector<256x128xf32>
    %21 = arith.addf %16, %20 : vector<256x128xf32>
    %c0_40 = arith.constant 0 : index
    %c1_41 = arith.constant 1 : index
    %c0_42 = arith.constant 0 : index
    %c0_43 = arith.constant 0 : index
    %22 = vector.load %arg6[%c0_40, %c1_41, %c0_42, %c0_43] : memref<1x18x32x128xbf16, #tpu.memory_space<vmem>>, vector<1x16x16x128xbf16>
    %23 = vector.shape_cast %22 : vector<1x16x16x128xbf16> to vector<256x128xbf16>
    %c384 = arith.constant 384 : index
    %c0_44 = arith.constant 0 : index
    %24 = vector.load %arg2[%c384, %c0_44] : memref<1152x128xbf16, #tpu.memory_space<vmem>>, vector<128x128xbf16>
    %cst_45 = arith.constant dense<0.000000e+00> : vector<256x128xf32>
    %25 = tpu.matmul %23, %24, %cst_45 {dimension_numbers = #tpu.dot_dimension_numbers<[1], [0], [0], [1], [0, 0, 1, 1], [], []>} : vector<256x128xbf16>, vector<128x128xbf16>, vector<256x128xf32> -> vector<256x128xf32>
    %26 = arith.addf %21, %25 : vector<256x128xf32>
    %c0_46 = arith.constant 0 : index
    %c1_47 = arith.constant 1 : index
    %c1_48 = arith.constant 1 : index
    %c0_49 = arith.constant 0 : index
    %27 = vector.load %arg6[%c0_46, %c1_47, %c1_48, %c0_49] : memref<1x18x32x128xbf16, #tpu.memory_space<vmem>>, vector<1x16x16x128xbf16>
    %28 = vector.shape_cast %27 : vector<1x16x16x128xbf16> to vector<256x128xbf16>
    %c512 = arith.constant 512 : index
    %c0_50 = arith.constant 0 : index
    %29 = vector.load %arg2[%c512, %c0_50] : memref<1152x128xbf16, #tpu.memory_space<vmem>>, vector<128x128xbf16>
    %cst_51 = arith.constant dense<0.000000e+00> : vector<256x128xf32>
    %30 = tpu.matmul %28, %29, %cst_51 {dimension_numbers = #tpu.dot_dimension_numbers<[1], [0], [0], [1], [0, 0, 1, 1], [], []>} : vector<256x128xbf16>, vector<128x128xbf16>, vector<256x128xf32> -> vector<256x128xf32>
    %31 = arith.addf %26, %30 : vector<256x128xf32>
    %c0_52 = arith.constant 0 : index
    %c1_53 = arith.constant 1 : index
    %c2_54 = arith.constant 2 : index
    %c0_55 = arith.constant 0 : index
    %32 = vector.load %arg6[%c0_52, %c1_53, %c2_54, %c0_55] : memref<1x18x32x128xbf16, #tpu.memory_space<vmem>>, vector<1x16x16x128xbf16>
    %33 = vector.shape_cast %32 : vector<1x16x16x128xbf16> to vector<256x128xbf16>
    %c640 = arith.constant 640 : index
    %c0_56 = arith.constant 0 : index
    %34 = vector.load %arg2[%c640, %c0_56] : memref<1152x128xbf16, #tpu.memory_space<vmem>>, vector<128x128xbf16>
    %cst_57 = arith.constant dense<0.000000e+00> : vector<256x128xf32>
    %35 = tpu.matmul %33, %34, %cst_57 {dimension_numbers = #tpu.dot_dimension_numbers<[1], [0], [0], [1], [0, 0, 1, 1], [], []>} : vector<256x128xbf16>, vector<128x128xbf16>, vector<256x128xf32> -> vector<256x128xf32>
    %36 = arith.addf %31, %35 : vector<256x128xf32>
    %c0_58 = arith.constant 0 : index
    %c2_59 = arith.constant 2 : index
    %c0_60 = arith.constant 0 : index
    %c0_61 = arith.constant 0 : index
    %37 = vector.load %arg6[%c0_58, %c2_59, %c0_60, %c0_61] : memref<1x18x32x128xbf16, #tpu.memory_space<vmem>>, vector<1x16x16x128xbf16>
    %38 = vector.shape_cast %37 : vector<1x16x16x128xbf16> to vector<256x128xbf16>
    %c768 = arith.constant 768 : index
    %c0_62 = arith.constant 0 : index
    %39 = vector.load %arg2[%c768, %c0_62] : memref<1152x128xbf16, #tpu.memory_space<vmem>>, vector<128x128xbf16>
    %cst_63 = arith.constant dense<0.000000e+00> : vector<256x128xf32>
    %40 = tpu.matmul %38, %39, %cst_63 {dimension_numbers = #tpu.dot_dimension_numbers<[1], [0], [0], [1], [0, 0, 1, 1], [], []>} : vector<256x128xbf16>, vector<128x128xbf16>, vector<256x128xf32> -> vector<256x128xf32>
    %41 = arith.addf %36, %40 : vector<256x128xf32>
    %c0_64 = arith.constant 0 : index
    %c2_65 = arith.constant 2 : index
    %c1_66 = arith.constant 1 : index
    %c0_67 = arith.constant 0 : index
    %42 = vector.load %arg6[%c0_64, %c2_65, %c1_66, %c0_67] : memref<1x18x32x128xbf16, #tpu.memory_space<vmem>>, vector<1x16x16x128xbf16>
    %43 = vector.shape_cast %42 : vector<1x16x16x128xbf16> to vector<256x128xbf16>
    %c896 = arith.constant 896 : index
    %c0_68 = arith.constant 0 : index
    %44 = vector.load %arg2[%c896, %c0_68] : memref<1152x128xbf16, #tpu.memory_space<vmem>>, vector<128x128xbf16>
    %cst_69 = arith.constant dense<0.000000e+00> : vector<256x128xf32>
    %45 = tpu.matmul %43, %44, %cst_69 {dimension_numbers = #tpu.dot_dimension_numbers<[1], [0], [0], [1], [0, 0, 1, 1], [], []>} : vector<256x128xbf16>, vector<128x128xbf16>, vector<256x128xf32> -> vector<256x128xf32>
    %46 = arith.addf %41, %45 : vector<256x128xf32>
    %c0_70 = arith.constant 0 : index
    %c2_71 = arith.constant 2 : index
    %c2_72 = arith.constant 2 : index
    %c0_73 = arith.constant 0 : index
    %47 = vector.load %arg6[%c0_70, %c2_71, %c2_72, %c0_73] : memref<1x18x32x128xbf16, #tpu.memory_space<vmem>>, vector<1x16x16x128xbf16>
    %48 = vector.shape_cast %47 : vector<1x16x16x128xbf16> to vector<256x128xbf16>
    %c1024 = arith.constant 1024 : index
    %c0_74 = arith.constant 0 : index
    %49 = vector.load %arg2[%c1024, %c0_74] : memref<1152x128xbf16, #tpu.memory_space<vmem>>, vector<128x128xbf16>
    %cst_75 = arith.constant dense<0.000000e+00> : vector<256x128xf32>
    %50 = tpu.matmul %48, %49, %cst_75 {dimension_numbers = #tpu.dot_dimension_numbers<[1], [0], [0], [1], [0, 0, 1, 1], [], []>} : vector<256x128xbf16>, vector<128x128xbf16>, vector<256x128xf32> -> vector<256x128xf32>
    %51 = arith.addf %46, %50 : vector<256x128xf32>
    %52 = vector.shape_cast %51 : vector<256x128xf32> to vector<32x8x128xf32>
    %cst_76 = arith.constant dense<0.000000e+00> : vector<8x128xf32>
    %53 = vector.multi_reduction <add>, %52, %cst_76 [0] : vector<32x8x128xf32> to vector<8x128xf32>
    %c0_77 = arith.constant 0 : index
    %c0_78 = arith.constant 0 : index
    %c0_79 = arith.constant 0 : index
    %54 = vector.load %arg4[%c0_77, %c0_78, %c0_79] : memref<1x8x128xf32, #tpu.memory_space<vmem>>, vector<1x8x128xf32>
    %55 = vector.shape_cast %54 : vector<1x8x128xf32> to vector<8x128xf32>
    %56 = vector.shape_cast %53 : vector<8x128xf32> to vector<1x8x128xf32>
    tpu.vector_store %arg4[%c0_77, %c0_78, %c0_79], %56 {strides = array<i32>} : memref<1x8x128xf32, #tpu.memory_space<vmem>>, vector<1x8x128xf32>,
    %57 = arith.mulf %51, %51 : vector<256x128xf32>
    %58 = vector.shape_cast %57 : vector<256x128xf32> to vector<32x8x128xf32>
    %cst_80 = arith.constant dense<0.000000e+00> : vector<8x128xf32>
    %59 = vector.multi_reduction <add>, %58, %cst_80 [0] : vector<32x8x128xf32> to vector<8x128xf32>
    %c0_81 = arith.constant 0 : index
    %c0_82 = arith.constant 0 : index
    %c0_83 = arith.constant 0 : index
    %60 = vector.load %arg5[%c0_81, %c0_82, %c0_83] : memref<1x8x128xf32, #tpu.memory_space<vmem>>, vector<1x8x128xf32>
    %61 = vector.shape_cast %60 : vector<1x8x128xf32> to vector<8x128xf32>
    %62 = vector.shape_cast %59 : vector<8x128xf32> to vector<1x8x128xf32>
    tpu.vector_store %arg5[%c0_81, %c0_82, %c0_83], %62 {strides = array<i32>} : memref<1x8x128xf32, #tpu.memory_space<vmem>>, vector<1x8x128xf32>,
    %63 = arith.truncf %51 : vector<256x128xf32> to vector<256x128xbf16>
    %c0_84 = arith.constant 0 : index
    %c0_85 = arith.constant 0 : index
    %64 = vector.load %arg3[%c0_84, %c0_85] : memref<256x128xbf16, #tpu.memory_space<vmem>>, vector<256x128xbf16>
    tpu.vector_store %arg3[%c0_84, %c0_85], %63 {strides = array<i32>} : memref<256x128xbf16, #tpu.memory_space<vmem>>, vector<256x128xbf16>,
    return
  }
  func.func @transform_0(%arg0: i32) -> (i32, i32, i32, i32) {
    %c0_i32 = arith.constant 0 : i32
    %c0_i32_0 = arith.constant 0 : i32
    %c0_i32_1 = arith.constant 0 : i32
    %c0_i32_2 = arith.constant 0 : i32
    return %arg0, %c0_i32, %c0_i32_0, %c0_i32_1 : i32, i32, i32, i32
  }
  func.func @transform_1(%arg0: i32) -> (i32, i32) {
    %c0_i32 = arith.constant 0 : i32
    %c0_i32_0 = arith.constant 0 : i32
    %c0_i32_1 = arith.constant 0 : i32
    return %c0_i32, %c0_i32_0 : i32, i32
  }
  func.func @transform_2(%arg0: i32) -> (i32, i32) {
    %c0_i32 = arith.constant 0 : i32
    %c0_i32_0 = arith.constant 0 : i32
    return %arg0, %c0_i32 : i32, i32
  }
  func.func @transform_3(%arg0: i32) -> (i32, i32, i32) {
    %c0_i32 = arith.constant 0 : i32
    %c0_i32_0 = arith.constant 0 : i32
    %c0_i32_1 = arith.constant 0 : i32
    return %arg0, %c0_i32, %c0_i32_0 : i32, i32, i32
  }
  func.func @transform_4(%arg0: i32) -> (i32, i32, i32) {
    %c0_i32 = arith.constant 0 : i32
    %c0_i32_0 = arith.constant 0 : i32
    %c0_i32_1 = arith.constant 0 : i32
    return %arg0, %c0_i32, %c0_i32_0 : i32, i32, i32
  }
}

module attributes {stable_mosaic.version = 11 : i64} {
  func.func @_conv3x3_bn_kernel(%arg0: i32, %arg1: memref<1x16x16x128xbf16, #tpu.memory_space<vmem>>, %arg2: memref<1152x128xbf16, #tpu.memory_space<vmem>>, %arg3: memref<1x128xf32, #tpu.memory_space<vmem>>, %arg4: memref<1x128xf32, #tpu.memory_space<vmem>>, %arg5: memref<256x128xbf16, #tpu.memory_space<vmem>>, %arg6: memref<1x8x128xf32, #tpu.memory_space<vmem>>, %arg7: memref<1x8x128xf32, #tpu.memory_space<vmem>>, %arg8: memref<1x18x32x128xbf16, #tpu.memory_space<vmem>>) attributes {dimension_semantics = [#tpu.dimension_semantics<parallel>], iteration_bounds = array<i64: 2>, scalar_prefetch = 0 : i64, scratch_operands = 1 : i64, tpu.core_type = #tpu.core_type<tc>, window_params = [{transform_indices = @transform_0, window_bounds = array<i64: 1, 16, 16, 128>}, {pipeline_mode = #tpu.pipeline_mode<synchronous>, transform_indices = @transform_1, window_bounds = array<i64: 1152, 128>}, {pipeline_mode = #tpu.pipeline_mode<synchronous>, transform_indices = @transform_2, window_bounds = array<i64: 1, 128>}, {pipeline_mode = #tpu.pipeline_mode<synchronous>, transform_indices = @transform_3, window_bounds = array<i64: 1, 128>}, {transform_indices = @transform_4, window_bounds = array<i64: 256, 128>}, {transform_indices = @transform_5, window_bounds = array<i64: 1, 8, 128>}, {transform_indices = @transform_6, window_bounds = array<i64: 1, 8, 128>}]} {
    %cst = arith.constant 0.000000e+00 : bf16
    %0 = vector.broadcast %cst : bf16 to vector<1x1x32x128xbf16>
    %c0 = arith.constant 0 : index
    %c0_0 = arith.constant 0 : index
    %c0_1 = arith.constant 0 : index
    %c0_2 = arith.constant 0 : index
    %1 = vector.load %arg8[%c0, %c0_0, %c0_1, %c0_2] : memref<1x18x32x128xbf16, #tpu.memory_space<vmem>>, vector<1x1x32x128xbf16>
    tpu.vector_store %arg8[%c0, %c0_0, %c0_1, %c0_2], %0 {strides = array<i32>} : memref<1x18x32x128xbf16, #tpu.memory_space<vmem>>, vector<1x1x32x128xbf16>,
    %c0_3 = arith.constant 0 : index
    %c17 = arith.constant 17 : index
    %c0_4 = arith.constant 0 : index
    %c0_5 = arith.constant 0 : index
    %2 = vector.load %arg8[%c0_3, %c17, %c0_4, %c0_5] : memref<1x18x32x128xbf16, #tpu.memory_space<vmem>>, vector<1x1x32x128xbf16>
    tpu.vector_store %arg8[%c0_3, %c17, %c0_4, %c0_5], %0 {strides = array<i32>} : memref<1x18x32x128xbf16, #tpu.memory_space<vmem>>, vector<1x1x32x128xbf16>,
    %cst_6 = arith.constant 0.000000e+00 : bf16
    %3 = vector.broadcast %cst_6 : bf16 to vector<1x18x1x128xbf16>
    %c0_7 = arith.constant 0 : index
    %c0_8 = arith.constant 0 : index
    %c0_9 = arith.constant 0 : index
    %c0_10 = arith.constant 0 : index
    %4 = vector.load %arg8[%c0_7, %c0_8, %c0_9, %c0_10] : memref<1x18x32x128xbf16, #tpu.memory_space<vmem>>, vector<1x18x1x128xbf16>
    tpu.vector_store %arg8[%c0_7, %c0_8, %c0_9, %c0_10], %3 {strides = array<i32>} : memref<1x18x32x128xbf16, #tpu.memory_space<vmem>>, vector<1x18x1x128xbf16>,
    %c0_11 = arith.constant 0 : index
    %c0_12 = arith.constant 0 : index
    %c17_13 = arith.constant 17 : index
    %c0_14 = arith.constant 0 : index
    %5 = vector.load %arg8[%c0_11, %c0_12, %c17_13, %c0_14] : memref<1x18x32x128xbf16, #tpu.memory_space<vmem>>, vector<1x18x1x128xbf16>
    tpu.vector_store %arg8[%c0_11, %c0_12, %c17_13, %c0_14], %3 {strides = array<i32>} : memref<1x18x32x128xbf16, #tpu.memory_space<vmem>>, vector<1x18x1x128xbf16>,
    %c0_15 = arith.constant 0 : index
    %c0_16 = arith.constant 0 : index
    %c0_17 = arith.constant 0 : index
    %c0_18 = arith.constant 0 : index
    %6 = vector.load %arg1[%c0_15, %c0_16, %c0_17, %c0_18] : memref<1x16x16x128xbf16, #tpu.memory_space<vmem>>, vector<1x16x16x128xbf16>
    %7 = arith.extf %6 : vector<1x16x16x128xbf16> to vector<1x16x16x128xf32>
    %c0_19 = arith.constant 0 : index
    %c0_20 = arith.constant 0 : index
    %8 = vector.load %arg3[%c0_19, %c0_20] : memref<1x128xf32, #tpu.memory_space<vmem>>, vector<1x128xf32>
    %9 = vector.shape_cast %8 : vector<1x128xf32> to vector<128xf32>
    %10 = vector.shape_cast %9 : vector<128xf32> to vector<1x1x1x128xf32>
    %11 = vector.broadcast %10 : vector<1x1x1x128xf32> to vector<1x16x16x128xf32>
    %12 = arith.mulf %7, %11 : vector<1x16x16x128xf32>
    %c0_21 = arith.constant 0 : index
    %c0_22 = arith.constant 0 : index
    %13 = vector.load %arg4[%c0_21, %c0_22] : memref<1x128xf32, #tpu.memory_space<vmem>>, vector<1x128xf32>
    %14 = vector.shape_cast %13 : vector<1x128xf32> to vector<128xf32>
    %15 = vector.shape_cast %14 : vector<128xf32> to vector<1x1x1x128xf32>
    %16 = vector.broadcast %15 : vector<1x1x1x128xf32> to vector<1x16x16x128xf32>
    %17 = arith.addf %12, %16 : vector<1x16x16x128xf32>
    %cst_23 = arith.constant 0.000000e+00 : f32
    %18 = vector.broadcast %cst_23 : f32 to vector<1x16x16x128xf32>
    %19 = arith.maximumf %17, %18 : vector<1x16x16x128xf32>
    %20 = arith.truncf %19 : vector<1x16x16x128xf32> to vector<1x16x16x128xbf16>
    %c0_24 = arith.constant 0 : index
    %c1 = arith.constant 1 : index
    %c1_25 = arith.constant 1 : index
    %c0_26 = arith.constant 0 : index
    %21 = vector.load %arg8[%c0_24, %c1, %c1_25, %c0_26] : memref<1x18x32x128xbf16, #tpu.memory_space<vmem>>, vector<1x16x16x128xbf16>
    tpu.vector_store %arg8[%c0_24, %c1, %c1_25, %c0_26], %20 {strides = array<i32>} : memref<1x18x32x128xbf16, #tpu.memory_space<vmem>>, vector<1x16x16x128xbf16>,
    %c0_27 = arith.constant 0 : index
    %c0_28 = arith.constant 0 : index
    %c0_29 = arith.constant 0 : index
    %c0_30 = arith.constant 0 : index
    %22 = vector.load %arg8[%c0_27, %c0_28, %c0_29, %c0_30] : memref<1x18x32x128xbf16, #tpu.memory_space<vmem>>, vector<1x16x16x128xbf16>
    %23 = vector.shape_cast %22 : vector<1x16x16x128xbf16> to vector<256x128xbf16>
    %c0_31 = arith.constant 0 : index
    %c0_32 = arith.constant 0 : index
    %24 = vector.load %arg2[%c0_31, %c0_32] : memref<1152x128xbf16, #tpu.memory_space<vmem>>, vector<128x128xbf16>
    %cst_33 = arith.constant dense<0.000000e+00> : vector<256x128xf32>
    %25 = tpu.matmul %23, %24, %cst_33 {dimension_numbers = #tpu.dot_dimension_numbers<[1], [0], [0], [1], [0, 0, 1, 1], [], []>} : vector<256x128xbf16>, vector<128x128xbf16>, vector<256x128xf32> -> vector<256x128xf32>
    %c0_34 = arith.constant 0 : index
    %c0_35 = arith.constant 0 : index
    %c1_36 = arith.constant 1 : index
    %c0_37 = arith.constant 0 : index
    %26 = vector.load %arg8[%c0_34, %c0_35, %c1_36, %c0_37] : memref<1x18x32x128xbf16, #tpu.memory_space<vmem>>, vector<1x16x16x128xbf16>
    %27 = vector.shape_cast %26 : vector<1x16x16x128xbf16> to vector<256x128xbf16>
    %c128 = arith.constant 128 : index
    %c0_38 = arith.constant 0 : index
    %28 = vector.load %arg2[%c128, %c0_38] : memref<1152x128xbf16, #tpu.memory_space<vmem>>, vector<128x128xbf16>
    %cst_39 = arith.constant dense<0.000000e+00> : vector<256x128xf32>
    %29 = tpu.matmul %27, %28, %cst_39 {dimension_numbers = #tpu.dot_dimension_numbers<[1], [0], [0], [1], [0, 0, 1, 1], [], []>} : vector<256x128xbf16>, vector<128x128xbf16>, vector<256x128xf32> -> vector<256x128xf32>
    %30 = arith.addf %25, %29 : vector<256x128xf32>
    %c0_40 = arith.constant 0 : index
    %c0_41 = arith.constant 0 : index
    %c2 = arith.constant 2 : index
    %c0_42 = arith.constant 0 : index
    %31 = vector.load %arg8[%c0_40, %c0_41, %c2, %c0_42] : memref<1x18x32x128xbf16, #tpu.memory_space<vmem>>, vector<1x16x16x128xbf16>
    %32 = vector.shape_cast %31 : vector<1x16x16x128xbf16> to vector<256x128xbf16>
    %c256 = arith.constant 256 : index
    %c0_43 = arith.constant 0 : index
    %33 = vector.load %arg2[%c256, %c0_43] : memref<1152x128xbf16, #tpu.memory_space<vmem>>, vector<128x128xbf16>
    %cst_44 = arith.constant dense<0.000000e+00> : vector<256x128xf32>
    %34 = tpu.matmul %32, %33, %cst_44 {dimension_numbers = #tpu.dot_dimension_numbers<[1], [0], [0], [1], [0, 0, 1, 1], [], []>} : vector<256x128xbf16>, vector<128x128xbf16>, vector<256x128xf32> -> vector<256x128xf32>
    %35 = arith.addf %30, %34 : vector<256x128xf32>
    %c0_45 = arith.constant 0 : index
    %c1_46 = arith.constant 1 : index
    %c0_47 = arith.constant 0 : index
    %c0_48 = arith.constant 0 : index
    %36 = vector.load %arg8[%c0_45, %c1_46, %c0_47, %c0_48] : memref<1x18x32x128xbf16, #tpu.memory_space<vmem>>, vector<1x16x16x128xbf16>
    %37 = vector.shape_cast %36 : vector<1x16x16x128xbf16> to vector<256x128xbf16>
    %c384 = arith.constant 384 : index
    %c0_49 = arith.constant 0 : index
    %38 = vector.load %arg2[%c384, %c0_49] : memref<1152x128xbf16, #tpu.memory_space<vmem>>, vector<128x128xbf16>
    %cst_50 = arith.constant dense<0.000000e+00> : vector<256x128xf32>
    %39 = tpu.matmul %37, %38, %cst_50 {dimension_numbers = #tpu.dot_dimension_numbers<[1], [0], [0], [1], [0, 0, 1, 1], [], []>} : vector<256x128xbf16>, vector<128x128xbf16>, vector<256x128xf32> -> vector<256x128xf32>
    %40 = arith.addf %35, %39 : vector<256x128xf32>
    %c0_51 = arith.constant 0 : index
    %c1_52 = arith.constant 1 : index
    %c1_53 = arith.constant 1 : index
    %c0_54 = arith.constant 0 : index
    %41 = vector.load %arg8[%c0_51, %c1_52, %c1_53, %c0_54] : memref<1x18x32x128xbf16, #tpu.memory_space<vmem>>, vector<1x16x16x128xbf16>
    %42 = vector.shape_cast %41 : vector<1x16x16x128xbf16> to vector<256x128xbf16>
    %c512 = arith.constant 512 : index
    %c0_55 = arith.constant 0 : index
    %43 = vector.load %arg2[%c512, %c0_55] : memref<1152x128xbf16, #tpu.memory_space<vmem>>, vector<128x128xbf16>
    %cst_56 = arith.constant dense<0.000000e+00> : vector<256x128xf32>
    %44 = tpu.matmul %42, %43, %cst_56 {dimension_numbers = #tpu.dot_dimension_numbers<[1], [0], [0], [1], [0, 0, 1, 1], [], []>} : vector<256x128xbf16>, vector<128x128xbf16>, vector<256x128xf32> -> vector<256x128xf32>
    %45 = arith.addf %40, %44 : vector<256x128xf32>
    %c0_57 = arith.constant 0 : index
    %c1_58 = arith.constant 1 : index
    %c2_59 = arith.constant 2 : index
    %c0_60 = arith.constant 0 : index
    %46 = vector.load %arg8[%c0_57, %c1_58, %c2_59, %c0_60] : memref<1x18x32x128xbf16, #tpu.memory_space<vmem>>, vector<1x16x16x128xbf16>
    %47 = vector.shape_cast %46 : vector<1x16x16x128xbf16> to vector<256x128xbf16>
    %c640 = arith.constant 640 : index
    %c0_61 = arith.constant 0 : index
    %48 = vector.load %arg2[%c640, %c0_61] : memref<1152x128xbf16, #tpu.memory_space<vmem>>, vector<128x128xbf16>
    %cst_62 = arith.constant dense<0.000000e+00> : vector<256x128xf32>
    %49 = tpu.matmul %47, %48, %cst_62 {dimension_numbers = #tpu.dot_dimension_numbers<[1], [0], [0], [1], [0, 0, 1, 1], [], []>} : vector<256x128xbf16>, vector<128x128xbf16>, vector<256x128xf32> -> vector<256x128xf32>
    %50 = arith.addf %45, %49 : vector<256x128xf32>
    %c0_63 = arith.constant 0 : index
    %c2_64 = arith.constant 2 : index
    %c0_65 = arith.constant 0 : index
    %c0_66 = arith.constant 0 : index
    %51 = vector.load %arg8[%c0_63, %c2_64, %c0_65, %c0_66] : memref<1x18x32x128xbf16, #tpu.memory_space<vmem>>, vector<1x16x16x128xbf16>
    %52 = vector.shape_cast %51 : vector<1x16x16x128xbf16> to vector<256x128xbf16>
    %c768 = arith.constant 768 : index
    %c0_67 = arith.constant 0 : index
    %53 = vector.load %arg2[%c768, %c0_67] : memref<1152x128xbf16, #tpu.memory_space<vmem>>, vector<128x128xbf16>
    %cst_68 = arith.constant dense<0.000000e+00> : vector<256x128xf32>
    %54 = tpu.matmul %52, %53, %cst_68 {dimension_numbers = #tpu.dot_dimension_numbers<[1], [0], [0], [1], [0, 0, 1, 1], [], []>} : vector<256x128xbf16>, vector<128x128xbf16>, vector<256x128xf32> -> vector<256x128xf32>
    %55 = arith.addf %50, %54 : vector<256x128xf32>
    %c0_69 = arith.constant 0 : index
    %c2_70 = arith.constant 2 : index
    %c1_71 = arith.constant 1 : index
    %c0_72 = arith.constant 0 : index
    %56 = vector.load %arg8[%c0_69, %c2_70, %c1_71, %c0_72] : memref<1x18x32x128xbf16, #tpu.memory_space<vmem>>, vector<1x16x16x128xbf16>
    %57 = vector.shape_cast %56 : vector<1x16x16x128xbf16> to vector<256x128xbf16>
    %c896 = arith.constant 896 : index
    %c0_73 = arith.constant 0 : index
    %58 = vector.load %arg2[%c896, %c0_73] : memref<1152x128xbf16, #tpu.memory_space<vmem>>, vector<128x128xbf16>
    %cst_74 = arith.constant dense<0.000000e+00> : vector<256x128xf32>
    %59 = tpu.matmul %57, %58, %cst_74 {dimension_numbers = #tpu.dot_dimension_numbers<[1], [0], [0], [1], [0, 0, 1, 1], [], []>} : vector<256x128xbf16>, vector<128x128xbf16>, vector<256x128xf32> -> vector<256x128xf32>
    %60 = arith.addf %55, %59 : vector<256x128xf32>
    %c0_75 = arith.constant 0 : index
    %c2_76 = arith.constant 2 : index
    %c2_77 = arith.constant 2 : index
    %c0_78 = arith.constant 0 : index
    %61 = vector.load %arg8[%c0_75, %c2_76, %c2_77, %c0_78] : memref<1x18x32x128xbf16, #tpu.memory_space<vmem>>, vector<1x16x16x128xbf16>
    %62 = vector.shape_cast %61 : vector<1x16x16x128xbf16> to vector<256x128xbf16>
    %c1024 = arith.constant 1024 : index
    %c0_79 = arith.constant 0 : index
    %63 = vector.load %arg2[%c1024, %c0_79] : memref<1152x128xbf16, #tpu.memory_space<vmem>>, vector<128x128xbf16>
    %cst_80 = arith.constant dense<0.000000e+00> : vector<256x128xf32>
    %64 = tpu.matmul %62, %63, %cst_80 {dimension_numbers = #tpu.dot_dimension_numbers<[1], [0], [0], [1], [0, 0, 1, 1], [], []>} : vector<256x128xbf16>, vector<128x128xbf16>, vector<256x128xf32> -> vector<256x128xf32>
    %65 = arith.addf %60, %64 : vector<256x128xf32>
    %66 = vector.shape_cast %65 : vector<256x128xf32> to vector<32x8x128xf32>
    %cst_81 = arith.constant dense<0.000000e+00> : vector<8x128xf32>
    %67 = vector.multi_reduction <add>, %66, %cst_81 [0] : vector<32x8x128xf32> to vector<8x128xf32>
    %c0_82 = arith.constant 0 : index
    %c0_83 = arith.constant 0 : index
    %c0_84 = arith.constant 0 : index
    %68 = vector.load %arg6[%c0_82, %c0_83, %c0_84] : memref<1x8x128xf32, #tpu.memory_space<vmem>>, vector<1x8x128xf32>
    %69 = vector.shape_cast %68 : vector<1x8x128xf32> to vector<8x128xf32>
    %70 = vector.shape_cast %67 : vector<8x128xf32> to vector<1x8x128xf32>
    tpu.vector_store %arg6[%c0_82, %c0_83, %c0_84], %70 {strides = array<i32>} : memref<1x8x128xf32, #tpu.memory_space<vmem>>, vector<1x8x128xf32>,
    %71 = arith.mulf %65, %65 : vector<256x128xf32>
    %72 = vector.shape_cast %71 : vector<256x128xf32> to vector<32x8x128xf32>
    %cst_85 = arith.constant dense<0.000000e+00> : vector<8x128xf32>
    %73 = vector.multi_reduction <add>, %72, %cst_85 [0] : vector<32x8x128xf32> to vector<8x128xf32>
    %c0_86 = arith.constant 0 : index
    %c0_87 = arith.constant 0 : index
    %c0_88 = arith.constant 0 : index
    %74 = vector.load %arg7[%c0_86, %c0_87, %c0_88] : memref<1x8x128xf32, #tpu.memory_space<vmem>>, vector<1x8x128xf32>
    %75 = vector.shape_cast %74 : vector<1x8x128xf32> to vector<8x128xf32>
    %76 = vector.shape_cast %73 : vector<8x128xf32> to vector<1x8x128xf32>
    tpu.vector_store %arg7[%c0_86, %c0_87, %c0_88], %76 {strides = array<i32>} : memref<1x8x128xf32, #tpu.memory_space<vmem>>, vector<1x8x128xf32>,
    %77 = arith.truncf %65 : vector<256x128xf32> to vector<256x128xbf16>
    %c0_89 = arith.constant 0 : index
    %c0_90 = arith.constant 0 : index
    %78 = vector.load %arg5[%c0_89, %c0_90] : memref<256x128xbf16, #tpu.memory_space<vmem>>, vector<256x128xbf16>
    tpu.vector_store %arg5[%c0_89, %c0_90], %77 {strides = array<i32>} : memref<256x128xbf16, #tpu.memory_space<vmem>>, vector<256x128xbf16>,
    return
  }
  func.func @transform_0(%arg0: i32) -> (i32, i32, i32, i32) {
    %c0_i32 = arith.constant 0 : i32
    %c0_i32_0 = arith.constant 0 : i32
    %c0_i32_1 = arith.constant 0 : i32
    %c0_i32_2 = arith.constant 0 : i32
    return %arg0, %c0_i32, %c0_i32_0, %c0_i32_1 : i32, i32, i32, i32
  }
  func.func @transform_1(%arg0: i32) -> (i32, i32) {
    %c0_i32 = arith.constant 0 : i32
    %c0_i32_0 = arith.constant 0 : i32
    %c0_i32_1 = arith.constant 0 : i32
    return %c0_i32, %c0_i32_0 : i32, i32
  }
  func.func @transform_2(%arg0: i32) -> (i32, i32) {
    %c0_i32 = arith.constant 0 : i32
    %c0_i32_0 = arith.constant 0 : i32
    %c0_i32_1 = arith.constant 0 : i32
    return %c0_i32, %c0_i32_0 : i32, i32
  }
  func.func @transform_3(%arg0: i32) -> (i32, i32) {
    %c0_i32 = arith.constant 0 : i32
    %c0_i32_0 = arith.constant 0 : i32
    %c0_i32_1 = arith.constant 0 : i32
    return %c0_i32, %c0_i32_0 : i32, i32
  }
  func.func @transform_4(%arg0: i32) -> (i32, i32) {
    %c0_i32 = arith.constant 0 : i32
    %c0_i32_0 = arith.constant 0 : i32
    return %arg0, %c0_i32 : i32, i32
  }
  func.func @transform_5(%arg0: i32) -> (i32, i32, i32) {
    %c0_i32 = arith.constant 0 : i32
    %c0_i32_0 = arith.constant 0 : i32
    %c0_i32_1 = arith.constant 0 : i32
    return %arg0, %c0_i32, %c0_i32_0 : i32, i32, i32
  }
  func.func @transform_6(%arg0: i32) -> (i32, i32, i32) {
    %c0_i32 = arith.constant 0 : i32
    %c0_i32_0 = arith.constant 0 : i32
    %c0_i32_1 = arith.constant 0 : i32
    return %arg0, %c0_i32, %c0_i32_0 : i32, i32, i32
  }
}

module attributes {stable_mosaic.version = 11 : i64} {
  func.func @_bn_apply_kernel(%arg0: i32, %arg1: memref<256x128xbf16, #tpu.memory_space<vmem>>, %arg2: memref<1x128xf32, #tpu.memory_space<vmem>>, %arg3: memref<1x128xf32, #tpu.memory_space<vmem>>, %arg4: memref<256x128xf32, #tpu.memory_space<vmem>>) attributes {dimension_semantics = [#tpu.dimension_semantics<parallel>], iteration_bounds = array<i64: 2>, scalar_prefetch = 0 : i64, scratch_operands = 0 : i64, tpu.core_type = #tpu.core_type<tc>, window_params = [{transform_indices = @transform_0, window_bounds = array<i64: 256, 128>}, {pipeline_mode = #tpu.pipeline_mode<synchronous>, transform_indices = @transform_1, window_bounds = array<i64: 1, 128>}, {pipeline_mode = #tpu.pipeline_mode<synchronous>, transform_indices = @transform_2, window_bounds = array<i64: 1, 128>}, {transform_indices = @transform_3, window_bounds = array<i64: 256, 128>}]} {
    %c0 = arith.constant 0 : index
    %c0_0 = arith.constant 0 : index
    %0 = vector.load %arg1[%c0, %c0_0] : memref<256x128xbf16, #tpu.memory_space<vmem>>, vector<256x128xbf16>
    %1 = arith.extf %0 : vector<256x128xbf16> to vector<256x128xf32>
    %c0_1 = arith.constant 0 : index
    %c0_2 = arith.constant 0 : index
    %2 = vector.load %arg2[%c0_1, %c0_2] : memref<1x128xf32, #tpu.memory_space<vmem>>, vector<1x128xf32>
    %3 = vector.shape_cast %2 : vector<1x128xf32> to vector<128xf32>
    %4 = vector.shape_cast %3 : vector<128xf32> to vector<1x128xf32>
    %5 = vector.broadcast %4 : vector<1x128xf32> to vector<256x128xf32>
    %6 = arith.mulf %1, %5 : vector<256x128xf32>
    %c0_3 = arith.constant 0 : index
    %c0_4 = arith.constant 0 : index
    %7 = vector.load %arg3[%c0_3, %c0_4] : memref<1x128xf32, #tpu.memory_space<vmem>>, vector<1x128xf32>
    %8 = vector.shape_cast %7 : vector<1x128xf32> to vector<128xf32>
    %9 = vector.shape_cast %8 : vector<128xf32> to vector<1x128xf32>
    %10 = vector.broadcast %9 : vector<1x128xf32> to vector<256x128xf32>
    %11 = arith.addf %6, %10 : vector<256x128xf32>
    %c0_5 = arith.constant 0 : index
    %c0_6 = arith.constant 0 : index
    %12 = vector.load %arg4[%c0_5, %c0_6] : memref<256x128xf32, #tpu.memory_space<vmem>>, vector<256x128xf32>
    tpu.vector_store %arg4[%c0_5, %c0_6], %11 {strides = array<i32>} : memref<256x128xf32, #tpu.memory_space<vmem>>, vector<256x128xf32>,
    return
  }
  func.func @transform_0(%arg0: i32) -> (i32, i32) {
    %c0_i32 = arith.constant 0 : i32
    %c0_i32_0 = arith.constant 0 : i32
    return %arg0, %c0_i32 : i32, i32
  }
  func.func @transform_1(%arg0: i32) -> (i32, i32) {
    %c0_i32 = arith.constant 0 : i32
    %c0_i32_0 = arith.constant 0 : i32
    %c0_i32_1 = arith.constant 0 : i32
    return %c0_i32, %c0_i32_0 : i32, i32
  }
  func.func @transform_2(%arg0: i32) -> (i32, i32) {
    %c0_i32 = arith.constant 0 : i32
    %c0_i32_0 = arith.constant 0 : i32
    %c0_i32_1 = arith.constant 0 : i32
    return %c0_i32, %c0_i32_0 : i32, i32
  }
  func.func @transform_3(%arg0: i32) -> (i32, i32) {
    %c0_i32 = arith.constant 0 : i32
    %c0_i32_0 = arith.constant 0 : i32
    return %arg0, %c0_i32 : i32, i32
  }
}

</mosaic_0001>

<llo_original>
// kernel: basic_block_forward.5
$region0: #{basic_block_forward.5}
  #allocation0 [shape = 'u32[]', space=smem, size = 0x4, offset = 0x4, fixed_abs, tag = 'smem constant byte address 0x4 - core index']
  #allocation1 [shape = 'u32[144,128]{1,0:T(1,128)}', space=vmem, size = 0x12000, scoped, tag = 'internal scratch']
  %s0 = inlined_call_operand.vmem [shape: bf16[512,128], index: 0, kind: input, shape index: {}]
  %s1 = inlined_call_operand.vmem [shape: f32[1,128], index: 1, kind: input, shape index: {}]
  %s2 = inlined_call_operand.vmem [shape: f32[1,128], index: 2, kind: input, shape index: {}]
  %s3 = inlined_call_operand.vmem [shape: f32[512,128], index: 3, kind: output, shape index: {}]
  %s4 = sld [smem:[#allocation0]]
  $region45: #{basic_block_forward.5} parent=0
    _
  %s6 = ssub.s32 1, %s4
  %s7 = scalar_select 0, %s6, %s4
  loop: start=0, step=1, limit=4
  $region2: #{basic_block_forward.5} parent=0 // loop_pre_header
    _
  $region3: #{basic_block_forward.5} parent=0 // loop_header
    %s9 = sphi 0, %s13
    %p10 = scmp.ge.s32.totalorder %s9, 4
    %s19 = sphi 0, %s21
    %s22 = sphi 0, %s19
    %s23 = sphi 0, %s22
    %s39 = sphi 0, %s23
    %s43 = sphi 0, %s43
    %s45 = sphi 0, %s43
    %s46 = sphi 0, %s45
    %s60 = sphi 0, %s46
    %s64 = sphi 0, %s64
    %s66 = sphi 0, %s64
    %s67 = sphi 0, %s66
    %s81 = sphi 0, %s67
    %s87 = sphi 0, %s89
    %s90 = sphi 0, %s87
    %s91 = sphi 0, %s90
    %s107 = sphi 0, %s91
  $region4: #{basic_block_forward.5} parent=0 // loop_header_branch
    %12 = sbr.rel (%p10) target = $region8
  $region5: #{basic_block_forward.5} parent=0 // loop_body
    %s14 = ssub.s32 %s9, 1
    %s15 = ssub.s32 %s9, 2
    %s16 = sadd.s32 %s9, 1
    %s17 = ssub.s32 %s9, %s16
    %p18 = scmp.eq.s32.totalorder %s17, 0
    %s20 = sadd.s32 %s19, 1
    %s21 = scalar_select %p18, %s19, %s20
    %p24 = pneg %p18
    %p25 = scmp.eq.s32.totalorder %s9, 1
    %p26 = por %p24, %p25
    %p27 = scmp.ne.s32.totalorder %s19, %s22
    %p28 = scmp.eq.s32.totalorder %s9, 0
    %p29 = por %p27, %p28
    %p30 = scmp.ne.s32.totalorder %s19, %s22
    %p31 = scmp.eq.s32.totalorder %s14, 1
    %p32 = por %p30, %p31
    %p33 = scmp.ne.s32.totalorder %s22, %s23
    %p34 = scmp.eq.s32.totalorder %s14, 0
    %p35 = por %p33, %p34
    %p36 = scmp.ne.s32.totalorder %s22, %s23
    %p37 = scmp.eq.s32.totalorder %s15, 1
    %p38 = por %p36, %p37
    %p40 = scmp.ne.s32.totalorder %s23, %s39
    %p41 = scmp.eq.s32.totalorder %s15, 0
    %p42 = por %p40, %p41
    %s44 = sadd.s32 %s43, 1
    %p47 = scmp.eq.s32.totalorder %s9, 1
    %p48 = scmp.ne.s32.totalorder %s43, %s45
    %p49 = scmp.eq.s32.totalorder %s9, 0
    %p50 = por %p48, %p49
    %p51 = scmp.ne.s32.totalorder %s43, %s45
    %p52 = scmp.eq.s32.totalorder %s14, 1
    %p53 = por %p51, %p52
    %p54 = scmp.ne.s32.totalorder %s45, %s46
    %p55 = scmp.eq.s32.totalorder %s14, 0
    %p56 = por %p54, %p55
    %p57 = scmp.ne.s32.totalorder %s45, %s46
    %p58 = scmp.eq.s32.totalorder %s15, 1
    %p59 = por %p57, %p58
    %p61 = scmp.ne.s32.totalorder %s46, %s60
    %p62 = scmp.eq.s32.totalorder %s15, 0
    %p63 = por %p61, %p62
    %s65 = sadd.s32 %s64, 1
    %p68 = scmp.eq.s32.totalorder %s9, 1
    %p69 = scmp.ne.s32.totalorder %s64, %s66
    %p70 = scmp.eq.s32.totalorder %s9, 0
    %p71 = por %p69, %p70
    %p72 = scmp.ne.s32.totalorder %s64, %s66
    %p73 = scmp.eq.s32.totalorder %s14, 1
    %p74 = por %p72, %p73
    %p75 = scmp.ne.s32.totalorder %s66, %s67
    %p76 = scmp.eq.s32.totalorder %s14, 0
    %p77 = por %p75, %p76
    %p78 = scmp.ne.s32.totalorder %s66, %s67
    %p79 = scmp.eq.s32.totalorder %s15, 1
    %p80 = por %p78, %p79
    %p82 = scmp.ne.s32.totalorder %s67, %s81
    %p83 = scmp.eq.s32.totalorder %s15, 0
    %p84 = por %p82, %p83
    %s85 = ssub.s32 %s9, %s16
    %p86 = scmp.eq.s32.totalorder %s85, 0
    %s88 = sadd.s32 %s87, 1
    %s89 = scalar_select %p86, %s87, %s88
    %p92 = pneg %p86
    %p93 = scmp.eq.s32.totalorder %s9, 1
    %p94 = por %p92, %p93
    %p95 = scmp.ne.s32.totalorder %s87, %s90
    %p96 = scmp.eq.s32.totalorder %s9, 0
    %p97 = por %p95, %p96
    %p98 = scmp.ne.s32.totalorder %s87, %s90
    %p99 = scmp.eq.s32.totalorder %s14, 1
    %p100 = por %p98, %p99
    %p101 = scmp.ne.s32.totalorder %s90, %s91
    %p102 = scmp.eq.s32.totalorder %s14, 0
    %p103 = por %p101, %p102
    %p104 = scmp.ne.s32.totalorder %s90, %s91
    %p105 = scmp.eq.s32.totalorder %s15, 1
    %p106 = por %p104, %p105
    %p108 = scmp.ne.s32.totalorder %s91, %s107
    %p109 = scmp.eq.s32.totalorder %s15, 0
    %p110 = por %p108, %p109
    %p111 = scmp.le.s32.totalorder 1, %s9
    %p112 = scmp.lt.s32.totalorder %s9, 3
    %p113 = pnand %p111, %p112
    %p114 = pneg %p113
    // Predicated region
    $region9: #{basic_block_forward.5} parent=5 // pred_check
      _
    $region10: #{basic_block_forward.5} parent=5 // pred_check_branch
      %116 = sbr.rel (%p113) target = $region12
    $region11: #{basic_block_forward.5} parent=5 // pred_region
      %s117 = ssub.s32 %s9, 1
      // Predicated region
      $region13: #{basic_block_forward.5} parent=11 // pred_check
        %p118 = pneg %p56
      $region14: #{basic_block_forward.5} parent=11 // pred_check_branch
        %120 = sbr.rel (%p118) target = $region16
      $region15: #{basic_block_forward.5} parent=11 // pred_region
        _
      $region16: #{basic_block_forward.5} parent=11 // pred_fallthru
        _
      // Predicated region
      $region17: #{basic_block_forward.5} parent=11 // pred_check
        %p121 = pneg %p77
      $region18: #{basic_block_forward.5} parent=11 // pred_check_branch
        %123 = sbr.rel (%p121) target = $region20
      $region19: #{basic_block_forward.5} parent=11 // pred_region
        _
      $region20: #{basic_block_forward.5} parent=11 // pred_fallthru
        _
    $region12: #{basic_block_forward.5} parent=5 // pred_fallthru
      _
    %p124 = scmp.lt.s32.totalorder %s9, 2
    // Predicated region
    $region21: #{basic_block_forward.5} parent=5 // pred_check
      %p125 = pneg %p124
    $region22: #{basic_block_forward.5} parent=5 // pred_check_branch
      %127 = sbr.rel (%p125) target = $region24
    $region23: #{basic_block_forward.5} parent=5 // pred_region
      // Predicated region
      $region25: #{basic_block_forward.5} parent=23 // pred_check
        %p128 = pneg %p29
      $region26: #{basic_block_forward.5} parent=23 // pred_check_branch
        %130 = sbr.rel (%p128) target = $region28
      $region27: #{basic_block_forward.5} parent=23 // pred_region
        %s131 = smul.u32 32, %s9
        %p132 = scmp.lt.s32.totalorder %s131, 63
        %s133 = scalar_select %p132, %s131, 63
        %s134 = smul.addr %s133, 4
        %s135 = scalar_lea.vmem %s0, %s134
        %s136 = smul.u32 32, %s9
      $region28: #{basic_block_forward.5} parent=23 // pred_fallthru
        _
    $region24: #{basic_block_forward.5} parent=5 // pred_fallthru
      _
    %p137 = scmp.le.s32.totalorder 1, %s9
    %p138 = scmp.lt.s32.totalorder %s9, 3
    %p139 = pnand %p137, %p138
    %p140 = pneg %p139
    // Predicated region
    $region29: #{basic_block_forward.5} parent=5 // pred_check
      _
    $region30: #{basic_block_forward.5} parent=5 // pred_check_branch
      %142 = sbr.rel (%p139) target = $region32
    $region31: #{basic_block_forward.5} parent=5 // pred_region
      %s143 = ssub.s32 %s9, 1
      %s144 = smul.u32 32, %s14
      %p145 = scmp.lt.s32.totalorder %s144, 63
      %s146 = scalar_select %p145, %s144, 63
      %s147 = smul.addr %s146, 4
      %s148 = scalar_lea.vmem %s0, %s147
      %p149 = pneg %p35
      %p150 = pneg %p32
      %p151 = pneg %p56
      %p152 = pneg %p53
      %p153 = pneg %p77
      %p154 = pneg %p74
      %p155 = pneg %p103
      %p156 = pneg %p100
      %s157 = smul.u32 32, %s14
      %p158 = scmp.lt.s32.totalorder %s157, 63
      %s159 = scalar_select %p158, %s157, 63
      %s160 = smul.addr %s159, 8
      %s161 = scalar_lea.vmem %s3, %s160
      %s162 = smul.u32 32, %s14
      %p163 = scmp.lt.s32.totalorder %s162, 63
      %s164 = scalar_select %p163, %s162, 63
      %s165 = smul.addr %s164, 4
      %s166 = scalar_lea.vmem %s0, %s165
      %s167 = smul.u32 32, %s14
      %s168 = smul.u32 32, %s14
      %p169 = scmp.lt.s32.totalorder %s168, 63
      %s170 = scalar_select %p169, %s168, 63
      %s171 = smul.addr %s170, 8
      %s172 = scalar_lea.vmem %s3, %s171
      %s173 = smul.u32 32, %s14
      %v174 = vld [vmem:[%s166] sm:$0xf]
      %v175 = vld [vmem:[%s166 + $0x4] sm:$0xf]
      %v176 = vld [vmem:[%s166 + $0x8] sm:$0xf]
      %v177 = vld [vmem:[%s166 + $0xc] sm:$0xf]
      %v178 = vld [vmem:[%s166 + $0x10] sm:$0xf]
      %v179 = vld [vmem:[%s166 + $0x14] sm:$0xf]
      %v180 = vld [vmem:[%s166 + $0x18] sm:$0xf]
      %v181 = vld [vmem:[%s166 + $0x1c] sm:$0xf]
      %v182 = vld [vmem:[%s166 + $0x20] sm:$0xf]
      %v183 = vld [vmem:[%s166 + $0x24] sm:$0xf]
      %v184 = vld [vmem:[%s166 + $0x28] sm:$0xf]
      %v185 = vld [vmem:[%s166 + $0x2c] sm:$0xf]
      %v186 = vld [vmem:[%s166 + $0x30] sm:$0xf]
      %v187 = vld [vmem:[%s166 + $0x34] sm:$0xf]
      %v188 = vld [vmem:[%s166 + $0x38] sm:$0xf]
      %v189 = vld [vmem:[%s166 + $0x3c] sm:$0xf]
      %v190 = vld [vmem:[%s166 + $0x40] sm:$0xf]
      %v191 = vld [vmem:[%s166 + $0x44] sm:$0xf]
      %v192 = vld [vmem:[%s166 + $0x48] sm:$0xf]
      %v193 = vld [vmem:[%s166 + $0x4c] sm:$0xf]
      %v194 = vld [vmem:[%s166 + $0x50] sm:$0xf]
      %v195 = vld [vmem:[%s166 + $0x54] sm:$0xf]
      %v196 = vld [vmem:[%s166 + $0x58] sm:$0xf]
      %v197 = vld [vmem:[%s166 + $0x5c] sm:$0xf]
      %v198 = vld [vmem:[%s166 + $0x60] sm:$0xf]
      %v199 = vld [vmem:[%s166 + $0x64] sm:$0xf]
      %v200 = vld [vmem:[%s166 + $0x68] sm:$0xf]
      %v201 = vld [vmem:[%s166 + $0x6c] sm:$0xf]
      %v202 = vld [vmem:[%s166 + $0x70] sm:$0xf]
      %v203 = vld [vmem:[%s166 + $0x74] sm:$0xf]
      %v204 = vld [vmem:[%s166 + $0x78] sm:$0xf]
      %v205 = vld [vmem:[%s166 + $0x7c] sm:$0xf]
      %v206 = vunpack.c.l.bf16 %v174
      %v207 = vunpack.c.l.bf16 %v175
      %v208 = vunpack.c.l.bf16 %v176
      %v209 = vunpack.c.l.bf16 %v177
      %v210 = vunpack.c.l.bf16 %v178
      %v211 = vunpack.c.l.bf16 %v179
      %v212 = vunpack.c.l.bf16 %v180
      %v213 = vunpack.c.l.bf16 %v181
      %v214 = vunpack.c.l.bf16 %v182
      %v215 = vunpack.c.l.bf16 %v183
      %v216 = vunpack.c.l.bf16 %v184
      %v217 = vunpack.c.l.bf16 %v185
      %v218 = vunpack.c.l.bf16 %v186
      %v219 = vunpack.c.l.bf16 %v187
      %v220 = vunpack.c.l.bf16 %v188
      %v221 = vunpack.c.l.bf16 %v189
      %v222 = vunpack.c.l.bf16 %v190
      %v223 = vunpack.c.l.bf16 %v191
      %v224 = vunpack.c.l.bf16 %v192
      %v225 = vunpack.c.l.bf16 %v193
      %v226 = vunpack.c.l.bf16 %v194
      %v227 = vunpack.c.l.bf16 %v195
      %v228 = vunpack.c.l.bf16 %v196
      %v229 = vunpack.c.l.bf16 %v197
      %v230 = vunpack.c.l.bf16 %v198
      %v231 = vunpack.c.l.bf16 %v199
      %v232 = vunpack.c.l.bf16 %v200
      %v233 = vunpack.c.l.bf16 %v201
      %v234 = vunpack.c.l.bf16 %v202
      %v235 = vunpack.c.l.bf16 %v203
      %v236 = vunpack.c.l.bf16 %v204
      %v237 = vunpack.c.l.bf16 %v205
      %v238 = vld [vmem:[%s1] sm:$0x1]
      %v240 = vlaneseq
      %v241 = vshrl.u32 %v240, 7
      %v242 = vsub.s32 0, %v241
      %v243 = vrot.slane %v238, %v242
      %v245 = vmul.f32 %v206, %v243
      %v246 = vmul.f32 %v207, %v243
      %v247 = vmul.f32 %v208, %v243
      %v248 = vmul.f32 %v209, %v243
      %v249 = vmul.f32 %v210, %v243
      %v250 = vmul.f32 %v211, %v243
      %v251 = vmul.f32 %v212, %v243
      %v252 = vmul.f32 %v213, %v243
      %v253 = vmul.f32 %v214, %v243
      %v254 = vmul.f32 %v215, %v243
      %v255 = vmul.f32 %v216, %v243
      %v256 = vmul.f32 %v217, %v243
      %v257 = vmul.f32 %v218, %v243
      %v258 = vmul.f32 %v219, %v243
      %v259 = vmul.f32 %v220, %v243
      %v260 = vmul.f32 %v221, %v243
      %v261 = vmul.f32 %v222, %v243
      %v262 = vmul.f32 %v223, %v243
      %v263 = vmul.f32 %v224, %v243
      %v264 = vmul.f32 %v225, %v243
      %v265 = vmul.f32 %v226, %v243
      %v266 = vmul.f32 %v227, %v243
      %v267 = vmul.f32 %v228, %v243
      %v268 = vmul.f32 %v229, %v243
      %v269 = vmul.f32 %v230, %v243
      %v270 = vmul.f32 %v231, %v243
      %v271 = vmul.f32 %v232, %v243
      %v272 = vmul.f32 %v233, %v243
      %v273 = vmul.f32 %v234, %v243
      %v274 = vmul.f32 %v235, %v243
      %v275 = vmul.f32 %v236, %v243
      %v276 = vmul.f32 %v237, %v243
      %v277 = vld [vmem:[%s2] sm:$0x1]
      %v279 = vlaneseq
      %v280 = vshrl.u32 %v279, 7
      %v281 = vsub.s32 0, %v280
      %v282 = vrot.slane %v277, %v281
      %v284 = vadd.f32 %v245, %v282
      %v285 = vadd.f32 %v246, %v282
      %v286 = vadd.f32 %v247, %v282
      %v287 = vadd.f32 %v248, %v282
      %v288 = vadd.f32 %v249, %v282
      %v289 = vadd.f32 %v250, %v282
      %v290 = vadd.f32 %v251, %v282
      %v291 = vadd.f32 %v252, %v282
      %v292 = vadd.f32 %v253, %v282
      %v293 = vadd.f32 %v254, %v282
      %v294 = vadd.f32 %v255, %v282
      %v295 = vadd.f32 %v256, %v282
      %v296 = vadd.f32 %v257, %v282
      %v297 = vadd.f32 %v258, %v282
      %v298 = vadd.f32 %v259, %v282
      %v299 = vadd.f32 %v260, %v282
      %v300 = vadd.f32 %v261, %v282
      %v301 = vadd.f32 %v262, %v282
      %v302 = vadd.f32 %v263, %v282
      %v303 = vadd.f32 %v264, %v282
      %v304 = vadd.f32 %v265, %v282
      %v305 = vadd.f32 %v266, %v282
      %v306 = vadd.f32 %v267, %v282
      %v307 = vadd.f32 %v268, %v282
      %v308 = vadd.f32 %v269, %v282
      %v309 = vadd.f32 %v270, %v282
      %v310 = vadd.f32 %v271, %v282
      %v311 = vadd.f32 %v272, %v282
      %v312 = vadd.f32 %v273, %v282
      %v313 = vadd.f32 %v274, %v282
      %v314 = vadd.f32 %v275, %v282
      %v315 = vadd.f32 %v276, %v282
      %316 = vst [vmem:[%s172] sm:$0xff] %v284
      %317 = vst [vmem:[%s172 + $0x8] sm:$0xff] %v285
      %318 = vst [vmem:[%s172 + $0x10] sm:$0xff] %v286
      %319 = vst [vmem:[%s172 + $0x18] sm:$0xff] %v287
      %320 = vst [vmem:[%s172 + $0x20] sm:$0xff] %v288
      %321 = vst [vmem:[%s172 + $0x28] sm:$0xff] %v289
      %322 = vst [vmem:[%s172 + $0x30] sm:$0xff] %v290
      %323 = vst [vmem:[%s172 + $0x38] sm:$0xff] %v291
      %324 = vst [vmem:[%s172 + $0x40] sm:$0xff] %v292
      %325 = vst [vmem:[%s172 + $0x48] sm:$0xff] %v293
      %326 = vst [vmem:[%s172 + $0x50] sm:$0xff] %v294
      %327 = vst [vmem:[%s172 + $0x58] sm:$0xff] %v295
      %328 = vst [vmem:[%s172 + $0x60] sm:$0xff] %v296
      %329 = vst [vmem:[%s172 + $0x68] sm:$0xff] %v297
      %330 = vst [vmem:[%s172 + $0x70] sm:$0xff] %v298
      %331 = vst [vmem:[%s172 + $0x78] sm:$0xff] %v299
      %332 = vst [vmem:[%s172 + $0x80] sm:$0xff] %v300
      %333 = vst [vmem:[%s172 + $0x88] sm:$0xff] %v301
      %334 = vst [vmem:[%s172 + $0x90] sm:$0xff] %v302
      %335 = vst [vmem:[%s172 + $0x98] sm:$0xff] %v303
      %336 = vst [vmem:[%s172 + $0xa0] sm:$0xff] %v304
      %337 = vst [vmem:[%s172 + $0xa8] sm:$0xff] %v305
      %338 = vst [vmem:[%s172 + $0xb0] sm:$0xff] %v306
      %339 = vst [vmem:[%s172 + $0xb8] sm:$0xff] %v307
      %340 = vst [vmem:[%s172 + $0xc0] sm:$0xff] %v308
      %341 = vst [vmem:[%s172 + $0xc8] sm:$0xff] %v309
      %342 = vst [vmem:[%s172 + $0xd0] sm:$0xff] %v310
      %343 = vst [vmem:[%s172 + $0xd8] sm:$0xff] %v311
      %344 = vst [vmem:[%s172 + $0xe0] sm:$0xff] %v312
      %345 = vst [vmem:[%s172 + $0xe8] sm:$0xff] %v313
      %346 = vst [vmem:[%s172 + $0xf0] sm:$0xff] %v314
      %347 = vst [vmem:[%s172 + $0xf8] sm:$0xff] %v315
      %s348 = smul.u32 32, %s14
      %p349 = scmp.lt.s32.totalorder %s348, 63
      %s350 = scalar_select %p349, %s348, 63
      %s351 = smul.addr %s350, 8
      %s352 = scalar_lea.vmem %s3, %s351
      // Predicated region
      $region33: #{basic_block_forward.5} parent=31 // pred_check
        %p353 = pneg %p100
      $region34: #{basic_block_forward.5} parent=31 // pred_check_branch
        %355 = sbr.rel (%p353) target = $region36
      $region35: #{basic_block_forward.5} parent=31 // pred_region
        %s356 = smul.u32 32, %s14
      $region36: #{basic_block_forward.5} parent=31 // pred_fallthru
        _
    $region32: #{basic_block_forward.5} parent=5 // pred_fallthru
      _
    %p357 = scmp.le.s32.totalorder 2, %s9
    // Predicated region
    $region37: #{basic_block_forward.5} parent=5 // pred_check
      %p358 = pneg %p357
    $region38: #{basic_block_forward.5} parent=5 // pred_check_branch
      %360 = sbr.rel (%p358) target = $region40
    $region39: #{basic_block_forward.5} parent=5 // pred_region
      %s361 = ssub.s32 %s9, 2
      // Predicated region
      $region41: #{basic_block_forward.5} parent=39 // pred_check
        %p362 = pneg %p106
      $region42: #{basic_block_forward.5} parent=39 // pred_check_branch
        %364 = sbr.rel (%p362) target = $region44
      $region43: #{basic_block_forward.5} parent=39 // pred_region
        %s365 = smul.u32 32, %s15
        %p366 = scmp.lt.s32.totalorder %s365, 63
        %s367 = scalar_select %p366, %s365, 63
        %s368 = smul.addr %s367, 8
        %s369 = scalar_lea.vmem %s3, %s368
      $region44: #{basic_block_forward.5} parent=39 // pred_fallthru
        _
    $region40: #{basic_block_forward.5} parent=5 // pred_fallthru
      _
  $region6: #{basic_block_forward.5} parent=0 // loop_footer
    %s13 = sadd.s32 1, %s9
  $region7: #{basic_block_forward.5} parent=0 // loop_footer_branch
    %8 = sbr.rel target = $region3
  $region8: #{basic_block_forward.5} parent=0 // loop_exit
    _

// kernel: basic_block_forward.4
$region0: #{basic_block_forward.4}
  #allocation0 [shape = 'u32[]', space=smem, size = 0x4, offset = 0x4, fixed_abs, tag = 'smem constant byte address 0x4 - core index']
  #allocation1 [shape = 'u32[144,128]{1,0:T(1,128)}', space=vmem, size = 0x12000, scoped, tag = 'internal scratch']
  #allocation2 [shape = 'bf16[1,18,32,128]{3,2,1,0:T(16,128)(2,1)}', space=vmem, size = 0x24000, scoped, tag = 'scratch operand']
  %s0 = inlined_call_operand.vmem [shape: bf16[2,16,16,128], index: 0, kind: input, shape index: {}]
  %s1 = inlined_call_operand.vmem [shape: bf16[1152,128], index: 1, kind: input, shape index: {}]
  %s2 = inlined_call_operand.vmem [shape: f32[1,128], index: 2, kind: input, shape index: {}]
  %s3 = inlined_call_operand.vmem [shape: f32[1,128], index: 3, kind: input, shape index: {}]
  %s4 = inlined_call_operand.vmem [shape: bf16[512,128], index: 4, kind: output, shape index: {0}]
  %s5 = inlined_call_operand.vmem [shape: f32[2,8,128], index: 5, kind: output, shape index: {1}]
  %s6 = inlined_call_operand.vmem [shape: f32[2,8,128], index: 6, kind: output, shape index: {2}]
  %7 = xla_tuple %s4, %s5, %s6
  %s8 = sld [smem:[#allocation0]]
  $region65: #{basic_block_forward.4} parent=0
    _
  %s10 = ssub.s32 1, %s8
  %s11 = scalar_select 0, %s10, %s8
  loop: start=0, step=1, limit=4
  $region2: #{basic_block_forward.4} parent=0 // loop_pre_header
    _
  $region3: #{basic_block_forward.4} parent=0 // loop_header
    %s13 = sphi 0, %s17
    %p14 = scmp.ge.s32.totalorder %s13, 4
    %s23 = sphi 0, %s25
    %s26 = sphi 0, %s23
    %s27 = sphi 0, %s26
    %s43 = sphi 0, %s27
    %s47 = sphi 0, %s47
    %s49 = sphi 0, %s47
    %s50 = sphi 0, %s49
    %s64 = sphi 0, %s50
    %s68 = sphi 0, %s68
    %s70 = sphi 0, %s68
    %s71 = sphi 0, %s70
    %s85 = sphi 0, %s71
    %s89 = sphi 0, %s89
    %s91 = sphi 0, %s89
    %s92 = sphi 0, %s91
    %s106 = sphi 0, %s92
    %s112 = sphi 0, %s114
    %s115 = sphi 0, %s112
    %s116 = sphi 0, %s115
    %s132 = sphi 0, %s116
    %s138 = sphi 0, %s140
    %s141 = sphi 0, %s138
    %s142 = sphi 0, %s141
    %s158 = sphi 0, %s142
    %s164 = sphi 0, %s166
    %s167 = sphi 0, %s164
    %s168 = sphi 0, %s167
    %s184 = sphi 0, %s168
  $region4: #{basic_block_forward.4} parent=0 // loop_header_branch
    %16 = sbr.rel (%p14) target = $region8
  $region5: #{basic_block_forward.4} parent=0 // loop_body
    %s18 = ssub.s32 %s13, 1
    %s19 = ssub.s32 %s13, 2
    %s20 = sadd.s32 %s13, 1
    %s21 = ssub.s32 %s13, %s20
    %p22 = scmp.eq.s32.totalorder %s21, 0
    %s24 = sadd.s32 %s23, 1
    %s25 = scalar_select %p22, %s23, %s24
    %p28 = pneg %p22
    %p29 = scmp.eq.s32.totalorder %s13, 1
    %p30 = por %p28, %p29
    %p31 = scmp.ne.s32.totalorder %s23, %s26
    %p32 = scmp.eq.s32.totalorder %s13, 0
    %p33 = por %p31, %p32
    %p34 = scmp.ne.s32.totalorder %s23, %s26
    %p35 = scmp.eq.s32.totalorder %s18, 1
    %p36 = por %p34, %p35
    %p37 = scmp.ne.s32.totalorder %s26, %s27
    %p38 = scmp.eq.s32.totalorder %s18, 0
    %p39 = por %p37, %p38
    %p40 = scmp.ne.s32.totalorder %s26, %s27
    %p41 = scmp.eq.s32.totalorder %s19, 1
    %p42 = por %p40, %p41
    %p44 = scmp.ne.s32.totalorder %s27, %s43
    %p45 = scmp.eq.s32.totalorder %s19, 0
    %p46 = por %p44, %p45
    %s48 = sadd.s32 %s47, 1
    %p51 = scmp.eq.s32.totalorder %s13, 1
    %p52 = scmp.ne.s32.totalorder %s47, %s49
    %p53 = scmp.eq.s32.totalorder %s13, 0
    %p54 = por %p52, %p53
    %p55 = scmp.ne.s32.totalorder %s47, %s49
    %p56 = scmp.eq.s32.totalorder %s18, 1
    %p57 = por %p55, %p56
    %p58 = scmp.ne.s32.totalorder %s49, %s50
    %p59 = scmp.eq.s32.totalorder %s18, 0
    %p60 = por %p58, %p59
    %p61 = scmp.ne.s32.totalorder %s49, %s50
    %p62 = scmp.eq.s32.totalorder %s19, 1
    %p63 = por %p61, %p62
    %p65 = scmp.ne.s32.totalorder %s50, %s64
    %p66 = scmp.eq.s32.totalorder %s19, 0
    %p67 = por %p65, %p66
    %s69 = sadd.s32 %s68, 1
    %p72 = scmp.eq.s32.totalorder %s13, 1
    %p73 = scmp.ne.s32.totalorder %s68, %s70
    %p74 = scmp.eq.s32.totalorder %s13, 0
    %p75 = por %p73, %p74
    %p76 = scmp.ne.s32.totalorder %s68, %s70
    %p77 = scmp.eq.s32.totalorder %s18, 1
    %p78 = por %p76, %p77
    %p79 = scmp.ne.s32.totalorder %s70, %s71
    %p80 = scmp.eq.s32.totalorder %s18, 0
    %p81 = por %p79, %p80
    %p82 = scmp.ne.s32.totalorder %s70, %s71
    %p83 = scmp.eq.s32.totalorder %s19, 1
    %p84 = por %p82, %p83
    %p86 = scmp.ne.s32.totalorder %s71, %s85
    %p87 = scmp.eq.s32.totalorder %s19, 0
    %p88 = por %p86, %p87
    %s90 = sadd.s32 %s89, 1
    %p93 = scmp.eq.s32.totalorder %s13, 1
    %p94 = scmp.ne.s32.totalorder %s89, %s91
    %p95 = scmp.eq.s32.totalorder %s13, 0
    %p96 = por %p94, %p95
    %p97 = scmp.ne.s32.totalorder %s89, %s91
    %p98 = scmp.eq.s32.totalorder %s18, 1
    %p99 = por %p97, %p98
    %p100 = scmp.ne.s32.totalorder %s91, %s92
    %p101 = scmp.eq.s32.totalorder %s18, 0
    %p102 = por %p100, %p101
    %p103 = scmp.ne.s32.totalorder %s91, %s92
    %p104 = scmp.eq.s32.totalorder %s19, 1
    %p105 = por %p103, %p104
    %p107 = scmp.ne.s32.totalorder %s92, %s106
    %p108 = scmp.eq.s32.totalorder %s19, 0
    %p109 = por %p107, %p108
    %s110 = ssub.s32 %s13, %s20
    %p111 = scmp.eq.s32.totalorder %s110, 0
    %s113 = sadd.s32 %s112, 1
    %s114 = scalar_select %p111, %s112, %s113
    %p117 = pneg %p111
    %p118 = scmp.eq.s32.totalorder %s13, 1
    %p119 = por %p117, %p118
    %p120 = scmp.ne.s32.totalorder %s112, %s115
    %p121 = scmp.eq.s32.totalorder %s13, 0
    %p122 = por %p120, %p121
    %p123 = scmp.ne.s32.totalorder %s112, %s115
    %p124 = scmp.eq.s32.totalorder %s18, 1
    %p125 = por %p123, %p124
    %p126 = scmp.ne.s32.totalorder %s115, %s116
    %p127 = scmp.eq.s32.totalorder %s18, 0
    %p128 = por %p126, %p127
    %p129 = scmp.ne.s32.totalorder %s115, %s116
    %p130 = scmp.eq.s32.totalorder %s19, 1
    %p131 = por %p129, %p130
    %p133 = scmp.ne.s32.totalorder %s116, %s132
    %p134 = scmp.eq.s32.totalorder %s19, 0
    %p135 = por %p133, %p134
    %s136 = ssub.s32 %s13, %s20
    %p137 = scmp.eq.s32.totalorder %s136, 0
    %s139 = sadd.s32 %s138, 1
    %s140 = scalar_select %p137, %s138, %s139
    %p143 = pneg %p137
    %p144 = scmp.eq.s32.totalorder %s13, 1
    %p145 = por %p143, %p144
    %p146 = scmp.ne.s32.totalorder %s138, %s141
    %p147 = scmp.eq.s32.totalorder %s13, 0
    %p148 = por %p146, %p147
    %p149 = scmp.ne.s32.totalorder %s138, %s141
    %p150 = scmp.eq.s32.totalorder %s18, 1
    %p151 = por %p149, %p150
    %p152 = scmp.ne.s32.totalorder %s141, %s142
    %p153 = scmp.eq.s32.totalorder %s18, 0
    %p154 = por %p152, %p153
    %p155 = scmp.ne.s32.totalorder %s141, %s142
    %p156 = scmp.eq.s32.totalorder %s19, 1
    %p157 = por %p155, %p156
    %p159 = scmp.ne.s32.totalorder %s142, %s158
    %p160 = scmp.eq.s32.totalorder %s19, 0
    %p161 = por %p159, %p160
    %s162 = ssub.s32 %s13, %s20
    %p163 = scmp.eq.s32.totalorder %s162, 0
    %s165 = sadd.s32 %s164, 1
    %s166 = scalar_select %p163, %s164, %s165
    %p169 = pneg %p163
    %p170 = scmp.eq.s32.totalorder %s13, 1
    %p171 = por %p169, %p170
    %p172 = scmp.ne.s32.totalorder %s164, %s167
    %p173 = scmp.eq.s32.totalorder %s13, 0
    %p174 = por %p172, %p173
    %p175 = scmp.ne.s32.totalorder %s164, %s167
    %p176 = scmp.eq.s32.totalorder %s18, 1
    %p177 = por %p175, %p176
    %p178 = scmp.ne.s32.totalorder %s167, %s168
    %p179 = scmp.eq.s32.totalorder %s18, 0
    %p180 = por %p178, %p179
    %p181 = scmp.ne.s32.totalorder %s167, %s168
    %p182 = scmp.eq.s32.totalorder %s19, 1
    %p183 = por %p181, %p182
    %p185 = scmp.ne.s32.totalorder %s168, %s184
    %p186 = scmp.eq.s32.totalorder %s19, 0
    %p187 = por %p185, %p186
    %p188 = scmp.le.s32.totalorder 1, %s13
    %p189 = scmp.lt.s32.totalorder %s13, 3
    %p190 = pnand %p188, %p189
    %p191 = pneg %p190
    // Predicated region
    $region9: #{basic_block_forward.4} parent=5 // pred_check
      _
    $region10: #{basic_block_forward.4} parent=5 // pred_check_branch
      %193 = sbr.rel (%p190) target = $region12
    $region11: #{basic_block_forward.4} parent=5 // pred_region
      %s194 = ssub.s32 %s13, 1
      // Predicated region
      $region13: #{basic_block_forward.4} parent=11 // pred_check
        %p195 = pneg %p60
      $region14: #{basic_block_forward.4} parent=11 // pred_check_branch
        %197 = sbr.rel (%p195) target = $region16
      $region15: #{basic_block_forward.4} parent=11 // pred_region
        _
      $region16: #{basic_block_forward.4} parent=11 // pred_fallthru
        _
      // Predicated region
      $region17: #{basic_block_forward.4} parent=11 // pred_check
        %p198 = pneg %p81
      $region18: #{basic_block_forward.4} parent=11 // pred_check_branch
        %200 = sbr.rel (%p198) target = $region20
      $region19: #{basic_block_forward.4} parent=11 // pred_region
        _
      $region20: #{basic_block_forward.4} parent=11 // pred_fallthru
        _
      // Predicated region
      $region21: #{basic_block_forward.4} parent=11 // pred_check
        %p201 = pneg %p102
      $region22: #{basic_block_forward.4} parent=11 // pred_check_branch
        %203 = sbr.rel (%p201) target = $region24
      $region23: #{basic_block_forward.4} parent=11 // pred_region
        _
      $region24: #{basic_block_forward.4} parent=11 // pred_fallthru
        _
    $region12: #{basic_block_forward.4} parent=5 // pred_fallthru
      _
    %p204 = scmp.lt.s32.totalorder %s13, 2
    // Predicated region
    $region25: #{basic_block_forward.4} parent=5 // pred_check
      %p205 = pneg %p204
    $region26: #{basic_block_forward.4} parent=5 // pred_check_branch
      %207 = sbr.rel (%p205) target = $region28
    $region27: #{basic_block_forward.4} parent=5 // pred_region
      // Predicated region
      $region29: #{basic_block_forward.4} parent=27 // pred_check
        %p208 = pneg %p33
      $region30: #{basic_block_forward.4} parent=27 // pred_check_branch
        %210 = sbr.rel (%p208) target = $region32
      $region31: #{basic_block_forward.4} parent=27 // pred_region
        %p211 = scmp.lt.s32.totalorder %s13, 1
        %s212 = scalar_select %p211, %s13, 1
        %s213 = smul.addr %s212, 32
        %s214 = smul.addr %s213, 4
        %s215 = scalar_lea.vmem %s0, %s214
      $region32: #{basic_block_forward.4} parent=27 // pred_fallthru
        _
    $region28: #{basic_block_forward.4} parent=5 // pred_fallthru
      _
    %p216 = scmp.le.s32.totalorder 1, %s13
    %p217 = scmp.lt.s32.totalorder %s13, 3
    %p218 = pnand %p216, %p217
    %p219 = pneg %p218
    // Predicated region
    $region33: #{basic_block_forward.4} parent=5 // pred_check
      _
    $region34: #{basic_block_forward.4} parent=5 // pred_check_branch
      %221 = sbr.rel (%p218) target = $region36
    $region35: #{basic_block_forward.4} parent=5 // pred_region
      %s222 = ssub.s32 %s13, 1
      %p223 = scmp.lt.s32.totalorder %s18, 1
      %s224 = scalar_select %p223, %s18, 1
      %s225 = smul.addr %s224, 32
      %s226 = smul.addr %s225, 4
      %s227 = scalar_lea.vmem %s0, %s226
      %p228 = pneg %p39
      %p229 = pneg %p36
      %p230 = pneg %p60
      %p231 = pneg %p57
      %p232 = pneg %p81
      %p233 = pneg %p78
      %p234 = pneg %p102
      %p235 = pneg %p99
      %p236 = pneg %p128
      %p237 = pneg %p125
      %s238 = smul.u32 32, %s18
      %p239 = scmp.lt.s32.totalorder %s238, 63
      %s240 = scalar_select %p239, %s238, 63
      %s241 = smul.addr %s240, 4
      %s242 = scalar_lea.vmem %s4, %s241
      %p243 = pneg %p154
      %p244 = pneg %p151
      %p245 = scmp.lt.s32.totalorder %s18, 1
      %s246 = scalar_select %p245, %s18, 1
      %s247 = smul.addr %s246, 8
      %s248 = scalar_lea.vmem %s5, %s247
      %p249 = pneg %p180
      %p250 = pneg %p177
      %p251 = scmp.lt.s32.totalorder %s18, 1
      %s252 = scalar_select %p251, %s18, 1
      %s253 = smul.addr %s252, 8
      %s254 = scalar_lea.vmem %s6, %s253
      %p255 = scmp.lt.s32.totalorder %s18, 1
      %s256 = scalar_select %p255, %s18, 1
      %s257 = smul.addr %s256, 32
      %s258 = smul.addr %s257, 4
      %s259 = scalar_lea.vmem %s0, %s258
      %s260 = smul.u32 32, %s18
      %p261 = scmp.lt.s32.totalorder %s260, 63
      %s262 = scalar_select %p261, %s260, 63
      %s263 = smul.addr %s262, 4
      %s264 = scalar_lea.vmem %s4, %s263
      %s265 = smul.u32 32, %s18
      %p266 = scmp.lt.s32.totalorder %s18, 1
      %s267 = scalar_select %p266, %s18, 1
      %s268 = smul.addr %s267, 8
      %s269 = scalar_lea.vmem %s5, %s268
      %p270 = scmp.lt.s32.totalorder %s18, 1
      %s271 = scalar_select %p270, %s18, 1
      %s272 = smul.addr %s271, 8
      %s273 = scalar_lea.vmem %s6, %s272
      %275 = vst [vmem:[#allocation2] sm:$0xff] 0
      %276 = vst [vmem:[#allocation2 + $0x8] sm:$0xff] 0
      %s277 = scalar_lea.vmem [#allocation2], 272
      %278 = vst [vmem:[%s277] sm:$0xff] 0
      %279 = vst [vmem:[%s277 + $0x8] sm:$0xff] 0
      %vm280 = vcmask 1040384
      %vm281 = vsmask.f32 256
      %vm282 = vmand %vm280, %vm281
      %v283 = vld [vmem:[#allocation2] sm:$0x1]
      %v284 = vsel %vm282, 0, %v283
      %285 = vst [vmem:[#allocation2] sm:$0x1] %v284
      %v286 = vld [vmem:[#allocation2 + $0x10] sm:$0x1]
      %v287 = vsel %vm282, 0, %v286
      %288 = vst [vmem:[#allocation2 + $0x10] sm:$0x1] %v287
      %v289 = vld [vmem:[#allocation2 + $0x20] sm:$0x1]
      %v290 = vsel %vm282, 0, %v289
      %291 = vst [vmem:[#allocation2 + $0x20] sm:$0x1] %v290
      %v292 = vld [vmem:[#allocation2 + $0x30] sm:$0x1]
      %v293 = vsel %vm282, 0, %v292
      %294 = vst [vmem:[#allocation2 + $0x30] sm:$0x1] %v293
      %v295 = vld [vmem:[#allocation2 + $0x40] sm:$0x1]
      %v296 = vsel %vm282, 0, %v295
      %297 = vst [vmem:[#allocation2 + $0x40] sm:$0x1] %v296
      %v298 = vld [vmem:[#allocation2 + $0x50] sm:$0x1]
      %v299 = vsel %vm282, 0, %v298
      %300 = vst [vmem:[#allocation2 + $0x50] sm:$0x1] %v299
      %v301 = vld [vmem:[#allocation2 + $0x60] sm:$0x1]
      %v302 = vsel %vm282, 0, %v301
      %303 = vst [vmem:[#allocation2 + $0x60] sm:$0x1] %v302
      %v304 = vld [vmem:[#allocation2 + $0x70] sm:$0x1]
      %v305 = vsel %vm282, 0, %v304
      %306 = vst [vmem:[#allocation2 + $0x70] sm:$0x1] %v305
      %v307 = vld [vmem:[#allocation2 + $0x80] sm:$0x1]
      %v308 = vsel %vm282, 0, %v307
      %309 = vst [vmem:[#allocation2 + $0x80] sm:$0x1] %v308
      %v310 = vld [vmem:[#allocation2 + $0x90] sm:$0x1]
      %v311 = vsel %vm282, 0, %v310
      %312 = vst [vmem:[#allocation2 + $0x90] sm:$0x1] %v311
      %v313 = vld [vmem:[#allocation2 + $0xa0] sm:$0x1]
      %v314 = vsel %vm282, 0, %v313
      %315 = vst [vmem:[#allocation2 + $0xa0] sm:$0x1] %v314
      %v316 = vld [vmem:[#allocation2 + $0xb0] sm:$0x1]
      %v317 = vsel %vm282, 0, %v316
      %318 = vst [vmem:[#allocation2 + $0xb0] sm:$0x1] %v317
      %v319 = vld [vmem:[#allocation2 + $0xc0] sm:$0x1]
      %v320 = vsel %vm282, 0, %v319
      %321 = vst [vmem:[#allocation2 + $0xc0] sm:$0x1] %v320
      %v322 = vld [vmem:[#allocation2 + $0xd0] sm:$0x1]
      %v323 = vsel %vm282, 0, %v322
      %324 = vst [vmem:[#allocation2 + $0xd0] sm:$0x1] %v323
      %v325 = vld [vmem:[#allocation2 + $0xe0] sm:$0x1]
      %v326 = vsel %vm282, 0, %v325
      %327 = vst [vmem:[#allocation2 + $0xe0] sm:$0x1] %v326
      %v328 = vld [vmem:[#allocation2 + $0xf0] sm:$0x1]
      %v329 = vsel %vm282, 0, %v328
      %330 = vst [vmem:[#allocation2 + $0xf0] sm:$0x1] %v329
      %v331 = vld [vmem:[#allocation2 + $0x100] sm:$0x1]
      %v332 = vsel %vm282, 0, %v331
      %333 = vst [vmem:[#allocation2 + $0x100] sm:$0x1] %v332
      %v334 = vld [vmem:[#allocation2 + $0x110] sm:$0x1]
      %v335 = vsel %vm282, 0, %v334
      %336 = vst [vmem:[#allocation2 + $0x110] sm:$0x1] %v335
      %vm337 = vsmask.f32 7938
      %vm338 = vmand %vm280, %vm337
      %v339 = vld [vmem:[#allocation2 + $0x8] sm:$0x1]
      %v340 = vsel %vm338, 0, %v339
      %341 = vst [vmem:[#allocation2 + $0x8] sm:$0x1] %v340
      %v342 = vld [vmem:[#allocation2 + $0x18] sm:$0x1]
      %v343 = vsel %vm338, 0, %v342
      %344 = vst [vmem:[#allocation2 + $0x18] sm:$0x1] %v343
      %v345 = vld [vmem:[#allocation2 + $0x28] sm:$0x1]
      %v346 = vsel %vm338, 0, %v345
      %347 = vst [vmem:[#allocation2 + $0x28] sm:$0x1] %v346
      %v348 = vld [vmem:[#allocation2 + $0x38] sm:$0x1]
      %v349 = vsel %vm338, 0, %v348
      %350 = vst [vmem:[#allocation2 + $0x38] sm:$0x1] %v349
      %v351 = vld [vmem:[#allocation2 + $0x48] sm:$0x1]
      %v352 = vsel %vm338, 0, %v351
      %353 = vst [vmem:[#allocation2 + $0x48] sm:$0x1] %v352
      %v354 = vld [vmem:[#allocation2 + $0x58] sm:$0x1]
      %v355 = vsel %vm338, 0, %v354
      %356 = vst [vmem:[#allocation2 + $0x58] sm:$0x1] %v355
      %v357 = vld [vmem:[#allocation2 + $0x68] sm:$0x1]
      %v358 = vsel %vm338, 0, %v357
      %359 = vst [vmem:[#allocation2 + $0x68] sm:$0x1] %v358
      %v360 = vld [vmem:[#allocation2 + $0x78] sm:$0x1]
      %v361 = vsel %vm338, 0, %v360
      %362 = vst [vmem:[#allocation2 + $0x78] sm:$0x1] %v361
      %v363 = vld [vmem:[#allocation2 + $0x88] sm:$0x1]
      %v364 = vsel %vm338, 0, %v363
      %365 = vst [vmem:[#allocation2 + $0x88] sm:$0x1] %v364
      %v366 = vld [vmem:[#allocation2 + $0x98] sm:$0x1]
      %v367 = vsel %vm338, 0, %v366
      %368 = vst [vmem:[#allocation2 + $0x98] sm:$0x1] %v367
      %v369 = vld [vmem:[#allocation2 + $0xa8] sm:$0x1]
      %v370 = vsel %vm338, 0, %v369
      %371 = vst [vmem:[#allocation2 + $0xa8] sm:$0x1] %v370
      %v372 = vld [vmem:[#allocation2 + $0xb8] sm:$0x1]
      %v373 = vsel %vm338, 0, %v372
      %374 = vst [vmem:[#allocation2 + $0xb8] sm:$0x1] %v373
      %v375 = vld [vmem:[#allocation2 + $0xc8] sm:$0x1]
      %v376 = vsel %vm338, 0, %v375
      %377 = vst [vmem:[#allocation2 + $0xc8] sm:$0x1] %v376
      %v378 = vld [vmem:[#allocation2 + $0xd8] sm:$0x1]
      %v379 = vsel %vm338, 0, %v378
      %380 = vst [vmem:[#allocation2 + $0xd8] sm:$0x1] %v379
      %v381 = vld [vmem:[#allocation2 + $0xe8] sm:$0x1]
      %v382 = vsel %vm338, 0, %v381
      %383 = vst [vmem:[#allocation2 + $0xe8] sm:$0x1] %v382
      %v384 = vld [vmem:[#allocation2 + $0xf8] sm:$0x1]
      %v385 = vsel %vm338, 0, %v384
      %386 = vst [vmem:[#allocation2 + $0xf8] sm:$0x1] %v385
      %v387 = vld [vmem:[#allocation2 + $0x108] sm:$0x1]
      %v388 = vsel %vm338, 0, %v387
      %389 = vst [vmem:[#allocation2 + $0x108] sm:$0x1] %v388
      %v390 = vld [vmem:[#allocation2 + $0x118] sm:$0x1]
      %v391 = vsel %vm338, 0, %v390
      %392 = vst [vmem:[#allocation2 + $0x118] sm:$0x1] %v391
      %v393 = vld [vmem:[%s259] sm:$0xf]
      %v394 = vld [vmem:[%s259 + $0x4] sm:$0xf]
      %v395 = vld [vmem:[%s259 + $0x8] sm:$0xf]
      %v396 = vld [vmem:[%s259 + $0xc] sm:$0xf]
      %v397 = vld [vmem:[%s259 + $0x10] sm:$0xf]
      %v398 = vld [vmem:[%s259 + $0x14] sm:$0xf]
      %v399 = vld [vmem:[%s259 + $0x18] sm:$0xf]
      %v400 = vld [vmem:[%s259 + $0x1c] sm:$0xf]
      %v401 = vld [vmem:[%s259 + $0x20] sm:$0xf]
      %v402 = vld [vmem:[%s259 + $0x24] sm:$0xf]
      %v403 = vld [vmem:[%s259 + $0x28] sm:$0xf]
      %v404 = vld [vmem:[%s259 + $0x2c] sm:$0xf]
      %v405 = vld [vmem:[%s259 + $0x30] sm:$0xf]
      %v406 = vld [vmem:[%s259 + $0x34] sm:$0xf]
      %v407 = vld [vmem:[%s259 + $0x38] sm:$0xf]
      %v408 = vld [vmem:[%s259 + $0x3c] sm:$0xf]
      %v409 = vld [vmem:[%s259 + $0x40] sm:$0xf]
      %v410 = vld [vmem:[%s259 + $0x44] sm:$0xf]
      %v411 = vld [vmem:[%s259 + $0x48] sm:$0xf]
      %v412 = vld [vmem:[%s259 + $0x4c] sm:$0xf]
      %v413 = vld [vmem:[%s259 + $0x50] sm:$0xf]
      %v414 = vld [vmem:[%s259 + $0x54] sm:$0xf]
      %v415 = vld [vmem:[%s259 + $0x58] sm:$0xf]
      %v416 = vld [vmem:[%s259 + $0x5c] sm:$0xf]
      %v417 = vld [vmem:[%s259 + $0x60] sm:$0xf]
      %v418 = vld [vmem:[%s259 + $0x64] sm:$0xf]
      %v419 = vld [vmem:[%s259 + $0x68] sm:$0xf]
      %v420 = vld [vmem:[%s259 + $0x6c] sm:$0xf]
      %v421 = vld [vmem:[%s259 + $0x70] sm:$0xf]
      %v422 = vld [vmem:[%s259 + $0x74] sm:$0xf]
      %v423 = vld [vmem:[%s259 + $0x78] sm:$0xf]
      %v424 = vld [vmem:[%s259 + $0x7c] sm:$0xf]
      %v425 = vunpack.c.l.bf16 %v393
      %v426 = vunpack.c.l.bf16 %v394
      %v427 = vunpack.c.l.bf16 %v395
      %v428 = vunpack.c.l.bf16 %v396
      %v429 = vunpack.c.l.bf16 %v397
      %v430 = vunpack.c.l.bf16 %v398
      %v431 = vunpack.c.l.bf16 %v399
      %v432 = vunpack.c.l.bf16 %v400
      %v433 = vunpack.c.l.bf16 %v401
      %v434 = vunpack.c.l.bf16 %v402
      %v435 = vunpack.c.l.bf16 %v403
      %v436 = vunpack.c.l.bf16 %v404
      %v437 = vunpack.c.l.bf16 %v405
      %v438 = vunpack.c.l.bf16 %v406
      %v439 = vunpack.c.l.bf16 %v407
      %v440 = vunpack.c.l.bf16 %v408
      %v441 = vunpack.c.l.bf16 %v409
      %v442 = vunpack.c.l.bf16 %v410
      %v443 = vunpack.c.l.bf16 %v411
      %v444 = vunpack.c.l.bf16 %v412
      %v445 = vunpack.c.l.bf16 %v413
      %v446 = vunpack.c.l.bf16 %v414
      %v447 = vunpack.c.l.bf16 %v415
      %v448 = vunpack.c.l.bf16 %v416
      %v449 = vunpack.c.l.bf16 %v417
      %v450 = vunpack.c.l.bf16 %v418
      %v451 = vunpack.c.l.bf16 %v419
      %v452 = vunpack.c.l.bf16 %v420
      %v453 = vunpack.c.l.bf16 %v421
      %v454 = vunpack.c.l.bf16 %v422
      %v455 = vunpack.c.l.bf16 %v423
      %v456 = vunpack.c.l.bf16 %v424
      %v457 = vld [vmem:[%s2] sm:$0x1]
      %v459 = vlaneseq
      %v460 = vshrl.u32 %v459, 7
      %v461 = vsub.s32 0, %v460
      %v462 = vrot.slane %v457, %v461
      %v464 = vmul.f32 %v425, %v462
      %v465 = vmul.f32 %v426, %v462
      %v466 = vmul.f32 %v427, %v462
      %v467 = vmul.f32 %v428, %v462
      %v468 = vmul.f32 %v429, %v462
      %v469 = vmul.f32 %v430, %v462
      %v470 = vmul.f32 %v431, %v462
      %v471 = vmul.f32 %v432, %v462
      %v472 = vmul.f32 %v433, %v462
      %v473 = vmul.f32 %v434, %v462
      %v474 = vmul.f32 %v435, %v462
      %v475 = vmul.f32 %v436, %v462
      %v476 = vmul.f32 %v437, %v462
      %v477 = vmul.f32 %v438, %v462
      %v478 = vmul.f32 %v439, %v462
      %v479 = vmul.f32 %v440, %v462
      %v480 = vmul.f32 %v441, %v462
      %v481 = vmul.f32 %v442, %v462
      %v482 = vmul.f32 %v443, %v462
      %v483 = vmul.f32 %v444, %v462
      %v484 = vmul.f32 %v445, %v462
      %v485 = vmul.f32 %v446, %v462
      %v486 = vmul.f32 %v447, %v462
      %v487 = vmul.f32 %v448, %v462
      %v488 = vmul.f32 %v449, %v462
      %v489 = vmul.f32 %v450, %v462
      %v490 = vmul.f32 %v451, %v462
      %v491 = vmul.f32 %v452, %v462
      %v492 = vmul.f32 %v453, %v462
      %v493 = vmul.f32 %v454, %v462
      %v494 = vmul.f32 %v455, %v462
      %v495 = vmul.f32 %v456, %v462
      %v496 = vld [vmem:[%s3] sm:$0x1]
      %v498 = vlaneseq
      %v499 = vshrl.u32 %v498, 7
      %v500 = vsub.s32 0, %v499
      %v501 = vrot.slane %v496, %v500
      %v503 = vadd.f32 %v464, %v501
      %v504 = vadd.f32 %v465, %v501
      %v505 = vadd.f32 %v466, %v501
      %v506 = vadd.f32 %v467, %v501
      %v507 = vadd.f32 %v468, %v501
      %v508 = vadd.f32 %v469, %v501
      %v509 = vadd.f32 %v470, %v501
      %v510 = vadd.f32 %v471, %v501
      %v511 = vadd.f32 %v472, %v501
      %v512 = vadd.f32 %v473, %v501
      %v513 = vadd.f32 %v474, %v501
      %v514 = vadd.f32 %v475, %v501
      %v515 = vadd.f32 %v476, %v501
      %v516 = vadd.f32 %v477, %v501
      %v517 = vadd.f32 %v478, %v501
      %v518 = vadd.f32 %v479, %v501
      %v519 = vadd.f32 %v480, %v501
      %v520 = vadd.f32 %v481, %v501
      %v521 = vadd.f32 %v482, %v501
      %v522 = vadd.f32 %v483, %v501
      %v523 = vadd.f32 %v484, %v501
      %v524 = vadd.f32 %v485, %v501
      %v525 = vadd.f32 %v486, %v501
      %v526 = vadd.f32 %v487, %v501
      %v527 = vadd.f32 %v488, %v501
      %v528 = vadd.f32 %v489, %v501
      %v529 = vadd.f32 %v490, %v501
      %v530 = vadd.f32 %v491, %v501
      %v531 = vadd.f32 %v492, %v501
      %v532 = vadd.f32 %v493, %v501
      %v533 = vadd.f32 %v494, %v501
      %v534 = vadd.f32 %v495, %v501
      %v535 = vmax.f32 %v503, 0.0
      %v536 = vmax.f32 %v504, 0.0
      %v537 = vmax.f32 %v505, 0.0
      %v538 = vmax.f32 %v506, 0.0
      %v539 = vmax.f32 %v507, 0.0
      %v540 = vmax.f32 %v508, 0.0
      %v541 = vmax.f32 %v509, 0.0
      %v542 = vmax.f32 %v510, 0.0
      %v543 = vmax.f32 %v511, 0.0
      %v544 = vmax.f32 %v512, 0.0
      %v545 = vmax.f32 %v513, 0.0
      %v546 = vmax.f32 %v514, 0.0
      %v547 = vmax.f32 %v515, 0.0
      %v548 = vmax.f32 %v516, 0.0
      %v549 = vmax.f32 %v517, 0.0
      %v550 = vmax.f32 %v518, 0.0
      %v551 = vmax.f32 %v519, 0.0
      %v552 = vmax.f32 %v520, 0.0
      %v553 = vmax.f32 %v521, 0.0
      %v554 = vmax.f32 %v522, 0.0
      %v555 = vmax.f32 %v523, 0.0
      %v556 = vmax.f32 %v524, 0.0
      %v557 = vmax.f32 %v525, 0.0
      %v558 = vmax.f32 %v526, 0.0
      %v559 = vmax.f32 %v527, 0.0
      %v560 = vmax.f32 %v528, 0.0
      %v561 = vmax.f32 %v529, 0.0
      %v562 = vmax.f32 %v530, 0.0
      %v563 = vmax.f32 %v531, 0.0
      %v564 = vmax.f32 %v532, 0.0
      %v565 = vmax.f32 %v533, 0.0
      %v566 = vmax.f32 %v534, 0.0
      %v567 = vpack.c.bf16 %v536, %v535
      %v568 = vpack.c.bf16 %v538, %v537
      %v569 = vpack.c.bf16 %v540, %v539
      %v570 = vpack.c.bf16 %v542, %v541
      %v571 = vpack.c.bf16 %v544, %v543
      %v572 = vpack.c.bf16 %v546, %v545
      %v573 = vpack.c.bf16 %v548, %v547
      %v574 = vpack.c.bf16 %v550, %v549
      %v575 = vpack.c.bf16 %v552, %v551
      %v576 = vpack.c.bf16 %v554, %v553
      %v577 = vpack.c.bf16 %v556, %v555
      %v578 = vpack.c.bf16 %v558, %v557
      %v579 = vpack.c.bf16 %v560, %v559
      %v580 = vpack.c.bf16 %v562, %v561
      %v581 = vpack.c.bf16 %v564, %v563
      %v582 = vpack.c.bf16 %v566, %v565
      %v584 = vshrl.u32 %v567, 16
      %v586 = vrot.slane %v584, 7
      %v587 = vshll.u32 %v567, 16
      %v589 = vor.u32 %v586, %v587
      %v591 = vshrl.u32 %v568, 16
      %v593 = vrot.slane %v591, 7
      %v594 = vshll.u32 %v568, 16
      %v596 = vor.u32 %v593, %v594
      %v598 = vshrl.u32 %v569, 16
      %v600 = vrot.slane %v598, 7
      %v601 = vshll.u32 %v569, 16
      %v603 = vor.u32 %v600, %v601
      %v605 = vshrl.u32 %v570, 16
      %v607 = vrot.slane %v605, 7
      %v608 = vshll.u32 %v570, 16
      %v610 = vor.u32 %v607, %v608
      %v612 = vshrl.u32 %v571, 16
      %v614 = vrot.slane %v612, 7
      %v615 = vshll.u32 %v571, 16
      %v617 = vor.u32 %v614, %v615
      %v619 = vshrl.u32 %v572, 16
      %v621 = vrot.slane %v619, 7
      %v622 = vshll.u32 %v572, 16
      %v624 = vor.u32 %v621, %v622
      %v626 = vshrl.u32 %v573, 16
      %v628 = vrot.slane %v626, 7
      %v629 = vshll.u32 %v573, 16
      %v631 = vor.u32 %v628, %v629
      %v633 = vshrl.u32 %v574, 16
      %v635 = vrot.slane %v633, 7
      %v636 = vshll.u32 %v574, 16
      %v638 = vor.u32 %v635, %v636
      %v640 = vshrl.u32 %v575, 16
      %v642 = vrot.slane %v640, 7
      %v643 = vshll.u32 %v575, 16
      %v645 = vor.u32 %v642, %v643
      %v647 = vshrl.u32 %v576, 16
      %v649 = vrot.slane %v647, 7
      %v650 = vshll.u32 %v576, 16
      %v652 = vor.u32 %v649, %v650
      %v654 = vshrl.u32 %v577, 16
      %v656 = vrot.slane %v654, 7
      %v657 = vshll.u32 %v577, 16
      %v659 = vor.u32 %v656, %v657
      %v661 = vshrl.u32 %v578, 16
      %v663 = vrot.slane %v661, 7
      %v664 = vshll.u32 %v578, 16
      %v666 = vor.u32 %v663, %v664
      %v668 = vshrl.u32 %v579, 16
      %v670 = vrot.slane %v668, 7
      %v671 = vshll.u32 %v579, 16
      %v673 = vor.u32 %v670, %v671
      %v675 = vshrl.u32 %v580, 16
      %v677 = vrot.slane %v675, 7
      %v678 = vshll.u32 %v580, 16
      %v680 = vor.u32 %v677, %v678
      %v682 = vshrl.u32 %v581, 16
      %v684 = vrot.slane %v682, 7
      %v685 = vshll.u32 %v581, 16
      %v687 = vor.u32 %v684, %v685
      %v689 = vshrl.u32 %v582, 16
      %v691 = vrot.slane %v689, 7
      %v692 = vshll.u32 %v582, 16
      %v694 = vor.u32 %v691, %v692
      %s727 = scalar_lea.vmem [#allocation2], 16
      %vm728 = vcmask 1047552
      %vm729 = vmand %vm728, %vm337
      %v730 = vld [vmem:[%s727] sm:$0xff]
      %v731 = vsel %vm729, %v589, %v730
      %732 = vst [vmem:[%s727] sm:$0xff] %v731
      %v733 = vld [vmem:[%s727 + $0x8] sm:$0x1]
      %v734 = vsel %vm282, %v586, %v733
      %735 = vst [vmem:[%s727 + $0x8] sm:$0x1] %v734
      %v736 = vld [vmem:[%s727 + $0x10] sm:$0xff]
      %v737 = vsel %vm729, %v596, %v736
      %738 = vst [vmem:[%s727 + $0x10] sm:$0xff] %v737
      %v739 = vld [vmem:[%s727 + $0x18] sm:$0x1]
      %v740 = vsel %vm282, %v593, %v739
      %741 = vst [vmem:[%s727 + $0x18] sm:$0x1] %v740
      %v742 = vld [vmem:[%s727 + $0x20] sm:$0xff]
      %v743 = vsel %vm729, %v603, %v742
      %744 = vst [vmem:[%s727 + $0x20] sm:$0xff] %v743
      %v745 = vld [vmem:[%s727 + $0x28] sm:$0x1]
      %v746 = vsel %vm282, %v600, %v745
      %747 = vst [vmem:[%s727 + $0x28] sm:$0x1] %v746
      %v748 = vld [vmem:[%s727 + $0x30] sm:$0xff]
      %v749 = vsel %vm729, %v610, %v748
      %750 = vst [vmem:[%s727 + $0x30] sm:$0xff] %v749
      %v751 = vld [vmem:[%s727 + $0x38] sm:$0x1]
      %v752 = vsel %vm282, %v607, %v751
      %753 = vst [vmem:[%s727 + $0x38] sm:$0x1] %v752
      %v754 = vld [vmem:[%s727 + $0x40] sm:$0xff]
      %v755 = vsel %vm729, %v617, %v754
      %756 = vst [vmem:[%s727 + $0x40] sm:$0xff] %v755
      %v757 = vld [vmem:[%s727 + $0x48] sm:$0x1]
      %v758 = vsel %vm282, %v614, %v757
      %759 = vst [vmem:[%s727 + $0x48] sm:$0x1] %v758
      %v760 = vld [vmem:[%s727 + $0x50] sm:$0xff]
      %v761 = vsel %vm729, %v624, %v760
      %762 = vst [vmem:[%s727 + $0x50] sm:$0xff] %v761
      %v763 = vld [vmem:[%s727 + $0x58] sm:$0x1]
      %v764 = vsel %vm282, %v621, %v763
      %765 = vst [vmem:[%s727 + $0x58] sm:$0x1] %v764
      %v766 = vld [vmem:[%s727 + $0x60] sm:$0xff]
      %v767 = vsel %vm729, %v631, %v766
      %768 = vst [vmem:[%s727 + $0x60] sm:$0xff] %v767
      %v769 = vld [vmem:[%s727 + $0x68] sm:$0x1]
      %v770 = vsel %vm282, %v628, %v769
      %771 = vst [vmem:[%s727 + $0x68] sm:$0x1] %v770
      %v772 = vld [vmem:[%s727 + $0x70] sm:$0xff]
      %v773 = vsel %vm729, %v638, %v772
      %774 = vst [vmem:[%s727 + $0x70] sm:$0xff] %v773
      %v775 = vld [vmem:[%s727 + $0x78] sm:$0x1]
      %v776 = vsel %vm282, %v635, %v775
      %777 = vst [vmem:[%s727 + $0x78] sm:$0x1] %v776
      %v778 = vld [vmem:[%s727 + $0x80] sm:$0xff]
      %v779 = vsel %vm729, %v645, %v778
      %780 = vst [vmem:[%s727 + $0x80] sm:$0xff] %v779
      %v781 = vld [vmem:[%s727 + $0x88] sm:$0x1]
      %v782 = vsel %vm282, %v642, %v781
      %783 = vst [vmem:[%s727 + $0x88] sm:$0x1] %v782
      %v784 = vld [vmem:[%s727 + $0x90] sm:$0xff]
      %v785 = vsel %vm729, %v652, %v784
      %786 = vst [vmem:[%s727 + $0x90] sm:$0xff] %v785
      %v787 = vld [vmem:[%s727 + $0x98] sm:$0x1]
      %v788 = vsel %vm282, %v649, %v787
      %789 = vst [vmem:[%s727 + $0x98] sm:$0x1] %v788
      %v790 = vld [vmem:[%s727 + $0xa0] sm:$0xff]
      %v791 = vsel %vm729, %v659, %v790
      %792 = vst [vmem:[%s727 + $0xa0] sm:$0xff] %v791
      %v793 = vld [vmem:[%s727 + $0xa8] sm:$0x1]
      %v794 = vsel %vm282, %v656, %v793
      %795 = vst [vmem:[%s727 + $0xa8] sm:$0x1] %v794
      %v796 = vld [vmem:[%s727 + $0xb0] sm:$0xff]
      %v797 = vsel %vm729, %v666, %v796
      %798 = vst [vmem:[%s727 + $0xb0] sm:$0xff] %v797
      %v799 = vld [vmem:[%s727 + $0xb8] sm:$0x1]
      %v800 = vsel %vm282, %v663, %v799
      %801 = vst [vmem:[%s727 + $0xb8] sm:$0x1] %v800
      %v802 = vld [vmem:[%s727 + $0xc0] sm:$0xff]
      %v803 = vsel %vm729, %v673, %v802
      %804 = vst [vmem:[%s727 + $0xc0] sm:$0xff] %v803
      %v805 = vld [vmem:[%s727 + $0xc8] sm:$0x1]
      %v806 = vsel %vm282, %v670, %v805
      %807 = vst [vmem:[%s727 + $0xc8] sm:$0x1] %v806
      %v808 = vld [vmem:[%s727 + $0xd0] sm:$0xff]
      %v809 = vsel %vm729, %v680, %v808
      %810 = vst [vmem:[%s727 + $0xd0] sm:$0xff] %v809
      %v811 = vld [vmem:[%s727 + $0xd8] sm:$0x1]
      %v812 = vsel %vm282, %v677, %v811
      %813 = vst [vmem:[%s727 + $0xd8] sm:$0x1] %v812
      %v814 = vld [vmem:[%s727 + $0xe0] sm:$0xff]
      %v815 = vsel %vm729, %v687, %v814
      %816 = vst [vmem:[%s727 + $0xe0] sm:$0xff] %v815
      %v817 = vld [vmem:[%s727 + $0xe8] sm:$0x1]
      %v818 = vsel %vm282, %v684, %v817
      %819 = vst [vmem:[%s727 + $0xe8] sm:$0x1] %v818
      %v820 = vld [vmem:[%s727 + $0xf0] sm:$0xff]
      %v821 = vsel %vm729, %v694, %v820
      %822 = vst [vmem:[%s727 + $0xf0] sm:$0xff] %v821
      %v823 = vld [vmem:[%s727 + $0xf8] sm:$0x1]
      %v824 = vsel %vm282, %v691, %v823
      %825 = vst [vmem:[%s727 + $0xf8] sm:$0x1] %v824
      %v826 = vld [vmem:[#allocation2] sm:$0xff]
      %v827 = vld [vmem:[#allocation2 + $0x10] sm:$0xff]
      %v828 = vld [vmem:[#allocation2 + $0x20] sm:$0xff]
      %v829 = vld [vmem:[#allocation2 + $0x30] sm:$0xff]
      %v830 = vld [vmem:[#allocation2 + $0x40] sm:$0xff]
      %v831 = vld [vmem:[#allocation2 + $0x50] sm:$0xff]
      %v832 = vld [vmem:[#allocation2 + $0x60] sm:$0xff]
      %v833 = vld [vmem:[#allocation2 + $0x70] sm:$0xff]
      %v834 = vld [vmem:[#allocation2 + $0x80] sm:$0xff]
      %v835 = vld [vmem:[#allocation2 + $0x90] sm:$0xff]
      %v836 = vld [vmem:[#allocation2 + $0xa0] sm:$0xff]
      %v837 = vld [vmem:[#allocation2 + $0xb0] sm:$0xff]
      %v838 = vld [vmem:[#allocation2 + $0xc0] sm:$0xff]
      %v839 = vld [vmem:[#allocation2 + $0xd0] sm:$0xff]
      %v840 = vld [vmem:[#allocation2 + $0xe0] sm:$0xff]
      %v841 = vld [vmem:[#allocation2 + $0xf0] sm:$0xff]
      %v842 = vld [vmem:[%s1] sm:$0xf]
      %v843 = vld [vmem:[%s1 + $0x4] sm:$0xf]
      %v844 = vld [vmem:[%s1 + $0x8] sm:$0xf]
      %v845 = vld [vmem:[%s1 + $0xc] sm:$0xf]
      %v846 = vld [vmem:[%s1 + $0x10] sm:$0xf]
      %v847 = vld [vmem:[%s1 + $0x14] sm:$0xf]
      %v848 = vld [vmem:[%s1 + $0x18] sm:$0xf]
      %v849 = vld [vmem:[%s1 + $0x1c] sm:$0xf]
      %v850 = vld [vmem:[%s1 + $0x20] sm:$0xf]
      %v851 = vld [vmem:[%s1 + $0x24] sm:$0xf]
      %v852 = vld [vmem:[%s1 + $0x28] sm:$0xf]
      %v853 = vld [vmem:[%s1 + $0x2c] sm:$0xf]
      %v854 = vld [vmem:[%s1 + $0x30] sm:$0xf]
      %v855 = vld [vmem:[%s1 + $0x34] sm:$0xf]
      %v856 = vld [vmem:[%s1 + $0x38] sm:$0xf]
      %v857 = vld [vmem:[%s1 + $0x3c] sm:$0xf]
      %v858 = vld [vmem:[#allocation2 + $0x8] sm:$0x1]
      %v859 = vld [vmem:[#allocation2 + $0x18] sm:$0x1]
      %v860 = vld [vmem:[#allocation2 + $0x28] sm:$0x1]
      %v861 = vld [vmem:[#allocation2 + $0x38] sm:$0x1]
      %v862 = vld [vmem:[#allocation2 + $0x48] sm:$0x1]
      %v863 = vld [vmem:[#allocation2 + $0x58] sm:$0x1]
      %v864 = vld [vmem:[#allocation2 + $0x68] sm:$0x1]
      %v865 = vld [vmem:[#allocation2 + $0x78] sm:$0x1]
      %v866 = vld [vmem:[#allocation2 + $0x88] sm:$0x1]
      %v867 = vld [vmem:[#allocation2 + $0x98] sm:$0x1]
      %v868 = vld [vmem:[#allocation2 + $0xa8] sm:$0x1]
      %v869 = vld [vmem:[#allocation2 + $0xb8] sm:$0x1]
      %v870 = vld [vmem:[#allocation2 + $0xc8] sm:$0x1]
      %v871 = vld [vmem:[#allocation2 + $0xd8] sm:$0x1]
      %v872 = vld [vmem:[#allocation2 + $0xe8] sm:$0x1]
      %v873 = vld [vmem:[#allocation2 + $0xf8] sm:$0x1]
      %vm874 = vsmask.f32 7424
      %v876 = vshrl.u32 %v826, 16
      %v878 = vshll.u32 %v826, 16
      %v880 = vrot.slane %v878, 1
      %v881 = vor.u32 %v876, %v880
      %v883 = vshll.u32 %v858, 16
      %v885 = vrot.slane %v883, 1
      %v886 = vsel %vm874, %v881, %v885
      %v888 = vshrl.u32 %v827, 16
      %v890 = vshll.u32 %v827, 16
      %v892 = vrot.slane %v890, 1
      %v893 = vor.u32 %v888, %v892
      %v895 = vshll.u32 %v859, 16
      %v897 = vrot.slane %v895, 1
      %v898 = vsel %vm874, %v893, %v897
      %v900 = vshrl.u32 %v828, 16
      %v902 = vshll.u32 %v828, 16
      %v904 = vrot.slane %v902, 1
      %v905 = vor.u32 %v900, %v904
      %v907 = vshll.u32 %v860, 16
      %v909 = vrot.slane %v907, 1
      %v910 = vsel %vm874, %v905, %v909
      %v912 = vshrl.u32 %v829, 16
      %v914 = vshll.u32 %v829, 16
      %v916 = vrot.slane %v914, 1
      %v917 = vor.u32 %v912, %v916
      %v919 = vshll.u32 %v861, 16
      %v921 = vrot.slane %v919, 1
      %v922 = vsel %vm874, %v917, %v921
      %v924 = vshrl.u32 %v830, 16
      %v926 = vshll.u32 %v830, 16
      %v928 = vrot.slane %v926, 1
      %v929 = vor.u32 %v924, %v928
      %v931 = vshll.u32 %v862, 16
      %v933 = vrot.slane %v931, 1
      %v934 = vsel %vm874, %v929, %v933
      %v936 = vshrl.u32 %v831, 16
      %v938 = vshll.u32 %v831, 16
      %v940 = vrot.slane %v938, 1
      %v941 = vor.u32 %v936, %v940
      %v943 = vshll.u32 %v863, 16
      %v945 = vrot.slane %v943, 1
      %v946 = vsel %vm874, %v941, %v945
      %v948 = vshrl.u32 %v832, 16
      %v950 = vshll.u32 %v832, 16
      %v952 = vrot.slane %v950, 1
      %v953 = vor.u32 %v948, %v952
      %v955 = vshll.u32 %v864, 16
      %v957 = vrot.slane %v955, 1
      %v958 = vsel %vm874, %v953, %v957
      %v960 = vshrl.u32 %v833, 16
      %v962 = vshll.u32 %v833, 16
      %v964 = vrot.slane %v962, 1
      %v965 = vor.u32 %v960, %v964
      %v967 = vshll.u32 %v865, 16
      %v969 = vrot.slane %v967, 1
      %v970 = vsel %vm874, %v965, %v969
      %v972 = vshrl.u32 %v834, 16
      %v974 = vshll.u32 %v834, 16
      %v976 = vrot.slane %v974, 1
      %v977 = vor.u32 %v972, %v976
      %v979 = vshll.u32 %v866, 16
      %v981 = vrot.slane %v979, 1
      %v982 = vsel %vm874, %v977, %v981
      %v984 = vshrl.u32 %v835, 16
      %v986 = vshll.u32 %v835, 16
      %v988 = vrot.slane %v986, 1
      %v989 = vor.u32 %v984, %v988
      %v991 = vshll.u32 %v867, 16
      %v993 = vrot.slane %v991, 1
      %v994 = vsel %vm874, %v989, %v993
      %v996 = vshrl.u32 %v836, 16
      %v998 = vshll.u32 %v836, 16
      %v1000 = vrot.slane %v998, 1
      %v1001 = vor.u32 %v996, %v1000
      %v1003 = vshll.u32 %v868, 16
      %v1005 = vrot.slane %v1003, 1
      %v1006 = vsel %vm874, %v1001, %v1005
      %v1008 = vshrl.u32 %v837, 16
      %v1010 = vshll.u32 %v837, 16
      %v1012 = vrot.slane %v1010, 1
      %v1013 = vor.u32 %v1008, %v1012
      %v1015 = vshll.u32 %v869, 16
      %v1017 = vrot.slane %v1015, 1
      %v1018 = vsel %vm874, %v1013, %v1017
      %v1020 = vshrl.u32 %v838, 16
      %v1022 = vshll.u32 %v838, 16
      %v1024 = vrot.slane %v1022, 1
      %v1025 = vor.u32 %v1020, %v1024
      %v1027 = vshll.u32 %v870, 16
      %v1029 = vrot.slane %v1027, 1
      %v1030 = vsel %vm874, %v1025, %v1029
      %v1032 = vshrl.u32 %v839, 16
      %v1034 = vshll.u32 %v839, 16
      %v1036 = vrot.slane %v1034, 1
      %v1037 = vor.u32 %v1032, %v1036
      %v1039 = vshll.u32 %v871, 16
      %v1041 = vrot.slane %v1039, 1
      %v1042 = vsel %vm874, %v1037, %v1041
      %v1044 = vshrl.u32 %v840, 16
      %v1046 = vshll.u32 %v840, 16
      %v1048 = vrot.slane %v1046, 1
      %v1049 = vor.u32 %v1044, %v1048
      %v1051 = vshll.u32 %v872, 16
      %v1053 = vrot.slane %v1051, 1
      %v1054 = vsel %vm874, %v1049, %v1053
      %v1056 = vshrl.u32 %v841, 16
      %v1058 = vshll.u32 %v841, 16
      %v1060 = vrot.slane %v1058, 1
      %v1061 = vor.u32 %v1056, %v1060
      %v1063 = vshll.u32 %v873, 16
      %v1065 = vrot.slane %v1063, 1
      %v1066 = vsel %vm874, %v1061, %v1065
      %v1083 = vld [vmem:[%s1 + $0x40] sm:$0xf]
      %v1084 = vld [vmem:[%s1 + $0x44] sm:$0xf]
      %v1085 = vld [vmem:[%s1 + $0x48] sm:$0xf]
      %v1086 = vld [vmem:[%s1 + $0x4c] sm:$0xf]
      %v1087 = vld [vmem:[%s1 + $0x50] sm:$0xf]
      %v1088 = vld [vmem:[%s1 + $0x54] sm:$0xf]
      %v1089 = vld [vmem:[%s1 + $0x58] sm:$0xf]
      %v1090 = vld [vmem:[%s1 + $0x5c] sm:$0xf]
      %v1091 = vld [vmem:[%s1 + $0x60] sm:$0xf]
      %v1092 = vld [vmem:[%s1 + $0x64] sm:$0xf]
      %v1093 = vld [vmem:[%s1 + $0x68] sm:$0xf]
      %v1094 = vld [vmem:[%s1 + $0x6c] sm:$0xf]
      %v1095 = vld [vmem:[%s1 + $0x70] sm:$0xf]
      %v1096 = vld [vmem:[%s1 + $0x74] sm:$0xf]
      %v1097 = vld [vmem:[%s1 + $0x78] sm:$0xf]
      %v1098 = vld [vmem:[%s1 + $0x7c] sm:$0xf]
      %v1115 = vunpack.c.l.b16 %v1083
      %v1116 = vunpack.c.l.b16 %v1084
      %v1117 = vunpack.c.l.b16 %v1085
      %v1118 = vunpack.c.l.b16 %v1086
      %v1119 = vunpack.c.l.b16 %v1087
      %v1120 = vunpack.c.l.b16 %v1088
      %v1121 = vunpack.c.l.b16 %v1089
      %v1122 = vunpack.c.l.b16 %v1090
      %v1123 = vunpack.c.l.b16 %v1091
      %v1124 = vunpack.c.l.b16 %v1092
      %v1125 = vunpack.c.l.b16 %v1093
      %v1126 = vunpack.c.l.b16 %v1094
      %v1127 = vunpack.c.l.b16 %v1095
      %v1128 = vunpack.c.l.b16 %v1096
      %v1129 = vunpack.c.l.b16 %v1097
      %v1130 = vunpack.c.l.b16 %v1098
      %v1131 = vpack.c.b16 %v1116, %v1115
      %v1132 = vpack.c.b16 %v1118, %v1117
      %v1133 = vpack.c.b16 %v1120, %v1119
      %v1134 = vpack.c.b16 %v1122, %v1121
      %v1135 = vpack.c.b16 %v1124, %v1123
      %v1136 = vpack.c.b16 %v1126, %v1125
      %v1137 = vpack.c.b16 %v1128, %v1127
      %v1138 = vpack.c.b16 %v1130, %v1129
      %1147 = vmatprep.subr.bf16.mxu0 0
      %1148 = vmatpush1.bf16.msra.mxu0 %v1131
      %1149 = vmatprep.subr.bf16.mxu0 0
      %1150 = vmatpush1.bf16.msra.mxu0 %v1132
      %1151 = vmatprep.subr.bf16.mxu0 0
      %1152 = vmatpush1.bf16.msra.mxu0 %v1133
      %1153 = vmatprep.subr.bf16.mxu0 0
      %1154 = vmatpush1.bf16.msra.mxu0 %v1134
      %1155 = vmatprep.subr.bf16.mxu0 0
      %1156 = vmatpush1.bf16.msra.mxu0 %v1135
      %1157 = vmatprep.subr.bf16.mxu0 0
      %1158 = vmatpush1.bf16.msra.mxu0 %v1136
      %1159 = vmatprep.subr.bf16.mxu0 0
      %1160 = vmatpush1.bf16.msra.mxu0 %v1137
      %1161 = vmatprep.subr.bf16.mxu0 0
      %1162 = vmatpush1.bf16.msra.mxu0 %v1138
      %1163 = vmatprep.subr.bf16.mxu0 0
      %1164 = vmatpush1.bf16.msra.mxu0 0
      %1165 = vmatprep.subr.bf16.mxu0 0
      %1166 = vmatpush1.bf16.msra.mxu0 0
      %1167 = vmatprep.subr.bf16.mxu0 0
      %1168 = vmatpush1.bf16.msra.mxu0 0
      %1169 = vmatprep.subr.bf16.mxu0 0
      %1170 = vmatpush1.bf16.msra.mxu0 0
      %1171 = vmatprep.subr.bf16.mxu0 0
      %1172 = vmatpush1.bf16.msra.mxu0 0
      %1173 = vmatprep.subr.bf16.mxu0 0
      %1174 = vmatpush1.bf16.msra.mxu0 0
      %1175 = vmatprep.subr.bf16.mxu0 0
      %1176 = vmatpush1.bf16.msra.mxu0 0
      %1177 = vmatprep.subr.bf16.mxu0 0
      %1178 = vmatpush1.bf16.msra.mxu0 0
      %1179 = vmatprep.mubr.bf16.mxu0 0
      %1180 = vmatmul.mubr.bf16.gmra.mrb[0].mxu0 %v886
      %v1181 = vpop.f32.mrb[0].mxu0
      %v1182 = vadd.f32 0.0, %v1181
      %v1183 = vpop.f32.mrb[0].mxu0
      %v1184 = vpop.f32.mrb[0].mxu0
      %v1185 = vadd.f32 0.0, %v1184
      %v1186 = vpop.f32.mrb[0].mxu0
      %1187 = vmatprep.mubr.bf16.mxu0 0
      %1188 = vmatmul.mubr.bf16.gmra.mrb[0].mxu0 %v898
      %v1189 = vpop.f32.mrb[0].mxu0
      %v1190 = vadd.f32 0.0, %v1189
      %v1191 = vpop.f32.mrb[0].mxu0
      %v1192 = vpop.f32.mrb[0].mxu0
      %v1193 = vadd.f32 0.0, %v1192
      %v1194 = vpop.f32.mrb[0].mxu0
      %1195 = vmatprep.mubr.bf16.mxu0 0
      %1196 = vmatmul.mubr.bf16.gmra.mrb[0].mxu0 %v910
      %v1197 = vpop.f32.mrb[0].mxu0
      %v1198 = vadd.f32 0.0, %v1197
      %v1199 = vpop.f32.mrb[0].mxu0
      %v1200 = vpop.f32.mrb[0].mxu0
      %v1201 = vadd.f32 0.0, %v1200
      %v1202 = vpop.f32.mrb[0].mxu0
      %1203 = vmatprep.mubr.bf16.mxu0 0
      %1204 = vmatmul.mubr.bf16.gmra.mrb[0].mxu0 %v922
      %v1205 = vpop.f32.mrb[0].mxu0
      %v1206 = vadd.f32 0.0, %v1205
      %v1207 = vpop.f32.mrb[0].mxu0
      %v1208 = vpop.f32.mrb[0].mxu0
      %v1209 = vadd.f32 0.0, %v1208
      %v1210 = vpop.f32.mrb[0].mxu0
      %1211 = vmatprep.mubr.bf16.mxu0 0
      %1212 = vmatmul.mubr.bf16.gmra.mrb[0].mxu0 %v934
      %v1213 = vpop.f32.mrb[0].mxu0
      %v1214 = vadd.f32 0.0, %v1213
      %v1215 = vpop.f32.mrb[0].mxu0
      %v1216 = vpop.f32.mrb[0].mxu0
      %v1217 = vadd.f32 0.0, %v1216
      %v1218 = vpop.f32.mrb[0].mxu0
      %1219 = vmatprep.mubr.bf16.mxu0 0
      %1220 = vmatmul.mubr.bf16.gmra.mrb[0].mxu0 %v946
      %v1221 = vpop.f32.mrb[0].mxu0
      %v1222 = vadd.f32 0.0, %v1221
      %v1223 = vpop.f32.mrb[0].mxu0
      %v1224 = vpop.f32.mrb[0].mxu0
      %v1225 = vadd.f32 0.0, %v1224
      %v1226 = vpop.f32.mrb[0].mxu0
      %1227 = vmatprep.mubr.bf16.mxu0 0
      %1228 = vmatmul.mubr.bf16.gmra.mrb[0].mxu0 %v958
      %v1229 = vpop.f32.mrb[0].mxu0
      %v1230 = vadd.f32 0.0, %v1229
      %v1231 = vpop.f32.mrb[0].mxu0
      %v1232 = vpop.f32.mrb[0].mxu0
      %v1233 = vadd.f32 0.0, %v1232
      %v1234 = vpop.f32.mrb[0].mxu0
      %1235 = vmatprep.mubr.bf16.mxu0 0
      %1236 = vmatmul.mubr.bf16.gmra.mrb[0].mxu0 %v970
      %v1237 = vpop.f32.mrb[0].mxu0
      %v1238 = vadd.f32 0.0, %v1237
      %v1239 = vpop.f32.mrb[0].mxu0
      %v1240 = vpop.f32.mrb[0].mxu0
      %v1241 = vadd.f32 0.0, %v1240
      %v1242 = vpop.f32.mrb[0].mxu0
      %1243 = vmatprep.mubr.bf16.mxu0 0
      %1244 = vmatmul.mubr.bf16.gmra.mrb[0].mxu0 %v982
      %v1245 = vpop.f32.mrb[0].mxu0
      %v1246 = vadd.f32 0.0, %v1245
      %v1247 = vpop.f32.mrb[0].mxu0
      %v1248 = vpop.f32.mrb[0].mxu0
      %v1249 = vadd.f32 0.0, %v1248
      %v1250 = vpop.f32.mrb[0].mxu0
      %1251 = vmatprep.mubr.bf16.mxu0 0
      %1252 = vmatmul.mubr.bf16.gmra.mrb[0].mxu0 %v994
      %v1253 = vpop.f32.mrb[0].mxu0
      %v1254 = vadd.f32 0.0, %v1253
      %v1255 = vpop.f32.mrb[0].mxu0
      %v1256 = vpop.f32.mrb[0].mxu0
      %v1257 = vadd.f32 0.0, %v1256
      %v1258 = vpop.f32.mrb[0].mxu0
      %1259 = vmatprep.mubr.bf16.mxu0 0
      %1260 = vmatmul.mubr.bf16.gmra.mrb[0].mxu0 %v1006
      %v1261 = vpop.f32.mrb[0].mxu0
      %v1262 = vadd.f32 0.0, %v1261
      %v1263 = vpop.f32.mrb[0].mxu0
      %v1264 = vpop.f32.mrb[0].mxu0
      %v1265 = vadd.f32 0.0, %v1264
      %v1266 = vpop.f32.mrb[0].mxu0
      %1267 = vmatprep.mubr.bf16.mxu0 0
      %1268 = vmatmul.mubr.bf16.gmra.mrb[0].mxu0 %v1018
      %v1269 = vpop.f32.mrb[0].mxu0
      %v1270 = vadd.f32 0.0, %v1269
      %v1271 = vpop.f32.mrb[0].mxu0
      %v1272 = vpop.f32.mrb[0].mxu0
      %v1273 = vadd.f32 0.0, %v1272
      %v1274 = vpop.f32.mrb[0].mxu0
      %1275 = vmatprep.mubr.bf16.mxu0 0
      %1276 = vmatmul.mubr.bf16.gmra.mrb[0].mxu0 %v1030
      %v1277 = vpop.f32.mrb[0].mxu0
      %v1278 = vadd.f32 0.0, %v1277
      %v1279 = vpop.f32.mrb[0].mxu0
      %v1280 = vpop.f32.mrb[0].mxu0
      %v1281 = vadd.f32 0.0, %v1280
      %v1282 = vpop.f32.mrb[0].mxu0
      %1283 = vmatprep.mubr.bf16.mxu0 0
      %1284 = vmatmul.mubr.bf16.gmra.mrb[0].mxu0 %v1042
      %v1285 = vpop.f32.mrb[0].mxu0
      %v1286 = vadd.f32 0.0, %v1285
      %v1287 = vpop.f32.mrb[0].mxu0
      %v1288 = vpop.f32.mrb[0].mxu0
      %v1289 = vadd.f32 0.0, %v1288
      %v1290 = vpop.f32.mrb[0].mxu0
      %1291 = vmatprep.mubr.bf16.mxu0 0
      %1292 = vmatmul.mubr.bf16.gmra.mrb[0].mxu0 %v1054
      %v1293 = vpop.f32.mrb[0].mxu0
      %v1294 = vadd.f32 0.0, %v1293
      %v1295 = vpop.f32.mrb[0].mxu0
      %v1296 = vpop.f32.mrb[0].mxu0
      %v1297 = vadd.f32 0.0, %v1296
      %v1298 = vpop.f32.mrb[0].mxu0
      %1299 = vmatprep.mubr.bf16.mxu0 0
      %1300 = vmatmul.mubr.bf16.gmra.mrb[0].mxu0 %v1066
      %v1301 = vpop.f32.mrb[0].mxu0
      %v1302 = vadd.f32 0.0, %v1301
      %v1303 = vpop.f32.mrb[0].mxu0
      %v1304 = vpop.f32.mrb[0].mxu0
      %v1305 = vadd.f32 0.0, %v1304
      %v1306 = vpop.f32.mrb[0].mxu0
      %1307 = vdwg.mxu0
      %v1324 = vunpack.c.l.b16 %v842
      %v1325 = vunpack.c.l.b16 %v843
      %v1326 = vunpack.c.l.b16 %v844
      %v1327 = vunpack.c.l.b16 %v845
      %v1328 = vunpack.c.l.b16 %v846
      %v1329 = vunpack.c.l.b16 %v847
      %v1330 = vunpack.c.l.b16 %v848
      %v1331 = vunpack.c.l.b16 %v849
      %v1332 = vunpack.c.l.b16 %v850
      %v1333 = vunpack.c.l.b16 %v851
      %v1334 = vunpack.c.l.b16 %v852
      %v1335 = vunpack.c.l.b16 %v853
      %v1336 = vunpack.c.l.b16 %v854
      %v1337 = vunpack.c.l.b16 %v855
      %v1338 = vunpack.c.l.b16 %v856
      %v1339 = vunpack.c.l.b16 %v857
      %v1340 = vpack.c.b16 %v1325, %v1324
      %v1341 = vpack.c.b16 %v1327, %v1326
      %v1342 = vpack.c.b16 %v1329, %v1328
      %v1343 = vpack.c.b16 %v1331, %v1330
      %v1344 = vpack.c.b16 %v1333, %v1332
      %v1345 = vpack.c.b16 %v1335, %v1334
      %v1346 = vpack.c.b16 %v1337, %v1336
      %v1347 = vpack.c.b16 %v1339, %v1338
      %1356 = vmatprep.subr.bf16.mxu0 0
      %1357 = vmatpush1.bf16.msra.mxu0 %v1340
      %1358 = vmatprep.subr.bf16.mxu0 0
      %1359 = vmatpush1.bf16.msra.mxu0 %v1341
      %1360 = vmatprep.subr.bf16.mxu0 0
      %1361 = vmatpush1.bf16.msra.mxu0 %v1342
      %1362 = vmatprep.subr.bf16.mxu0 0
      %1363 = vmatpush1.bf16.msra.mxu0 %v1343
      %1364 = vmatprep.subr.bf16.mxu0 0
      %1365 = vmatpush1.bf16.msra.mxu0 %v1344
      %1366 = vmatprep.subr.bf16.mxu0 0
      %1367 = vmatpush1.bf16.msra.mxu0 %v1345
      %1368 = vmatprep.subr.bf16.mxu0 0
      %1369 = vmatpush1.bf16.msra.mxu0 %v1346
      %1370 = vmatprep.subr.bf16.mxu0 0
      %1371 = vmatpush1.bf16.msra.mxu0 %v1347
      %1372 = vmatprep.subr.bf16.mxu0 0
      %1373 = vmatpush1.bf16.msra.mxu0 0
      %1374 = vmatprep.subr.bf16.mxu0 0
      %1375 = vmatpush1.bf16.msra.mxu0 0
      %1376 = vmatprep.subr.bf16.mxu0 0
      %1377 = vmatpush1.bf16.msra.mxu0 0
      %1378 = vmatprep.subr.bf16.mxu0 0
      %1379 = vmatpush1.bf16.msra.mxu0 0
      %1380 = vmatprep.subr.bf16.mxu0 0
      %1381 = vmatpush1.bf16.msra.mxu0 0
      %1382 = vmatprep.subr.bf16.mxu0 0
      %1383 = vmatpush1.bf16.msra.mxu0 0
      %1384 = vmatprep.subr.bf16.mxu0 0
      %1385 = vmatpush1.bf16.msra.mxu0 0
      %1386 = vmatprep.subr.bf16.mxu0 0
      %1387 = vmatpush1.bf16.msra.mxu0 0
      %1388 = vmatprep.mubr.bf16.mxu0 0
      %1389 = vmatmul.mubr.bf16.gmra.mrb[0].mxu0 %v826
      %v1390 = vpop.f32.mrb[0].mxu0
      %v1391 = vadd.f32 %v1182, %v1390
      %v1392 = vpop.f32.mrb[0].mxu0
      %v1393 = vpop.f32.mrb[0].mxu0
      %v1394 = vadd.f32 %v1185, %v1393
      %v1395 = vpop.f32.mrb[0].mxu0
      %1396 = vmatprep.mubr.bf16.mxu0 0
      %1397 = vmatmul.mubr.bf16.gmra.mrb[0].mxu0 %v827
      %v1398 = vpop.f32.mrb[0].mxu0
      %v1399 = vadd.f32 %v1190, %v1398
      %v1400 = vpop.f32.mrb[0].mxu0
      %v1401 = vpop.f32.mrb[0].mxu0
      %v1402 = vadd.f32 %v1193, %v1401
      %v1403 = vpop.f32.mrb[0].mxu0
      %1404 = vmatprep.mubr.bf16.mxu0 0
      %1405 = vmatmul.mubr.bf16.gmra.mrb[0].mxu0 %v828
      %v1406 = vpop.f32.mrb[0].mxu0
      %v1407 = vadd.f32 %v1198, %v1406
      %v1408 = vpop.f32.mrb[0].mxu0
      %v1409 = vpop.f32.mrb[0].mxu0
      %v1410 = vadd.f32 %v1201, %v1409
      %v1411 = vpop.f32.mrb[0].mxu0
      %1412 = vmatprep.mubr.bf16.mxu0 0
      %1413 = vmatmul.mubr.bf16.gmra.mrb[0].mxu0 %v829
      %v1414 = vpop.f32.mrb[0].mxu0
      %v1415 = vadd.f32 %v1206, %v1414
      %v1416 = vpop.f32.mrb[0].mxu0
      %v1417 = vpop.f32.mrb[0].mxu0
      %v1418 = vadd.f32 %v1209, %v1417
      %v1419 = vpop.f32.mrb[0].mxu0
      %1420 = vmatprep.mubr.bf16.mxu0 0
      %1421 = vmatmul.mubr.bf16.gmra.mrb[0].mxu0 %v830
      %v1422 = vpop.f32.mrb[0].mxu0
      %v1423 = vadd.f32 %v1214, %v1422
      %v1424 = vpop.f32.mrb[0].mxu0
      %v1425 = vpop.f32.mrb[0].mxu0
      %v1426 = vadd.f32 %v1217, %v1425
      %v1427 = vpop.f32.mrb[0].mxu0
      %1428 = vmatprep.mubr.bf16.mxu0 0
      %1429 = vmatmul.mubr.bf16.gmra.mrb[0].mxu0 %v831
      %v1430 = vpop.f32.mrb[0].mxu0
      %v1431 = vadd.f32 %v1222, %v1430
      %v1432 = vpop.f32.mrb[0].mxu0
      %v1433 = vpop.f32.mrb[0].mxu0
      %v1434 = vadd.f32 %v1225, %v1433
      %v1435 = vpop.f32.mrb[0].mxu0
      %1436 = vmatprep.mubr.bf16.mxu0 0
      %1437 = vmatmul.mubr.bf16.gmra.mrb[0].mxu0 %v832
      %v1438 = vpop.f32.mrb[0].mxu0
      %v1439 = vadd.f32 %v1230, %v1438
      %v1440 = vpop.f32.mrb[0].mxu0
      %v1441 = vpop.f32.mrb[0].mxu0
      %v1442 = vadd.f32 %v1233, %v1441
      %v1443 = vpop.f32.mrb[0].mxu0
      %1444 = vmatprep.mubr.bf16.mxu0 0
      %1445 = vmatmul.mubr.bf16.gmra.mrb[0].mxu0 %v833
      %v1446 = vpop.f32.mrb[0].mxu0
      %v1447 = vadd.f32 %v1238, %v1446
      %v1448 = vpop.f32.mrb[0].mxu0
      %v1449 = vpop.f32.mrb[0].mxu0
      %v1450 = vadd.f32 %v1241, %v1449
      %v1451 = vpop.f32.mrb[0].mxu0
      %1452 = vmatprep.mubr.bf16.mxu0 0
      %1453 = vmatmul.mubr.bf16.gmra.mrb[0].mxu0 %v834
      %v1454 = vpop.f32.mrb[0].mxu0
      %v1455 = vadd.f32 %v1246, %v1454
      %v1456 = vpop.f32.mrb[0].mxu0
      %v1457 = vpop.f32.mrb[0].mxu0
      %v1458 = vadd.f32 %v1249, %v1457
      %v1459 = vpop.f32.mrb[0].mxu0
      %1460 = vmatprep.mubr.bf16.mxu0 0
      %1461 = vmatmul.mubr.bf16.gmra.mrb[0].mxu0 %v835
      %v1462 = vpop.f32.mrb[0].mxu0
      %v1463 = vadd.f32 %v1254, %v1462
      %v1464 = vpop.f32.mrb[0].mxu0
      %v1465 = vpop.f32.mrb[0].mxu0
      %v1466 = vadd.f32 %v1257, %v1465
      %v1467 = vpop.f32.mrb[0].mxu0
      %1468 = vmatprep.mubr.bf16.mxu0 0
      %1469 = vmatmul.mubr.bf16.gmra.mrb[0].mxu0 %v836
      %v1470 = vpop.f32.mrb[0].mxu0
      %v1471 = vadd.f32 %v1262, %v1470
      %v1472 = vpop.f32.mrb[0].mxu0
      %v1473 = vpop.f32.mrb[0].mxu0
      %v1474 = vadd.f32 %v1265, %v1473
      %v1475 = vpop.f32.mrb[0].mxu0
      %1476 = vmatprep.mubr.bf16.mxu0 0
      %1477 = vmatmul.mubr.bf16.gmra.mrb[0].mxu0 %v837
      %v1478 = vpop.f32.mrb[0].mxu0
      %v1479 = vadd.f32 %v1270, %v1478
      %v1480 = vpop.f32.mrb[0].mxu0
      %v1481 = vpop.f32.mrb[0].mxu0
      %v1482 = vadd.f32 %v1273, %v1481
      %v1483 = vpop.f32.mrb[0].mxu0
      %1484 = vmatprep.mubr.bf16.mxu0 0
      %1485 = vmatmul.mubr.bf16.gmra.mrb[0].mxu0 %v838
      %v1486 = vpop.f32.mrb[0].mxu0
      %v1487 = vadd.f32 %v1278, %v1486
      %v1488 = vpop.f32.mrb[0].mxu0
      %v1489 = vpop.f32.mrb[0].mxu0
      %v1490 = vadd.f32 %v1281, %v1489
      %v1491 = vpop.f32.mrb[0].mxu0
      %1492 = vmatprep.mubr.bf16.mxu0 0
      %1493 = vmatmul.mubr.bf16.gmra.mrb[0].mxu0 %v839
      %v1494 = vpop.f32.mrb[0].mxu0
      %v1495 = vadd.f32 %v1286, %v1494
      %v1496 = vpop.f32.mrb[0].mxu0
      %v1497 = vpop.f32.mrb[0].mxu0
      %v1498 = vadd.f32 %v1289, %v1497
      %v1499 = vpop.f32.mrb[0].mxu0
      %1500 = vmatprep.mubr.bf16.mxu0 0
      %1501 = vmatmul.mubr.bf16.gmra.mrb[0].mxu0 %v840
      %v1502 = vpop.f32.mrb[0].mxu0
      %v1503 = vadd.f32 %v1294, %v1502
      %v1504 = vpop.f32.mrb[0].mxu0
      %v1505 = vpop.f32.mrb[0].mxu0
      %v1506 = vadd.f32 %v1297, %v1505
      %v1507 = vpop.f32.mrb[0].mxu0
      %1508 = vmatprep.mubr.bf16.mxu0 0
      %1509 = vmatmul.mubr.bf16.gmra.mrb[0].mxu0 %v841
      %v1510 = vpop.f32.mrb[0].mxu0
      %v1511 = vadd.f32 %v1302, %v1510
      %v1512 = vpop.f32.mrb[0].mxu0
      %v1513 = vpop.f32.mrb[0].mxu0
      %v1514 = vadd.f32 %v1305, %v1513
      %v1515 = vpop.f32.mrb[0].mxu0
      %1516 = vdwg.mxu0
      %v1517 = vld [vmem:[#allocation2] sm:$0xfe]
      %v1518 = vld [vmem:[#allocation2 + $0x10] sm:$0xfe]
      %v1519 = vld [vmem:[#allocation2 + $0x20] sm:$0xfe]
      %v1520 = vld [vmem:[#allocation2 + $0x30] sm:$0xfe]
      %v1521 = vld [vmem:[#allocation2 + $0x40] sm:$0xfe]
      %v1522 = vld [vmem:[#allocation2 + $0x50] sm:$0xfe]
      %v1523 = vld [vmem:[#allocation2 + $0x60] sm:$0xfe]
      %v1524 = vld [vmem:[#allocation2 + $0x70] sm:$0xfe]
      %v1525 = vld [vmem:[#allocation2 + $0x80] sm:$0xfe]
      %v1526 = vld [vmem:[#allocation2 + $0x90] sm:$0xfe]
      %v1527 = vld [vmem:[#allocation2 + $0xa0] sm:$0xfe]
      %v1528 = vld [vmem:[#allocation2 + $0xb0] sm:$0xfe]
      %v1529 = vld [vmem:[#allocation2 + $0xc0] sm:$0xfe]
      %v1530 = vld [vmem:[#allocation2 + $0xd0] sm:$0xfe]
      %v1531 = vld [vmem:[#allocation2 + $0xe0] sm:$0xfe]
      %v1532 = vld [vmem:[#allocation2 + $0xf0] sm:$0xfe]
      %vm1565 = vcmask 1046528
      %v1566 = vrot.slane %v1517, 1
      %v1567 = vrot.slane %v858, 1
      %v1568 = vsel %vm1565, %v1566, %v1567
      %v1569 = vrot.slane %v1518, 1
      %v1570 = vrot.slane %v859, 1
      %v1571 = vsel %vm1565, %v1569, %v1570
      %v1572 = vrot.slane %v1519, 1
      %v1573 = vrot.slane %v860, 1
      %v1574 = vsel %vm1565, %v1572, %v1573
      %v1575 = vrot.slane %v1520, 1
      %v1576 = vrot.slane %v861, 1
      %v1577 = vsel %vm1565, %v1575, %v1576
      %v1578 = vrot.slane %v1521, 1
      %v1579 = vrot.slane %v862, 1
      %v1580 = vsel %vm1565, %v1578, %v1579
      %v1581 = vrot.slane %v1522, 1
      %v1582 = vrot.slane %v863, 1
      %v1583 = vsel %vm1565, %v1581, %v1582
      %v1584 = vrot.slane %v1523, 1
      %v1585 = vrot.slane %v864, 1
      %v1586 = vsel %vm1565, %v1584, %v1585
      %v1587 = vrot.slane %v1524, 1
      %v1588 = vrot.slane %v865, 1
      %v1589 = vsel %vm1565, %v1587, %v1588
      %v1590 = vrot.slane %v1525, 1
      %v1591 = vrot.slane %v866, 1
      %v1592 = vsel %vm1565, %v1590, %v1591
      %v1593 = vrot.slane %v1526, 1
      %v1594 = vrot.slane %v867, 1
      %v1595 = vsel %vm1565, %v1593, %v1594
      %v1596 = vrot.slane %v1527, 1
      %v1597 = vrot.slane %v868, 1
      %v1598 = vsel %vm1565, %v1596, %v1597
      %v1599 = vrot.slane %v1528, 1
      %v1600 = vrot.slane %v869, 1
      %v1601 = vsel %vm1565, %v1599, %v1600
      %v1602 = vrot.slane %v1529, 1
      %v1603 = vrot.slane %v870, 1
      %v1604 = vsel %vm1565, %v1602, %v1603
      %v1605 = vrot.slane %v1530, 1
      %v1606 = vrot.slane %v871, 1
      %v1607 = vsel %vm1565, %v1605, %v1606
      %v1608 = vrot.slane %v1531, 1
      %v1609 = vrot.slane %v872, 1
      %v1610 = vsel %vm1565, %v1608, %v1609
      %v1611 = vrot.slane %v1532, 1
      %v1612 = vrot.slane %v873, 1
      %v1613 = vsel %vm1565, %v1611, %v1612
      %v1630 = vld [vmem:[%s1 + $0x80] sm:$0xf]
      %v1631 = vld [vmem:[%s1 + $0x84] sm:$0xf]
      %v1632 = vld [vmem:[%s1 + $0x88] sm:$0xf]
      %v1633 = vld [vmem:[%s1 + $0x8c] sm:$0xf]
      %v1634 = vld [vmem:[%s1 + $0x90] sm:$0xf]
      %v1635 = vld [vmem:[%s1 + $0x94] sm:$0xf]
      %v1636 = vld [vmem:[%s1 + $0x98] sm:$0xf]
      %v1637 = vld [vmem:[%s1 + $0x9c] sm:$0xf]
      %v1638 = vld [vmem:[%s1 + $0xa0] sm:$0xf]
      %v1639 = vld [vmem:[%s1 + $0xa4] sm:$0xf]
      %v1640 = vld [vmem:[%s1 + $0xa8] sm:$0xf]
      %v1641 = vld [vmem:[%s1 + $0xac] sm:$0xf]
      %v1642 = vld [vmem:[%s1 + $0xb0] sm:$0xf]
      %v1643 = vld [vmem:[%s1 + $0xb4] sm:$0xf]
      %v1644 = vld [vmem:[%s1 + $0xb8] sm:$0xf]
      %v1645 = vld [vmem:[%s1 + $0xbc] sm:$0xf]
      %v1662 = vunpack.c.l.b16 %v1630
      %v1663 = vunpack.c.l.b16 %v1631
      %v1664 = vunpack.c.l.b16 %v1632
      %v1665 = vunpack.c.l.b16 %v1633
      %v1666 = vunpack.c.l.b16 %v1634
      %v1667 = vunpack.c.l.b16 %v1635
      %v1668 = vunpack.c.l.b16 %v1636
      %v1669 = vunpack.c.l.b16 %v1637
      %v1670 = vunpack.c.l.b16 %v1638
      %v1671 = vunpack.c.l.b16 %v1639
      %v1672 = vunpack.c.l.b16 %v1640
      %v1673 = vunpack.c.l.b16 %v1641
      %v1674 = vunpack.c.l.b16 %v1642
      %v1675 = vunpack.c.l.b16 %v1643
      %v1676 = vunpack.c.l.b16 %v1644
      %v1677 = vunpack.c.l.b16 %v1645
      %v1678 = vpack.c.b16 %v1663, %v1662
      %v1679 = vpack.c.b16 %v1665, %v1664
      %v1680 = vpack.c.b16 %v1667, %v1666
      %v1681 = vpack.c.b16 %v1669, %v1668
      %v1682 = vpack.c.b16 %v1671, %v1670
      %v1683 = vpack.c.b16 %v1673, %v1672
      %v1684 = vpack.c.b16 %v1675, %v1674
      %v1685 = vpack.c.b16 %v1677, %v1676
      %1694 = vmatprep.subr.bf16.mxu0 0
      %1695 = vmatpush1.bf16.msra.mxu0 %v1678
      %1696 = vmatprep.subr.bf16.mxu0 0
      %1697 = vmatpush1.bf16.msra.mxu0 %v1679
      %1698 = vmatprep.subr.bf16.mxu0 0
      %1699 = vmatpush1.bf16.msra.mxu0 %v1680
      %1700 = vmatprep.subr.bf16.mxu0 0
      %1701 = vmatpush1.bf16.msra.mxu0 %v1681
      %1702 = vmatprep.subr.bf16.mxu0 0
      %1703 = vmatpush1.bf16.msra.mxu0 %v1682
      %1704 = vmatprep.subr.bf16.mxu0 0
      %1705 = vmatpush1.bf16.msra.mxu0 %v1683
      %1706 = vmatprep.subr.bf16.mxu0 0
      %1707 = vmatpush1.bf16.msra.mxu0 %v1684
      %1708 = vmatprep.subr.bf16.mxu0 0
      %1709 = vmatpush1.bf16.msra.mxu0 %v1685
      %1710 = vmatprep.subr.bf16.mxu0 0
      %1711 = vmatpush1.bf16.msra.mxu0 0
      %1712 = vmatprep.subr.bf16.mxu0 0
      %1713 = vmatpush1.bf16.msra.mxu0 0
      %1714 = vmatprep.subr.bf16.mxu0 0
      %1715 = vmatpush1.bf16.msra.mxu0 0
      %1716 = vmatprep.subr.bf16.mxu0 0
      %1717 = vmatpush1.bf16.msra.mxu0 0
      %1718 = vmatprep.subr.bf16.mxu0 0
      %1719 = vmatpush1.bf16.msra.mxu0 0
      %1720 = vmatprep.subr.bf16.mxu0 0
      %1721 = vmatpush1.bf16.msra.mxu0 0
      %1722 = vmatprep.subr.bf16.mxu0 0
      %1723 = vmatpush1.bf16.msra.mxu0 0
      %1724 = vmatprep.subr.bf16.mxu0 0
      %1725 = vmatpush1.bf16.msra.mxu0 0
      %1726 = vmatprep.mubr.bf16.mxu0 0
      %1727 = vmatmul.mubr.bf16.gmra.mrb[0].mxu0 %v1568
      %v1728 = vpop.f32.mrb[0].mxu0
      %v1729 = vadd.f32 0.0, %v1728
      %v1730 = vpop.f32.mrb[0].mxu0
      %v1731 = vpop.f32.mrb[0].mxu0
      %v1732 = vadd.f32 0.0, %v1731
      %v1733 = vpop.f32.mrb[0].mxu0
      %1734 = vmatprep.mubr.bf16.mxu0 0
      %1735 = vmatmul.mubr.bf16.gmra.mrb[0].mxu0 %v1571
      %v1736 = vpop.f32.mrb[0].mxu0
      %v1737 = vadd.f32 0.0, %v1736
      %v1738 = vpop.f32.mrb[0].mxu0
      %v1739 = vpop.f32.mrb[0].mxu0
      %v1740 = vadd.f32 0.0, %v1739
      %v1741 = vpop.f32.mrb[0].mxu0
      %1742 = vmatprep.mubr.bf16.mxu0 0
      %1743 = vmatmul.mubr.bf16.gmra.mrb[0].mxu0 %v1574
      %v1744 = vpop.f32.mrb[0].mxu0
      %v1745 = vadd.f32 0.0, %v1744
      %v1746 = vpop.f32.mrb[0].mxu0
      %v1747 = vpop.f32.mrb[0].mxu0
      %v1748 = vadd.f32 0.0, %v1747
      %v1749 = vpop.f32.mrb[0].mxu0
      %1750 = vmatprep.mubr.bf16.mxu0 0
      %1751 = vmatmul.mubr.bf16.gmra.mrb[0].mxu0 %v1577
      %v1752 = vpop.f32.mrb[0].mxu0
      %v1753 = vadd.f32 0.0, %v1752
      %v1754 = vpop.f32.mrb[0].mxu0
      %v1755 = vpop.f32.mrb[0].mxu0
      %v1756 = vadd.f32 0.0, %v1755
      %v1757 = vpop.f32.mrb[0].mxu0
      %1758 = vmatprep.mubr.bf16.mxu0 0
      %1759 = vmatmul.mubr.bf16.gmra.mrb[0].mxu0 %v1580
      %v1760 = vpop.f32.mrb[0].mxu0
      %v1761 = vadd.f32 0.0, %v1760
      %v1762 = vpop.f32.mrb[0].mxu0
      %v1763 = vpop.f32.mrb[0].mxu0
      %v1764 = vadd.f32 0.0, %v1763
      %v1765 = vpop.f32.mrb[0].mxu0
      %1766 = vmatprep.mubr.bf16.mxu0 0
      %1767 = vmatmul.mubr.bf16.gmra.mrb[0].mxu0 %v1583
      %v1768 = vpop.f32.mrb[0].mxu0
      %v1769 = vadd.f32 0.0, %v1768
      %v1770 = vpop.f32.mrb[0].mxu0
      %v1771 = vpop.f32.mrb[0].mxu0
      %v1772 = vadd.f32 0.0, %v1771
      %v1773 = vpop.f32.mrb[0].mxu0
      %1774 = vmatprep.mubr.bf16.mxu0 0
      %1775 = vmatmul.mubr.bf16.gmra.mrb[0].mxu0 %v1586
      %v1776 = vpop.f32.mrb[0].mxu0
      %v1777 = vadd.f32 0.0, %v1776
      %v1778 = vpop.f32.mrb[0].mxu0
      %v1779 = vpop.f32.mrb[0].mxu0
      %v1780 = vadd.f32 0.0, %v1779
      %v1781 = vpop.f32.mrb[0].mxu0
      %1782 = vmatprep.mubr.bf16.mxu0 0
      %1783 = vmatmul.mubr.bf16.gmra.mrb[0].mxu0 %v1589
      %v1784 = vpop.f32.mrb[0].mxu0
      %v1785 = vadd.f32 0.0, %v1784
      %v1786 = vpop.f32.mrb[0].mxu0
      %v1787 = vpop.f32.mrb[0].mxu0
      %v1788 = vadd.f32 0.0, %v1787
      %v1789 = vpop.f32.mrb[0].mxu0
      %1790 = vmatprep.mubr.bf16.mxu0 0
      %1791 = vmatmul.mubr.bf16.gmra.mrb[0].mxu0 %v1592
      %v1792 = vpop.f32.mrb[0].mxu0
      %v1793 = vadd.f32 0.0, %v1792
      %v1794 = vpop.f32.mrb[0].mxu0
      %v1795 = vpop.f32.mrb[0].mxu0
      %v1796 = vadd.f32 0.0, %v1795
      %v1797 = vpop.f32.mrb[0].mxu0
      %1798 = vmatprep.mubr.bf16.mxu0 0
      %1799 = vmatmul.mubr.bf16.gmra.mrb[0].mxu0 %v1595
      %v1800 = vpop.f32.mrb[0].mxu0
      %v1801 = vadd.f32 0.0, %v1800
      %v1802 = vpop.f32.mrb[0].mxu0
      %v1803 = vpop.f32.mrb[0].mxu0
      %v1804 = vadd.f32 0.0, %v1803
      %v1805 = vpop.f32.mrb[0].mxu0
      %1806 = vmatprep.mubr.bf16.mxu0 0
      %1807 = vmatmul.mubr.bf16.gmra.mrb[0].mxu0 %v1598
      %v1808 = vpop.f32.mrb[0].mxu0
      %v1809 = vadd.f32 0.0, %v1808
      %v1810 = vpop.f32.mrb[0].mxu0
      %v1811 = vpop.f32.mrb[0].mxu0
      %v1812 = vadd.f32 0.0, %v1811
      %v1813 = vpop.f32.mrb[0].mxu0
      %1814 = vmatprep.mubr.bf16.mxu0 0
      %1815 = vmatmul.mubr.bf16.gmra.mrb[0].mxu0 %v1601
      %v1816 = vpop.f32.mrb[0].mxu0
      %v1817 = vadd.f32 0.0, %v1816
      %v1818 = vpop.f32.mrb[0].mxu0
      %v1819 = vpop.f32.mrb[0].mxu0
      %v1820 = vadd.f32 0.0, %v1819
      %v1821 = vpop.f32.mrb[0].mxu0
      %1822 = vmatprep.mubr.bf16.mxu0 0
      %1823 = vmatmul.mubr.bf16.gmra.mrb[0].mxu0 %v1604
      %v1824 = vpop.f32.mrb[0].mxu0
      %v1825 = vadd.f32 0.0, %v1824
      %v1826 = vpop.f32.mrb[0].mxu0
      %v1827 = vpop.f32.mrb[0].mxu0
      %v1828 = vadd.f32 0.0, %v1827
      %v1829 = vpop.f32.mrb[0].mxu0
      %1830 = vmatprep.mubr.bf16.mxu0 0
      %1831 = vmatmul.mubr.bf16.gmra.mrb[0].mxu0 %v1607
      %v1832 = vpop.f32.mrb[0].mxu0
      %v1833 = vadd.f32 0.0, %v1832
      %v1834 = vpop.f32.mrb[0].mxu0
      %v1835 = vpop.f32.mrb[0].mxu0
      %v1836 = vadd.f32 0.0, %v1835
      %v1837 = vpop.f32.mrb[0].mxu0
      %1838 = vmatprep.mubr.bf16.mxu0 0
      %1839 = vmatmul.mubr.bf16.gmra.mrb[0].mxu0 %v1610
      %v1840 = vpop.f32.mrb[0].mxu0
      %v1841 = vadd.f32 0.0, %v1840
      %v1842 = vpop.f32.mrb[0].mxu0
      %v1843 = vpop.f32.mrb[0].mxu0
      %v1844 = vadd.f32 0.0, %v1843
      %v1845 = vpop.f32.mrb[0].mxu0
      %1846 = vmatprep.mubr.bf16.mxu0 0
      %1847 = vmatmul.mubr.bf16.gmra.mrb[0].mxu0 %v1613
      %v1848 = vpop.f32.mrb[0].mxu0
      %v1849 = vadd.f32 0.0, %v1848
      %v1850 = vpop.f32.mrb[0].mxu0
      %v1851 = vpop.f32.mrb[0].mxu0
      %v1852 = vadd.f32 0.0, %v1851
      %v1853 = vpop.f32.mrb[0].mxu0
      %1854 = vdwg.mxu0
      %v1855 = vadd.f32 %v1391, %v1729
      %v1856 = vadd.f32 %v1394, %v1732
      %v1857 = vadd.f32 %v1399, %v1737
      %v1858 = vadd.f32 %v1402, %v1740
      %v1859 = vadd.f32 %v1407, %v1745
      %v1860 = vadd.f32 %v1410, %v1748
      %v1861 = vadd.f32 %v1415, %v1753
      %v1862 = vadd.f32 %v1418, %v1756
      %v1863 = vadd.f32 %v1423, %v1761
      %v1864 = vadd.f32 %v1426, %v1764
      %v1865 = vadd.f32 %v1431, %v1769
      %v1866 = vadd.f32 %v1434, %v1772
      %v1867 = vadd.f32 %v1439, %v1777
      %v1868 = vadd.f32 %v1442, %v1780
      %v1869 = vadd.f32 %v1447, %v1785
      %v1870 = vadd.f32 %v1450, %v1788
      %v1871 = vadd.f32 %v1455, %v1793
      %v1872 = vadd.f32 %v1458, %v1796
      %v1873 = vadd.f32 %v1463, %v1801
      %v1874 = vadd.f32 %v1466, %v1804
      %v1875 = vadd.f32 %v1471, %v1809
      %v1876 = vadd.f32 %v1474, %v1812
      %v1877 = vadd.f32 %v1479, %v1817
      %v1878 = vadd.f32 %v1482, %v1820
      %v1879 = vadd.f32 %v1487, %v1825
      %v1880 = vadd.f32 %v1490, %v1828
      %v1881 = vadd.f32 %v1495, %v1833
      %v1882 = vadd.f32 %v1498, %v1836
      %v1883 = vadd.f32 %v1503, %v1841
      %v1884 = vadd.f32 %v1506, %v1844
      %v1885 = vadd.f32 %v1511, %v1849
      %v1886 = vadd.f32 %v1514, %v1852
      %v1887 = vld [vmem:[%s727] sm:$0xff]
      %v1888 = vld [vmem:[%s727 + $0x10] sm:$0xff]
      %v1889 = vld [vmem:[%s727 + $0x20] sm:$0xff]
      %v1890 = vld [vmem:[%s727 + $0x30] sm:$0xff]
      %v1891 = vld [vmem:[%s727 + $0x40] sm:$0xff]
      %v1892 = vld [vmem:[%s727 + $0x50] sm:$0xff]
      %v1893 = vld [vmem:[%s727 + $0x60] sm:$0xff]
      %v1894 = vld [vmem:[%s727 + $0x70] sm:$0xff]
      %v1895 = vld [vmem:[%s727 + $0x80] sm:$0xff]
      %v1896 = vld [vmem:[%s727 + $0x90] sm:$0xff]
      %v1897 = vld [vmem:[%s727 + $0xa0] sm:$0xff]
      %v1898 = vld [vmem:[%s727 + $0xb0] sm:$0xff]
      %v1899 = vld [vmem:[%s727 + $0xc0] sm:$0xff]
      %v1900 = vld [vmem:[%s727 + $0xd0] sm:$0xff]
      %v1901 = vld [vmem:[%s727 + $0xe0] sm:$0xff]
      %v1902 = vld [vmem:[%s727 + $0xf0] sm:$0xff]
      %v1903 = vld [vmem:[%s1 + $0xc0] sm:$0xf]
      %v1904 = vld [vmem:[%s1 + $0xc4] sm:$0xf]
      %v1905 = vld [vmem:[%s1 + $0xc8] sm:$0xf]
      %v1906 = vld [vmem:[%s1 + $0xcc] sm:$0xf]
      %v1907 = vld [vmem:[%s1 + $0xd0] sm:$0xf]
      %v1908 = vld [vmem:[%s1 + $0xd4] sm:$0xf]
      %v1909 = vld [vmem:[%s1 + $0xd8] sm:$0xf]
      %v1910 = vld [vmem:[%s1 + $0xdc] sm:$0xf]
      %v1911 = vld [vmem:[%s1 + $0xe0] sm:$0xf]
      %v1912 = vld [vmem:[%s1 + $0xe4] sm:$0xf]
      %v1913 = vld [vmem:[%s1 + $0xe8] sm:$0xf]
      %v1914 = vld [vmem:[%s1 + $0xec] sm:$0xf]
      %v1915 = vld [vmem:[%s1 + $0xf0] sm:$0xf]
      %v1916 = vld [vmem:[%s1 + $0xf4] sm:$0xf]
      %v1917 = vld [vmem:[%s1 + $0xf8] sm:$0xf]
      %v1918 = vld [vmem:[%s1 + $0xfc] sm:$0xf]
      %v1935 = vunpack.c.l.b16 %v1903
      %v1936 = vunpack.c.l.b16 %v1904
      %v1937 = vunpack.c.l.b16 %v1905
      %v1938 = vunpack.c.l.b16 %v1906
      %v1939 = vunpack.c.l.b16 %v1907
      %v1940 = vunpack.c.l.b16 %v1908
      %v1941 = vunpack.c.l.b16 %v1909
      %v1942 = vunpack.c.l.b16 %v1910
      %v1943 = vunpack.c.l.b16 %v1911
      %v1944 = vunpack.c.l.b16 %v1912
      %v1945 = vunpack.c.l.b16 %v1913
      %v1946 = vunpack.c.l.b16 %v1914
      %v1947 = vunpack.c.l.b16 %v1915
      %v1948 = vunpack.c.l.b16 %v1916
      %v1949 = vunpack.c.l.b16 %v1917
      %v1950 = vunpack.c.l.b16 %v1918
      %v1951 = vpack.c.b16 %v1936, %v1935
      %v1952 = vpack.c.b16 %v1938, %v1937
      %v1953 = vpack.c.b16 %v1940, %v1939
      %v1954 = vpack.c.b16 %v1942, %v1941
      %v1955 = vpack.c.b16 %v1944, %v1943
      %v1956 = vpack.c.b16 %v1946, %v1945
      %v1957 = vpack.c.b16 %v1948, %v1947
      %v1958 = vpack.c.b16 %v1950, %v1949
      %1967 = vmatprep.subr.bf16.mxu0 0
      %1968 = vmatpush1.bf16.msra.mxu0 %v1951
      %1969 = vmatprep.subr.bf16.mxu0 0
      %1970 = vmatpush1.bf16.msra.mxu0 %v1952
      %1971 = vmatprep.subr.bf16.mxu0 0
      %1972 = vmatpush1.bf16.msra.mxu0 %v1953
      %1973 = vmatprep.subr.bf16.mxu0 0
      %1974 = vmatpush1.bf16.msra.mxu0 %v1954
      %1975 = vmatprep.subr.bf16.mxu0 0
      %1976 = vmatpush1.bf16.msra.mxu0 %v1955
      %1977 = vmatprep.subr.bf16.mxu0 0
      %1978 = vmatpush1.bf16.msra.mxu0 %v1956
      %1979 = vmatprep.subr.bf16.mxu0 0
      %1980 = vmatpush1.bf16.msra.mxu0 %v1957
      %1981 = vmatprep.subr.bf16.mxu0 0
      %1982 = vmatpush1.bf16.msra.mxu0 %v1958
      %1983 = vmatprep.subr.bf16.mxu0 0
      %1984 = vmatpush1.bf16.msra.mxu0 0
      %1985 = vmatprep.subr.bf16.mxu0 0
      %1986 = vmatpush1.bf16.msra.mxu0 0
      %1987 = vmatprep.subr.bf16.mxu0 0
      %1988 = vmatpush1.bf16.msra.mxu0 0
      %1989 = vmatprep.subr.bf16.mxu0 0
      %1990 = vmatpush1.bf16.msra.mxu0 0
      %1991 = vmatprep.subr.bf16.mxu0 0
      %1992 = vmatpush1.bf16.msra.mxu0 0
      %1993 = vmatprep.subr.bf16.mxu0 0
      %1994 = vmatpush1.bf16.msra.mxu0 0
      %1995 = vmatprep.subr.bf16.mxu0 0
      %1996 = vmatpush1.bf16.msra.mxu0 0
      %1997 = vmatprep.subr.bf16.mxu0 0
      %1998 = vmatpush1.bf16.msra.mxu0 0
      %1999 = vmatprep.mubr.bf16.mxu0 0
      %2000 = vmatmul.mubr.bf16.gmra.mrb[0].mxu0 %v1887
      %v2001 = vpop.f32.mrb[0].mxu0
      %v2002 = vadd.f32 0.0, %v2001
      %v2003 = vpop.f32.mrb[0].mxu0
      %v2004 = vpop.f32.mrb[0].mxu0
      %v2005 = vadd.f32 0.0, %v2004
      %v2006 = vpop.f32.mrb[0].mxu0
      %2007 = vmatprep.mubr.bf16.mxu0 0
      %2008 = vmatmul.mubr.bf16.gmra.mrb[0].mxu0 %v1888
      %v2009 = vpop.f32.mrb[0].mxu0
      %v2010 = vadd.f32 0.0, %v2009
      %v2011 = vpop.f32.mrb[0].mxu0
      %v2012 = vpop.f32.mrb[0].mxu0
      %v2013 = vadd.f32 0.0, %v2012
      %v2014 = vpop.f32.mrb[0].mxu0
      %2015 = vmatprep.mubr.bf16.mxu0 0
      %2016 = vmatmul.mubr.bf16.gmra.mrb[0].mxu0 %v1889
      %v2017 = vpop.f32.mrb[0].mxu0
      %v2018 = vadd.f32 0.0, %v2017
      %v2019 = vpop.f32.mrb[0].mxu0
      %v2020 = vpop.f32.mrb[0].mxu0
      %v2021 = vadd.f32 0.0, %v2020
      %v2022 = vpop.f32.mrb[0].mxu0
      %2023 = vmatprep.mubr.bf16.mxu0 0
      %2024 = vmatmul.mubr.bf16.gmra.mrb[0].mxu0 %v1890
      %v2025 = vpop.f32.mrb[0].mxu0
      %v2026 = vadd.f32 0.0, %v2025
      %v2027 = vpop.f32.mrb[0].mxu0
      %v2028 = vpop.f32.mrb[0].mxu0
      %v2029 = vadd.f32 0.0, %v2028
      %v2030 = vpop.f32.mrb[0].mxu0
      %2031 = vmatprep.mubr.bf16.mxu0 0
      %2032 = vmatmul.mubr.bf16.gmra.mrb[0].mxu0 %v1891
      %v2033 = vpop.f32.mrb[0].mxu0
      %v2034 = vadd.f32 0.0, %v2033
      %v2035 = vpop.f32.mrb[0].mxu0
      %v2036 = vpop.f32.mrb[0].mxu0
      %v2037 = vadd.f32 0.0, %v2036
      %v2038 = vpop.f32.mrb[0].mxu0
      %2039 = vmatprep.mubr.bf16.mxu0 0
      %2040 = vmatmul.mubr.bf16.gmra.mrb[0].mxu0 %v1892
      %v2041 = vpop.f32.mrb[0].mxu0
      %v2042 = vadd.f32 0.0, %v2041
      %v2043 = vpop.f32.mrb[0].mxu0
      %v2044 = vpop.f32.mrb[0].mxu0
      %v2045 = vadd.f32 0.0, %v2044
      %v2046 = vpop.f32.mrb[0].mxu0
      %2047 = vmatprep.mubr.bf16.mxu0 0
      %2048 = vmatmul.mubr.bf16.gmra.mrb[0].mxu0 %v1893
      %v2049 = vpop.f32.mrb[0].mxu0
      %v2050 = vadd.f32 0.0, %v2049
      %v2051 = vpop.f32.mrb[0].mxu0
      %v2052 = vpop.f32.mrb[0].mxu0
      %v2053 = vadd.f32 0.0, %v2052
      %v2054 = vpop.f32.mrb[0].mxu0
      %2055 = vmatprep.mubr.bf16.mxu0 0
      %2056 = vmatmul.mubr.bf16.gmra.mrb[0].mxu0 %v1894
      %v2057 = vpop.f32.mrb[0].mxu0
      %v2058 = vadd.f32 0.0, %v2057
      %v2059 = vpop.f32.mrb[0].mxu0
      %v2060 = vpop.f32.mrb[0].mxu0
      %v2061 = vadd.f32 0.0, %v2060
      %v2062 = vpop.f32.mrb[0].mxu0
      %2063 = vmatprep.mubr.bf16.mxu0 0
      %2064 = vmatmul.mubr.bf16.gmra.mrb[0].mxu0 %v1895
      %v2065 = vpop.f32.mrb[0].mxu0
      %v2066 = vadd.f32 0.0, %v2065
      %v2067 = vpop.f32.mrb[0].mxu0
      %v2068 = vpop.f32.mrb[0].mxu0
      %v2069 = vadd.f32 0.0, %v2068
      %v2070 = vpop.f32.mrb[0].mxu0
      %2071 = vmatprep.mubr.bf16.mxu0 0
      %2072 = vmatmul.mubr.bf16.gmra.mrb[0].mxu0 %v1896
      %v2073 = vpop.f32.mrb[0].mxu0
      %v2074 = vadd.f32 0.0, %v2073
      %v2075 = vpop.f32.mrb[0].mxu0
      %v2076 = vpop.f32.mrb[0].mxu0
      %v2077 = vadd.f32 0.0, %v2076
      %v2078 = vpop.f32.mrb[0].mxu0
      %2079 = vmatprep.mubr.bf16.mxu0 0
      %2080 = vmatmul.mubr.bf16.gmra.mrb[0].mxu0 %v1897
      %v2081 = vpop.f32.mrb[0].mxu0
      %v2082 = vadd.f32 0.0, %v2081
      %v2083 = vpop.f32.mrb[0].mxu0
      %v2084 = vpop.f32.mrb[0].mxu0
      %v2085 = vadd.f32 0.0, %v2084
      %v2086 = vpop.f32.mrb[0].mxu0
      %2087 = vmatprep.mubr.bf16.mxu0 0
      %2088 = vmatmul.mubr.bf16.gmra.mrb[0].mxu0 %v1898
      %v2089 = vpop.f32.mrb[0].mxu0
      %v2090 = vadd.f32 0.0, %v2089
      %v2091 = vpop.f32.mrb[0].mxu0
      %v2092 = vpop.f32.mrb[0].mxu0
      %v2093 = vadd.f32 0.0, %v2092
      %v2094 = vpop.f32.mrb[0].mxu0
      %2095 = vmatprep.mubr.bf16.mxu0 0
      %2096 = vmatmul.mubr.bf16.gmra.mrb[0].mxu0 %v1899
      %v2097 = vpop.f32.mrb[0].mxu0
      %v2098 = vadd.f32 0.0, %v2097
      %v2099 = vpop.f32.mrb[0].mxu0
      %v2100 = vpop.f32.mrb[0].mxu0
      %v2101 = vadd.f32 0.0, %v2100
      %v2102 = vpop.f32.mrb[0].mxu0
      %2103 = vmatprep.mubr.bf16.mxu0 0
      %2104 = vmatmul.mubr.bf16.gmra.mrb[0].mxu0 %v1900
      %v2105 = vpop.f32.mrb[0].mxu0
      %v2106 = vadd.f32 0.0, %v2105
      %v2107 = vpop.f32.mrb[0].mxu0
      %v2108 = vpop.f32.mrb[0].mxu0
      %v2109 = vadd.f32 0.0, %v2108
      %v2110 = vpop.f32.mrb[0].mxu0
      %2111 = vmatprep.mubr.bf16.mxu0 0
      %2112 = vmatmul.mubr.bf16.gmra.mrb[0].mxu0 %v1901
      %v2113 = vpop.f32.mrb[0].mxu0
      %v2114 = vadd.f32 0.0, %v2113
      %v2115 = vpop.f32.mrb[0].mxu0
      %v2116 = vpop.f32.mrb[0].mxu0
      %v2117 = vadd.f32 0.0, %v2116
      %v2118 = vpop.f32.mrb[0].mxu0
      %2119 = vmatprep.mubr.bf16.mxu0 0
      %2120 = vmatmul.mubr.bf16.gmra.mrb[0].mxu0 %v1902
      %v2121 = vpop.f32.mrb[0].mxu0
      %v2122 = vadd.f32 0.0, %v2121
      %v2123 = vpop.f32.mrb[0].mxu0
      %v2124 = vpop.f32.mrb[0].mxu0
      %v2125 = vadd.f32 0.0, %v2124
      %v2126 = vpop.f32.mrb[0].mxu0
      %2127 = vdwg.mxu0
      %v2128 = vadd.f32 %v1855, %v2002
      %v2129 = vadd.f32 %v1856, %v2005
      %v2130 = vadd.f32 %v1857, %v2010
      %v2131 = vadd.f32 %v1858, %v2013
      %v2132 = vadd.f32 %v1859, %v2018
      %v2133 = vadd.f32 %v1860, %v2021
      %v2134 = vadd.f32 %v1861, %v2026
      %v2135 = vadd.f32 %v1862, %v2029
      %v2136 = vadd.f32 %v1863, %v2034
      %v2137 = vadd.f32 %v1864, %v2037
      %v2138 = vadd.f32 %v1865, %v2042
      %v2139 = vadd.f32 %v1866, %v2045
      %v2140 = vadd.f32 %v1867, %v2050
      %v2141 = vadd.f32 %v1868, %v2053
      %v2142 = vadd.f32 %v1869, %v2058
      %v2143 = vadd.f32 %v1870, %v2061
      %v2144 = vadd.f32 %v1871, %v2066
      %v2145 = vadd.f32 %v1872, %v2069
      %v2146 = vadd.f32 %v1873, %v2074
      %v2147 = vadd.f32 %v1874, %v2077
      %v2148 = vadd.f32 %v1875, %v2082
      %v2149 = vadd.f32 %v1876, %v2085
      %v2150 = vadd.f32 %v1877, %v2090
      %v2151 = vadd.f32 %v1878, %v2093
      %v2152 = vadd.f32 %v1879, %v2098
      %v2153 = vadd.f32 %v1880, %v2101
      %v2154 = vadd.f32 %v1881, %v2106
      %v2155 = vadd.f32 %v1882, %v2109
      %v2156 = vadd.f32 %v1883, %v2114
      %v2157 = vadd.f32 %v1884, %v2117
      %v2158 = vadd.f32 %v1885, %v2122
      %v2159 = vadd.f32 %v1886, %v2125
      %v2160 = vld [vmem:[%s727] sm:$0xff]
      %v2161 = vld [vmem:[%s727 + $0x8] sm:$0x1]
      %v2162 = vld [vmem:[%s727 + $0x10] sm:$0xff]
      %v2163 = vld [vmem:[%s727 + $0x18] sm:$0x1]
      %v2164 = vld [vmem:[%s727 + $0x20] sm:$0xff]
      %v2165 = vld [vmem:[%s727 + $0x28] sm:$0x1]
      %v2166 = vld [vmem:[%s727 + $0x30] sm:$0xff]
      %v2167 = vld [vmem:[%s727 + $0x38] sm:$0x1]
      %v2168 = vld [vmem:[%s727 + $0x40] sm:$0xff]
      %v2169 = vld [vmem:[%s727 + $0x48] sm:$0x1]
      %v2170 = vld [vmem:[%s727 + $0x50] sm:$0xff]
      %v2171 = vld [vmem:[%s727 + $0x58] sm:$0x1]
      %v2172 = vld [vmem:[%s727 + $0x60] sm:$0xff]
      %v2173 = vld [vmem:[%s727 + $0x68] sm:$0x1]
      %v2174 = vld [vmem:[%s727 + $0x70] sm:$0xff]
      %v2175 = vld [vmem:[%s727 + $0x78] sm:$0x1]
      %v2176 = vld [vmem:[%s727 + $0x80] sm:$0xff]
      %v2177 = vld [vmem:[%s727 + $0x88] sm:$0x1]
      %v2178 = vld [vmem:[%s727 + $0x90] sm:$0xff]
      %v2179 = vld [vmem:[%s727 + $0x98] sm:$0x1]
      %v2180 = vld [vmem:[%s727 + $0xa0] sm:$0xff]
      %v2181 = vld [vmem:[%s727 + $0xa8] sm:$0x1]
      %v2182 = vld [vmem:[%s727 + $0xb0] sm:$0xff]
      %v2183 = vld [vmem:[%s727 + $0xb8] sm:$0x1]
      %v2184 = vld [vmem:[%s727 + $0xc0] sm:$0xff]
      %v2185 = vld [vmem:[%s727 + $0xc8] sm:$0x1]
      %v2186 = vld [vmem:[%s727 + $0xd0] sm:$0xff]
      %v2187 = vld [vmem:[%s727 + $0xd8] sm:$0x1]
      %v2188 = vld [vmem:[%s727 + $0xe0] sm:$0xff]
      %v2189 = vld [vmem:[%s727 + $0xe8] sm:$0x1]
      %v2190 = vld [vmem:[%s727 + $0xf0] sm:$0xff]
      %v2191 = vld [vmem:[%s727 + $0xf8] sm:$0x1]
      %v2193 = vshrl.u32 %v2160, 16
      %v2195 = vshll.u32 %v2160, 16
      %v2197 = vrot.slane %v2195, 1
      %v2198 = vor.u32 %v2193, %v2197
      %v2200 = vshll.u32 %v2161, 16
      %v2202 = vrot.slane %v2200, 1
      %v2203 = vsel %vm874, %v2198, %v2202
      %v2205 = vshrl.u32 %v2162, 16
      %v2207 = vshll.u32 %v2162, 16
      %v2209 = vrot.slane %v2207, 1
      %v2210 = vor.u32 %v2205, %v2209
      %v2212 = vshll.u32 %v2163, 16
      %v2214 = vrot.slane %v2212, 1
      %v2215 = vsel %vm874, %v2210, %v2214
      %v2217 = vshrl.u32 %v2164, 16
      %v2219 = vshll.u32 %v2164, 16
      %v2221 = vrot.slane %v2219, 1
      %v2222 = vor.u32 %v2217, %v2221
      %v2224 = vshll.u32 %v2165, 16
      %v2226 = vrot.slane %v2224, 1
      %v2227 = vsel %vm874, %v2222, %v2226
      %v2229 = vshrl.u32 %v2166, 16
      %v2231 = vshll.u32 %v2166, 16
      %v2233 = vrot.slane %v2231, 1
      %v2234 = vor.u32 %v2229, %v2233
      %v2236 = vshll.u32 %v2167, 16
      %v2238 = vrot.slane %v2236, 1
      %v2239 = vsel %vm874, %v2234, %v2238
      %v2241 = vshrl.u32 %v2168, 16
      %v2243 = vshll.u32 %v2168, 16
      %v2245 = vrot.slane %v2243, 1
      %v2246 = vor.u32 %v2241, %v2245
      %v2248 = vshll.u32 %v2169, 16
      %v2250 = vrot.slane %v2248, 1
      %v2251 = vsel %vm874, %v2246, %v2250
      %v2253 = vshrl.u32 %v2170, 16
      %v2255 = vshll.u32 %v2170, 16
      %v2257 = vrot.slane %v2255, 1
      %v2258 = vor.u32 %v2253, %v2257
      %v2260 = vshll.u32 %v2171, 16
      %v2262 = vrot.slane %v2260, 1
      %v2263 = vsel %vm874, %v2258, %v2262
      %v2265 = vshrl.u32 %v2172, 16
      %v2267 = vshll.u32 %v2172, 16
      %v2269 = vrot.slane %v2267, 1
      %v2270 = vor.u32 %v2265, %v2269
      %v2272 = vshll.u32 %v2173, 16
      %v2274 = vrot.slane %v2272, 1
      %v2275 = vsel %vm874, %v2270, %v2274
      %v2277 = vshrl.u32 %v2174, 16
      %v2279 = vshll.u32 %v2174, 16
      %v2281 = vrot.slane %v2279, 1
      %v2282 = vor.u32 %v2277, %v2281
      %v2284 = vshll.u32 %v2175, 16
      %v2286 = vrot.slane %v2284, 1
      %v2287 = vsel %vm874, %v2282, %v2286
      %v2289 = vshrl.u32 %v2176, 16
      %v2291 = vshll.u32 %v2176, 16
      %v2293 = vrot.slane %v2291, 1
      %v2294 = vor.u32 %v2289, %v2293
      %v2296 = vshll.u32 %v2177, 16
      %v2298 = vrot.slane %v2296, 1
      %v2299 = vsel %vm874, %v2294, %v2298
      %v2301 = vshrl.u32 %v2178, 16
      %v2303 = vshll.u32 %v2178, 16
      %v2305 = vrot.slane %v2303, 1
      %v2306 = vor.u32 %v2301, %v2305
      %v2308 = vshll.u32 %v2179, 16
      %v2310 = vrot.slane %v2308, 1
      %v2311 = vsel %vm874, %v2306, %v2310
      %v2313 = vshrl.u32 %v2180, 16
      %v2315 = vshll.u32 %v2180, 16
      %v2317 = vrot.slane %v2315, 1
      %v2318 = vor.u32 %v2313, %v2317
      %v2320 = vshll.u32 %v2181, 16
      %v2322 = vrot.slane %v2320, 1
      %v2323 = vsel %vm874, %v2318, %v2322
      %v2325 = vshrl.u32 %v2182, 16
      %v2327 = vshll.u32 %v2182, 16
      %v2329 = vrot.slane %v2327, 1
      %v2330 = vor.u32 %v2325, %v2329
      %v2332 = vshll.u32 %v2183, 16
      %v2334 = vrot.slane %v2332, 1
      %v2335 = vsel %vm874, %v2330, %v2334
      %v2337 = vshrl.u32 %v2184, 16
      %v2339 = vshll.u32 %v2184, 16
      %v2341 = vrot.slane %v2339, 1
      %v2342 = vor.u32 %v2337, %v2341
      %v2344 = vshll.u32 %v2185, 16
      %v2346 = vrot.slane %v2344, 1
      %v2347 = vsel %vm874, %v2342, %v2346
      %v2349 = vshrl.u32 %v2186, 16
      %v2351 = vshll.u32 %v2186, 16
      %v2353 = vrot.slane %v2351, 1
      %v2354 = vor.u32 %v2349, %v2353
      %v2356 = vshll.u32 %v2187, 16
      %v2358 = vrot.slane %v2356, 1
      %v2359 = vsel %vm874, %v2354, %v2358
      %v2361 = vshrl.u32 %v2188, 16
      %v2363 = vshll.u32 %v2188, 16
      %v2365 = vrot.slane %v2363, 1
      %v2366 = vor.u32 %v2361, %v2365
      %v2368 = vshll.u32 %v2189, 16
      %v2370 = vrot.slane %v2368, 1
      %v2371 = vsel %vm874, %v2366, %v2370
      %v2373 = vshrl.u32 %v2190, 16
      %v2375 = vshll.u32 %v2190, 16
      %v2377 = vrot.slane %v2375, 1
      %v2378 = vor.u32 %v2373, %v2377
      %v2380 = vshll.u32 %v2191, 16
      %v2382 = vrot.slane %v2380, 1
      %v2383 = vsel %vm874, %v2378, %v2382
      %v2400 = vld [vmem:[%s1 + $0x100] sm:$0xf]
      %v2401 = vld [vmem:[%s1 + $0x104] sm:$0xf]
      %v2402 = vld [vmem:[%s1 + $0x108] sm:$0xf]
      %v2403 = vld [vmem:[%s1 + $0x10c] sm:$0xf]
      %v2404 = vld [vmem:[%s1 + $0x110] sm:$0xf]
      %v2405 = vld [vmem:[%s1 + $0x114] sm:$0xf]
      %v2406 = vld [vmem:[%s1 + $0x118] sm:$0xf]
      %v2407 = vld [vmem:[%s1 + $0x11c] sm:$0xf]
      %v2408 = vld [vmem:[%s1 + $0x120] sm:$0xf]
      %v2409 = vld [vmem:[%s1 + $0x124] sm:$0xf]
      %v2410 = vld [vmem:[%s1 + $0x128] sm:$0xf]
      %v2411 = vld [vmem:[%s1 + $0x12c] sm:$0xf]
      %v2412 = vld [vmem:[%s1 + $0x130] sm:$0xf]
      %v2413 = vld [vmem:[%s1 + $0x134] sm:$0xf]
      %v2414 = vld [vmem:[%s1 + $0x138] sm:$0xf]
      %v2415 = vld [vmem:[%s1 + $0x13c] sm:$0xf]
      %v2432 = vunpack.c.l.b16 %v2400
      %v2433 = vunpack.c.l.b16 %v2401
      %v2434 = vunpack.c.l.b16 %v2402
      %v2435 = vunpack.c.l.b16 %v2403
      %v2436 = vunpack.c.l.b16 %v2404
      %v2437 = vunpack.c.l.b16 %v2405
      %v2438 = vunpack.c.l.b16 %v2406
      %v2439 = vunpack.c.l.b16 %v2407
      %v2440 = vunpack.c.l.b16 %v2408
      %v2441 = vunpack.c.l.b16 %v2409
      %v2442 = vunpack.c.l.b16 %v2410
      %v2443 = vunpack.c.l.b16 %v2411
      %v2444 = vunpack.c.l.b16 %v2412
      %v2445 = vunpack.c.l.b16 %v2413
      %v2446 = vunpack.c.l.b16 %v2414
      %v2447 = vunpack.c.l.b16 %v2415
      %v2448 = vpack.c.b16 %v2433, %v2432
      %v2449 = vpack.c.b16 %v2435, %v2434
      %v2450 = vpack.c.b16 %v2437, %v2436
      %v2451 = vpack.c.b16 %v2439, %v2438
      %v2452 = vpack.c.b16 %v2441, %v2440
      %v2453 = vpack.c.b16 %v2443, %v2442
      %v2454 = vpack.c.b16 %v2445, %v2444
      %v2455 = vpack.c.b16 %v2447, %v2446
      %2464 = vmatprep.subr.bf16.mxu0 0
      %2465 = vmatpush1.bf16.msra.mxu0 %v2448
      %2466 = vmatprep.subr.bf16.mxu0 0
      %2467 = vmatpush1.bf16.msra.mxu0 %v2449
      %2468 = vmatprep.subr.bf16.mxu0 0
      %2469 = vmatpush1.bf16.msra.mxu0 %v2450
      %2470 = vmatprep.subr.bf16.mxu0 0
      %2471 = vmatpush1.bf16.msra.mxu0 %v2451
      %2472 = vmatprep.subr.bf16.mxu0 0
      %2473 = vmatpush1.bf16.msra.mxu0 %v2452
      %2474 = vmatprep.subr.bf16.mxu0 0
      %2475 = vmatpush1.bf16.msra.mxu0 %v2453
      %2476 = vmatprep.subr.bf16.mxu0 0
      %2477 = vmatpush1.bf16.msra.mxu0 %v2454
      %2478 = vmatprep.subr.bf16.mxu0 0
      %2479 = vmatpush1.bf16.msra.mxu0 %v2455
      %2480 = vmatprep.subr.bf16.mxu0 0
      %2481 = vmatpush1.bf16.msra.mxu0 0
      %2482 = vmatprep.subr.bf16.mxu0 0
      %2483 = vmatpush1.bf16.msra.mxu0 0
      %2484 = vmatprep.subr.bf16.mxu0 0
      %2485 = vmatpush1.bf16.msra.mxu0 0
      %2486 = vmatprep.subr.bf16.mxu0 0
      %2487 = vmatpush1.bf16.msra.mxu0 0
      %2488 = vmatprep.subr.bf16.mxu0 0
      %2489 = vmatpush1.bf16.msra.mxu0 0
      %2490 = vmatprep.subr.bf16.mxu0 0
      %2491 = vmatpush1.bf16.msra.mxu0 0
      %2492 = vmatprep.subr.bf16.mxu0 0
      %2493 = vmatpush1.bf16.msra.mxu0 0
      %2494 = vmatprep.subr.bf16.mxu0 0
      %2495 = vmatpush1.bf16.msra.mxu0 0
      %2496 = vmatprep.mubr.bf16.mxu0 0
      %2497 = vmatmul.mubr.bf16.gmra.mrb[0].mxu0 %v2203
      %v2498 = vpop.f32.mrb[0].mxu0
      %v2499 = vadd.f32 0.0, %v2498
      %v2500 = vpop.f32.mrb[0].mxu0
      %v2501 = vpop.f32.mrb[0].mxu0
      %v2502 = vadd.f32 0.0, %v2501
      %v2503 = vpop.f32.mrb[0].mxu0
      %2504 = vmatprep.mubr.bf16.mxu0 0
      %2505 = vmatmul.mubr.bf16.gmra.mrb[0].mxu0 %v2215
      %v2506 = vpop.f32.mrb[0].mxu0
      %v2507 = vadd.f32 0.0, %v2506
      %v2508 = vpop.f32.mrb[0].mxu0
      %v2509 = vpop.f32.mrb[0].mxu0
      %v2510 = vadd.f32 0.0, %v2509
      %v2511 = vpop.f32.mrb[0].mxu0
      %2512 = vmatprep.mubr.bf16.mxu0 0
      %2513 = vmatmul.mubr.bf16.gmra.mrb[0].mxu0 %v2227
      %v2514 = vpop.f32.mrb[0].mxu0
      %v2515 = vadd.f32 0.0, %v2514
      %v2516 = vpop.f32.mrb[0].mxu0
      %v2517 = vpop.f32.mrb[0].mxu0
      %v2518 = vadd.f32 0.0, %v2517
      %v2519 = vpop.f32.mrb[0].mxu0
      %2520 = vmatprep.mubr.bf16.mxu0 0
      %2521 = vmatmul.mubr.bf16.gmra.mrb[0].mxu0 %v2239
      %v2522 = vpop.f32.mrb[0].mxu0
      %v2523 = vadd.f32 0.0, %v2522
      %v2524 = vpop.f32.mrb[0].mxu0
      %v2525 = vpop.f32.mrb[0].mxu0
      %v2526 = vadd.f32 0.0, %v2525
      %v2527 = vpop.f32.mrb[0].mxu0
      %2528 = vmatprep.mubr.bf16.mxu0 0
      %2529 = vmatmul.mubr.bf16.gmra.mrb[0].mxu0 %v2251
      %v2530 = vpop.f32.mrb[0].mxu0
      %v2531 = vadd.f32 0.0, %v2530
      %v2532 = vpop.f32.mrb[0].mxu0
      %v2533 = vpop.f32.mrb[0].mxu0
      %v2534 = vadd.f32 0.0, %v2533
      %v2535 = vpop.f32.mrb[0].mxu0
      %2536 = vmatprep.mubr.bf16.mxu0 0
      %2537 = vmatmul.mubr.bf16.gmra.mrb[0].mxu0 %v2263
      %v2538 = vpop.f32.mrb[0].mxu0
      %v2539 = vadd.f32 0.0, %v2538
      %v2540 = vpop.f32.mrb[0].mxu0
      %v2541 = vpop.f32.mrb[0].mxu0
      %v2542 = vadd.f32 0.0, %v2541
      %v2543 = vpop.f32.mrb[0].mxu0
      %2544 = vmatprep.mubr.bf16.mxu0 0
      %2545 = vmatmul.mubr.bf16.gmra.mrb[0].mxu0 %v2275
      %v2546 = vpop.f32.mrb[0].mxu0
      %v2547 = vadd.f32 0.0, %v2546
      %v2548 = vpop.f32.mrb[0].mxu0
      %v2549 = vpop.f32.mrb[0].mxu0
      %v2550 = vadd.f32 0.0, %v2549
      %v2551 = vpop.f32.mrb[0].mxu0
      %2552 = vmatprep.mubr.bf16.mxu0 0
      %2553 = vmatmul.mubr.bf16.gmra.mrb[0].mxu0 %v2287
      %v2554 = vpop.f32.mrb[0].mxu0
      %v2555 = vadd.f32 0.0, %v2554
      %v2556 = vpop.f32.mrb[0].mxu0
      %v2557 = vpop.f32.mrb[0].mxu0
      %v2558 = vadd.f32 0.0, %v2557
      %v2559 = vpop.f32.mrb[0].mxu0
      %2560 = vmatprep.mubr.bf16.mxu0 0
      %2561 = vmatmul.mubr.bf16.gmra.mrb[0].mxu0 %v2299
      %v2562 = vpop.f32.mrb[0].mxu0
      %v2563 = vadd.f32 0.0, %v2562
      %v2564 = vpop.f32.mrb[0].mxu0
      %v2565 = vpop.f32.mrb[0].mxu0
      %v2566 = vadd.f32 0.0, %v2565
      %v2567 = vpop.f32.mrb[0].mxu0
      %2568 = vmatprep.mubr.bf16.mxu0 0
      %2569 = vmatmul.mubr.bf16.gmra.mrb[0].mxu0 %v2311
      %v2570 = vpop.f32.mrb[0].mxu0
      %v2571 = vadd.f32 0.0, %v2570
      %v2572 = vpop.f32.mrb[0].mxu0
      %v2573 = vpop.f32.mrb[0].mxu0
      %v2574 = vadd.f32 0.0, %v2573
      %v2575 = vpop.f32.mrb[0].mxu0
      %2576 = vmatprep.mubr.bf16.mxu0 0
      %2577 = vmatmul.mubr.bf16.gmra.mrb[0].mxu0 %v2323
      %v2578 = vpop.f32.mrb[0].mxu0
      %v2579 = vadd.f32 0.0, %v2578
      %v2580 = vpop.f32.mrb[0].mxu0
      %v2581 = vpop.f32.mrb[0].mxu0
      %v2582 = vadd.f32 0.0, %v2581
      %v2583 = vpop.f32.mrb[0].mxu0
      %2584 = vmatprep.mubr.bf16.mxu0 0
      %2585 = vmatmul.mubr.bf16.gmra.mrb[0].mxu0 %v2335
      %v2586 = vpop.f32.mrb[0].mxu0
      %v2587 = vadd.f32 0.0, %v2586
      %v2588 = vpop.f32.mrb[0].mxu0
      %v2589 = vpop.f32.mrb[0].mxu0
      %v2590 = vadd.f32 0.0, %v2589
      %v2591 = vpop.f32.mrb[0].mxu0
      %2592 = vmatprep.mubr.bf16.mxu0 0
      %2593 = vmatmul.mubr.bf16.gmra.mrb[0].mxu0 %v2347
      %v2594 = vpop.f32.mrb[0].mxu0
      %v2595 = vadd.f32 0.0, %v2594
      %v2596 = vpop.f32.mrb[0].mxu0
      %v2597 = vpop.f32.mrb[0].mxu0
      %v2598 = vadd.f32 0.0, %v2597
      %v2599 = vpop.f32.mrb[0].mxu0
      %2600 = vmatprep.mubr.bf16.mxu0 0
      %2601 = vmatmul.mubr.bf16.gmra.mrb[0].mxu0 %v2359
      %v2602 = vpop.f32.mrb[0].mxu0
      %v2603 = vadd.f32 0.0, %v2602
      %v2604 = vpop.f32.mrb[0].mxu0
      %v2605 = vpop.f32.mrb[0].mxu0
      %v2606 = vadd.f32 0.0, %v2605
      %v2607 = vpop.f32.mrb[0].mxu0
      %2608 = vmatprep.mubr.bf16.mxu0 0
      %2609 = vmatmul.mubr.bf16.gmra.mrb[0].mxu0 %v2371
      %v2610 = vpop.f32.mrb[0].mxu0
      %v2611 = vadd.f32 0.0, %v2610
      %v2612 = vpop.f32.mrb[0].mxu0
      %v2613 = vpop.f32.mrb[0].mxu0
      %v2614 = vadd.f32 0.0, %v2613
      %v2615 = vpop.f32.mrb[0].mxu0
      %2616 = vmatprep.mubr.bf16.mxu0 0
      %2617 = vmatmul.mubr.bf16.gmra.mrb[0].mxu0 %v2383
      %v2618 = vpop.f32.mrb[0].mxu0
      %v2619 = vadd.f32 0.0, %v2618
      %v2620 = vpop.f32.mrb[0].mxu0
      %v2621 = vpop.f32.mrb[0].mxu0
      %v2622 = vadd.f32 0.0, %v2621
      %v2623 = vpop.f32.mrb[0].mxu0
      %2624 = vdwg.mxu0
      %v2625 = vadd.f32 %v2128, %v2499
      %v2626 = vadd.f32 %v2129, %v2502
      %v2627 = vadd.f32 %v2130, %v2507
      %v2628 = vadd.f32 %v2131, %v2510
      %v2629 = vadd.f32 %v2132, %v2515
      %v2630 = vadd.f32 %v2133, %v2518
      %v2631 = vadd.f32 %v2134, %v2523
      %v2632 = vadd.f32 %v2135, %v2526
      %v2633 = vadd.f32 %v2136, %v2531
      %v2634 = vadd.f32 %v2137, %v2534
      %v2635 = vadd.f32 %v2138, %v2539
      %v2636 = vadd.f32 %v2139, %v2542
      %v2637 = vadd.f32 %v2140, %v2547
      %v2638 = vadd.f32 %v2141, %v2550
      %v2639 = vadd.f32 %v2142, %v2555
      %v2640 = vadd.f32 %v2143, %v2558
      %v2641 = vadd.f32 %v2144, %v2563
      %v2642 = vadd.f32 %v2145, %v2566
      %v2643 = vadd.f32 %v2146, %v2571
      %v2644 = vadd.f32 %v2147, %v2574
      %v2645 = vadd.f32 %v2148, %v2579
      %v2646 = vadd.f32 %v2149, %v2582
      %v2647 = vadd.f32 %v2150, %v2587
      %v2648 = vadd.f32 %v2151, %v2590
      %v2649 = vadd.f32 %v2152, %v2595
      %v2650 = vadd.f32 %v2153, %v2598
      %v2651 = vadd.f32 %v2154, %v2603
      %v2652 = vadd.f32 %v2155, %v2606
      %v2653 = vadd.f32 %v2156, %v2611
      %v2654 = vadd.f32 %v2157, %v2614
      %v2655 = vadd.f32 %v2158, %v2619
      %v2656 = vadd.f32 %v2159, %v2622
      %v2657 = vld [vmem:[%s727] sm:$0xfe]
      %v2658 = vld [vmem:[%s727 + $0x10] sm:$0xfe]
      %v2659 = vld [vmem:[%s727 + $0x20] sm:$0xfe]
      %v2660 = vld [vmem:[%s727 + $0x30] sm:$0xfe]
      %v2661 = vld [vmem:[%s727 + $0x40] sm:$0xfe]
      %v2662 = vld [vmem:[%s727 + $0x50] sm:$0xfe]
      %v2663 = vld [vmem:[%s727 + $0x60] sm:$0xfe]
      %v2664 = vld [vmem:[%s727 + $0x70] sm:$0xfe]
      %v2665 = vld [vmem:[%s727 + $0x80] sm:$0xfe]
      %v2666 = vld [vmem:[%s727 + $0x90] sm:$0xfe]
      %v2667 = vld [vmem:[%s727 + $0xa0] sm:$0xfe]
      %v2668 = vld [vmem:[%s727 + $0xb0] sm:$0xfe]
      %v2669 = vld [vmem:[%s727 + $0xc0] sm:$0xfe]
      %v2670 = vld [vmem:[%s727 + $0xd0] sm:$0xfe]
      %v2671 = vld [vmem:[%s727 + $0xe0] sm:$0xfe]
      %v2672 = vld [vmem:[%s727 + $0xf0] sm:$0xfe]
      %v2705 = vrot.slane %v2657, 1
      %v2706 = vrot.slane %v2161, 1
      %v2707 = vsel %vm1565, %v2705, %v2706
      %v2708 = vrot.slane %v2658, 1
      %v2709 = vrot.slane %v2163, 1
      %v2710 = vsel %vm1565, %v2708, %v2709
      %v2711 = vrot.slane %v2659, 1
      %v2712 = vrot.slane %v2165, 1
      %v2713 = vsel %vm1565, %v2711, %v2712
      %v2714 = vrot.slane %v2660, 1
      %v2715 = vrot.slane %v2167, 1
      %v2716 = vsel %vm1565, %v2714, %v2715
      %v2717 = vrot.slane %v2661, 1
      %v2718 = vrot.slane %v2169, 1
      %v2719 = vsel %vm1565, %v2717, %v2718
      %v2720 = vrot.slane %v2662, 1
      %v2721 = vrot.slane %v2171, 1
      %v2722 = vsel %vm1565, %v2720, %v2721
      %v2723 = vrot.slane %v2663, 1
      %v2724 = vrot.slane %v2173, 1
      %v2725 = vsel %vm1565, %v2723, %v2724
      %v2726 = vrot.slane %v2664, 1
      %v2727 = vrot.slane %v2175, 1
      %v2728 = vsel %vm1565, %v2726, %v2727
      %v2729 = vrot.slane %v2665, 1
      %v2730 = vrot.slane %v2177, 1
      %v2731 = vsel %vm1565, %v2729, %v2730
      %v2732 = vrot.slane %v2666, 1
      %v2733 = vrot.slane %v2179, 1
      %v2734 = vsel %vm1565, %v2732, %v2733
      %v2735 = vrot.slane %v2667, 1
      %v2736 = vrot.slane %v2181, 1
      %v2737 = vsel %vm1565, %v2735, %v2736
      %v2738 = vrot.slane %v2668, 1
      %v2739 = vrot.slane %v2183, 1
      %v2740 = vsel %vm1565, %v2738, %v2739
      %v2741 = vrot.slane %v2669, 1
      %v2742 = vrot.slane %v2185, 1
      %v2743 = vsel %vm1565, %v2741, %v2742
      %v2744 = vrot.slane %v2670, 1
      %v2745 = vrot.slane %v2187, 1
      %v2746 = vsel %vm1565, %v2744, %v2745
      %v2747 = vrot.slane %v2671, 1
      %v2748 = vrot.slane %v2189, 1
      %v2749 = vsel %vm1565, %v2747, %v2748
      %v2750 = vrot.slane %v2672, 1
      %v2751 = vrot.slane %v2191, 1
      %v2752 = vsel %vm1565, %v2750, %v2751
      %v2769 = vld [vmem:[%s1 + $0x140] sm:$0xf]
      %v2770 = vld [vmem:[%s1 + $0x144] sm:$0xf]
      %v2771 = vld [vmem:[%s1 + $0x148] sm:$0xf]
      %v2772 = vld [vmem:[%s1 + $0x14c] sm:$0xf]
      %v2773 = vld [vmem:[%s1 + $0x150] sm:$0xf]
      %v2774 = vld [vmem:[%s1 + $0x154] sm:$0xf]
      %v2775 = vld [vmem:[%s1 + $0x158] sm:$0xf]
      %v2776 = vld [vmem:[%s1 + $0x15c] sm:$0xf]
      %v2777 = vld [vmem:[%s1 + $0x160] sm:$0xf]
      %v2778 = vld [vmem:[%s1 + $0x164] sm:$0xf]
      %v2779 = vld [vmem:[%s1 + $0x168] sm:$0xf]
      %v2780 = vld [vmem:[%s1 + $0x16c] sm:$0xf]
      %v2781 = vld [vmem:[%s1 + $0x170] sm:$0xf]
      %v2782 = vld [vmem:[%s1 + $0x174] sm:$0xf]
      %v2783 = vld [vmem:[%s1 + $0x178] sm:$0xf]
      %v2784 = vld [vmem:[%s1 + $0x17c] sm:$0xf]
      %v2801 = vunpack.c.l.b16 %v2769
      %v2802 = vunpack.c.l.b16 %v2770
      %v2803 = vunpack.c.l.b16 %v2771
      %v2804 = vunpack.c.l.b16 %v2772
      %v2805 = vunpack.c.l.b16 %v2773
      %v2806 = vunpack.c.l.b16 %v2774
      %v2807 = vunpack.c.l.b16 %v2775
      %v2808 = vunpack.c.l.b16 %v2776
      %v2809 = vunpack.c.l.b16 %v2777
      %v2810 = vunpack.c.l.b16 %v2778
      %v2811 = vunpack.c.l.b16 %v2779
      %v2812 = vunpack.c.l.b16 %v2780
      %v2813 = vunpack.c.l.b16 %v2781
      %v2814 = vunpack.c.l.b16 %v2782
      %v2815 = vunpack.c.l.b16 %v2783
      %v2816 = vunpack.c.l.b16 %v2784
      %v2817 = vpack.c.b16 %v2802, %v2801
      %v2818 = vpack.c.b16 %v2804, %v2803
      %v2819 = vpack.c.b16 %v2806, %v2805
      %v2820 = vpack.c.b16 %v2808, %v2807
      %v2821 = vpack.c.b16 %v2810, %v2809
      %v2822 = vpack.c.b16 %v2812, %v2811
      %v2823 = vpack.c.b16 %v2814, %v2813
      %v2824 = vpack.c.b16 %v2816, %v2815
      %2833 = vmatprep.subr.bf16.mxu0 0
      %2834 = vmatpush1.bf16.msra.mxu0 %v2817
      %2835 = vmatprep.subr.bf16.mxu0 0
      %2836 = vmatpush1.bf16.msra.mxu0 %v2818
      %2837 = vmatprep.subr.bf16.mxu0 0
      %2838 = vmatpush1.bf16.msra.mxu0 %v2819
      %2839 = vmatprep.subr.bf16.mxu0 0
      %2840 = vmatpush1.bf16.msra.mxu0 %v2820
      %2841 = vmatprep.subr.bf16.mxu0 0
      %2842 = vmatpush1.bf16.msra.mxu0 %v2821
      %2843 = vmatprep.subr.bf16.mxu0 0
      %2844 = vmatpush1.bf16.msra.mxu0 %v2822
      %2845 = vmatprep.subr.bf16.mxu0 0
      %2846 = vmatpush1.bf16.msra.mxu0 %v2823
      %2847 = vmatprep.subr.bf16.mxu0 0
      %2848 = vmatpush1.bf16.msra.mxu0 %v2824
      %2849 = vmatprep.subr.bf16.mxu0 0
      %2850 = vmatpush1.bf16.msra.mxu0 0
      %2851 = vmatprep.subr.bf16.mxu0 0
      %2852 = vmatpush1.bf16.msra.mxu0 0
      %2853 = vmatprep.subr.bf16.mxu0 0
      %2854 = vmatpush1.bf16.msra.mxu0 0
      %2855 = vmatprep.subr.bf16.mxu0 0
      %2856 = vmatpush1.bf16.msra.mxu0 0
      %2857 = vmatprep.subr.bf16.mxu0 0
      %2858 = vmatpush1.bf16.msra.mxu0 0
      %2859 = vmatprep.subr.bf16.mxu0 0
      %2860 = vmatpush1.bf16.msra.mxu0 0
      %2861 = vmatprep.subr.bf16.mxu0 0
      %2862 = vmatpush1.bf16.msra.mxu0 0
      %2863 = vmatprep.subr.bf16.mxu0 0
      %2864 = vmatpush1.bf16.msra.mxu0 0
      %2865 = vmatprep.mubr.bf16.mxu0 0
      %2866 = vmatmul.mubr.bf16.gmra.mrb[0].mxu0 %v2707
      %v2867 = vpop.f32.mrb[0].mxu0
      %v2868 = vadd.f32 0.0, %v2867
      %v2869 = vpop.f32.mrb[0].mxu0
      %v2870 = vpop.f32.mrb[0].mxu0
      %v2871 = vadd.f32 0.0, %v2870
      %v2872 = vpop.f32.mrb[0].mxu0
      %2873 = vmatprep.mubr.bf16.mxu0 0
      %2874 = vmatmul.mubr.bf16.gmra.mrb[0].mxu0 %v2710
      %v2875 = vpop.f32.mrb[0].mxu0
      %v2876 = vadd.f32 0.0, %v2875
      %v2877 = vpop.f32.mrb[0].mxu0
      %v2878 = vpop.f32.mrb[0].mxu0
      %v2879 = vadd.f32 0.0, %v2878
      %v2880 = vpop.f32.mrb[0].mxu0
      %2881 = vmatprep.mubr.bf16.mxu0 0
      %2882 = vmatmul.mubr.bf16.gmra.mrb[0].mxu0 %v2713
      %v2883 = vpop.f32.mrb[0].mxu0
      %v2884 = vadd.f32 0.0, %v2883
      %v2885 = vpop.f32.mrb[0].mxu0
      %v2886 = vpop.f32.mrb[0].mxu0
      %v2887 = vadd.f32 0.0, %v2886
      %v2888 = vpop.f32.mrb[0].mxu0
      %2889 = vmatprep.mubr.bf16.mxu0 0
      %2890 = vmatmul.mubr.bf16.gmra.mrb[0].mxu0 %v2716
      %v2891 = vpop.f32.mrb[0].mxu0
      %v2892 = vadd.f32 0.0, %v2891
      %v2893 = vpop.f32.mrb[0].mxu0
      %v2894 = vpop.f32.mrb[0].mxu0
      %v2895 = vadd.f32 0.0, %v2894
      %v2896 = vpop.f32.mrb[0].mxu0
      %2897 = vmatprep.mubr.bf16.mxu0 0
      %2898 = vmatmul.mubr.bf16.gmra.mrb[0].mxu0 %v2719
      %v2899 = vpop.f32.mrb[0].mxu0
      %v2900 = vadd.f32 0.0, %v2899
      %v2901 = vpop.f32.mrb[0].mxu0
      %v2902 = vpop.f32.mrb[0].mxu0
      %v2903 = vadd.f32 0.0, %v2902
      %v2904 = vpop.f32.mrb[0].mxu0
      %2905 = vmatprep.mubr.bf16.mxu0 0
      %2906 = vmatmul.mubr.bf16.gmra.mrb[0].mxu0 %v2722
      %v2907 = vpop.f32.mrb[0].mxu0
      %v2908 = vadd.f32 0.0, %v2907
      %v2909 = vpop.f32.mrb[0].mxu0
      %v2910 = vpop.f32.mrb[0].mxu0
      %v2911 = vadd.f32 0.0, %v2910
      %v2912 = vpop.f32.mrb[0].mxu0
      %2913 = vmatprep.mubr.bf16.mxu0 0
      %2914 = vmatmul.mubr.bf16.gmra.mrb[0].mxu0 %v2725
      %v2915 = vpop.f32.mrb[0].mxu0
      %v2916 = vadd.f32 0.0, %v2915
      %v2917 = vpop.f32.mrb[0].mxu0
      %v2918 = vpop.f32.mrb[0].mxu0
      %v2919 = vadd.f32 0.0, %v2918
      %v2920 = vpop.f32.mrb[0].mxu0
      %2921 = vmatprep.mubr.bf16.mxu0 0
      %2922 = vmatmul.mubr.bf16.gmra.mrb[0].mxu0 %v2728
      %v2923 = vpop.f32.mrb[0].mxu0
      %v2924 = vadd.f32 0.0, %v2923
      %v2925 = vpop.f32.mrb[0].mxu0
      %v2926 = vpop.f32.mrb[0].mxu0
      %v2927 = vadd.f32 0.0, %v2926
      %v2928 = vpop.f32.mrb[0].mxu0
      %2929 = vmatprep.mubr.bf16.mxu0 0
      %2930 = vmatmul.mubr.bf16.gmra.mrb[0].mxu0 %v2731
      %v2931 = vpop.f32.mrb[0].mxu0
      %v2932 = vadd.f32 0.0, %v2931
      %v2933 = vpop.f32.mrb[0].mxu0
      %v2934 = vpop.f32.mrb[0].mxu0
      %v2935 = vadd.f32 0.0, %v2934
      %v2936 = vpop.f32.mrb[0].mxu0
      %2937 = vmatprep.mubr.bf16.mxu0 0
      %2938 = vmatmul.mubr.bf16.gmra.mrb[0].mxu0 %v2734
      %v2939 = vpop.f32.mrb[0].mxu0
      %v2940 = vadd.f32 0.0, %v2939
      %v2941 = vpop.f32.mrb[0].mxu0
      %v2942 = vpop.f32.mrb[0].mxu0
      %v2943 = vadd.f32 0.0, %v2942
      %v2944 = vpop.f32.mrb[0].mxu0
      %2945 = vmatprep.mubr.bf16.mxu0 0
      %2946 = vmatmul.mubr.bf16.gmra.mrb[0].mxu0 %v2737
      %v2947 = vpop.f32.mrb[0].mxu0
      %v2948 = vadd.f32 0.0, %v2947
      %v2949 = vpop.f32.mrb[0].mxu0
      %v2950 = vpop.f32.mrb[0].mxu0
      %v2951 = vadd.f32 0.0, %v2950
      %v2952 = vpop.f32.mrb[0].mxu0
      %2953 = vmatprep.mubr.bf16.mxu0 0
      %2954 = vmatmul.mubr.bf16.gmra.mrb[0].mxu0 %v2740
      %v2955 = vpop.f32.mrb[0].mxu0
      %v2956 = vadd.f32 0.0, %v2955
      %v2957 = vpop.f32.mrb[0].mxu0
      %v2958 = vpop.f32.mrb[0].mxu0
      %v2959 = vadd.f32 0.0, %v2958
      %v2960 = vpop.f32.mrb[0].mxu0
      %2961 = vmatprep.mubr.bf16.mxu0 0
      %2962 = vmatmul.mubr.bf16.gmra.mrb[0].mxu0 %v2743
      %v2963 = vpop.f32.mrb[0].mxu0
      %v2964 = vadd.f32 0.0, %v2963
      %v2965 = vpop.f32.mrb[0].mxu0
      %v2966 = vpop.f32.mrb[0].mxu0
      %v2967 = vadd.f32 0.0, %v2966
      %v2968 = vpop.f32.mrb[0].mxu0
      %2969 = vmatprep.mubr.bf16.mxu0 0
      %2970 = vmatmul.mubr.bf16.gmra.mrb[0].mxu0 %v2746
      %v2971 = vpop.f32.mrb[0].mxu0
      %v2972 = vadd.f32 0.0, %v2971
      %v2973 = vpop.f32.mrb[0].mxu0
      %v2974 = vpop.f32.mrb[0].mxu0
      %v2975 = vadd.f32 0.0, %v2974
      %v2976 = vpop.f32.mrb[0].mxu0
      %2977 = vmatprep.mubr.bf16.mxu0 0
      %2978 = vmatmul.mubr.bf16.gmra.mrb[0].mxu0 %v2749
      %v2979 = vpop.f32.mrb[0].mxu0
      %v2980 = vadd.f32 0.0, %v2979
      %v2981 = vpop.f32.mrb[0].mxu0
      %v2982 = vpop.f32.mrb[0].mxu0
      %v2983 = vadd.f32 0.0, %v2982
      %v2984 = vpop.f32.mrb[0].mxu0
      %2985 = vmatprep.mubr.bf16.mxu0 0
      %2986 = vmatmul.mubr.bf16.gmra.mrb[0].mxu0 %v2752
      %v2987 = vpop.f32.mrb[0].mxu0
      %v2988 = vadd.f32 0.0, %v2987
      %v2989 = vpop.f32.mrb[0].mxu0
      %v2990 = vpop.f32.mrb[0].mxu0
      %v2991 = vadd.f32 0.0, %v2990
      %v2992 = vpop.f32.mrb[0].mxu0
      %2993 = vdwg.mxu0
      %v2994 = vadd.f32 %v2625, %v2868
      %v2995 = vadd.f32 %v2626, %v2871
      %v2996 = vadd.f32 %v2627, %v2876
      %v2997 = vadd.f32 %v2628, %v2879
      %v2998 = vadd.f32 %v2629, %v2884
      %v2999 = vadd.f32 %v2630, %v2887
      %v3000 = vadd.f32 %v2631, %v2892
      %v3001 = vadd.f32 %v2632, %v2895
      %v3002 = vadd.f32 %v2633, %v2900
      %v3003 = vadd.f32 %v2634, %v2903
      %v3004 = vadd.f32 %v2635, %v2908
      %v3005 = vadd.f32 %v2636, %v2911
      %v3006 = vadd.f32 %v2637, %v2916
      %v3007 = vadd.f32 %v2638, %v2919
      %v3008 = vadd.f32 %v2639, %v2924
      %v3009 = vadd.f32 %v2640, %v2927
      %v3010 = vadd.f32 %v2641, %v2932
      %v3011 = vadd.f32 %v2642, %v2935
      %v3012 = vadd.f32 %v2643, %v2940
      %v3013 = vadd.f32 %v2644, %v2943
      %v3014 = vadd.f32 %v2645, %v2948
      %v3015 = vadd.f32 %v2646, %v2951
      %v3016 = vadd.f32 %v2647, %v2956
      %v3017 = vadd.f32 %v2648, %v2959
      %v3018 = vadd.f32 %v2649, %v2964
      %v3019 = vadd.f32 %v2650, %v2967
      %v3020 = vadd.f32 %v2651, %v2972
      %v3021 = vadd.f32 %v2652, %v2975
      %v3022 = vadd.f32 %v2653, %v2980
      %v3023 = vadd.f32 %v2654, %v2983
      %v3024 = vadd.f32 %v2655, %v2988
      %v3025 = vadd.f32 %v2656, %v2991
      %s3026 = scalar_lea.vmem [#allocation2], 32
      %v3027 = vld [vmem:[%s3026] sm:$0xff]
      %v3028 = vld [vmem:[%s3026 + $0x10] sm:$0xff]
      %v3029 = vld [vmem:[%s3026 + $0x20] sm:$0xff]
      %v3030 = vld [vmem:[%s3026 + $0x30] sm:$0xff]
      %v3031 = vld [vmem:[%s3026 + $0x40] sm:$0xff]
      %v3032 = vld [vmem:[%s3026 + $0x50] sm:$0xff]
      %v3033 = vld [vmem:[%s3026 + $0x60] sm:$0xff]
      %v3034 = vld [vmem:[%s3026 + $0x70] sm:$0xff]
      %v3035 = vld [vmem:[%s3026 + $0x80] sm:$0xff]
      %v3036 = vld [vmem:[%s3026 + $0x90] sm:$0xff]
      %v3037 = vld [vmem:[%s3026 + $0xa0] sm:$0xff]
      %v3038 = vld [vmem:[%s3026 + $0xb0] sm:$0xff]
      %v3039 = vld [vmem:[%s3026 + $0xc0] sm:$0xff]
      %v3040 = vld [vmem:[%s3026 + $0xd0] sm:$0xff]
      %v3041 = vld [vmem:[%s3026 + $0xe0] sm:$0xff]
      %v3042 = vld [vmem:[%s3026 + $0xf0] sm:$0xff]
      %v3043 = vld [vmem:[%s1 + $0x180] sm:$0xf]
      %v3044 = vld [vmem:[%s1 + $0x184] sm:$0xf]
      %v3045 = vld [vmem:[%s1 + $0x188] sm:$0xf]
      %v3046 = vld [vmem:[%s1 + $0x18c] sm:$0xf]
      %v3047 = vld [vmem:[%s1 + $0x190] sm:$0xf]
      %v3048 = vld [vmem:[%s1 + $0x194] sm:$0xf]
      %v3049 = vld [vmem:[%s1 + $0x198] sm:$0xf]
      %v3050 = vld [vmem:[%s1 + $0x19c] sm:$0xf]
      %v3051 = vld [vmem:[%s1 + $0x1a0] sm:$0xf]
      %v3052 = vld [vmem:[%s1 + $0x1a4] sm:$0xf]
      %v3053 = vld [vmem:[%s1 + $0x1a8] sm:$0xf]
      %v3054 = vld [vmem:[%s1 + $0x1ac] sm:$0xf]
      %v3055 = vld [vmem:[%s1 + $0x1b0] sm:$0xf]
      %v3056 = vld [vmem:[%s1 + $0x1b4] sm:$0xf]
      %v3057 = vld [vmem:[%s1 + $0x1b8] sm:$0xf]
      %v3058 = vld [vmem:[%s1 + $0x1bc] sm:$0xf]
      %v3075 = vunpack.c.l.b16 %v3043
      %v3076 = vunpack.c.l.b16 %v3044
      %v3077 = vunpack.c.l.b16 %v3045
      %v3078 = vunpack.c.l.b16 %v3046
      %v3079 = vunpack.c.l.b16 %v3047
      %v3080 = vunpack.c.l.b16 %v3048
      %v3081 = vunpack.c.l.b16 %v3049
      %v3082 = vunpack.c.l.b16 %v3050
      %v3083 = vunpack.c.l.b16 %v3051
      %v3084 = vunpack.c.l.b16 %v3052
      %v3085 = vunpack.c.l.b16 %v3053
      %v3086 = vunpack.c.l.b16 %v3054
      %v3087 = vunpack.c.l.b16 %v3055
      %v3088 = vunpack.c.l.b16 %v3056
      %v3089 = vunpack.c.l.b16 %v3057
      %v3090 = vunpack.c.l.b16 %v3058
      %v3091 = vpack.c.b16 %v3076, %v3075
      %v3092 = vpack.c.b16 %v3078, %v3077
      %v3093 = vpack.c.b16 %v3080, %v3079
      %v3094 = vpack.c.b16 %v3082, %v3081
      %v3095 = vpack.c.b16 %v3084, %v3083
      %v3096 = vpack.c.b16 %v3086, %v3085
      %v3097 = vpack.c.b16 %v3088, %v3087
      %v3098 = vpack.c.b16 %v3090, %v3089
      %3107 = vmatprep.subr.bf16.mxu0 0
      %3108 = vmatpush1.bf16.msra.mxu0 %v3091
      %3109 = vmatprep.subr.bf16.mxu0 0
      %3110 = vmatpush1.bf16.msra.mxu0 %v3092
      %3111 = vmatprep.subr.bf16.mxu0 0
      %3112 = vmatpush1.bf16.msra.mxu0 %v3093
      %3113 = vmatprep.subr.bf16.mxu0 0
      %3114 = vmatpush1.bf16.msra.mxu0 %v3094
      %3115 = vmatprep.subr.bf16.mxu0 0
      %3116 = vmatpush1.bf16.msra.mxu0 %v3095
      %3117 = vmatprep.subr.bf16.mxu0 0
      %3118 = vmatpush1.bf16.msra.mxu0 %v3096
      %3119 = vmatprep.subr.bf16.mxu0 0
      %3120 = vmatpush1.bf16.msra.mxu0 %v3097
      %3121 = vmatprep.subr.bf16.mxu0 0
      %3122 = vmatpush1.bf16.msra.mxu0 %v3098
      %3123 = vmatprep.subr.bf16.mxu0 0
      %3124 = vmatpush1.bf16.msra.mxu0 0
      %3125 = vmatprep.subr.bf16.mxu0 0
      %3126 = vmatpush1.bf16.msra.mxu0 0
      %3127 = vmatprep.subr.bf16.mxu0 0
      %3128 = vmatpush1.bf16.msra.mxu0 0
      %3129 = vmatprep.subr.bf16.mxu0 0
      %3130 = vmatpush1.bf16.msra.mxu0 0
      %3131 = vmatprep.subr.bf16.mxu0 0
      %3132 = vmatpush1.bf16.msra.mxu0 0
      %3133 = vmatprep.subr.bf16.mxu0 0
      %3134 = vmatpush1.bf16.msra.mxu0 0
      %3135 = vmatprep.subr.bf16.mxu0 0
      %3136 = vmatpush1.bf16.msra.mxu0 0
      %3137 = vmatprep.subr.bf16.mxu0 0
      %3138 = vmatpush1.bf16.msra.mxu0 0
      %3139 = vmatprep.mubr.bf16.mxu0 0
      %3140 = vmatmul.mubr.bf16.gmra.mrb[0].mxu0 %v3027
      %v3141 = vpop.f32.mrb[0].mxu0
      %v3142 = vadd.f32 0.0, %v3141
      %v3143 = vpop.f32.mrb[0].mxu0
      %v3144 = vpop.f32.mrb[0].mxu0
      %v3145 = vadd.f32 0.0, %v3144
      %v3146 = vpop.f32.mrb[0].mxu0
      %3147 = vmatprep.mubr.bf16.mxu0 0
      %3148 = vmatmul.mubr.bf16.gmra.mrb[0].mxu0 %v3028
      %v3149 = vpop.f32.mrb[0].mxu0
      %v3150 = vadd.f32 0.0, %v3149
      %v3151 = vpop.f32.mrb[0].mxu0
      %v3152 = vpop.f32.mrb[0].mxu0
      %v3153 = vadd.f32 0.0, %v3152
      %v3154 = vpop.f32.mrb[0].mxu0
      %3155 = vmatprep.mubr.bf16.mxu0 0
      %3156 = vmatmul.mubr.bf16.gmra.mrb[0].mxu0 %v3029
      %v3157 = vpop.f32.mrb[0].mxu0
      %v3158 = vadd.f32 0.0, %v3157
      %v3159 = vpop.f32.mrb[0].mxu0
      %v3160 = vpop.f32.mrb[0].mxu0
      %v3161 = vadd.f32 0.0, %v3160
      %v3162 = vpop.f32.mrb[0].mxu0
      %3163 = vmatprep.mubr.bf16.mxu0 0
      %3164 = vmatmul.mubr.bf16.gmra.mrb[0].mxu0 %v3030
      %v3165 = vpop.f32.mrb[0].mxu0
      %v3166 = vadd.f32 0.0, %v3165
      %v3167 = vpop.f32.mrb[0].mxu0
      %v3168 = vpop.f32.mrb[0].mxu0
      %v3169 = vadd.f32 0.0, %v3168
      %v3170 = vpop.f32.mrb[0].mxu0
      %3171 = vmatprep.mubr.bf16.mxu0 0
      %3172 = vmatmul.mubr.bf16.gmra.mrb[0].mxu0 %v3031
      %v3173 = vpop.f32.mrb[0].mxu0
      %v3174 = vadd.f32 0.0, %v3173
      %v3175 = vpop.f32.mrb[0].mxu0
      %v3176 = vpop.f32.mrb[0].mxu0
      %v3177 = vadd.f32 0.0, %v3176
      %v3178 = vpop.f32.mrb[0].mxu0
      %3179 = vmatprep.mubr.bf16.mxu0 0
      %3180 = vmatmul.mubr.bf16.gmra.mrb[0].mxu0 %v3032
      %v3181 = vpop.f32.mrb[0].mxu0
      %v3182 = vadd.f32 0.0, %v3181
      %v3183 = vpop.f32.mrb[0].mxu0
      %v3184 = vpop.f32.mrb[0].mxu0
      %v3185 = vadd.f32 0.0, %v3184
      %v3186 = vpop.f32.mrb[0].mxu0
      %3187 = vmatprep.mubr.bf16.mxu0 0
      %3188 = vmatmul.mubr.bf16.gmra.mrb[0].mxu0 %v3033
      %v3189 = vpop.f32.mrb[0].mxu0
      %v3190 = vadd.f32 0.0, %v3189
      %v3191 = vpop.f32.mrb[0].mxu0
      %v3192 = vpop.f32.mrb[0].mxu0
      %v3193 = vadd.f32 0.0, %v3192
      %v3194 = vpop.f32.mrb[0].mxu0
      %3195 = vmatprep.mubr.bf16.mxu0 0
      %3196 = vmatmul.mubr.bf16.gmra.mrb[0].mxu0 %v3034
      %v3197 = vpop.f32.mrb[0].mxu0
      %v3198 = vadd.f32 0.0, %v3197
      %v3199 = vpop.f32.mrb[0].mxu0
      %v3200 = vpop.f32.mrb[0].mxu0
      %v3201 = vadd.f32 0.0, %v3200
      %v3202 = vpop.f32.mrb[0].mxu0
      %3203 = vmatprep.mubr.bf16.mxu0 0
      %3204 = vmatmul.mubr.bf16.gmra.mrb[0].mxu0 %v3035
      %v3205 = vpop.f32.mrb[0].mxu0
      %v3206 = vadd.f32 0.0, %v3205
      %v3207 = vpop.f32.mrb[0].mxu0
      %v3208 = vpop.f32.mrb[0].mxu0
      %v3209 = vadd.f32 0.0, %v3208
      %v3210 = vpop.f32.mrb[0].mxu0
      %3211 = vmatprep.mubr.bf16.mxu0 0
      %3212 = vmatmul.mubr.bf16.gmra.mrb[0].mxu0 %v3036
      %v3213 = vpop.f32.mrb[0].mxu0
      %v3214 = vadd.f32 0.0, %v3213
      %v3215 = vpop.f32.mrb[0].mxu0
      %v3216 = vpop.f32.mrb[0].mxu0
      %v3217 = vadd.f32 0.0, %v3216
      %v3218 = vpop.f32.mrb[0].mxu0
      %3219 = vmatprep.mubr.bf16.mxu0 0
      %3220 = vmatmul.mubr.bf16.gmra.mrb[0].mxu0 %v3037
      %v3221 = vpop.f32.mrb[0].mxu0
      %v3222 = vadd.f32 0.0, %v3221
      %v3223 = vpop.f32.mrb[0].mxu0
      %v3224 = vpop.f32.mrb[0].mxu0
      %v3225 = vadd.f32 0.0, %v3224
      %v3226 = vpop.f32.mrb[0].mxu0
      %3227 = vmatprep.mubr.bf16.mxu0 0
      %3228 = vmatmul.mubr.bf16.gmra.mrb[0].mxu0 %v3038
      %v3229 = vpop.f32.mrb[0].mxu0
      %v3230 = vadd.f32 0.0, %v3229
      %v3231 = vpop.f32.mrb[0].mxu0
      %v3232 = vpop.f32.mrb[0].mxu0
      %v3233 = vadd.f32 0.0, %v3232
      %v3234 = vpop.f32.mrb[0].mxu0
      %3235 = vmatprep.mubr.bf16.mxu0 0
      %3236 = vmatmul.mubr.bf16.gmra.mrb[0].mxu0 %v3039
      %v3237 = vpop.f32.mrb[0].mxu0
      %v3238 = vadd.f32 0.0, %v3237
      %v3239 = vpop.f32.mrb[0].mxu0
      %v3240 = vpop.f32.mrb[0].mxu0
      %v3241 = vadd.f32 0.0, %v3240
      %v3242 = vpop.f32.mrb[0].mxu0
      %3243 = vmatprep.mubr.bf16.mxu0 0
      %3244 = vmatmul.mubr.bf16.gmra.mrb[0].mxu0 %v3040
      %v3245 = vpop.f32.mrb[0].mxu0
      %v3246 = vadd.f32 0.0, %v3245
      %v3247 = vpop.f32.mrb[0].mxu0
      %v3248 = vpop.f32.mrb[0].mxu0
      %v3249 = vadd.f32 0.0, %v3248
      %v3250 = vpop.f32.mrb[0].mxu0
      %3251 = vmatprep.mubr.bf16.mxu0 0
      %3252 = vmatmul.mubr.bf16.gmra.mrb[0].mxu0 %v3041
      %v3253 = vpop.f32.mrb[0].mxu0
      %v3254 = vadd.f32 0.0, %v3253
      %v3255 = vpop.f32.mrb[0].mxu0
      %v3256 = vpop.f32.mrb[0].mxu0
      %v3257 = vadd.f32 0.0, %v3256
      %v3258 = vpop.f32.mrb[0].mxu0
      %3259 = vmatprep.mubr.bf16.mxu0 0
      %3260 = vmatmul.mubr.bf16.gmra.mrb[0].mxu0 %v3042
      %v3261 = vpop.f32.mrb[0].mxu0
      %v3262 = vadd.f32 0.0, %v3261
      %v3263 = vpop.f32.mrb[0].mxu0
      %v3264 = vpop.f32.mrb[0].mxu0
      %v3265 = vadd.f32 0.0, %v3264
      %v3266 = vpop.f32.mrb[0].mxu0
      %3267 = vdwg.mxu0
      %v3268 = vadd.f32 %v2994, %v3142
      %v3269 = vadd.f32 %v2995, %v3145
      %v3270 = vadd.f32 %v2996, %v3150
      %v3271 = vadd.f32 %v2997, %v3153
      %v3272 = vadd.f32 %v2998, %v3158
      %v3273 = vadd.f32 %v2999, %v3161
      %v3274 = vadd.f32 %v3000, %v3166
      %v3275 = vadd.f32 %v3001, %v3169
      %v3276 = vadd.f32 %v3002, %v3174
      %v3277 = vadd.f32 %v3003, %v3177
      %v3278 = vadd.f32 %v3004, %v3182
      %v3279 = vadd.f32 %v3005, %v3185
      %v3280 = vadd.f32 %v3006, %v3190
      %v3281 = vadd.f32 %v3007, %v3193
      %v3282 = vadd.f32 %v3008, %v3198
      %v3283 = vadd.f32 %v3009, %v3201
      %v3284 = vadd.f32 %v3010, %v3206
      %v3285 = vadd.f32 %v3011, %v3209
      %v3286 = vadd.f32 %v3012, %v3214
      %v3287 = vadd.f32 %v3013, %v3217
      %v3288 = vadd.f32 %v3014, %v3222
      %v3289 = vadd.f32 %v3015, %v3225
      %v3290 = vadd.f32 %v3016, %v3230
      %v3291 = vadd.f32 %v3017, %v3233
      %v3292 = vadd.f32 %v3018, %v3238
      %v3293 = vadd.f32 %v3019, %v3241
      %v3294 = vadd.f32 %v3020, %v3246
      %v3295 = vadd.f32 %v3021, %v3249
      %v3296 = vadd.f32 %v3022, %v3254
      %v3297 = vadd.f32 %v3023, %v3257
      %v3298 = vadd.f32 %v3024, %v3262
      %v3299 = vadd.f32 %v3025, %v3265
      %v3300 = vld [vmem:[%s3026] sm:$0xff]
      %v3301 = vld [vmem:[%s3026 + $0x8] sm:$0x1]
      %v3302 = vld [vmem:[%s3026 + $0x10] sm:$0xff]
      %v3303 = vld [vmem:[%s3026 + $0x18] sm:$0x1]
      %v3304 = vld [vmem:[%s3026 + $0x20] sm:$0xff]
      %v3305 = vld [vmem:[%s3026 + $0x28] sm:$0x1]
      %v3306 = vld [vmem:[%s3026 + $0x30] sm:$0xff]
      %v3307 = vld [vmem:[%s3026 + $0x38] sm:$0x1]
      %v3308 = vld [vmem:[%s3026 + $0x40] sm:$0xff]
      %v3309 = vld [vmem:[%s3026 + $0x48] sm:$0x1]
      %v3310 = vld [vmem:[%s3026 + $0x50] sm:$0xff]
      %v3311 = vld [vmem:[%s3026 + $0x58] sm:$0x1]
      %v3312 = vld [vmem:[%s3026 + $0x60] sm:$0xff]
      %v3313 = vld [vmem:[%s3026 + $0x68] sm:$0x1]
      %v3314 = vld [vmem:[%s3026 + $0x70] sm:$0xff]
      %v3315 = vld [vmem:[%s3026 + $0x78] sm:$0x1]
      %v3316 = vld [vmem:[%s3026 + $0x80] sm:$0xff]
      %v3317 = vld [vmem:[%s3026 + $0x88] sm:$0x1]
      %v3318 = vld [vmem:[%s3026 + $0x90] sm:$0xff]
      %v3319 = vld [vmem:[%s3026 + $0x98] sm:$0x1]
      %v3320 = vld [vmem:[%s3026 + $0xa0] sm:$0xff]
      %v3321 = vld [vmem:[%s3026 + $0xa8] sm:$0x1]
      %v3322 = vld [vmem:[%s3026 + $0xb0] sm:$0xff]
      %v3323 = vld [vmem:[%s3026 + $0xb8] sm:$0x1]
      %v3324 = vld [vmem:[%s3026 + $0xc0] sm:$0xff]
      %v3325 = vld [vmem:[%s3026 + $0xc8] sm:$0x1]
      %v3326 = vld [vmem:[%s3026 + $0xd0] sm:$0xff]
      %v3327 = vld [vmem:[%s3026 + $0xd8] sm:$0x1]
      %v3328 = vld [vmem:[%s3026 + $0xe0] sm:$0xff]
      %v3329 = vld [vmem:[%s3026 + $0xe8] sm:$0x1]
      %v3330 = vld [vmem:[%s3026 + $0xf0] sm:$0xff]
      %v3331 = vld [vmem:[%s3026 + $0xf8] sm:$0x1]
      %v3333 = vshrl.u32 %v3300, 16
      %v3335 = vshll.u32 %v3300, 16
      %v3337 = vrot.slane %v3335, 1
      %v3338 = vor.u32 %v3333, %v3337
      %v3340 = vshll.u32 %v3301, 16
      %v3342 = vrot.slane %v3340, 1
      %v3343 = vsel %vm874, %v3338, %v3342
      %v3345 = vshrl.u32 %v3302, 16
      %v3347 = vshll.u32 %v3302, 16
      %v3349 = vrot.slane %v3347, 1
      %v3350 = vor.u32 %v3345, %v3349
      %v3352 = vshll.u32 %v3303, 16
      %v3354 = vrot.slane %v3352, 1
      %v3355 = vsel %vm874, %v3350, %v3354
      %v3357 = vshrl.u32 %v3304, 16
      %v3359 = vshll.u32 %v3304, 16
      %v3361 = vrot.slane %v3359, 1
      %v3362 = vor.u32 %v3357, %v3361
      %v3364 = vshll.u32 %v3305, 16
      %v3366 = vrot.slane %v3364, 1
      %v3367 = vsel %vm874, %v3362, %v3366
      %v3369 = vshrl.u32 %v3306, 16
      %v3371 = vshll.u32 %v3306, 16
      %v3373 = vrot.slane %v3371, 1
      %v3374 = vor.u32 %v3369, %v3373
      %v3376 = vshll.u32 %v3307, 16
      %v3378 = vrot.slane %v3376, 1
      %v3379 = vsel %vm874, %v3374, %v3378
      %v3381 = vshrl.u32 %v3308, 16
      %v3383 = vshll.u32 %v3308, 16
      %v3385 = vrot.slane %v3383, 1
      %v3386 = vor.u32 %v3381, %v3385
      %v3388 = vshll.u32 %v3309, 16
      %v3390 = vrot.slane %v3388, 1
      %v3391 = vsel %vm874, %v3386, %v3390
      %v3393 = vshrl.u32 %v3310, 16
      %v3395 = vshll.u32 %v3310, 16
      %v3397 = vrot.slane %v3395, 1
      %v3398 = vor.u32 %v3393, %v3397
      %v3400 = vshll.u32 %v3311, 16
      %v3402 = vrot.slane %v3400, 1
      %v3403 = vsel %vm874, %v3398, %v3402
      %v3405 = vshrl.u32 %v3312, 16
      %v3407 = vshll.u32 %v3312, 16
      %v3409 = vrot.slane %v3407, 1
      %v3410 = vor.u32 %v3405, %v3409
      %v3412 = vshll.u32 %v3313, 16
      %v3414 = vrot.slane %v3412, 1
      %v3415 = vsel %vm874, %v3410, %v3414
      %v3417 = vshrl.u32 %v3314, 16
      %v3419 = vshll.u32 %v3314, 16
      %v3421 = vrot.slane %v3419, 1
      %v3422 = vor.u32 %v3417, %v3421
      %v3424 = vshll.u32 %v3315, 16
      %v3426 = vrot.slane %v3424, 1
      %v3427 = vsel %vm874, %v3422, %v3426
      %v3429 = vshrl.u32 %v3316, 16
      %v3431 = vshll.u32 %v3316, 16
      %v3433 = vrot.slane %v3431, 1
      %v3434 = vor.u32 %v3429, %v3433
      %v3436 = vshll.u32 %v3317, 16
      %v3438 = vrot.slane %v3436, 1
      %v3439 = vsel %vm874, %v3434, %v3438
      %v3441 = vshrl.u32 %v3318, 16
      %v3443 = vshll.u32 %v3318, 16
      %v3445 = vrot.slane %v3443, 1
      %v3446 = vor.u32 %v3441, %v3445
      %v3448 = vshll.u32 %v3319, 16
      %v3450 = vrot.slane %v3448, 1
      %v3451 = vsel %vm874, %v3446, %v3450
      %v3453 = vshrl.u32 %v3320, 16
      %v3455 = vshll.u32 %v3320, 16
      %v3457 = vrot.slane %v3455, 1
      %v3458 = vor.u32 %v3453, %v3457
      %v3460 = vshll.u32 %v3321, 16
      %v3462 = vrot.slane %v3460, 1
      %v3463 = vsel %vm874, %v3458, %v3462
      %v3465 = vshrl.u32 %v3322, 16
      %v3467 = vshll.u32 %v3322, 16
      %v3469 = vrot.slane %v3467, 1
      %v3470 = vor.u32 %v3465, %v3469
      %v3472 = vshll.u32 %v3323, 16
      %v3474 = vrot.slane %v3472, 1
      %v3475 = vsel %vm874, %v3470, %v3474
      %v3477 = vshrl.u32 %v3324, 16
      %v3479 = vshll.u32 %v3324, 16
      %v3481 = vrot.slane %v3479, 1
      %v3482 = vor.u32 %v3477, %v3481
      %v3484 = vshll.u32 %v3325, 16
      %v3486 = vrot.slane %v3484, 1
      %v3487 = vsel %vm874, %v3482, %v3486
      %v3489 = vshrl.u32 %v3326, 16
      %v3491 = vshll.u32 %v3326, 16
      %v3493 = vrot.slane %v3491, 1
      %v3494 = vor.u32 %v3489, %v3493
      %v3496 = vshll.u32 %v3327, 16
      %v3498 = vrot.slane %v3496, 1
      %v3499 = vsel %vm874, %v3494, %v3498
      %v3501 = vshrl.u32 %v3328, 16
      %v3503 = vshll.u32 %v3328, 16
      %v3505 = vrot.slane %v3503, 1
      %v3506 = vor.u32 %v3501, %v3505
      %v3508 = vshll.u32 %v3329, 16
      %v3510 = vrot.slane %v3508, 1
      %v3511 = vsel %vm874, %v3506, %v3510
      %v3513 = vshrl.u32 %v3330, 16
      %v3515 = vshll.u32 %v3330, 16
      %v3517 = vrot.slane %v3515, 1
      %v3518 = vor.u32 %v3513, %v3517
      %v3520 = vshll.u32 %v3331, 16
      %v3522 = vrot.slane %v3520, 1
      %v3523 = vsel %vm874, %v3518, %v3522
      %v3540 = vld [vmem:[%s1 + $0x1c0] sm:$0xf]
      %v3541 = vld [vmem:[%s1 + $0x1c4] sm:$0xf]
      %v3542 = vld [vmem:[%s1 + $0x1c8] sm:$0xf]
      %v3543 = vld [vmem:[%s1 + $0x1cc] sm:$0xf]
      %v3544 = vld [vmem:[%s1 + $0x1d0] sm:$0xf]
      %v3545 = vld [vmem:[%s1 + $0x1d4] sm:$0xf]
      %v3546 = vld [vmem:[%s1 + $0x1d8] sm:$0xf]
      %v3547 = vld [vmem:[%s1 + $0x1dc] sm:$0xf]
      %v3548 = vld [vmem:[%s1 + $0x1e0] sm:$0xf]
      %v3549 = vld [vmem:[%s1 + $0x1e4] sm:$0xf]
      %v3550 = vld [vmem:[%s1 + $0x1e8] sm:$0xf]
      %v3551 = vld [vmem:[%s1 + $0x1ec] sm:$0xf]
      %v3552 = vld [vmem:[%s1 + $0x1f0] sm:$0xf]
      %v3553 = vld [vmem:[%s1 + $0x1f4] sm:$0xf]
      %v3554 = vld [vmem:[%s1 + $0x1f8] sm:$0xf]
      %v3555 = vld [vmem:[%s1 + $0x1fc] sm:$0xf]
      %v3572 = vunpack.c.l.b16 %v3540
      %v3573 = vunpack.c.l.b16 %v3541
      %v3574 = vunpack.c.l.b16 %v3542
      %v3575 = vunpack.c.l.b16 %v3543
      %v3576 = vunpack.c.l.b16 %v3544
      %v3577 = vunpack.c.l.b16 %v3545
      %v3578 = vunpack.c.l.b16 %v3546
      %v3579 = vunpack.c.l.b16 %v3547
      %v3580 = vunpack.c.l.b16 %v3548
      %v3581 = vunpack.c.l.b16 %v3549
      %v3582 = vunpack.c.l.b16 %v3550
      %v3583 = vunpack.c.l.b16 %v3551
      %v3584 = vunpack.c.l.b16 %v3552
      %v3585 = vunpack.c.l.b16 %v3553
      %v3586 = vunpack.c.l.b16 %v3554
      %v3587 = vunpack.c.l.b16 %v3555
      %v3588 = vpack.c.b16 %v3573, %v3572
      %v3589 = vpack.c.b16 %v3575, %v3574
      %v3590 = vpack.c.b16 %v3577, %v3576
      %v3591 = vpack.c.b16 %v3579, %v3578
      %v3592 = vpack.c.b16 %v3581, %v3580
      %v3593 = vpack.c.b16 %v3583, %v3582
      %v3594 = vpack.c.b16 %v3585, %v3584
      %v3595 = vpack.c.b16 %v3587, %v3586
      %3604 = vmatprep.subr.bf16.mxu0 0
      %3605 = vmatpush1.bf16.msra.mxu0 %v3588
      %3606 = vmatprep.subr.bf16.mxu0 0
      %3607 = vmatpush1.bf16.msra.mxu0 %v3589
      %3608 = vmatprep.subr.bf16.mxu0 0
      %3609 = vmatpush1.bf16.msra.mxu0 %v3590
      %3610 = vmatprep.subr.bf16.mxu0 0
      %3611 = vmatpush1.bf16.msra.mxu0 %v3591
      %3612 = vmatprep.subr.bf16.mxu0 0
      %3613 = vmatpush1.bf16.msra.mxu0 %v3592
      %3614 = vmatprep.subr.bf16.mxu0 0
      %3615 = vmatpush1.bf16.msra.mxu0 %v3593
      %3616 = vmatprep.subr.bf16.mxu0 0
      %3617 = vmatpush1.bf16.msra.mxu0 %v3594
      %3618 = vmatprep.subr.bf16.mxu0 0
      %3619 = vmatpush1.bf16.msra.mxu0 %v3595
      %3620 = vmatprep.subr.bf16.mxu0 0
      %3621 = vmatpush1.bf16.msra.mxu0 0
      %3622 = vmatprep.subr.bf16.mxu0 0
      %3623 = vmatpush1.bf16.msra.mxu0 0
      %3624 = vmatprep.subr.bf16.mxu0 0
      %3625 = vmatpush1.bf16.msra.mxu0 0
      %3626 = vmatprep.subr.bf16.mxu0 0
      %3627 = vmatpush1.bf16.msra.mxu0 0
      %3628 = vmatprep.subr.bf16.mxu0 0
      %3629 = vmatpush1.bf16.msra.mxu0 0
      %3630 = vmatprep.subr.bf16.mxu0 0
      %3631 = vmatpush1.bf16.msra.mxu0 0
      %3632 = vmatprep.subr.bf16.mxu0 0
      %3633 = vmatpush1.bf16.msra.mxu0 0
      %3634 = vmatprep.subr.bf16.mxu0 0
      %3635 = vmatpush1.bf16.msra.mxu0 0
      %3636 = vmatprep.mubr.bf16.mxu0 0
      %3637 = vmatmul.mubr.bf16.gmra.mrb[0].mxu0 %v3343
      %v3638 = vpop.f32.mrb[0].mxu0
      %v3639 = vadd.f32 0.0, %v3638
      %v3640 = vpop.f32.mrb[0].mxu0
      %v3641 = vpop.f32.mrb[0].mxu0
      %v3642 = vadd.f32 0.0, %v3641
      %v3643 = vpop.f32.mrb[0].mxu0
      %3644 = vmatprep.mubr.bf16.mxu0 0
      %3645 = vmatmul.mubr.bf16.gmra.mrb[0].mxu0 %v3355
      %v3646 = vpop.f32.mrb[0].mxu0
      %v3647 = vadd.f32 0.0, %v3646
      %v3648 = vpop.f32.mrb[0].mxu0
      %v3649 = vpop.f32.mrb[0].mxu0
      %v3650 = vadd.f32 0.0, %v3649
      %v3651 = vpop.f32.mrb[0].mxu0
      %3652 = vmatprep.mubr.bf16.mxu0 0
      %3653 = vmatmul.mubr.bf16.gmra.mrb[0].mxu0 %v3367
      %v3654 = vpop.f32.mrb[0].mxu0
      %v3655 = vadd.f32 0.0, %v3654
      %v3656 = vpop.f32.mrb[0].mxu0
      %v3657 = vpop.f32.mrb[0].mxu0
      %v3658 = vadd.f32 0.0, %v3657
      %v3659 = vpop.f32.mrb[0].mxu0
      %3660 = vmatprep.mubr.bf16.mxu0 0
      %3661 = vmatmul.mubr.bf16.gmra.mrb[0].mxu0 %v3379
      %v3662 = vpop.f32.mrb[0].mxu0
      %v3663 = vadd.f32 0.0, %v3662
      %v3664 = vpop.f32.mrb[0].mxu0
      %v3665 = vpop.f32.mrb[0].mxu0
      %v3666 = vadd.f32 0.0, %v3665
      %v3667 = vpop.f32.mrb[0].mxu0
      %3668 = vmatprep.mubr.bf16.mxu0 0
      %3669 = vmatmul.mubr.bf16.gmra.mrb[0].mxu0 %v3391
      %v3670 = vpop.f32.mrb[0].mxu0
      %v3671 = vadd.f32 0.0, %v3670
      %v3672 = vpop.f32.mrb[0].mxu0
      %v3673 = vpop.f32.mrb[0].mxu0
      %v3674 = vadd.f32 0.0, %v3673
      %v3675 = vpop.f32.mrb[0].mxu0
      %3676 = vmatprep.mubr.bf16.mxu0 0
      %3677 = vmatmul.mubr.bf16.gmra.mrb[0].mxu0 %v3403
      %v3678 = vpop.f32.mrb[0].mxu0
      %v3679 = vadd.f32 0.0, %v3678
      %v3680 = vpop.f32.mrb[0].mxu0
      %v3681 = vpop.f32.mrb[0].mxu0
      %v3682 = vadd.f32 0.0, %v3681
      %v3683 = vpop.f32.mrb[0].mxu0
      %3684 = vmatprep.mubr.bf16.mxu0 0
      %3685 = vmatmul.mubr.bf16.gmra.mrb[0].mxu0 %v3415
      %v3686 = vpop.f32.mrb[0].mxu0
      %v3687 = vadd.f32 0.0, %v3686
      %v3688 = vpop.f32.mrb[0].mxu0
      %v3689 = vpop.f32.mrb[0].mxu0
      %v3690 = vadd.f32 0.0, %v3689
      %v3691 = vpop.f32.mrb[0].mxu0
      %3692 = vmatprep.mubr.bf16.mxu0 0
      %3693 = vmatmul.mubr.bf16.gmra.mrb[0].mxu0 %v3427
      %v3694 = vpop.f32.mrb[0].mxu0
      %v3695 = vadd.f32 0.0, %v3694
      %v3696 = vpop.f32.mrb[0].mxu0
      %v3697 = vpop.f32.mrb[0].mxu0
      %v3698 = vadd.f32 0.0, %v3697
      %v3699 = vpop.f32.mrb[0].mxu0
      %3700 = vmatprep.mubr.bf16.mxu0 0
      %3701 = vmatmul.mubr.bf16.gmra.mrb[0].mxu0 %v3439
      %v3702 = vpop.f32.mrb[0].mxu0
      %v3703 = vadd.f32 0.0, %v3702
      %v3704 = vpop.f32.mrb[0].mxu0
      %v3705 = vpop.f32.mrb[0].mxu0
      %v3706 = vadd.f32 0.0, %v3705
      %v3707 = vpop.f32.mrb[0].mxu0
      %3708 = vmatprep.mubr.bf16.mxu0 0
      %3709 = vmatmul.mubr.bf16.gmra.mrb[0].mxu0 %v3451
      %v3710 = vpop.f32.mrb[0].mxu0
      %v3711 = vadd.f32 0.0, %v3710
      %v3712 = vpop.f32.mrb[0].mxu0
      %v3713 = vpop.f32.mrb[0].mxu0
      %v3714 = vadd.f32 0.0, %v3713
      %v3715 = vpop.f32.mrb[0].mxu0
      %3716 = vmatprep.mubr.bf16.mxu0 0
      %3717 = vmatmul.mubr.bf16.gmra.mrb[0].mxu0 %v3463
      %v3718 = vpop.f32.mrb[0].mxu0
      %v3719 = vadd.f32 0.0, %v3718
      %v3720 = vpop.f32.mrb[0].mxu0
      %v3721 = vpop.f32.mrb[0].mxu0
      %v3722 = vadd.f32 0.0, %v3721
      %v3723 = vpop.f32.mrb[0].mxu0
      %3724 = vmatprep.mubr.bf16.mxu0 0
      %3725 = vmatmul.mubr.bf16.gmra.mrb[0].mxu0 %v3475
      %v3726 = vpop.f32.mrb[0].mxu0
      %v3727 = vadd.f32 0.0, %v3726
      %v3728 = vpop.f32.mrb[0].mxu0
      %v3729 = vpop.f32.mrb[0].mxu0
      %v3730 = vadd.f32 0.0, %v3729
      %v3731 = vpop.f32.mrb[0].mxu0
      %3732 = vmatprep.mubr.bf16.mxu0 0
      %3733 = vmatmul.mubr.bf16.gmra.mrb[0].mxu0 %v3487
      %v3734 = vpop.f32.mrb[0].mxu0
      %v3735 = vadd.f32 0.0, %v3734
      %v3736 = vpop.f32.mrb[0].mxu0
      %v3737 = vpop.f32.mrb[0].mxu0
      %v3738 = vadd.f32 0.0, %v3737
      %v3739 = vpop.f32.mrb[0].mxu0
      %3740 = vmatprep.mubr.bf16.mxu0 0
      %3741 = vmatmul.mubr.bf16.gmra.mrb[0].mxu0 %v3499
      %v3742 = vpop.f32.mrb[0].mxu0
      %v3743 = vadd.f32 0.0, %v3742
      %v3744 = vpop.f32.mrb[0].mxu0
      %v3745 = vpop.f32.mrb[0].mxu0
      %v3746 = vadd.f32 0.0, %v3745
      %v3747 = vpop.f32.mrb[0].mxu0
      %3748 = vmatprep.mubr.bf16.mxu0 0
      %3749 = vmatmul.mubr.bf16.gmra.mrb[0].mxu0 %v3511
      %v3750 = vpop.f32.mrb[0].mxu0
      %v3751 = vadd.f32 0.0, %v3750
      %v3752 = vpop.f32.mrb[0].mxu0
      %v3753 = vpop.f32.mrb[0].mxu0
      %v3754 = vadd.f32 0.0, %v3753
      %v3755 = vpop.f32.mrb[0].mxu0
      %3756 = vmatprep.mubr.bf16.mxu0 0
      %3757 = vmatmul.mubr.bf16.gmra.mrb[0].mxu0 %v3523
      %v3758 = vpop.f32.mrb[0].mxu0
      %v3759 = vadd.f32 0.0, %v3758
      %v3760 = vpop.f32.mrb[0].mxu0
      %v3761 = vpop.f32.mrb[0].mxu0
      %v3762 = vadd.f32 0.0, %v3761
      %v3763 = vpop.f32.mrb[0].mxu0
      %3764 = vdwg.mxu0
      %v3765 = vadd.f32 %v3268, %v3639
      %v3766 = vadd.f32 %v3269, %v3642
      %v3767 = vadd.f32 %v3270, %v3647
      %v3768 = vadd.f32 %v3271, %v3650
      %v3769 = vadd.f32 %v3272, %v3655
      %v3770 = vadd.f32 %v3273, %v3658
      %v3771 = vadd.f32 %v3274, %v3663
      %v3772 = vadd.f32 %v3275, %v3666
      %v3773 = vadd.f32 %v3276, %v3671
      %v3774 = vadd.f32 %v3277, %v3674
      %v3775 = vadd.f32 %v3278, %v3679
      %v3776 = vadd.f32 %v3279, %v3682
      %v3777 = vadd.f32 %v3280, %v3687
      %v3778 = vadd.f32 %v3281, %v3690
      %v3779 = vadd.f32 %v3282, %v3695
      %v3780 = vadd.f32 %v3283, %v3698
      %v3781 = vadd.f32 %v3284, %v3703
      %v3782 = vadd.f32 %v3285, %v3706
      %v3783 = vadd.f32 %v3286, %v3711
      %v3784 = vadd.f32 %v3287, %v3714
      %v3785 = vadd.f32 %v3288, %v3719
      %v3786 = vadd.f32 %v3289, %v3722
      %v3787 = vadd.f32 %v3290, %v3727
      %v3788 = vadd.f32 %v3291, %v3730
      %v3789 = vadd.f32 %v3292, %v3735
      %v3790 = vadd.f32 %v3293, %v3738
      %v3791 = vadd.f32 %v3294, %v3743
      %v3792 = vadd.f32 %v3295, %v3746
      %v3793 = vadd.f32 %v3296, %v3751
      %v3794 = vadd.f32 %v3297, %v3754
      %v3795 = vadd.f32 %v3298, %v3759
      %v3796 = vadd.f32 %v3299, %v3762
      %v3797 = vld [vmem:[%s3026] sm:$0xfe]
      %v3798 = vld [vmem:[%s3026 + $0x10] sm:$0xfe]
      %v3799 = vld [vmem:[%s3026 + $0x20] sm:$0xfe]
      %v3800 = vld [vmem:[%s3026 + $0x30] sm:$0xfe]
      %v3801 = vld [vmem:[%s3026 + $0x40] sm:$0xfe]
      %v3802 = vld [vmem:[%s3026 + $0x50] sm:$0xfe]
      %v3803 = vld [vmem:[%s3026 + $0x60] sm:$0xfe]
      %v3804 = vld [vmem:[%s3026 + $0x70] sm:$0xfe]
      %v3805 = vld [vmem:[%s3026 + $0x80] sm:$0xfe]
      %v3806 = vld [vmem:[%s3026 + $0x90] sm:$0xfe]
      %v3807 = vld [vmem:[%s3026 + $0xa0] sm:$0xfe]
      %v3808 = vld [vmem:[%s3026 + $0xb0] sm:$0xfe]
      %v3809 = vld [vmem:[%s3026 + $0xc0] sm:$0xfe]
      %v3810 = vld [vmem:[%s3026 + $0xd0] sm:$0xfe]
      %v3811 = vld [vmem:[%s3026 + $0xe0] sm:$0xfe]
      %v3812 = vld [vmem:[%s3026 + $0xf0] sm:$0xfe]
      %v3845 = vrot.slane %v3797, 1
      %v3846 = vrot.slane %v3301, 1
      %v3847 = vsel %vm1565, %v3845, %v3846
      %v3848 = vrot.slane %v3798, 1
      %v3849 = vrot.slane %v3303, 1
      %v3850 = vsel %vm1565, %v3848, %v3849
      %v3851 = vrot.slane %v3799, 1
      %v3852 = vrot.slane %v3305, 1
      %v3853 = vsel %vm1565, %v3851, %v3852
      %v3854 = vrot.slane %v3800, 1
      %v3855 = vrot.slane %v3307, 1
      %v3856 = vsel %vm1565, %v3854, %v3855
      %v3857 = vrot.slane %v3801, 1
      %v3858 = vrot.slane %v3309, 1
      %v3859 = vsel %vm1565, %v3857, %v3858
      %v3860 = vrot.slane %v3802, 1
      %v3861 = vrot.slane %v3311, 1
      %v3862 = vsel %vm1565, %v3860, %v3861
      %v3863 = vrot.slane %v3803, 1
      %v3864 = vrot.slane %v3313, 1
      %v3865 = vsel %vm1565, %v3863, %v3864
      %v3866 = vrot.slane %v3804, 1
      %v3867 = vrot.slane %v3315, 1
      %v3868 = vsel %vm1565, %v3866, %v3867
      %v3869 = vrot.slane %v3805, 1
      %v3870 = vrot.slane %v3317, 1
      %v3871 = vsel %vm1565, %v3869, %v3870
      %v3872 = vrot.slane %v3806, 1
      %v3873 = vrot.slane %v3319, 1
      %v3874 = vsel %vm1565, %v3872, %v3873
      %v3875 = vrot.slane %v3807, 1
      %v3876 = vrot.slane %v3321, 1
      %v3877 = vsel %vm1565, %v3875, %v3876
      %v3878 = vrot.slane %v3808, 1
      %v3879 = vrot.slane %v3323, 1
      %v3880 = vsel %vm1565, %v3878, %v3879
      %v3881 = vrot.slane %v3809, 1
      %v3882 = vrot.slane %v3325, 1
      %v3883 = vsel %vm1565, %v3881, %v3882
      %v3884 = vrot.slane %v3810, 1
      %v3885 = vrot.slane %v3327, 1
      %v3886 = vsel %vm1565, %v3884, %v3885
      %v3887 = vrot.slane %v3811, 1
      %v3888 = vrot.slane %v3329, 1
      %v3889 = vsel %vm1565, %v3887, %v3888
      %v3890 = vrot.slane %v3812, 1
      %v3891 = vrot.slane %v3331, 1
      %v3892 = vsel %vm1565, %v3890, %v3891
      %v3909 = vld [vmem:[%s1 + $0x200] sm:$0xf]
      %v3910 = vld [vmem:[%s1 + $0x204] sm:$0xf]
      %v3911 = vld [vmem:[%s1 + $0x208] sm:$0xf]
      %v3912 = vld [vmem:[%s1 + $0x20c] sm:$0xf]
      %v3913 = vld [vmem:[%s1 + $0x210] sm:$0xf]
      %v3914 = vld [vmem:[%s1 + $0x214] sm:$0xf]
      %v3915 = vld [vmem:[%s1 + $0x218] sm:$0xf]
      %v3916 = vld [vmem:[%s1 + $0x21c] sm:$0xf]
      %v3917 = vld [vmem:[%s1 + $0x220] sm:$0xf]
      %v3918 = vld [vmem:[%s1 + $0x224] sm:$0xf]
      %v3919 = vld [vmem:[%s1 + $0x228] sm:$0xf]
      %v3920 = vld [vmem:[%s1 + $0x22c] sm:$0xf]
      %v3921 = vld [vmem:[%s1 + $0x230] sm:$0xf]
      %v3922 = vld [vmem:[%s1 + $0x234] sm:$0xf]
      %v3923 = vld [vmem:[%s1 + $0x238] sm:$0xf]
      %v3924 = vld [vmem:[%s1 + $0x23c] sm:$0xf]
      %v3941 = vunpack.c.l.b16 %v3909
      %v3942 = vunpack.c.l.b16 %v3910
      %v3943 = vunpack.c.l.b16 %v3911
      %v3944 = vunpack.c.l.b16 %v3912
      %v3945 = vunpack.c.l.b16 %v3913
      %v3946 = vunpack.c.l.b16 %v3914
      %v3947 = vunpack.c.l.b16 %v3915
      %v3948 = vunpack.c.l.b16 %v3916
      %v3949 = vunpack.c.l.b16 %v3917
      %v3950 = vunpack.c.l.b16 %v3918
      %v3951 = vunpack.c.l.b16 %v3919
      %v3952 = vunpack.c.l.b16 %v3920
      %v3953 = vunpack.c.l.b16 %v3921
      %v3954 = vunpack.c.l.b16 %v3922
      %v3955 = vunpack.c.l.b16 %v3923
      %v3956 = vunpack.c.l.b16 %v3924
      %v3957 = vpack.c.b16 %v3942, %v3941
      %v3958 = vpack.c.b16 %v3944, %v3943
      %v3959 = vpack.c.b16 %v3946, %v3945
      %v3960 = vpack.c.b16 %v3948, %v3947
      %v3961 = vpack.c.b16 %v3950, %v3949
      %v3962 = vpack.c.b16 %v3952, %v3951
      %v3963 = vpack.c.b16 %v3954, %v3953
      %v3964 = vpack.c.b16 %v3956, %v3955
      %3973 = vmatprep.subr.bf16.mxu0 0
      %3974 = vmatpush1.bf16.msra.mxu0 %v3957
      %3975 = vmatprep.subr.bf16.mxu0 0
      %3976 = vmatpush1.bf16.msra.mxu0 %v3958
      %3977 = vmatprep.subr.bf16.mxu0 0
      %3978 = vmatpush1.bf16.msra.mxu0 %v3959
      %3979 = vmatprep.subr.bf16.mxu0 0
      %3980 = vmatpush1.bf16.msra.mxu0 %v3960
      %3981 = vmatprep.subr.bf16.mxu0 0
      %3982 = vmatpush1.bf16.msra.mxu0 %v3961
      %3983 = vmatprep.subr.bf16.mxu0 0
      %3984 = vmatpush1.bf16.msra.mxu0 %v3962
      %3985 = vmatprep.subr.bf16.mxu0 0
      %3986 = vmatpush1.bf16.msra.mxu0 %v3963
      %3987 = vmatprep.subr.bf16.mxu0 0
      %3988 = vmatpush1.bf16.msra.mxu0 %v3964
      %3989 = vmatprep.subr.bf16.mxu0 0
      %3990 = vmatpush1.bf16.msra.mxu0 0
      %3991 = vmatprep.subr.bf16.mxu0 0
      %3992 = vmatpush1.bf16.msra.mxu0 0
      %3993 = vmatprep.subr.bf16.mxu0 0
      %3994 = vmatpush1.bf16.msra.mxu0 0
      %3995 = vmatprep.subr.bf16.mxu0 0
      %3996 = vmatpush1.bf16.msra.mxu0 0
      %3997 = vmatprep.subr.bf16.mxu0 0
      %3998 = vmatpush1.bf16.msra.mxu0 0
      %3999 = vmatprep.subr.bf16.mxu0 0
      %4000 = vmatpush1.bf16.msra.mxu0 0
      %4001 = vmatprep.subr.bf16.mxu0 0
      %4002 = vmatpush1.bf16.msra.mxu0 0
      %4003 = vmatprep.subr.bf16.mxu0 0
      %4004 = vmatpush1.bf16.msra.mxu0 0
      %4005 = vmatprep.mubr.bf16.mxu0 0
      %4006 = vmatmul.mubr.bf16.gmra.mrb[0].mxu0 %v3847
      %v4007 = vpop.f32.mrb[0].mxu0
      %v4008 = vadd.f32 0.0, %v4007
      %v4009 = vpop.f32.mrb[0].mxu0
      %v4010 = vpop.f32.mrb[0].mxu0
      %v4011 = vadd.f32 0.0, %v4010
      %v4012 = vpop.f32.mrb[0].mxu0
      %4013 = vmatprep.mubr.bf16.mxu0 0
      %4014 = vmatmul.mubr.bf16.gmra.mrb[0].mxu0 %v3850
      %v4015 = vpop.f32.mrb[0].mxu0
      %v4016 = vadd.f32 0.0, %v4015
      %v4017 = vpop.f32.mrb[0].mxu0
      %v4018 = vpop.f32.mrb[0].mxu0
      %v4019 = vadd.f32 0.0, %v4018
      %v4020 = vpop.f32.mrb[0].mxu0
      %4021 = vmatprep.mubr.bf16.mxu0 0
      %4022 = vmatmul.mubr.bf16.gmra.mrb[0].mxu0 %v3853
      %v4023 = vpop.f32.mrb[0].mxu0
      %v4024 = vadd.f32 0.0, %v4023
      %v4025 = vpop.f32.mrb[0].mxu0
      %v4026 = vpop.f32.mrb[0].mxu0
      %v4027 = vadd.f32 0.0, %v4026
      %v4028 = vpop.f32.mrb[0].mxu0
      %4029 = vmatprep.mubr.bf16.mxu0 0
      %4030 = vmatmul.mubr.bf16.gmra.mrb[0].mxu0 %v3856
      %v4031 = vpop.f32.mrb[0].mxu0
      %v4032 = vadd.f32 0.0, %v4031
      %v4033 = vpop.f32.mrb[0].mxu0
      %v4034 = vpop.f32.mrb[0].mxu0
      %v4035 = vadd.f32 0.0, %v4034
      %v4036 = vpop.f32.mrb[0].mxu0
      %4037 = vmatprep.mubr.bf16.mxu0 0
      %4038 = vmatmul.mubr.bf16.gmra.mrb[0].mxu0 %v3859
      %v4039 = vpop.f32.mrb[0].mxu0
      %v4040 = vadd.f32 0.0, %v4039
      %v4041 = vpop.f32.mrb[0].mxu0
      %v4042 = vpop.f32.mrb[0].mxu0
      %v4043 = vadd.f32 0.0, %v4042
      %v4044 = vpop.f32.mrb[0].mxu0
      %4045 = vmatprep.mubr.bf16.mxu0 0
      %4046 = vmatmul.mubr.bf16.gmra.mrb[0].mxu0 %v3862
      %v4047 = vpop.f32.mrb[0].mxu0
      %v4048 = vadd.f32 0.0, %v4047
      %v4049 = vpop.f32.mrb[0].mxu0
      %v4050 = vpop.f32.mrb[0].mxu0
      %v4051 = vadd.f32 0.0, %v4050
      %v4052 = vpop.f32.mrb[0].mxu0
      %4053 = vmatprep.mubr.bf16.mxu0 0
      %4054 = vmatmul.mubr.bf16.gmra.mrb[0].mxu0 %v3865
      %v4055 = vpop.f32.mrb[0].mxu0
      %v4056 = vadd.f32 0.0, %v4055
      %v4057 = vpop.f32.mrb[0].mxu0
      %v4058 = vpop.f32.mrb[0].mxu0
      %v4059 = vadd.f32 0.0, %v4058
      %v4060 = vpop.f32.mrb[0].mxu0
      %4061 = vmatprep.mubr.bf16.mxu0 0
      %4062 = vmatmul.mubr.bf16.gmra.mrb[0].mxu0 %v3868
      %v4063 = vpop.f32.mrb[0].mxu0
      %v4064 = vadd.f32 0.0, %v4063
      %v4065 = vpop.f32.mrb[0].mxu0
      %v4066 = vpop.f32.mrb[0].mxu0
      %v4067 = vadd.f32 0.0, %v4066
      %v4068 = vpop.f32.mrb[0].mxu0
      %4069 = vmatprep.mubr.bf16.mxu0 0
      %4070 = vmatmul.mubr.bf16.gmra.mrb[0].mxu0 %v3871
      %v4071 = vpop.f32.mrb[0].mxu0
      %v4072 = vadd.f32 0.0, %v4071
      %v4073 = vpop.f32.mrb[0].mxu0
      %v4074 = vpop.f32.mrb[0].mxu0
      %v4075 = vadd.f32 0.0, %v4074
      %v4076 = vpop.f32.mrb[0].mxu0
      %4077 = vmatprep.mubr.bf16.mxu0 0
      %4078 = vmatmul.mubr.bf16.gmra.mrb[0].mxu0 %v3874
      %v4079 = vpop.f32.mrb[0].mxu0
      %v4080 = vadd.f32 0.0, %v4079
      %v4081 = vpop.f32.mrb[0].mxu0
      %v4082 = vpop.f32.mrb[0].mxu0
      %v4083 = vadd.f32 0.0, %v4082
      %v4084 = vpop.f32.mrb[0].mxu0
      %4085 = vmatprep.mubr.bf16.mxu0 0
      %4086 = vmatmul.mubr.bf16.gmra.mrb[0].mxu0 %v3877
      %v4087 = vpop.f32.mrb[0].mxu0
      %v4088 = vadd.f32 0.0, %v4087
      %v4089 = vpop.f32.mrb[0].mxu0
      %v4090 = vpop.f32.mrb[0].mxu0
      %v4091 = vadd.f32 0.0, %v4090
      %v4092 = vpop.f32.mrb[0].mxu0
      %4093 = vmatprep.mubr.bf16.mxu0 0
      %4094 = vmatmul.mubr.bf16.gmra.mrb[0].mxu0 %v3880
      %v4095 = vpop.f32.mrb[0].mxu0
      %v4096 = vadd.f32 0.0, %v4095
      %v4097 = vpop.f32.mrb[0].mxu0
      %v4098 = vpop.f32.mrb[0].mxu0
      %v4099 = vadd.f32 0.0, %v4098
      %v4100 = vpop.f32.mrb[0].mxu0
      %4101 = vmatprep.mubr.bf16.mxu0 0
      %4102 = vmatmul.mubr.bf16.gmra.mrb[0].mxu0 %v3883
      %v4103 = vpop.f32.mrb[0].mxu0
      %v4104 = vadd.f32 0.0, %v4103
      %v4105 = vpop.f32.mrb[0].mxu0
      %v4106 = vpop.f32.mrb[0].mxu0
      %v4107 = vadd.f32 0.0, %v4106
      %v4108 = vpop.f32.mrb[0].mxu0
      %4109 = vmatprep.mubr.bf16.mxu0 0
      %4110 = vmatmul.mubr.bf16.gmra.mrb[0].mxu0 %v3886
      %v4111 = vpop.f32.mrb[0].mxu0
      %v4112 = vadd.f32 0.0, %v4111
      %v4113 = vpop.f32.mrb[0].mxu0
      %v4114 = vpop.f32.mrb[0].mxu0
      %v4115 = vadd.f32 0.0, %v4114
      %v4116 = vpop.f32.mrb[0].mxu0
      %4117 = vmatprep.mubr.bf16.mxu0 0
      %4118 = vmatmul.mubr.bf16.gmra.mrb[0].mxu0 %v3889
      %v4119 = vpop.f32.mrb[0].mxu0
      %v4120 = vadd.f32 0.0, %v4119
      %v4121 = vpop.f32.mrb[0].mxu0
      %v4122 = vpop.f32.mrb[0].mxu0
      %v4123 = vadd.f32 0.0, %v4122
      %v4124 = vpop.f32.mrb[0].mxu0
      %4125 = vmatprep.mubr.bf16.mxu0 0
      %4126 = vmatmul.mubr.bf16.gmra.mrb[0].mxu0 %v3892
      %v4127 = vpop.f32.mrb[0].mxu0
      %v4128 = vadd.f32 0.0, %v4127
      %v4129 = vpop.f32.mrb[0].mxu0
      %v4130 = vpop.f32.mrb[0].mxu0
      %v4131 = vadd.f32 0.0, %v4130
      %v4132 = vpop.f32.mrb[0].mxu0
      %4133 = vdwg.mxu0
      %v4134 = vadd.f32 %v3765, %v4008
      %v4135 = vadd.f32 %v3766, %v4011
      %v4136 = vadd.f32 %v3767, %v4016
      %v4137 = vadd.f32 %v3768, %v4019
      %v4138 = vadd.f32 %v3769, %v4024
      %v4139 = vadd.f32 %v3770, %v4027
      %v4140 = vadd.f32 %v3771, %v4032
      %v4141 = vadd.f32 %v3772, %v4035
      %v4142 = vadd.f32 %v3773, %v4040
      %v4143 = vadd.f32 %v3774, %v4043
      %v4144 = vadd.f32 %v3775, %v4048
      %v4145 = vadd.f32 %v3776, %v4051
      %v4146 = vadd.f32 %v3777, %v4056
      %v4147 = vadd.f32 %v3778, %v4059
      %v4148 = vadd.f32 %v3779, %v4064
      %v4149 = vadd.f32 %v3780, %v4067
      %v4150 = vadd.f32 %v3781, %v4072
      %v4151 = vadd.f32 %v3782, %v4075
      %v4152 = vadd.f32 %v3783, %v4080
      %v4153 = vadd.f32 %v3784, %v4083
      %v4154 = vadd.f32 %v3785, %v4088
      %v4155 = vadd.f32 %v3786, %v4091
      %v4156 = vadd.f32 %v3787, %v4096
      %v4157 = vadd.f32 %v3788, %v4099
      %v4158 = vadd.f32 %v3789, %v4104
      %v4159 = vadd.f32 %v3790, %v4107
      %v4160 = vadd.f32 %v3791, %v4112
      %v4161 = vadd.f32 %v3792, %v4115
      %v4162 = vadd.f32 %v3793, %v4120
      %v4163 = vadd.f32 %v3794, %v4123
      %v4164 = vadd.f32 %v3795, %v4128
      %v4165 = vadd.f32 %v3796, %v4131
      %v4166 = vadd.f32 %v4134, %v4135
      %v4167 = vadd.f32 %v4166, %v4136
      %v4168 = vadd.f32 %v4167, %v4137
      %v4169 = vadd.f32 %v4168, %v4138
      %v4170 = vadd.f32 %v4169, %v4139
      %v4171 = vadd.f32 %v4170, %v4140
      %v4172 = vadd.f32 %v4171, %v4141
      %v4173 = vadd.f32 %v4172, %v4142
      %v4174 = vadd.f32 %v4173, %v4143
      %v4175 = vadd.f32 %v4174, %v4144
      %v4176 = vadd.f32 %v4175, %v4145
      %v4177 = vadd.f32 %v4176, %v4146
      %v4178 = vadd.f32 %v4177, %v4147
      %v4179 = vadd.f32 %v4178, %v4148
      %v4180 = vadd.f32 %v4179, %v4149
      %v4181 = vadd.f32 %v4180, %v4150
      %v4182 = vadd.f32 %v4181, %v4151
      %v4183 = vadd.f32 %v4182, %v4152
      %v4184 = vadd.f32 %v4183, %v4153
      %v4185 = vadd.f32 %v4184, %v4154
      %v4186 = vadd.f32 %v4185, %v4155
      %v4187 = vadd.f32 %v4186, %v4156
      %v4188 = vadd.f32 %v4187, %v4157
      %v4189 = vadd.f32 %v4188, %v4158
      %v4190 = vadd.f32 %v4189, %v4159
      %v4191 = vadd.f32 %v4190, %v4160
      %v4192 = vadd.f32 %v4191, %v4161
      %v4193 = vadd.f32 %v4192, %v4162
      %v4194 = vadd.f32 %v4193, %v4163
      %v4195 = vadd.f32 %v4194, %v4164
      %v4196 = vadd.f32 %v4195, %v4165
      %4197 = vst [vmem:[%s269] sm:$0xff] %v4196
      %v4198 = vmul.f32 %v4134, %v4134
      %v4199 = vmul.f32 %v4135, %v4135
      %v4200 = vmul.f32 %v4136, %v4136
      %v4201 = vmul.f32 %v4137, %v4137
      %v4202 = vmul.f32 %v4138, %v4138
      %v4203 = vmul.f32 %v4139, %v4139
      %v4204 = vmul.f32 %v4140, %v4140
      %v4205 = vmul.f32 %v4141, %v4141
      %v4206 = vmul.f32 %v4142, %v4142
      %v4207 = vmul.f32 %v4143, %v4143
      %v4208 = vmul.f32 %v4144, %v4144
      %v4209 = vmul.f32 %v4145, %v4145
      %v4210 = vmul.f32 %v4146, %v4146
      %v4211 = vmul.f32 %v4147, %v4147
      %v4212 = vmul.f32 %v4148, %v4148
      %v4213 = vmul.f32 %v4149, %v4149
      %v4214 = vmul.f32 %v4150, %v4150
      %v4215 = vmul.f32 %v4151, %v4151
      %v4216 = vmul.f32 %v4152, %v4152
      %v4217 = vmul.f32 %v4153, %v4153
      %v4218 = vmul.f32 %v4154, %v4154
      %v4219 = vmul.f32 %v4155, %v4155
      %v4220 = vmul.f32 %v4156, %v4156
      %v4221 = vmul.f32 %v4157, %v4157
      %v4222 = vmul.f32 %v4158, %v4158
      %v4223 = vmul.f32 %v4159, %v4159
      %v4224 = vmul.f32 %v4160, %v4160
      %v4225 = vmul.f32 %v4161, %v4161
      %v4226 = vmul.f32 %v4162, %v4162
      %v4227 = vmul.f32 %v4163, %v4163
      %v4228 = vmul.f32 %v4164, %v4164
      %v4229 = vmul.f32 %v4165, %v4165
      %v4230 = vadd.f32 %v4198, %v4199
      %v4231 = vadd.f32 %v4230, %v4200
      %v4232 = vadd.f32 %v4231, %v4201
      %v4233 = vadd.f32 %v4232, %v4202
      %v4234 = vadd.f32 %v4233, %v4203
      %v4235 = vadd.f32 %v4234, %v4204
      %v4236 = vadd.f32 %v4235, %v4205
      %v4237 = vadd.f32 %v4236, %v4206
      %v4238 = vadd.f32 %v4237, %v4207
      %v4239 = vadd.f32 %v4238, %v4208
      %v4240 = vadd.f32 %v4239, %v4209
      %v4241 = vadd.f32 %v4240, %v4210
      %v4242 = vadd.f32 %v4241, %v4211
      %v4243 = vadd.f32 %v4242, %v4212
      %v4244 = vadd.f32 %v4243, %v4213
      %v4245 = vadd.f32 %v4244, %v4214
      %v4246 = vadd.f32 %v4245, %v4215
      %v4247 = vadd.f32 %v4246, %v4216
      %v4248 = vadd.f32 %v4247, %v4217
      %v4249 = vadd.f32 %v4248, %v4218
      %v4250 = vadd.f32 %v4249, %v4219
      %v4251 = vadd.f32 %v4250, %v4220
      %v4252 = vadd.f32 %v4251, %v4221
      %v4253 = vadd.f32 %v4252, %v4222
      %v4254 = vadd.f32 %v4253, %v4223
      %v4255 = vadd.f32 %v4254, %v4224
      %v4256 = vadd.f32 %v4255, %v4225
      %v4257 = vadd.f32 %v4256, %v4226
      %v4258 = vadd.f32 %v4257, %v4227
      %v4259 = vadd.f32 %v4258, %v4228
      %v4260 = vadd.f32 %v4259, %v4229
      %4261 = vst [vmem:[%s273] sm:$0xff] %v4260
      %v4262 = vpack.c.bf16 %v4135, %v4134
      %v4263 = vpack.c.bf16 %v4137, %v4136
      %v4264 = vpack.c.bf16 %v4139, %v4138
      %v4265 = vpack.c.bf16 %v4141, %v4140
      %v4266 = vpack.c.bf16 %v4143, %v4142
      %v4267 = vpack.c.bf16 %v4145, %v4144
      %v4268 = vpack.c.bf16 %v4147, %v4146
      %v4269 = vpack.c.bf16 %v4149, %v4148
      %v4270 = vpack.c.bf16 %v4151, %v4150
      %v4271 = vpack.c.bf16 %v4153, %v4152
      %v4272 = vpack.c.bf16 %v4155, %v4154
      %v4273 = vpack.c.bf16 %v4157, %v4156
      %v4274 = vpack.c.bf16 %v4159, %v4158
      %v4275 = vpack.c.bf16 %v4161, %v4160
      %v4276 = vpack.c.bf16 %v4163, %v4162
      %v4277 = vpack.c.bf16 %v4165, %v4164
      %v4294 = vunpack.c.l.b16 %v4262
      %v4295 = vunpack.c.h.b16 %v4262
      %v4296 = vunpack.c.l.b16 %v4263
      %v4297 = vunpack.c.h.b16 %v4263
      %v4298 = vunpack.c.l.b16 %v4264
      %v4299 = vunpack.c.h.b16 %v4264
      %v4300 = vunpack.c.l.b16 %v4265
      %v4301 = vunpack.c.h.b16 %v4265
      %v4302 = vunpack.c.l.b16 %v4266
      %v4303 = vunpack.c.h.b16 %v4266
      %v4304 = vunpack.c.l.b16 %v4267
      %v4305 = vunpack.c.h.b16 %v4267
      %v4306 = vunpack.c.l.b16 %v4268
      %v4307 = vunpack.c.h.b16 %v4268
      %v4308 = vunpack.c.l.b16 %v4269
      %v4309 = vunpack.c.h.b16 %v4269
      %v4310 = vunpack.c.l.b16 %v4270
      %v4311 = vunpack.c.h.b16 %v4270
      %v4312 = vunpack.c.l.b16 %v4271
      %v4313 = vunpack.c.h.b16 %v4271
      %v4314 = vunpack.c.l.b16 %v4272
      %v4315 = vunpack.c.h.b16 %v4272
      %v4316 = vunpack.c.l.b16 %v4273
      %v4317 = vunpack.c.h.b16 %v4273
      %v4318 = vunpack.c.l.b16 %v4274
      %v4319 = vunpack.c.h.b16 %v4274
      %v4320 = vunpack.c.l.b16 %v4275
      %v4321 = vunpack.c.h.b16 %v4275
      %v4322 = vunpack.c.l.b16 %v4276
      %v4323 = vunpack.c.h.b16 %v4276
      %v4324 = vunpack.c.l.b16 %v4277
      %v4325 = vunpack.c.h.b16 %v4277
      %v4326 = vpack.c.b16 %v4294, %v4294
      %v4327 = vpack.c.b16 %v4295, %v4295
      %v4328 = vpack.c.b16 %v4296, %v4296
      %v4329 = vpack.c.b16 %v4297, %v4297
      %v4330 = vpack.c.b16 %v4298, %v4298
      %v4331 = vpack.c.b16 %v4299, %v4299
      %v4332 = vpack.c.b16 %v4300, %v4300
      %v4333 = vpack.c.b16 %v4301, %v4301
      %v4334 = vpack.c.b16 %v4302, %v4302
      %v4335 = vpack.c.b16 %v4303, %v4303
      %v4336 = vpack.c.b16 %v4304, %v4304
      %v4337 = vpack.c.b16 %v4305, %v4305
      %v4338 = vpack.c.b16 %v4306, %v4306
      %v4339 = vpack.c.b16 %v4307, %v4307
      %v4340 = vpack.c.b16 %v4308, %v4308
      %v4341 = vpack.c.b16 %v4309, %v4309
      %v4342 = vpack.c.b16 %v4310, %v4310
      %v4343 = vpack.c.b16 %v4311, %v4311
      %v4344 = vpack.c.b16 %v4312, %v4312
      %v4345 = vpack.c.b16 %v4313, %v4313
      %v4346 = vpack.c.b16 %v4314, %v4314
      %v4347 = vpack.c.b16 %v4315, %v4315
      %v4348 = vpack.c.b16 %v4316, %v4316
      %v4349 = vpack.c.b16 %v4317, %v4317
      %v4350 = vpack.c.b16 %v4318, %v4318
      %v4351 = vpack.c.b16 %v4319, %v4319
      %v4352 = vpack.c.b16 %v4320, %v4320
      %v4353 = vpack.c.b16 %v4321, %v4321
      %v4354 = vpack.c.b16 %v4322, %v4322
      %v4355 = vpack.c.b16 %v4323, %v4323
      %v4356 = vpack.c.b16 %v4324, %v4324
      %v4357 = vpack.c.b16 %v4325, %v4325
      %4390 = vst [vmem:[%s264] sm:$0xf] %v4326
      %4391 = vst [vmem:[%s264 + $0x4] sm:$0xf] %v4327
      %4392 = vst [vmem:[%s264 + $0x8] sm:$0xf] %v4328
      %4393 = vst [vmem:[%s264 + $0xc] sm:$0xf] %v4329
      %4394 = vst [vmem:[%s264 + $0x10] sm:$0xf] %v4330
      %4395 = vst [vmem:[%s264 + $0x14] sm:$0xf] %v4331
      %4396 = vst [vmem:[%s264 + $0x18] sm:$0xf] %v4332
      %4397 = vst [vmem:[%s264 + $0x1c] sm:$0xf] %v4333
      %4398 = vst [vmem:[%s264 + $0x20] sm:$0xf] %v4334
      %4399 = vst [vmem:[%s264 + $0x24] sm:$0xf] %v4335
      %4400 = vst [vmem:[%s264 + $0x28] sm:$0xf] %v4336
      %4401 = vst [vmem:[%s264 + $0x2c] sm:$0xf] %v4337
      %4402 = vst [vmem:[%s264 + $0x30] sm:$0xf] %v4338
      %4403 = vst [vmem:[%s264 + $0x34] sm:$0xf] %v4339
      %4404 = vst [vmem:[%s264 + $0x38] sm:$0xf] %v4340
      %4405 = vst [vmem:[%s264 + $0x3c] sm:$0xf] %v4341
      %4406 = vst [vmem:[%s264 + $0x40] sm:$0xf] %v4342
      %4407 = vst [vmem:[%s264 + $0x44] sm:$0xf] %v4343
      %4408 = vst [vmem:[%s264 + $0x48] sm:$0xf] %v4344
      %4409 = vst [vmem:[%s264 + $0x4c] sm:$0xf] %v4345
      %4410 = vst [vmem:[%s264 + $0x50] sm:$0xf] %v4346
      %4411 = vst [vmem:[%s264 + $0x54] sm:$0xf] %v4347
      %4412 = vst [vmem:[%s264 + $0x58] sm:$0xf] %v4348
      %4413 = vst [vmem:[%s264 + $0x5c] sm:$0xf] %v4349
      %4414 = vst [vmem:[%s264 + $0x60] sm:$0xf] %v4350
      %4415 = vst [vmem:[%s264 + $0x64] sm:$0xf] %v4351
      %4416 = vst [vmem:[%s264 + $0x68] sm:$0xf] %v4352
      %4417 = vst [vmem:[%s264 + $0x6c] sm:$0xf] %v4353
      %4418 = vst [vmem:[%s264 + $0x70] sm:$0xf] %v4354
      %4419 = vst [vmem:[%s264 + $0x74] sm:$0xf] %v4355
      %4420 = vst [vmem:[%s264 + $0x78] sm:$0xf] %v4356
      %4421 = vst [vmem:[%s264 + $0x7c] sm:$0xf] %v4357
      %s4422 = smul.u32 32, %s18
      %p4423 = scmp.lt.s32.totalorder %s4422, 63
      %s4424 = scalar_select %p4423, %s4422, 63
      %s4425 = smul.addr %s4424, 4
      %s4426 = scalar_lea.vmem %s4, %s4425
      %p4427 = scmp.lt.s32.totalorder %s18, 1
      %s4428 = scalar_select %p4427, %s18, 1
      %s4429 = smul.addr %s4428, 8
      %s4430 = scalar_lea.vmem %s5, %s4429
      %p4431 = scmp.lt.s32.totalorder %s18, 1
      %s4432 = scalar_select %p4431, %s18, 1
      %s4433 = smul.addr %s4432, 8
      %s4434 = scalar_lea.vmem %s6, %s4433
      // Predicated region
      $region37: #{basic_block_forward.4} parent=35 // pred_check
        %p4435 = pneg %p125
      $region38: #{basic_block_forward.4} parent=35 // pred_check_branch
        %4437 = sbr.rel (%p4435) target = $region40
      $region39: #{basic_block_forward.4} parent=35 // pred_region
        %s4438 = smul.u32 32, %s18
      $region40: #{basic_block_forward.4} parent=35 // pred_fallthru
        _
      // Predicated region
      $region41: #{basic_block_forward.4} parent=35 // pred_check
        %p4439 = pneg %p151
      $region42: #{basic_block_forward.4} parent=35 // pred_check_branch
        %4441 = sbr.rel (%p4439) target = $region44
      $region43: #{basic_block_forward.4} parent=35 // pred_region
        _
      $region44: #{basic_block_forward.4} parent=35 // pred_fallthru
        _
      // Predicated region
      $region45: #{basic_block_forward.4} parent=35 // pred_check
        %p4442 = pneg %p177
      $region46: #{basic_block_forward.4} parent=35 // pred_check_branch
        %4444 = sbr.rel (%p4442) target = $region48
      $region47: #{basic_block_forward.4} parent=35 // pred_region
        _
      $region48: #{basic_block_forward.4} parent=35 // pred_fallthru
        _
    $region36: #{basic_block_forward.4} parent=5 // pred_fallthru
      _
    %p4445 = scmp.le.s32.totalorder 2, %s13
    // Predicated region
    $region49: #{basic_block_forward.4} parent=5 // pred_check
      %p4446 = pneg %p4445
    $region50: #{basic_block_forward.4} parent=5 // pred_check_branch
      %4448 = sbr.rel (%p4446) target = $region52
    $region51: #{basic_block_forward.4} parent=5 // pred_region
      %s4449 = ssub.s32 %s13, 2
      // Predicated region
      $region53: #{basic_block_forward.4} parent=51 // pred_check
        %p4450 = pneg %p131
      $region54: #{basic_block_forward.4} parent=51 // pred_check_branch
        %4452 = sbr.rel (%p4450) target = $region56
      $region55: #{basic_block_forward.4} parent=51 // pred_region
        %s4453 = smul.u32 32, %s19
        %p4454 = scmp.lt.s32.totalorder %s4453, 63
        %s4455 = scalar_select %p4454, %s4453, 63
        %s4456 = smul.addr %s4455, 4
        %s4457 = scalar_lea.vmem %s4, %s4456
      $region56: #{basic_block_forward.4} parent=51 // pred_fallthru
        _
      // Predicated region
      $region57: #{basic_block_forward.4} parent=51 // pred_check
        %p4458 = pneg %p157
      $region58: #{basic_block_forward.4} parent=51 // pred_check_branch
        %4460 = sbr.rel (%p4458) target = $region60
      $region59: #{basic_block_forward.4} parent=51 // pred_region
        %p4461 = scmp.lt.s32.totalorder %s19, 1
        %s4462 = scalar_select %p4461, %s19, 1
        %s4463 = smul.addr %s4462, 8
        %s4464 = scalar_lea.vmem %s5, %s4463
      $region60: #{basic_block_forward.4} parent=51 // pred_fallthru
        _
      // Predicated region
      $region61: #{basic_block_forward.4} parent=51 // pred_check
        %p4465 = pneg %p183
      $region62: #{basic_block_forward.4} parent=51 // pred_check_branch
        %4467 = sbr.rel (%p4465) target = $region64
      $region63: #{basic_block_forward.4} parent=51 // pred_region
        %p4468 = scmp.lt.s32.totalorder %s19, 1
        %s4469 = scalar_select %p4468, %s19, 1
        %s4470 = smul.addr %s4469, 8
        %s4471 = scalar_lea.vmem %s6, %s4470
      $region64: #{basic_block_forward.4} parent=51 // pred_fallthru
        _
    $region52: #{basic_block_forward.4} parent=5 // pred_fallthru
      _
  $region6: #{basic_block_forward.4} parent=0 // loop_footer
    %s17 = sadd.s32 1, %s13
  $region7: #{basic_block_forward.4} parent=0 // loop_footer_branch
    %12 = sbr.rel target = $region3
  $region8: #{basic_block_forward.4} parent=0 // loop_exit
    _

// kernel: basic_block_forward.3
$region0: #{basic_block_forward.3}
  #allocation0 [shape = 'u32[]', space=smem, size = 0x4, offset = 0x4, fixed_abs, tag = 'smem constant byte address 0x4 - core index']
  #allocation1 [shape = 'u32[144,128]{1,0:T(1,128)}', space=vmem, size = 0x12000, scoped, tag = 'internal scratch']
  #allocation2 [shape = 'bf16[1,18,32,128]{3,2,1,0:T(16,128)(2,1)}', space=vmem, size = 0x24000, scoped, tag = 'scratch operand']
  %s0 = inlined_call_operand.vmem [shape: bf16[2,16,16,128], index: 0, kind: input, shape index: {}]
  %s1 = inlined_call_operand.vmem [shape: bf16[1152,128], index: 1, kind: input, shape index: {}]
  %s2 = inlined_call_operand.vmem [shape: bf16[512,128], index: 2, kind: output, shape index: {0}]
  %s3 = inlined_call_operand.vmem [shape: f32[2,8,128], index: 3, kind: output, shape index: {1}]
  %s4 = inlined_call_operand.vmem [shape: f32[2,8,128], index: 4, kind: output, shape index: {2}]
  %5 = xla_tuple %s2, %s3, %s4
  %s6 = sld [smem:[#allocation0]]
  $region57: #{basic_block_forward.3} parent=0
    _
  %s8 = ssub.s32 1, %s6
  %s9 = scalar_select 0, %s8, %s6
  loop: start=0, step=1, limit=4
  $region2: #{basic_block_forward.3} parent=0 // loop_pre_header
    _
  $region3: #{basic_block_forward.3} parent=0 // loop_header
    %s11 = sphi 0, %s15
    %p12 = scmp.ge.s32.totalorder %s11, 4
    %s21 = sphi 0, %s23
    %s24 = sphi 0, %s21
    %s25 = sphi 0, %s24
    %s41 = sphi 0, %s25
    %s45 = sphi 0, %s45
    %s47 = sphi 0, %s45
    %s48 = sphi 0, %s47
    %s62 = sphi 0, %s48
    %s68 = sphi 0, %s70
    %s71 = sphi 0, %s68
    %s72 = sphi 0, %s71
    %s88 = sphi 0, %s72
    %s94 = sphi 0, %s96
    %s97 = sphi 0, %s94
    %s98 = sphi 0, %s97
    %s114 = sphi 0, %s98
    %s120 = sphi 0, %s122
    %s123 = sphi 0, %s120
    %s124 = sphi 0, %s123
    %s140 = sphi 0, %s124
  $region4: #{basic_block_forward.3} parent=0 // loop_header_branch
    %14 = sbr.rel (%p12) target = $region8
  $region5: #{basic_block_forward.3} parent=0 // loop_body
    %s16 = ssub.s32 %s11, 1
    %s17 = ssub.s32 %s11, 2
    %s18 = sadd.s32 %s11, 1
    %s19 = ssub.s32 %s11, %s18
    %p20 = scmp.eq.s32.totalorder %s19, 0
    %s22 = sadd.s32 %s21, 1
    %s23 = scalar_select %p20, %s21, %s22
    %p26 = pneg %p20
    %p27 = scmp.eq.s32.totalorder %s11, 1
    %p28 = por %p26, %p27
    %p29 = scmp.ne.s32.totalorder %s21, %s24
    %p30 = scmp.eq.s32.totalorder %s11, 0
    %p31 = por %p29, %p30
    %p32 = scmp.ne.s32.totalorder %s21, %s24
    %p33 = scmp.eq.s32.totalorder %s16, 1
    %p34 = por %p32, %p33
    %p35 = scmp.ne.s32.totalorder %s24, %s25
    %p36 = scmp.eq.s32.totalorder %s16, 0
    %p37 = por %p35, %p36
    %p38 = scmp.ne.s32.totalorder %s24, %s25
    %p39 = scmp.eq.s32.totalorder %s17, 1
    %p40 = por %p38, %p39
    %p42 = scmp.ne.s32.totalorder %s25, %s41
    %p43 = scmp.eq.s32.totalorder %s17, 0
    %p44 = por %p42, %p43
    %s46 = sadd.s32 %s45, 1
    %p49 = scmp.eq.s32.totalorder %s11, 1
    %p50 = scmp.ne.s32.totalorder %s45, %s47
    %p51 = scmp.eq.s32.totalorder %s11, 0
    %p52 = por %p50, %p51
    %p53 = scmp.ne.s32.totalorder %s45, %s47
    %p54 = scmp.eq.s32.totalorder %s16, 1
    %p55 = por %p53, %p54
    %p56 = scmp.ne.s32.totalorder %s47, %s48
    %p57 = scmp.eq.s32.totalorder %s16, 0
    %p58 = por %p56, %p57
    %p59 = scmp.ne.s32.totalorder %s47, %s48
    %p60 = scmp.eq.s32.totalorder %s17, 1
    %p61 = por %p59, %p60
    %p63 = scmp.ne.s32.totalorder %s48, %s62
    %p64 = scmp.eq.s32.totalorder %s17, 0
    %p65 = por %p63, %p64
    %s66 = ssub.s32 %s11, %s18
    %p67 = scmp.eq.s32.totalorder %s66, 0
    %s69 = sadd.s32 %s68, 1
    %s70 = scalar_select %p67, %s68, %s69
    %p73 = pneg %p67
    %p74 = scmp.eq.s32.totalorder %s11, 1
    %p75 = por %p73, %p74
    %p76 = scmp.ne.s32.totalorder %s68, %s71
    %p77 = scmp.eq.s32.totalorder %s11, 0
    %p78 = por %p76, %p77
    %p79 = scmp.ne.s32.totalorder %s68, %s71
    %p80 = scmp.eq.s32.totalorder %s16, 1
    %p81 = por %p79, %p80
    %p82 = scmp.ne.s32.totalorder %s71, %s72
    %p83 = scmp.eq.s32.totalorder %s16, 0
    %p84 = por %p82, %p83
    %p85 = scmp.ne.s32.totalorder %s71, %s72
    %p86 = scmp.eq.s32.totalorder %s17, 1
    %p87 = por %p85, %p86
    %p89 = scmp.ne.s32.totalorder %s72, %s88
    %p90 = scmp.eq.s32.totalorder %s17, 0
    %p91 = por %p89, %p90
    %s92 = ssub.s32 %s11, %s18
    %p93 = scmp.eq.s32.totalorder %s92, 0
    %s95 = sadd.s32 %s94, 1
    %s96 = scalar_select %p93, %s94, %s95
    %p99 = pneg %p93
    %p100 = scmp.eq.s32.totalorder %s11, 1
    %p101 = por %p99, %p100
    %p102 = scmp.ne.s32.totalorder %s94, %s97
    %p103 = scmp.eq.s32.totalorder %s11, 0
    %p104 = por %p102, %p103
    %p105 = scmp.ne.s32.totalorder %s94, %s97
    %p106 = scmp.eq.s32.totalorder %s16, 1
    %p107 = por %p105, %p106
    %p108 = scmp.ne.s32.totalorder %s97, %s98
    %p109 = scmp.eq.s32.totalorder %s16, 0
    %p110 = por %p108, %p109
    %p111 = scmp.ne.s32.totalorder %s97, %s98
    %p112 = scmp.eq.s32.totalorder %s17, 1
    %p113 = por %p111, %p112
    %p115 = scmp.ne.s32.totalorder %s98, %s114
    %p116 = scmp.eq.s32.totalorder %s17, 0
    %p117 = por %p115, %p116
    %s118 = ssub.s32 %s11, %s18
    %p119 = scmp.eq.s32.totalorder %s118, 0
    %s121 = sadd.s32 %s120, 1
    %s122 = scalar_select %p119, %s120, %s121
    %p125 = pneg %p119
    %p126 = scmp.eq.s32.totalorder %s11, 1
    %p127 = por %p125, %p126
    %p128 = scmp.ne.s32.totalorder %s120, %s123
    %p129 = scmp.eq.s32.totalorder %s11, 0
    %p130 = por %p128, %p129
    %p131 = scmp.ne.s32.totalorder %s120, %s123
    %p132 = scmp.eq.s32.totalorder %s16, 1
    %p133 = por %p131, %p132
    %p134 = scmp.ne.s32.totalorder %s123, %s124
    %p135 = scmp.eq.s32.totalorder %s16, 0
    %p136 = por %p134, %p135
    %p137 = scmp.ne.s32.totalorder %s123, %s124
    %p138 = scmp.eq.s32.totalorder %s17, 1
    %p139 = por %p137, %p138
    %p141 = scmp.ne.s32.totalorder %s124, %s140
    %p142 = scmp.eq.s32.totalorder %s17, 0
    %p143 = por %p141, %p142
    %p144 = scmp.le.s32.totalorder 1, %s11
    %p145 = scmp.lt.s32.totalorder %s11, 3
    %p146 = pnand %p144, %p145
    %p147 = pneg %p146
    // Predicated region
    $region9: #{basic_block_forward.3} parent=5 // pred_check
      _
    $region10: #{basic_block_forward.3} parent=5 // pred_check_branch
      %149 = sbr.rel (%p146) target = $region12
    $region11: #{basic_block_forward.3} parent=5 // pred_region
      %s150 = ssub.s32 %s11, 1
      // Predicated region
      $region13: #{basic_block_forward.3} parent=11 // pred_check
        %p151 = pneg %p58
      $region14: #{basic_block_forward.3} parent=11 // pred_check_branch
        %153 = sbr.rel (%p151) target = $region16
      $region15: #{basic_block_forward.3} parent=11 // pred_region
        _
      $region16: #{basic_block_forward.3} parent=11 // pred_fallthru
        _
    $region12: #{basic_block_forward.3} parent=5 // pred_fallthru
      _
    %p154 = scmp.lt.s32.totalorder %s11, 2
    // Predicated region
    $region17: #{basic_block_forward.3} parent=5 // pred_check
      %p155 = pneg %p154
    $region18: #{basic_block_forward.3} parent=5 // pred_check_branch
      %157 = sbr.rel (%p155) target = $region20
    $region19: #{basic_block_forward.3} parent=5 // pred_region
      // Predicated region
      $region21: #{basic_block_forward.3} parent=19 // pred_check
        %p158 = pneg %p31
      $region22: #{basic_block_forward.3} parent=19 // pred_check_branch
        %160 = sbr.rel (%p158) target = $region24
      $region23: #{basic_block_forward.3} parent=19 // pred_region
        %p161 = scmp.lt.s32.totalorder %s11, 1
        %s162 = scalar_select %p161, %s11, 1
        %s163 = smul.addr %s162, 32
        %s164 = smul.addr %s163, 4
        %s165 = scalar_lea.vmem %s0, %s164
      $region24: #{basic_block_forward.3} parent=19 // pred_fallthru
        _
    $region20: #{basic_block_forward.3} parent=5 // pred_fallthru
      _
    %p166 = scmp.le.s32.totalorder 1, %s11
    %p167 = scmp.lt.s32.totalorder %s11, 3
    %p168 = pnand %p166, %p167
    %p169 = pneg %p168
    // Predicated region
    $region25: #{basic_block_forward.3} parent=5 // pred_check
      _
    $region26: #{basic_block_forward.3} parent=5 // pred_check_branch
      %171 = sbr.rel (%p168) target = $region28
    $region27: #{basic_block_forward.3} parent=5 // pred_region
      %s172 = ssub.s32 %s11, 1
      %p173 = scmp.lt.s32.totalorder %s16, 1
      %s174 = scalar_select %p173, %s16, 1
      %s175 = smul.addr %s174, 32
      %s176 = smul.addr %s175, 4
      %s177 = scalar_lea.vmem %s0, %s176
      %p178 = pneg %p37
      %p179 = pneg %p34
      %p180 = pneg %p58
      %p181 = pneg %p55
      %p182 = pneg %p84
      %p183 = pneg %p81
      %s184 = smul.u32 32, %s16
      %p185 = scmp.lt.s32.totalorder %s184, 63
      %s186 = scalar_select %p185, %s184, 63
      %s187 = smul.addr %s186, 4
      %s188 = scalar_lea.vmem %s2, %s187
      %p189 = pneg %p110
      %p190 = pneg %p107
      %p191 = scmp.lt.s32.totalorder %s16, 1
      %s192 = scalar_select %p191, %s16, 1
      %s193 = smul.addr %s192, 8
      %s194 = scalar_lea.vmem %s3, %s193
      %p195 = pneg %p136
      %p196 = pneg %p133
      %p197 = scmp.lt.s32.totalorder %s16, 1
      %s198 = scalar_select %p197, %s16, 1
      %s199 = smul.addr %s198, 8
      %s200 = scalar_lea.vmem %s4, %s199
      %p201 = scmp.lt.s32.totalorder %s16, 1
      %s202 = scalar_select %p201, %s16, 1
      %s203 = smul.addr %s202, 32
      %s204 = smul.addr %s203, 4
      %s205 = scalar_lea.vmem %s0, %s204
      %s206 = smul.u32 32, %s16
      %p207 = scmp.lt.s32.totalorder %s206, 63
      %s208 = scalar_select %p207, %s206, 63
      %s209 = smul.addr %s208, 4
      %s210 = scalar_lea.vmem %s2, %s209
      %s211 = smul.u32 32, %s16
      %p212 = scmp.lt.s32.totalorder %s16, 1
      %s213 = scalar_select %p212, %s16, 1
      %s214 = smul.addr %s213, 8
      %s215 = scalar_lea.vmem %s3, %s214
      %p216 = scmp.lt.s32.totalorder %s16, 1
      %s217 = scalar_select %p216, %s16, 1
      %s218 = smul.addr %s217, 8
      %s219 = scalar_lea.vmem %s4, %s218
      %221 = vst [vmem:[#allocation2] sm:$0xff] 0
      %222 = vst [vmem:[#allocation2 + $0x8] sm:$0xff] 0
      %s223 = scalar_lea.vmem [#allocation2], 272
      %224 = vst [vmem:[%s223] sm:$0xff] 0
      %225 = vst [vmem:[%s223 + $0x8] sm:$0xff] 0
      %vm226 = vcmask 1040384
      %vm227 = vsmask.f32 256
      %vm228 = vmand %vm226, %vm227
      %v229 = vld [vmem:[#allocation2] sm:$0x1]
      %v230 = vsel %vm228, 0, %v229
      %231 = vst [vmem:[#allocation2] sm:$0x1] %v230
      %v232 = vld [vmem:[#allocation2 + $0x10] sm:$0x1]
      %v233 = vsel %vm228, 0, %v232
      %234 = vst [vmem:[#allocation2 + $0x10] sm:$0x1] %v233
      %v235 = vld [vmem:[#allocation2 + $0x20] sm:$0x1]
      %v236 = vsel %vm228, 0, %v235
      %237 = vst [vmem:[#allocation2 + $0x20] sm:$0x1] %v236
      %v238 = vld [vmem:[#allocation2 + $0x30] sm:$0x1]
      %v239 = vsel %vm228, 0, %v238
      %240 = vst [vmem:[#allocation2 + $0x30] sm:$0x1] %v239
      %v241 = vld [vmem:[#allocation2 + $0x40] sm:$0x1]
      %v242 = vsel %vm228, 0, %v241
      %243 = vst [vmem:[#allocation2 + $0x40] sm:$0x1] %v242
      %v244 = vld [vmem:[#allocation2 + $0x50] sm:$0x1]
      %v245 = vsel %vm228, 0, %v244
      %246 = vst [vmem:[#allocation2 + $0x50] sm:$0x1] %v245
      %v247 = vld [vmem:[#allocation2 + $0x60] sm:$0x1]
      %v248 = vsel %vm228, 0, %v247
      %249 = vst [vmem:[#allocation2 + $0x60] sm:$0x1] %v248
      %v250 = vld [vmem:[#allocation2 + $0x70] sm:$0x1]
      %v251 = vsel %vm228, 0, %v250
      %252 = vst [vmem:[#allocation2 + $0x70] sm:$0x1] %v251
      %v253 = vld [vmem:[#allocation2 + $0x80] sm:$0x1]
      %v254 = vsel %vm228, 0, %v253
      %255 = vst [vmem:[#allocation2 + $0x80] sm:$0x1] %v254
      %v256 = vld [vmem:[#allocation2 + $0x90] sm:$0x1]
      %v257 = vsel %vm228, 0, %v256
      %258 = vst [vmem:[#allocation2 + $0x90] sm:$0x1] %v257
      %v259 = vld [vmem:[#allocation2 + $0xa0] sm:$0x1]
      %v260 = vsel %vm228, 0, %v259
      %261 = vst [vmem:[#allocation2 + $0xa0] sm:$0x1] %v260
      %v262 = vld [vmem:[#allocation2 + $0xb0] sm:$0x1]
      %v263 = vsel %vm228, 0, %v262
      %264 = vst [vmem:[#allocation2 + $0xb0] sm:$0x1] %v263
      %v265 = vld [vmem:[#allocation2 + $0xc0] sm:$0x1]
      %v266 = vsel %vm228, 0, %v265
      %267 = vst [vmem:[#allocation2 + $0xc0] sm:$0x1] %v266
      %v268 = vld [vmem:[#allocation2 + $0xd0] sm:$0x1]
      %v269 = vsel %vm228, 0, %v268
      %270 = vst [vmem:[#allocation2 + $0xd0] sm:$0x1] %v269
      %v271 = vld [vmem:[#allocation2 + $0xe0] sm:$0x1]
      %v272 = vsel %vm228, 0, %v271
      %273 = vst [vmem:[#allocation2 + $0xe0] sm:$0x1] %v272
      %v274 = vld [vmem:[#allocation2 + $0xf0] sm:$0x1]
      %v275 = vsel %vm228, 0, %v274
      %276 = vst [vmem:[#allocation2 + $0xf0] sm:$0x1] %v275
      %v277 = vld [vmem:[#allocation2 + $0x100] sm:$0x1]
      %v278 = vsel %vm228, 0, %v277
      %279 = vst [vmem:[#allocation2 + $0x100] sm:$0x1] %v278
      %v280 = vld [vmem:[#allocation2 + $0x110] sm:$0x1]
      %v281 = vsel %vm228, 0, %v280
      %282 = vst [vmem:[#allocation2 + $0x110] sm:$0x1] %v281
      %vm283 = vsmask.f32 7938
      %vm284 = vmand %vm226, %vm283
      %v285 = vld [vmem:[#allocation2 + $0x8] sm:$0x1]
      %v286 = vsel %vm284, 0, %v285
      %287 = vst [vmem:[#allocation2 + $0x8] sm:$0x1] %v286
      %v288 = vld [vmem:[#allocation2 + $0x18] sm:$0x1]
      %v289 = vsel %vm284, 0, %v288
      %290 = vst [vmem:[#allocation2 + $0x18] sm:$0x1] %v289
      %v291 = vld [vmem:[#allocation2 + $0x28] sm:$0x1]
      %v292 = vsel %vm284, 0, %v291
      %293 = vst [vmem:[#allocation2 + $0x28] sm:$0x1] %v292
      %v294 = vld [vmem:[#allocation2 + $0x38] sm:$0x1]
      %v295 = vsel %vm284, 0, %v294
      %296 = vst [vmem:[#allocation2 + $0x38] sm:$0x1] %v295
      %v297 = vld [vmem:[#allocation2 + $0x48] sm:$0x1]
      %v298 = vsel %vm284, 0, %v297
      %299 = vst [vmem:[#allocation2 + $0x48] sm:$0x1] %v298
      %v300 = vld [vmem:[#allocation2 + $0x58] sm:$0x1]
      %v301 = vsel %vm284, 0, %v300
      %302 = vst [vmem:[#allocation2 + $0x58] sm:$0x1] %v301
      %v303 = vld [vmem:[#allocation2 + $0x68] sm:$0x1]
      %v304 = vsel %vm284, 0, %v303
      %305 = vst [vmem:[#allocation2 + $0x68] sm:$0x1] %v304
      %v306 = vld [vmem:[#allocation2 + $0x78] sm:$0x1]
      %v307 = vsel %vm284, 0, %v306
      %308 = vst [vmem:[#allocation2 + $0x78] sm:$0x1] %v307
      %v309 = vld [vmem:[#allocation2 + $0x88] sm:$0x1]
      %v310 = vsel %vm284, 0, %v309
      %311 = vst [vmem:[#allocation2 + $0x88] sm:$0x1] %v310
      %v312 = vld [vmem:[#allocation2 + $0x98] sm:$0x1]
      %v313 = vsel %vm284, 0, %v312
      %314 = vst [vmem:[#allocation2 + $0x98] sm:$0x1] %v313
      %v315 = vld [vmem:[#allocation2 + $0xa8] sm:$0x1]
      %v316 = vsel %vm284, 0, %v315
      %317 = vst [vmem:[#allocation2 + $0xa8] sm:$0x1] %v316
      %v318 = vld [vmem:[#allocation2 + $0xb8] sm:$0x1]
      %v319 = vsel %vm284, 0, %v318
      %320 = vst [vmem:[#allocation2 + $0xb8] sm:$0x1] %v319
      %v321 = vld [vmem:[#allocation2 + $0xc8] sm:$0x1]
      %v322 = vsel %vm284, 0, %v321
      %323 = vst [vmem:[#allocation2 + $0xc8] sm:$0x1] %v322
      %v324 = vld [vmem:[#allocation2 + $0xd8] sm:$0x1]
      %v325 = vsel %vm284, 0, %v324
      %326 = vst [vmem:[#allocation2 + $0xd8] sm:$0x1] %v325
      %v327 = vld [vmem:[#allocation2 + $0xe8] sm:$0x1]
      %v328 = vsel %vm284, 0, %v327
      %329 = vst [vmem:[#allocation2 + $0xe8] sm:$0x1] %v328
      %v330 = vld [vmem:[#allocation2 + $0xf8] sm:$0x1]
      %v331 = vsel %vm284, 0, %v330
      %332 = vst [vmem:[#allocation2 + $0xf8] sm:$0x1] %v331
      %v333 = vld [vmem:[#allocation2 + $0x108] sm:$0x1]
      %v334 = vsel %vm284, 0, %v333
      %335 = vst [vmem:[#allocation2 + $0x108] sm:$0x1] %v334
      %v336 = vld [vmem:[#allocation2 + $0x118] sm:$0x1]
      %v337 = vsel %vm284, 0, %v336
      %338 = vst [vmem:[#allocation2 + $0x118] sm:$0x1] %v337
      %v339 = vld [vmem:[%s205] sm:$0xf]
      %v340 = vld [vmem:[%s205 + $0x4] sm:$0xf]
      %v341 = vld [vmem:[%s205 + $0x8] sm:$0xf]
      %v342 = vld [vmem:[%s205 + $0xc] sm:$0xf]
      %v343 = vld [vmem:[%s205 + $0x10] sm:$0xf]
      %v344 = vld [vmem:[%s205 + $0x14] sm:$0xf]
      %v345 = vld [vmem:[%s205 + $0x18] sm:$0xf]
      %v346 = vld [vmem:[%s205 + $0x1c] sm:$0xf]
      %v347 = vld [vmem:[%s205 + $0x20] sm:$0xf]
      %v348 = vld [vmem:[%s205 + $0x24] sm:$0xf]
      %v349 = vld [vmem:[%s205 + $0x28] sm:$0xf]
      %v350 = vld [vmem:[%s205 + $0x2c] sm:$0xf]
      %v351 = vld [vmem:[%s205 + $0x30] sm:$0xf]
      %v352 = vld [vmem:[%s205 + $0x34] sm:$0xf]
      %v353 = vld [vmem:[%s205 + $0x38] sm:$0xf]
      %v354 = vld [vmem:[%s205 + $0x3c] sm:$0xf]
      %v355 = vld [vmem:[%s205 + $0x40] sm:$0xf]
      %v356 = vld [vmem:[%s205 + $0x44] sm:$0xf]
      %v357 = vld [vmem:[%s205 + $0x48] sm:$0xf]
      %v358 = vld [vmem:[%s205 + $0x4c] sm:$0xf]
      %v359 = vld [vmem:[%s205 + $0x50] sm:$0xf]
      %v360 = vld [vmem:[%s205 + $0x54] sm:$0xf]
      %v361 = vld [vmem:[%s205 + $0x58] sm:$0xf]
      %v362 = vld [vmem:[%s205 + $0x5c] sm:$0xf]
      %v363 = vld [vmem:[%s205 + $0x60] sm:$0xf]
      %v364 = vld [vmem:[%s205 + $0x64] sm:$0xf]
      %v365 = vld [vmem:[%s205 + $0x68] sm:$0xf]
      %v366 = vld [vmem:[%s205 + $0x6c] sm:$0xf]
      %v367 = vld [vmem:[%s205 + $0x70] sm:$0xf]
      %v368 = vld [vmem:[%s205 + $0x74] sm:$0xf]
      %v369 = vld [vmem:[%s205 + $0x78] sm:$0xf]
      %v370 = vld [vmem:[%s205 + $0x7c] sm:$0xf]
      %v403 = vunpack.c.l.b16 %v339
      %v404 = vunpack.c.l.b16 %v340
      %v405 = vunpack.c.l.b16 %v341
      %v406 = vunpack.c.l.b16 %v342
      %v407 = vunpack.c.l.b16 %v343
      %v408 = vunpack.c.l.b16 %v344
      %v409 = vunpack.c.l.b16 %v345
      %v410 = vunpack.c.l.b16 %v346
      %v411 = vunpack.c.l.b16 %v347
      %v412 = vunpack.c.l.b16 %v348
      %v413 = vunpack.c.l.b16 %v349
      %v414 = vunpack.c.l.b16 %v350
      %v415 = vunpack.c.l.b16 %v351
      %v416 = vunpack.c.l.b16 %v352
      %v417 = vunpack.c.l.b16 %v353
      %v418 = vunpack.c.l.b16 %v354
      %v419 = vunpack.c.l.b16 %v355
      %v420 = vunpack.c.l.b16 %v356
      %v421 = vunpack.c.l.b16 %v357
      %v422 = vunpack.c.l.b16 %v358
      %v423 = vunpack.c.l.b16 %v359
      %v424 = vunpack.c.l.b16 %v360
      %v425 = vunpack.c.l.b16 %v361
      %v426 = vunpack.c.l.b16 %v362
      %v427 = vunpack.c.l.b16 %v363
      %v428 = vunpack.c.l.b16 %v364
      %v429 = vunpack.c.l.b16 %v365
      %v430 = vunpack.c.l.b16 %v366
      %v431 = vunpack.c.l.b16 %v367
      %v432 = vunpack.c.l.b16 %v368
      %v433 = vunpack.c.l.b16 %v369
      %v434 = vunpack.c.l.b16 %v370
      %v435 = vpack.c.b16 %v404, %v403
      %v436 = vpack.c.b16 %v406, %v405
      %v437 = vpack.c.b16 %v408, %v407
      %v438 = vpack.c.b16 %v410, %v409
      %v439 = vpack.c.b16 %v412, %v411
      %v440 = vpack.c.b16 %v414, %v413
      %v441 = vpack.c.b16 %v416, %v415
      %v442 = vpack.c.b16 %v418, %v417
      %v443 = vpack.c.b16 %v420, %v419
      %v444 = vpack.c.b16 %v422, %v421
      %v445 = vpack.c.b16 %v424, %v423
      %v446 = vpack.c.b16 %v426, %v425
      %v447 = vpack.c.b16 %v428, %v427
      %v448 = vpack.c.b16 %v430, %v429
      %v449 = vpack.c.b16 %v432, %v431
      %v450 = vpack.c.b16 %v434, %v433
      %v452 = vshrl.u32 %v435, 16
      %v454 = vrot.slane %v452, 7
      %v455 = vshll.u32 %v435, 16
      %v457 = vor.u32 %v454, %v455
      %v459 = vshrl.u32 %v436, 16
      %v461 = vrot.slane %v459, 7
      %v462 = vshll.u32 %v436, 16
      %v464 = vor.u32 %v461, %v462
      %v466 = vshrl.u32 %v437, 16
      %v468 = vrot.slane %v466, 7
      %v469 = vshll.u32 %v437, 16
      %v471 = vor.u32 %v468, %v469
      %v473 = vshrl.u32 %v438, 16
      %v475 = vrot.slane %v473, 7
      %v476 = vshll.u32 %v438, 16
      %v478 = vor.u32 %v475, %v476
      %v480 = vshrl.u32 %v439, 16
      %v482 = vrot.slane %v480, 7
      %v483 = vshll.u32 %v439, 16
      %v485 = vor.u32 %v482, %v483
      %v487 = vshrl.u32 %v440, 16
      %v489 = vrot.slane %v487, 7
      %v490 = vshll.u32 %v440, 16
      %v492 = vor.u32 %v489, %v490
      %v494 = vshrl.u32 %v441, 16
      %v496 = vrot.slane %v494, 7
      %v497 = vshll.u32 %v441, 16
      %v499 = vor.u32 %v496, %v497
      %v501 = vshrl.u32 %v442, 16
      %v503 = vrot.slane %v501, 7
      %v504 = vshll.u32 %v442, 16
      %v506 = vor.u32 %v503, %v504
      %v508 = vshrl.u32 %v443, 16
      %v510 = vrot.slane %v508, 7
      %v511 = vshll.u32 %v443, 16
      %v513 = vor.u32 %v510, %v511
      %v515 = vshrl.u32 %v444, 16
      %v517 = vrot.slane %v515, 7
      %v518 = vshll.u32 %v444, 16
      %v520 = vor.u32 %v517, %v518
      %v522 = vshrl.u32 %v445, 16
      %v524 = vrot.slane %v522, 7
      %v525 = vshll.u32 %v445, 16
      %v527 = vor.u32 %v524, %v525
      %v529 = vshrl.u32 %v446, 16
      %v531 = vrot.slane %v529, 7
      %v532 = vshll.u32 %v446, 16
      %v534 = vor.u32 %v531, %v532
      %v536 = vshrl.u32 %v447, 16
      %v538 = vrot.slane %v536, 7
      %v539 = vshll.u32 %v447, 16
      %v541 = vor.u32 %v538, %v539
      %v543 = vshrl.u32 %v448, 16
      %v545 = vrot.slane %v543, 7
      %v546 = vshll.u32 %v448, 16
      %v548 = vor.u32 %v545, %v546
      %v550 = vshrl.u32 %v449, 16
      %v552 = vrot.slane %v550, 7
      %v553 = vshll.u32 %v449, 16
      %v555 = vor.u32 %v552, %v553
      %v557 = vshrl.u32 %v450, 16
      %v559 = vrot.slane %v557, 7
      %v560 = vshll.u32 %v450, 16
      %v562 = vor.u32 %v559, %v560
      %s595 = scalar_lea.vmem [#allocation2], 16
      %vm596 = vcmask 1047552
      %vm597 = vmand %vm596, %vm283
      %v598 = vld [vmem:[%s595] sm:$0xff]
      %v599 = vsel %vm597, %v457, %v598
      %600 = vst [vmem:[%s595] sm:$0xff] %v599
      %v601 = vld [vmem:[%s595 + $0x8] sm:$0x1]
      %v602 = vsel %vm228, %v454, %v601
      %603 = vst [vmem:[%s595 + $0x8] sm:$0x1] %v602
      %v604 = vld [vmem:[%s595 + $0x10] sm:$0xff]
      %v605 = vsel %vm597, %v464, %v604
      %606 = vst [vmem:[%s595 + $0x10] sm:$0xff] %v605
      %v607 = vld [vmem:[%s595 + $0x18] sm:$0x1]
      %v608 = vsel %vm228, %v461, %v607
      %609 = vst [vmem:[%s595 + $0x18] sm:$0x1] %v608
      %v610 = vld [vmem:[%s595 + $0x20] sm:$0xff]
      %v611 = vsel %vm597, %v471, %v610
      %612 = vst [vmem:[%s595 + $0x20] sm:$0xff] %v611
      %v613 = vld [vmem:[%s595 + $0x28] sm:$0x1]
      %v614 = vsel %vm228, %v468, %v613
      %615 = vst [vmem:[%s595 + $0x28] sm:$0x1] %v614
      %v616 = vld [vmem:[%s595 + $0x30] sm:$0xff]
      %v617 = vsel %vm597, %v478, %v616
      %618 = vst [vmem:[%s595 + $0x30] sm:$0xff] %v617
      %v619 = vld [vmem:[%s595 + $0x38] sm:$0x1]
      %v620 = vsel %vm228, %v475, %v619
      %621 = vst [vmem:[%s595 + $0x38] sm:$0x1] %v620
      %v622 = vld [vmem:[%s595 + $0x40] sm:$0xff]
      %v623 = vsel %vm597, %v485, %v622
      %624 = vst [vmem:[%s595 + $0x40] sm:$0xff] %v623
      %v625 = vld [vmem:[%s595 + $0x48] sm:$0x1]
      %v626 = vsel %vm228, %v482, %v625
      %627 = vst [vmem:[%s595 + $0x48] sm:$0x1] %v626
      %v628 = vld [vmem:[%s595 + $0x50] sm:$0xff]
      %v629 = vsel %vm597, %v492, %v628
      %630 = vst [vmem:[%s595 + $0x50] sm:$0xff] %v629
      %v631 = vld [vmem:[%s595 + $0x58] sm:$0x1]
      %v632 = vsel %vm228, %v489, %v631
      %633 = vst [vmem:[%s595 + $0x58] sm:$0x1] %v632
      %v634 = vld [vmem:[%s595 + $0x60] sm:$0xff]
      %v635 = vsel %vm597, %v499, %v634
      %636 = vst [vmem:[%s595 + $0x60] sm:$0xff] %v635
      %v637 = vld [vmem:[%s595 + $0x68] sm:$0x1]
      %v638 = vsel %vm228, %v496, %v637
      %639 = vst [vmem:[%s595 + $0x68] sm:$0x1] %v638
      %v640 = vld [vmem:[%s595 + $0x70] sm:$0xff]
      %v641 = vsel %vm597, %v506, %v640
      %642 = vst [vmem:[%s595 + $0x70] sm:$0xff] %v641
      %v643 = vld [vmem:[%s595 + $0x78] sm:$0x1]
      %v644 = vsel %vm228, %v503, %v643
      %645 = vst [vmem:[%s595 + $0x78] sm:$0x1] %v644
      %v646 = vld [vmem:[%s595 + $0x80] sm:$0xff]
      %v647 = vsel %vm597, %v513, %v646
      %648 = vst [vmem:[%s595 + $0x80] sm:$0xff] %v647
      %v649 = vld [vmem:[%s595 + $0x88] sm:$0x1]
      %v650 = vsel %vm228, %v510, %v649
      %651 = vst [vmem:[%s595 + $0x88] sm:$0x1] %v650
      %v652 = vld [vmem:[%s595 + $0x90] sm:$0xff]
      %v653 = vsel %vm597, %v520, %v652
      %654 = vst [vmem:[%s595 + $0x90] sm:$0xff] %v653
      %v655 = vld [vmem:[%s595 + $0x98] sm:$0x1]
      %v656 = vsel %vm228, %v517, %v655
      %657 = vst [vmem:[%s595 + $0x98] sm:$0x1] %v656
      %v658 = vld [vmem:[%s595 + $0xa0] sm:$0xff]
      %v659 = vsel %vm597, %v527, %v658
      %660 = vst [vmem:[%s595 + $0xa0] sm:$0xff] %v659
      %v661 = vld [vmem:[%s595 + $0xa8] sm:$0x1]
      %v662 = vsel %vm228, %v524, %v661
      %663 = vst [vmem:[%s595 + $0xa8] sm:$0x1] %v662
      %v664 = vld [vmem:[%s595 + $0xb0] sm:$0xff]
      %v665 = vsel %vm597, %v534, %v664
      %666 = vst [vmem:[%s595 + $0xb0] sm:$0xff] %v665
      %v667 = vld [vmem:[%s595 + $0xb8] sm:$0x1]
      %v668 = vsel %vm228, %v531, %v667
      %669 = vst [vmem:[%s595 + $0xb8] sm:$0x1] %v668
      %v670 = vld [vmem:[%s595 + $0xc0] sm:$0xff]
      %v671 = vsel %vm597, %v541, %v670
      %672 = vst [vmem:[%s595 + $0xc0] sm:$0xff] %v671
      %v673 = vld [vmem:[%s595 + $0xc8] sm:$0x1]
      %v674 = vsel %vm228, %v538, %v673
      %675 = vst [vmem:[%s595 + $0xc8] sm:$0x1] %v674
      %v676 = vld [vmem:[%s595 + $0xd0] sm:$0xff]
      %v677 = vsel %vm597, %v548, %v676
      %678 = vst [vmem:[%s595 + $0xd0] sm:$0xff] %v677
      %v679 = vld [vmem:[%s595 + $0xd8] sm:$0x1]
      %v680 = vsel %vm228, %v545, %v679
      %681 = vst [vmem:[%s595 + $0xd8] sm:$0x1] %v680
      %v682 = vld [vmem:[%s595 + $0xe0] sm:$0xff]
      %v683 = vsel %vm597, %v555, %v682
      %684 = vst [vmem:[%s595 + $0xe0] sm:$0xff] %v683
      %v685 = vld [vmem:[%s595 + $0xe8] sm:$0x1]
      %v686 = vsel %vm228, %v552, %v685
      %687 = vst [vmem:[%s595 + $0xe8] sm:$0x1] %v686
      %v688 = vld [vmem:[%s595 + $0xf0] sm:$0xff]
      %v689 = vsel %vm597, %v562, %v688
      %690 = vst [vmem:[%s595 + $0xf0] sm:$0xff] %v689
      %v691 = vld [vmem:[%s595 + $0xf8] sm:$0x1]
      %v692 = vsel %vm228, %v559, %v691
      %693 = vst [vmem:[%s595 + $0xf8] sm:$0x1] %v692
      %v694 = vld [vmem:[#allocation2] sm:$0xff]
      %v695 = vld [vmem:[#allocation2 + $0x10] sm:$0xff]
      %v696 = vld [vmem:[#allocation2 + $0x20] sm:$0xff]
      %v697 = vld [vmem:[#allocation2 + $0x30] sm:$0xff]
      %v698 = vld [vmem:[#allocation2 + $0x40] sm:$0xff]
      %v699 = vld [vmem:[#allocation2 + $0x50] sm:$0xff]
      %v700 = vld [vmem:[#allocation2 + $0x60] sm:$0xff]
      %v701 = vld [vmem:[#allocation2 + $0x70] sm:$0xff]
      %v702 = vld [vmem:[#allocation2 + $0x80] sm:$0xff]
      %v703 = vld [vmem:[#allocation2 + $0x90] sm:$0xff]
      %v704 = vld [vmem:[#allocation2 + $0xa0] sm:$0xff]
      %v705 = vld [vmem:[#allocation2 + $0xb0] sm:$0xff]
      %v706 = vld [vmem:[#allocation2 + $0xc0] sm:$0xff]
      %v707 = vld [vmem:[#allocation2 + $0xd0] sm:$0xff]
      %v708 = vld [vmem:[#allocation2 + $0xe0] sm:$0xff]
      %v709 = vld [vmem:[#allocation2 + $0xf0] sm:$0xff]
      %v710 = vld [vmem:[%s1] sm:$0xf]
      %v711 = vld [vmem:[%s1 + $0x4] sm:$0xf]
      %v712 = vld [vmem:[%s1 + $0x8] sm:$0xf]
      %v713 = vld [vmem:[%s1 + $0xc] sm:$0xf]
      %v714 = vld [vmem:[%s1 + $0x10] sm:$0xf]
      %v715 = vld [vmem:[%s1 + $0x14] sm:$0xf]
      %v716 = vld [vmem:[%s1 + $0x18] sm:$0xf]
      %v717 = vld [vmem:[%s1 + $0x1c] sm:$0xf]
      %v718 = vld [vmem:[%s1 + $0x20] sm:$0xf]
      %v719 = vld [vmem:[%s1 + $0x24] sm:$0xf]
      %v720 = vld [vmem:[%s1 + $0x28] sm:$0xf]
      %v721 = vld [vmem:[%s1 + $0x2c] sm:$0xf]
      %v722 = vld [vmem:[%s1 + $0x30] sm:$0xf]
      %v723 = vld [vmem:[%s1 + $0x34] sm:$0xf]
      %v724 = vld [vmem:[%s1 + $0x38] sm:$0xf]
      %v725 = vld [vmem:[%s1 + $0x3c] sm:$0xf]
      %v726 = vld [vmem:[#allocation2 + $0x8] sm:$0x1]
      %v727 = vld [vmem:[#allocation2 + $0x18] sm:$0x1]
      %v728 = vld [vmem:[#allocation2 + $0x28] sm:$0x1]
      %v729 = vld [vmem:[#allocation2 + $0x38] sm:$0x1]
      %v730 = vld [vmem:[#allocation2 + $0x48] sm:$0x1]
      %v731 = vld [vmem:[#allocation2 + $0x58] sm:$0x1]
      %v732 = vld [vmem:[#allocation2 + $0x68] sm:$0x1]
      %v733 = vld [vmem:[#allocation2 + $0x78] sm:$0x1]
      %v734 = vld [vmem:[#allocation2 + $0x88] sm:$0x1]
      %v735 = vld [vmem:[#allocation2 + $0x98] sm:$0x1]
      %v736 = vld [vmem:[#allocation2 + $0xa8] sm:$0x1]
      %v737 = vld [vmem:[#allocation2 + $0xb8] sm:$0x1]
      %v738 = vld [vmem:[#allocation2 + $0xc8] sm:$0x1]
      %v739 = vld [vmem:[#allocation2 + $0xd8] sm:$0x1]
      %v740 = vld [vmem:[#allocation2 + $0xe8] sm:$0x1]
      %v741 = vld [vmem:[#allocation2 + $0xf8] sm:$0x1]
      %vm742 = vsmask.f32 7424
      %v744 = vshrl.u32 %v694, 16
      %v746 = vshll.u32 %v694, 16
      %v748 = vrot.slane %v746, 1
      %v749 = vor.u32 %v744, %v748
      %v751 = vshll.u32 %v726, 16
      %v753 = vrot.slane %v751, 1
      %v754 = vsel %vm742, %v749, %v753
      %v756 = vshrl.u32 %v695, 16
      %v758 = vshll.u32 %v695, 16
      %v760 = vrot.slane %v758, 1
      %v761 = vor.u32 %v756, %v760
      %v763 = vshll.u32 %v727, 16
      %v765 = vrot.slane %v763, 1
      %v766 = vsel %vm742, %v761, %v765
      %v768 = vshrl.u32 %v696, 16
      %v770 = vshll.u32 %v696, 16
      %v772 = vrot.slane %v770, 1
      %v773 = vor.u32 %v768, %v772
      %v775 = vshll.u32 %v728, 16
      %v777 = vrot.slane %v775, 1
      %v778 = vsel %vm742, %v773, %v777
      %v780 = vshrl.u32 %v697, 16
      %v782 = vshll.u32 %v697, 16
      %v784 = vrot.slane %v782, 1
      %v785 = vor.u32 %v780, %v784
      %v787 = vshll.u32 %v729, 16
      %v789 = vrot.slane %v787, 1
      %v790 = vsel %vm742, %v785, %v789
      %v792 = vshrl.u32 %v698, 16
      %v794 = vshll.u32 %v698, 16
      %v796 = vrot.slane %v794, 1
      %v797 = vor.u32 %v792, %v796
      %v799 = vshll.u32 %v730, 16
      %v801 = vrot.slane %v799, 1
      %v802 = vsel %vm742, %v797, %v801
      %v804 = vshrl.u32 %v699, 16
      %v806 = vshll.u32 %v699, 16
      %v808 = vrot.slane %v806, 1
      %v809 = vor.u32 %v804, %v808
      %v811 = vshll.u32 %v731, 16
      %v813 = vrot.slane %v811, 1
      %v814 = vsel %vm742, %v809, %v813
      %v816 = vshrl.u32 %v700, 16
      %v818 = vshll.u32 %v700, 16
      %v820 = vrot.slane %v818, 1
      %v821 = vor.u32 %v816, %v820
      %v823 = vshll.u32 %v732, 16
      %v825 = vrot.slane %v823, 1
      %v826 = vsel %vm742, %v821, %v825
      %v828 = vshrl.u32 %v701, 16
      %v830 = vshll.u32 %v701, 16
      %v832 = vrot.slane %v830, 1
      %v833 = vor.u32 %v828, %v832
      %v835 = vshll.u32 %v733, 16
      %v837 = vrot.slane %v835, 1
      %v838 = vsel %vm742, %v833, %v837
      %v840 = vshrl.u32 %v702, 16
      %v842 = vshll.u32 %v702, 16
      %v844 = vrot.slane %v842, 1
      %v845 = vor.u32 %v840, %v844
      %v847 = vshll.u32 %v734, 16
      %v849 = vrot.slane %v847, 1
      %v850 = vsel %vm742, %v845, %v849
      %v852 = vshrl.u32 %v703, 16
      %v854 = vshll.u32 %v703, 16
      %v856 = vrot.slane %v854, 1
      %v857 = vor.u32 %v852, %v856
      %v859 = vshll.u32 %v735, 16
      %v861 = vrot.slane %v859, 1
      %v862 = vsel %vm742, %v857, %v861
      %v864 = vshrl.u32 %v704, 16
      %v866 = vshll.u32 %v704, 16
      %v868 = vrot.slane %v866, 1
      %v869 = vor.u32 %v864, %v868
      %v871 = vshll.u32 %v736, 16
      %v873 = vrot.slane %v871, 1
      %v874 = vsel %vm742, %v869, %v873
      %v876 = vshrl.u32 %v705, 16
      %v878 = vshll.u32 %v705, 16
      %v880 = vrot.slane %v878, 1
      %v881 = vor.u32 %v876, %v880
      %v883 = vshll.u32 %v737, 16
      %v885 = vrot.slane %v883, 1
      %v886 = vsel %vm742, %v881, %v885
      %v888 = vshrl.u32 %v706, 16
      %v890 = vshll.u32 %v706, 16
      %v892 = vrot.slane %v890, 1
      %v893 = vor.u32 %v888, %v892
      %v895 = vshll.u32 %v738, 16
      %v897 = vrot.slane %v895, 1
      %v898 = vsel %vm742, %v893, %v897
      %v900 = vshrl.u32 %v707, 16
      %v902 = vshll.u32 %v707, 16
      %v904 = vrot.slane %v902, 1
      %v905 = vor.u32 %v900, %v904
      %v907 = vshll.u32 %v739, 16
      %v909 = vrot.slane %v907, 1
      %v910 = vsel %vm742, %v905, %v909
      %v912 = vshrl.u32 %v708, 16
      %v914 = vshll.u32 %v708, 16
      %v916 = vrot.slane %v914, 1
      %v917 = vor.u32 %v912, %v916
      %v919 = vshll.u32 %v740, 16
      %v921 = vrot.slane %v919, 1
      %v922 = vsel %vm742, %v917, %v921
      %v924 = vshrl.u32 %v709, 16
      %v926 = vshll.u32 %v709, 16
      %v928 = vrot.slane %v926, 1
      %v929 = vor.u32 %v924, %v928
      %v931 = vshll.u32 %v741, 16
      %v933 = vrot.slane %v931, 1
      %v934 = vsel %vm742, %v929, %v933
      %v951 = vld [vmem:[%s1 + $0x40] sm:$0xf]
      %v952 = vld [vmem:[%s1 + $0x44] sm:$0xf]
      %v953 = vld [vmem:[%s1 + $0x48] sm:$0xf]
      %v954 = vld [vmem:[%s1 + $0x4c] sm:$0xf]
      %v955 = vld [vmem:[%s1 + $0x50] sm:$0xf]
      %v956 = vld [vmem:[%s1 + $0x54] sm:$0xf]
      %v957 = vld [vmem:[%s1 + $0x58] sm:$0xf]
      %v958 = vld [vmem:[%s1 + $0x5c] sm:$0xf]
      %v959 = vld [vmem:[%s1 + $0x60] sm:$0xf]
      %v960 = vld [vmem:[%s1 + $0x64] sm:$0xf]
      %v961 = vld [vmem:[%s1 + $0x68] sm:$0xf]
      %v962 = vld [vmem:[%s1 + $0x6c] sm:$0xf]
      %v963 = vld [vmem:[%s1 + $0x70] sm:$0xf]
      %v964 = vld [vmem:[%s1 + $0x74] sm:$0xf]
      %v965 = vld [vmem:[%s1 + $0x78] sm:$0xf]
      %v966 = vld [vmem:[%s1 + $0x7c] sm:$0xf]
      %v983 = vunpack.c.l.b16 %v951
      %v984 = vunpack.c.l.b16 %v952
      %v985 = vunpack.c.l.b16 %v953
      %v986 = vunpack.c.l.b16 %v954
      %v987 = vunpack.c.l.b16 %v955
      %v988 = vunpack.c.l.b16 %v956
      %v989 = vunpack.c.l.b16 %v957
      %v990 = vunpack.c.l.b16 %v958
      %v991 = vunpack.c.l.b16 %v959
      %v992 = vunpack.c.l.b16 %v960
      %v993 = vunpack.c.l.b16 %v961
      %v994 = vunpack.c.l.b16 %v962
      %v995 = vunpack.c.l.b16 %v963
      %v996 = vunpack.c.l.b16 %v964
      %v997 = vunpack.c.l.b16 %v965
      %v998 = vunpack.c.l.b16 %v966
      %v999 = vpack.c.b16 %v984, %v983
      %v1000 = vpack.c.b16 %v986, %v985
      %v1001 = vpack.c.b16 %v988, %v987
      %v1002 = vpack.c.b16 %v990, %v989
      %v1003 = vpack.c.b16 %v992, %v991
      %v1004 = vpack.c.b16 %v994, %v993
      %v1005 = vpack.c.b16 %v996, %v995
      %v1006 = vpack.c.b16 %v998, %v997
      %1015 = vmatprep.subr.bf16.mxu0 0
      %1016 = vmatpush1.bf16.msra.mxu0 %v999
      %1017 = vmatprep.subr.bf16.mxu0 0
      %1018 = vmatpush1.bf16.msra.mxu0 %v1000
      %1019 = vmatprep.subr.bf16.mxu0 0
      %1020 = vmatpush1.bf16.msra.mxu0 %v1001
      %1021 = vmatprep.subr.bf16.mxu0 0
      %1022 = vmatpush1.bf16.msra.mxu0 %v1002
      %1023 = vmatprep.subr.bf16.mxu0 0
      %1024 = vmatpush1.bf16.msra.mxu0 %v1003
      %1025 = vmatprep.subr.bf16.mxu0 0
      %1026 = vmatpush1.bf16.msra.mxu0 %v1004
      %1027 = vmatprep.subr.bf16.mxu0 0
      %1028 = vmatpush1.bf16.msra.mxu0 %v1005
      %1029 = vmatprep.subr.bf16.mxu0 0
      %1030 = vmatpush1.bf16.msra.mxu0 %v1006
      %1031 = vmatprep.subr.bf16.mxu0 0
      %1032 = vmatpush1.bf16.msra.mxu0 0
      %1033 = vmatprep.subr.bf16.mxu0 0
      %1034 = vmatpush1.bf16.msra.mxu0 0
      %1035 = vmatprep.subr.bf16.mxu0 0
      %1036 = vmatpush1.bf16.msra.mxu0 0
      %1037 = vmatprep.subr.bf16.mxu0 0
      %1038 = vmatpush1.bf16.msra.mxu0 0
      %1039 = vmatprep.subr.bf16.mxu0 0
      %1040 = vmatpush1.bf16.msra.mxu0 0
      %1041 = vmatprep.subr.bf16.mxu0 0
      %1042 = vmatpush1.bf16.msra.mxu0 0
      %1043 = vmatprep.subr.bf16.mxu0 0
      %1044 = vmatpush1.bf16.msra.mxu0 0
      %1045 = vmatprep.subr.bf16.mxu0 0
      %1046 = vmatpush1.bf16.msra.mxu0 0
      %1047 = vmatprep.mubr.bf16.mxu0 0
      %1048 = vmatmul.mubr.bf16.gmra.mrb[0].mxu0 %v754
      %v1049 = vpop.f32.mrb[0].mxu0
      %v1050 = vadd.f32 0.0, %v1049
      %v1051 = vpop.f32.mrb[0].mxu0
      %v1052 = vpop.f32.mrb[0].mxu0
      %v1053 = vadd.f32 0.0, %v1052
      %v1054 = vpop.f32.mrb[0].mxu0
      %1055 = vmatprep.mubr.bf16.mxu0 0
      %1056 = vmatmul.mubr.bf16.gmra.mrb[0].mxu0 %v766
      %v1057 = vpop.f32.mrb[0].mxu0
      %v1058 = vadd.f32 0.0, %v1057
      %v1059 = vpop.f32.mrb[0].mxu0
      %v1060 = vpop.f32.mrb[0].mxu0
      %v1061 = vadd.f32 0.0, %v1060
      %v1062 = vpop.f32.mrb[0].mxu0
      %1063 = vmatprep.mubr.bf16.mxu0 0
      %1064 = vmatmul.mubr.bf16.gmra.mrb[0].mxu0 %v778
      %v1065 = vpop.f32.mrb[0].mxu0
      %v1066 = vadd.f32 0.0, %v1065
      %v1067 = vpop.f32.mrb[0].mxu0
      %v1068 = vpop.f32.mrb[0].mxu0
      %v1069 = vadd.f32 0.0, %v1068
      %v1070 = vpop.f32.mrb[0].mxu0
      %1071 = vmatprep.mubr.bf16.mxu0 0
      %1072 = vmatmul.mubr.bf16.gmra.mrb[0].mxu0 %v790
      %v1073 = vpop.f32.mrb[0].mxu0
      %v1074 = vadd.f32 0.0, %v1073
      %v1075 = vpop.f32.mrb[0].mxu0
      %v1076 = vpop.f32.mrb[0].mxu0
      %v1077 = vadd.f32 0.0, %v1076
      %v1078 = vpop.f32.mrb[0].mxu0
      %1079 = vmatprep.mubr.bf16.mxu0 0
      %1080 = vmatmul.mubr.bf16.gmra.mrb[0].mxu0 %v802
      %v1081 = vpop.f32.mrb[0].mxu0
      %v1082 = vadd.f32 0.0, %v1081
      %v1083 = vpop.f32.mrb[0].mxu0
      %v1084 = vpop.f32.mrb[0].mxu0
      %v1085 = vadd.f32 0.0, %v1084
      %v1086 = vpop.f32.mrb[0].mxu0
      %1087 = vmatprep.mubr.bf16.mxu0 0
      %1088 = vmatmul.mubr.bf16.gmra.mrb[0].mxu0 %v814
      %v1089 = vpop.f32.mrb[0].mxu0
      %v1090 = vadd.f32 0.0, %v1089
      %v1091 = vpop.f32.mrb[0].mxu0
      %v1092 = vpop.f32.mrb[0].mxu0
      %v1093 = vadd.f32 0.0, %v1092
      %v1094 = vpop.f32.mrb[0].mxu0
      %1095 = vmatprep.mubr.bf16.mxu0 0
      %1096 = vmatmul.mubr.bf16.gmra.mrb[0].mxu0 %v826
      %v1097 = vpop.f32.mrb[0].mxu0
      %v1098 = vadd.f32 0.0, %v1097
      %v1099 = vpop.f32.mrb[0].mxu0
      %v1100 = vpop.f32.mrb[0].mxu0
      %v1101 = vadd.f32 0.0, %v1100
      %v1102 = vpop.f32.mrb[0].mxu0
      %1103 = vmatprep.mubr.bf16.mxu0 0
      %1104 = vmatmul.mubr.bf16.gmra.mrb[0].mxu0 %v838
      %v1105 = vpop.f32.mrb[0].mxu0
      %v1106 = vadd.f32 0.0, %v1105
      %v1107 = vpop.f32.mrb[0].mxu0
      %v1108 = vpop.f32.mrb[0].mxu0
      %v1109 = vadd.f32 0.0, %v1108
      %v1110 = vpop.f32.mrb[0].mxu0
      %1111 = vmatprep.mubr.bf16.mxu0 0
      %1112 = vmatmul.mubr.bf16.gmra.mrb[0].mxu0 %v850
      %v1113 = vpop.f32.mrb[0].mxu0
      %v1114 = vadd.f32 0.0, %v1113
      %v1115 = vpop.f32.mrb[0].mxu0
      %v1116 = vpop.f32.mrb[0].mxu0
      %v1117 = vadd.f32 0.0, %v1116
      %v1118 = vpop.f32.mrb[0].mxu0
      %1119 = vmatprep.mubr.bf16.mxu0 0
      %1120 = vmatmul.mubr.bf16.gmra.mrb[0].mxu0 %v862
      %v1121 = vpop.f32.mrb[0].mxu0
      %v1122 = vadd.f32 0.0, %v1121
      %v1123 = vpop.f32.mrb[0].mxu0
      %v1124 = vpop.f32.mrb[0].mxu0
      %v1125 = vadd.f32 0.0, %v1124
      %v1126 = vpop.f32.mrb[0].mxu0
      %1127 = vmatprep.mubr.bf16.mxu0 0
      %1128 = vmatmul.mubr.bf16.gmra.mrb[0].mxu0 %v874
      %v1129 = vpop.f32.mrb[0].mxu0
      %v1130 = vadd.f32 0.0, %v1129
      %v1131 = vpop.f32.mrb[0].mxu0
      %v1132 = vpop.f32.mrb[0].mxu0
      %v1133 = vadd.f32 0.0, %v1132
      %v1134 = vpop.f32.mrb[0].mxu0
      %1135 = vmatprep.mubr.bf16.mxu0 0
      %1136 = vmatmul.mubr.bf16.gmra.mrb[0].mxu0 %v886
      %v1137 = vpop.f32.mrb[0].mxu0
      %v1138 = vadd.f32 0.0, %v1137
      %v1139 = vpop.f32.mrb[0].mxu0
      %v1140 = vpop.f32.mrb[0].mxu0
      %v1141 = vadd.f32 0.0, %v1140
      %v1142 = vpop.f32.mrb[0].mxu0
      %1143 = vmatprep.mubr.bf16.mxu0 0
      %1144 = vmatmul.mubr.bf16.gmra.mrb[0].mxu0 %v898
      %v1145 = vpop.f32.mrb[0].mxu0
      %v1146 = vadd.f32 0.0, %v1145
      %v1147 = vpop.f32.mrb[0].mxu0
      %v1148 = vpop.f32.mrb[0].mxu0
      %v1149 = vadd.f32 0.0, %v1148
      %v1150 = vpop.f32.mrb[0].mxu0
      %1151 = vmatprep.mubr.bf16.mxu0 0
      %1152 = vmatmul.mubr.bf16.gmra.mrb[0].mxu0 %v910
      %v1153 = vpop.f32.mrb[0].mxu0
      %v1154 = vadd.f32 0.0, %v1153
      %v1155 = vpop.f32.mrb[0].mxu0
      %v1156 = vpop.f32.mrb[0].mxu0
      %v1157 = vadd.f32 0.0, %v1156
      %v1158 = vpop.f32.mrb[0].mxu0
      %1159 = vmatprep.mubr.bf16.mxu0 0
      %1160 = vmatmul.mubr.bf16.gmra.mrb[0].mxu0 %v922
      %v1161 = vpop.f32.mrb[0].mxu0
      %v1162 = vadd.f32 0.0, %v1161
      %v1163 = vpop.f32.mrb[0].mxu0
      %v1164 = vpop.f32.mrb[0].mxu0
      %v1165 = vadd.f32 0.0, %v1164
      %v1166 = vpop.f32.mrb[0].mxu0
      %1167 = vmatprep.mubr.bf16.mxu0 0
      %1168 = vmatmul.mubr.bf16.gmra.mrb[0].mxu0 %v934
      %v1169 = vpop.f32.mrb[0].mxu0
      %v1170 = vadd.f32 0.0, %v1169
      %v1171 = vpop.f32.mrb[0].mxu0
      %v1172 = vpop.f32.mrb[0].mxu0
      %v1173 = vadd.f32 0.0, %v1172
      %v1174 = vpop.f32.mrb[0].mxu0
      %1175 = vdwg.mxu0
      %v1192 = vunpack.c.l.b16 %v710
      %v1193 = vunpack.c.l.b16 %v711
      %v1194 = vunpack.c.l.b16 %v712
      %v1195 = vunpack.c.l.b16 %v713
      %v1196 = vunpack.c.l.b16 %v714
      %v1197 = vunpack.c.l.b16 %v715
      %v1198 = vunpack.c.l.b16 %v716
      %v1199 = vunpack.c.l.b16 %v717
      %v1200 = vunpack.c.l.b16 %v718
      %v1201 = vunpack.c.l.b16 %v719
      %v1202 = vunpack.c.l.b16 %v720
      %v1203 = vunpack.c.l.b16 %v721
      %v1204 = vunpack.c.l.b16 %v722
      %v1205 = vunpack.c.l.b16 %v723
      %v1206 = vunpack.c.l.b16 %v724
      %v1207 = vunpack.c.l.b16 %v725
      %v1208 = vpack.c.b16 %v1193, %v1192
      %v1209 = vpack.c.b16 %v1195, %v1194
      %v1210 = vpack.c.b16 %v1197, %v1196
      %v1211 = vpack.c.b16 %v1199, %v1198
      %v1212 = vpack.c.b16 %v1201, %v1200
      %v1213 = vpack.c.b16 %v1203, %v1202
      %v1214 = vpack.c.b16 %v1205, %v1204
      %v1215 = vpack.c.b16 %v1207, %v1206
      %1224 = vmatprep.subr.bf16.mxu0 0
      %1225 = vmatpush1.bf16.msra.mxu0 %v1208
      %1226 = vmatprep.subr.bf16.mxu0 0
      %1227 = vmatpush1.bf16.msra.mxu0 %v1209
      %1228 = vmatprep.subr.bf16.mxu0 0
      %1229 = vmatpush1.bf16.msra.mxu0 %v1210
      %1230 = vmatprep.subr.bf16.mxu0 0
      %1231 = vmatpush1.bf16.msra.mxu0 %v1211
      %1232 = vmatprep.subr.bf16.mxu0 0
      %1233 = vmatpush1.bf16.msra.mxu0 %v1212
      %1234 = vmatprep.subr.bf16.mxu0 0
      %1235 = vmatpush1.bf16.msra.mxu0 %v1213
      %1236 = vmatprep.subr.bf16.mxu0 0
      %1237 = vmatpush1.bf16.msra.mxu0 %v1214
      %1238 = vmatprep.subr.bf16.mxu0 0
      %1239 = vmatpush1.bf16.msra.mxu0 %v1215
      %1240 = vmatprep.subr.bf16.mxu0 0
      %1241 = vmatpush1.bf16.msra.mxu0 0
      %1242 = vmatprep.subr.bf16.mxu0 0
      %1243 = vmatpush1.bf16.msra.mxu0 0
      %1244 = vmatprep.subr.bf16.mxu0 0
      %1245 = vmatpush1.bf16.msra.mxu0 0
      %1246 = vmatprep.subr.bf16.mxu0 0
      %1247 = vmatpush1.bf16.msra.mxu0 0
      %1248 = vmatprep.subr.bf16.mxu0 0
      %1249 = vmatpush1.bf16.msra.mxu0 0
      %1250 = vmatprep.subr.bf16.mxu0 0
      %1251 = vmatpush1.bf16.msra.mxu0 0
      %1252 = vmatprep.subr.bf16.mxu0 0
      %1253 = vmatpush1.bf16.msra.mxu0 0
      %1254 = vmatprep.subr.bf16.mxu0 0
      %1255 = vmatpush1.bf16.msra.mxu0 0
      %1256 = vmatprep.mubr.bf16.mxu0 0
      %1257 = vmatmul.mubr.bf16.gmra.mrb[0].mxu0 %v694
      %v1258 = vpop.f32.mrb[0].mxu0
      %v1259 = vadd.f32 %v1050, %v1258
      %v1260 = vpop.f32.mrb[0].mxu0
      %v1261 = vpop.f32.mrb[0].mxu0
      %v1262 = vadd.f32 %v1053, %v1261
      %v1263 = vpop.f32.mrb[0].mxu0
      %1264 = vmatprep.mubr.bf16.mxu0 0
      %1265 = vmatmul.mubr.bf16.gmra.mrb[0].mxu0 %v695
      %v1266 = vpop.f32.mrb[0].mxu0
      %v1267 = vadd.f32 %v1058, %v1266
      %v1268 = vpop.f32.mrb[0].mxu0
      %v1269 = vpop.f32.mrb[0].mxu0
      %v1270 = vadd.f32 %v1061, %v1269
      %v1271 = vpop.f32.mrb[0].mxu0
      %1272 = vmatprep.mubr.bf16.mxu0 0
      %1273 = vmatmul.mubr.bf16.gmra.mrb[0].mxu0 %v696
      %v1274 = vpop.f32.mrb[0].mxu0
      %v1275 = vadd.f32 %v1066, %v1274
      %v1276 = vpop.f32.mrb[0].mxu0
      %v1277 = vpop.f32.mrb[0].mxu0
      %v1278 = vadd.f32 %v1069, %v1277
      %v1279 = vpop.f32.mrb[0].mxu0
      %1280 = vmatprep.mubr.bf16.mxu0 0
      %1281 = vmatmul.mubr.bf16.gmra.mrb[0].mxu0 %v697
      %v1282 = vpop.f32.mrb[0].mxu0
      %v1283 = vadd.f32 %v1074, %v1282
      %v1284 = vpop.f32.mrb[0].mxu0
      %v1285 = vpop.f32.mrb[0].mxu0
      %v1286 = vadd.f32 %v1077, %v1285
      %v1287 = vpop.f32.mrb[0].mxu0
      %1288 = vmatprep.mubr.bf16.mxu0 0
      %1289 = vmatmul.mubr.bf16.gmra.mrb[0].mxu0 %v698
      %v1290 = vpop.f32.mrb[0].mxu0
      %v1291 = vadd.f32 %v1082, %v1290
      %v1292 = vpop.f32.mrb[0].mxu0
      %v1293 = vpop.f32.mrb[0].mxu0
      %v1294 = vadd.f32 %v1085, %v1293
      %v1295 = vpop.f32.mrb[0].mxu0
      %1296 = vmatprep.mubr.bf16.mxu0 0
      %1297 = vmatmul.mubr.bf16.gmra.mrb[0].mxu0 %v699
      %v1298 = vpop.f32.mrb[0].mxu0
      %v1299 = vadd.f32 %v1090, %v1298
      %v1300 = vpop.f32.mrb[0].mxu0
      %v1301 = vpop.f32.mrb[0].mxu0
      %v1302 = vadd.f32 %v1093, %v1301
      %v1303 = vpop.f32.mrb[0].mxu0
      %1304 = vmatprep.mubr.bf16.mxu0 0
      %1305 = vmatmul.mubr.bf16.gmra.mrb[0].mxu0 %v700
      %v1306 = vpop.f32.mrb[0].mxu0
      %v1307 = vadd.f32 %v1098, %v1306
      %v1308 = vpop.f32.mrb[0].mxu0
      %v1309 = vpop.f32.mrb[0].mxu0
      %v1310 = vadd.f32 %v1101, %v1309
      %v1311 = vpop.f32.mrb[0].mxu0
      %1312 = vmatprep.mubr.bf16.mxu0 0
      %1313 = vmatmul.mubr.bf16.gmra.mrb[0].mxu0 %v701
      %v1314 = vpop.f32.mrb[0].mxu0
      %v1315 = vadd.f32 %v1106, %v1314
      %v1316 = vpop.f32.mrb[0].mxu0
      %v1317 = vpop.f32.mrb[0].mxu0
      %v1318 = vadd.f32 %v1109, %v1317
      %v1319 = vpop.f32.mrb[0].mxu0
      %1320 = vmatprep.mubr.bf16.mxu0 0
      %1321 = vmatmul.mubr.bf16.gmra.mrb[0].mxu0 %v702
      %v1322 = vpop.f32.mrb[0].mxu0
      %v1323 = vadd.f32 %v1114, %v1322
      %v1324 = vpop.f32.mrb[0].mxu0
      %v1325 = vpop.f32.mrb[0].mxu0
      %v1326 = vadd.f32 %v1117, %v1325
      %v1327 = vpop.f32.mrb[0].mxu0
      %1328 = vmatprep.mubr.bf16.mxu0 0
      %1329 = vmatmul.mubr.bf16.gmra.mrb[0].mxu0 %v703
      %v1330 = vpop.f32.mrb[0].mxu0
      %v1331 = vadd.f32 %v1122, %v1330
      %v1332 = vpop.f32.mrb[0].mxu0
      %v1333 = vpop.f32.mrb[0].mxu0
      %v1334 = vadd.f32 %v1125, %v1333
      %v1335 = vpop.f32.mrb[0].mxu0
      %1336 = vmatprep.mubr.bf16.mxu0 0
      %1337 = vmatmul.mubr.bf16.gmra.mrb[0].mxu0 %v704
      %v1338 = vpop.f32.mrb[0].mxu0
      %v1339 = vadd.f32 %v1130, %v1338
      %v1340 = vpop.f32.mrb[0].mxu0
      %v1341 = vpop.f32.mrb[0].mxu0
      %v1342 = vadd.f32 %v1133, %v1341
      %v1343 = vpop.f32.mrb[0].mxu0
      %1344 = vmatprep.mubr.bf16.mxu0 0
      %1345 = vmatmul.mubr.bf16.gmra.mrb[0].mxu0 %v705
      %v1346 = vpop.f32.mrb[0].mxu0
      %v1347 = vadd.f32 %v1138, %v1346
      %v1348 = vpop.f32.mrb[0].mxu0
      %v1349 = vpop.f32.mrb[0].mxu0
      %v1350 = vadd.f32 %v1141, %v1349
      %v1351 = vpop.f32.mrb[0].mxu0
      %1352 = vmatprep.mubr.bf16.mxu0 0
      %1353 = vmatmul.mubr.bf16.gmra.mrb[0].mxu0 %v706
      %v1354 = vpop.f32.mrb[0].mxu0
      %v1355 = vadd.f32 %v1146, %v1354
      %v1356 = vpop.f32.mrb[0].mxu0
      %v1357 = vpop.f32.mrb[0].mxu0
      %v1358 = vadd.f32 %v1149, %v1357
      %v1359 = vpop.f32.mrb[0].mxu0
      %1360 = vmatprep.mubr.bf16.mxu0 0
      %1361 = vmatmul.mubr.bf16.gmra.mrb[0].mxu0 %v707
      %v1362 = vpop.f32.mrb[0].mxu0
      %v1363 = vadd.f32 %v1154, %v1362
      %v1364 = vpop.f32.mrb[0].mxu0
      %v1365 = vpop.f32.mrb[0].mxu0
      %v1366 = vadd.f32 %v1157, %v1365
      %v1367 = vpop.f32.mrb[0].mxu0
      %1368 = vmatprep.mubr.bf16.mxu0 0
      %1369 = vmatmul.mubr.bf16.gmra.mrb[0].mxu0 %v708
      %v1370 = vpop.f32.mrb[0].mxu0
      %v1371 = vadd.f32 %v1162, %v1370
      %v1372 = vpop.f32.mrb[0].mxu0
      %v1373 = vpop.f32.mrb[0].mxu0
      %v1374 = vadd.f32 %v1165, %v1373
      %v1375 = vpop.f32.mrb[0].mxu0
      %1376 = vmatprep.mubr.bf16.mxu0 0
      %1377 = vmatmul.mubr.bf16.gmra.mrb[0].mxu0 %v709
      %v1378 = vpop.f32.mrb[0].mxu0
      %v1379 = vadd.f32 %v1170, %v1378
      %v1380 = vpop.f32.mrb[0].mxu0
      %v1381 = vpop.f32.mrb[0].mxu0
      %v1382 = vadd.f32 %v1173, %v1381
      %v1383 = vpop.f32.mrb[0].mxu0
      %1384 = vdwg.mxu0
      %v1385 = vld [vmem:[#allocation2] sm:$0xfe]
      %v1386 = vld [vmem:[#allocation2 + $0x10] sm:$0xfe]
      %v1387 = vld [vmem:[#allocation2 + $0x20] sm:$0xfe]
      %v1388 = vld [vmem:[#allocation2 + $0x30] sm:$0xfe]
      %v1389 = vld [vmem:[#allocation2 + $0x40] sm:$0xfe]
      %v1390 = vld [vmem:[#allocation2 + $0x50] sm:$0xfe]
      %v1391 = vld [vmem:[#allocation2 + $0x60] sm:$0xfe]
      %v1392 = vld [vmem:[#allocation2 + $0x70] sm:$0xfe]
      %v1393 = vld [vmem:[#allocation2 + $0x80] sm:$0xfe]
      %v1394 = vld [vmem:[#allocation2 + $0x90] sm:$0xfe]
      %v1395 = vld [vmem:[#allocation2 + $0xa0] sm:$0xfe]
      %v1396 = vld [vmem:[#allocation2 + $0xb0] sm:$0xfe]
      %v1397 = vld [vmem:[#allocation2 + $0xc0] sm:$0xfe]
      %v1398 = vld [vmem:[#allocation2 + $0xd0] sm:$0xfe]
      %v1399 = vld [vmem:[#allocation2 + $0xe0] sm:$0xfe]
      %v1400 = vld [vmem:[#allocation2 + $0xf0] sm:$0xfe]
      %vm1433 = vcmask 1046528
      %v1434 = vrot.slane %v1385, 1
      %v1435 = vrot.slane %v726, 1
      %v1436 = vsel %vm1433, %v1434, %v1435
      %v1437 = vrot.slane %v1386, 1
      %v1438 = vrot.slane %v727, 1
      %v1439 = vsel %vm1433, %v1437, %v1438
      %v1440 = vrot.slane %v1387, 1
      %v1441 = vrot.slane %v728, 1
      %v1442 = vsel %vm1433, %v1440, %v1441
      %v1443 = vrot.slane %v1388, 1
      %v1444 = vrot.slane %v729, 1
      %v1445 = vsel %vm1433, %v1443, %v1444
      %v1446 = vrot.slane %v1389, 1
      %v1447 = vrot.slane %v730, 1
      %v1448 = vsel %vm1433, %v1446, %v1447
      %v1449 = vrot.slane %v1390, 1
      %v1450 = vrot.slane %v731, 1
      %v1451 = vsel %vm1433, %v1449, %v1450
      %v1452 = vrot.slane %v1391, 1
      %v1453 = vrot.slane %v732, 1
      %v1454 = vsel %vm1433, %v1452, %v1453
      %v1455 = vrot.slane %v1392, 1
      %v1456 = vrot.slane %v733, 1
      %v1457 = vsel %vm1433, %v1455, %v1456
      %v1458 = vrot.slane %v1393, 1
      %v1459 = vrot.slane %v734, 1
      %v1460 = vsel %vm1433, %v1458, %v1459
      %v1461 = vrot.slane %v1394, 1
      %v1462 = vrot.slane %v735, 1
      %v1463 = vsel %vm1433, %v1461, %v1462
      %v1464 = vrot.slane %v1395, 1
      %v1465 = vrot.slane %v736, 1
      %v1466 = vsel %vm1433, %v1464, %v1465
      %v1467 = vrot.slane %v1396, 1
      %v1468 = vrot.slane %v737, 1
      %v1469 = vsel %vm1433, %v1467, %v1468
      %v1470 = vrot.slane %v1397, 1
      %v1471 = vrot.slane %v738, 1
      %v1472 = vsel %vm1433, %v1470, %v1471
      %v1473 = vrot.slane %v1398, 1
      %v1474 = vrot.slane %v739, 1
      %v1475 = vsel %vm1433, %v1473, %v1474
      %v1476 = vrot.slane %v1399, 1
      %v1477 = vrot.slane %v740, 1
      %v1478 = vsel %vm1433, %v1476, %v1477
      %v1479 = vrot.slane %v1400, 1
      %v1480 = vrot.slane %v741, 1
      %v1481 = vsel %vm1433, %v1479, %v1480
      %v1498 = vld [vmem:[%s1 + $0x80] sm:$0xf]
      %v1499 = vld [vmem:[%s1 + $0x84] sm:$0xf]
      %v1500 = vld [vmem:[%s1 + $0x88] sm:$0xf]
      %v1501 = vld [vmem:[%s1 + $0x8c] sm:$0xf]
      %v1502 = vld [vmem:[%s1 + $0x90] sm:$0xf]
      %v1503 = vld [vmem:[%s1 + $0x94] sm:$0xf]
      %v1504 = vld [vmem:[%s1 + $0x98] sm:$0xf]
      %v1505 = vld [vmem:[%s1 + $0x9c] sm:$0xf]
      %v1506 = vld [vmem:[%s1 + $0xa0] sm:$0xf]
      %v1507 = vld [vmem:[%s1 + $0xa4] sm:$0xf]
      %v1508 = vld [vmem:[%s1 + $0xa8] sm:$0xf]
      %v1509 = vld [vmem:[%s1 + $0xac] sm:$0xf]
      %v1510 = vld [vmem:[%s1 + $0xb0] sm:$0xf]
      %v1511 = vld [vmem:[%s1 + $0xb4] sm:$0xf]
      %v1512 = vld [vmem:[%s1 + $0xb8] sm:$0xf]
      %v1513 = vld [vmem:[%s1 + $0xbc] sm:$0xf]
      %v1530 = vunpack.c.l.b16 %v1498
      %v1531 = vunpack.c.l.b16 %v1499
      %v1532 = vunpack.c.l.b16 %v1500
      %v1533 = vunpack.c.l.b16 %v1501
      %v1534 = vunpack.c.l.b16 %v1502
      %v1535 = vunpack.c.l.b16 %v1503
      %v1536 = vunpack.c.l.b16 %v1504
      %v1537 = vunpack.c.l.b16 %v1505
      %v1538 = vunpack.c.l.b16 %v1506
      %v1539 = vunpack.c.l.b16 %v1507
      %v1540 = vunpack.c.l.b16 %v1508
      %v1541 = vunpack.c.l.b16 %v1509
      %v1542 = vunpack.c.l.b16 %v1510
      %v1543 = vunpack.c.l.b16 %v1511
      %v1544 = vunpack.c.l.b16 %v1512
      %v1545 = vunpack.c.l.b16 %v1513
      %v1546 = vpack.c.b16 %v1531, %v1530
      %v1547 = vpack.c.b16 %v1533, %v1532
      %v1548 = vpack.c.b16 %v1535, %v1534
      %v1549 = vpack.c.b16 %v1537, %v1536
      %v1550 = vpack.c.b16 %v1539, %v1538
      %v1551 = vpack.c.b16 %v1541, %v1540
      %v1552 = vpack.c.b16 %v1543, %v1542
      %v1553 = vpack.c.b16 %v1545, %v1544
      %1562 = vmatprep.subr.bf16.mxu0 0
      %1563 = vmatpush1.bf16.msra.mxu0 %v1546
      %1564 = vmatprep.subr.bf16.mxu0 0
      %1565 = vmatpush1.bf16.msra.mxu0 %v1547
      %1566 = vmatprep.subr.bf16.mxu0 0
      %1567 = vmatpush1.bf16.msra.mxu0 %v1548
      %1568 = vmatprep.subr.bf16.mxu0 0
      %1569 = vmatpush1.bf16.msra.mxu0 %v1549
      %1570 = vmatprep.subr.bf16.mxu0 0
      %1571 = vmatpush1.bf16.msra.mxu0 %v1550
      %1572 = vmatprep.subr.bf16.mxu0 0
      %1573 = vmatpush1.bf16.msra.mxu0 %v1551
      %1574 = vmatprep.subr.bf16.mxu0 0
      %1575 = vmatpush1.bf16.msra.mxu0 %v1552
      %1576 = vmatprep.subr.bf16.mxu0 0
      %1577 = vmatpush1.bf16.msra.mxu0 %v1553
      %1578 = vmatprep.subr.bf16.mxu0 0
      %1579 = vmatpush1.bf16.msra.mxu0 0
      %1580 = vmatprep.subr.bf16.mxu0 0
      %1581 = vmatpush1.bf16.msra.mxu0 0
      %1582 = vmatprep.subr.bf16.mxu0 0
      %1583 = vmatpush1.bf16.msra.mxu0 0
      %1584 = vmatprep.subr.bf16.mxu0 0
      %1585 = vmatpush1.bf16.msra.mxu0 0
      %1586 = vmatprep.subr.bf16.mxu0 0
      %1587 = vmatpush1.bf16.msra.mxu0 0
      %1588 = vmatprep.subr.bf16.mxu0 0
      %1589 = vmatpush1.bf16.msra.mxu0 0
      %1590 = vmatprep.subr.bf16.mxu0 0
      %1591 = vmatpush1.bf16.msra.mxu0 0
      %1592 = vmatprep.subr.bf16.mxu0 0
      %1593 = vmatpush1.bf16.msra.mxu0 0
      %1594 = vmatprep.mubr.bf16.mxu0 0
      %1595 = vmatmul.mubr.bf16.gmra.mrb[0].mxu0 %v1436
      %v1596 = vpop.f32.mrb[0].mxu0
      %v1597 = vadd.f32 0.0, %v1596
      %v1598 = vpop.f32.mrb[0].mxu0
      %v1599 = vpop.f32.mrb[0].mxu0
      %v1600 = vadd.f32 0.0, %v1599
      %v1601 = vpop.f32.mrb[0].mxu0
      %1602 = vmatprep.mubr.bf16.mxu0 0
      %1603 = vmatmul.mubr.bf16.gmra.mrb[0].mxu0 %v1439
      %v1604 = vpop.f32.mrb[0].mxu0
      %v1605 = vadd.f32 0.0, %v1604
      %v1606 = vpop.f32.mrb[0].mxu0
      %v1607 = vpop.f32.mrb[0].mxu0
      %v1608 = vadd.f32 0.0, %v1607
      %v1609 = vpop.f32.mrb[0].mxu0
      %1610 = vmatprep.mubr.bf16.mxu0 0
      %1611 = vmatmul.mubr.bf16.gmra.mrb[0].mxu0 %v1442
      %v1612 = vpop.f32.mrb[0].mxu0
      %v1613 = vadd.f32 0.0, %v1612
      %v1614 = vpop.f32.mrb[0].mxu0
      %v1615 = vpop.f32.mrb[0].mxu0
      %v1616 = vadd.f32 0.0, %v1615
      %v1617 = vpop.f32.mrb[0].mxu0
      %1618 = vmatprep.mubr.bf16.mxu0 0
      %1619 = vmatmul.mubr.bf16.gmra.mrb[0].mxu0 %v1445
      %v1620 = vpop.f32.mrb[0].mxu0
      %v1621 = vadd.f32 0.0, %v1620
      %v1622 = vpop.f32.mrb[0].mxu0
      %v1623 = vpop.f32.mrb[0].mxu0
      %v1624 = vadd.f32 0.0, %v1623
      %v1625 = vpop.f32.mrb[0].mxu0
      %1626 = vmatprep.mubr.bf16.mxu0 0
      %1627 = vmatmul.mubr.bf16.gmra.mrb[0].mxu0 %v1448
      %v1628 = vpop.f32.mrb[0].mxu0
      %v1629 = vadd.f32 0.0, %v1628
      %v1630 = vpop.f32.mrb[0].mxu0
      %v1631 = vpop.f32.mrb[0].mxu0
      %v1632 = vadd.f32 0.0, %v1631
      %v1633 = vpop.f32.mrb[0].mxu0
      %1634 = vmatprep.mubr.bf16.mxu0 0
      %1635 = vmatmul.mubr.bf16.gmra.mrb[0].mxu0 %v1451
      %v1636 = vpop.f32.mrb[0].mxu0
      %v1637 = vadd.f32 0.0, %v1636
      %v1638 = vpop.f32.mrb[0].mxu0
      %v1639 = vpop.f32.mrb[0].mxu0
      %v1640 = vadd.f32 0.0, %v1639
      %v1641 = vpop.f32.mrb[0].mxu0
      %1642 = vmatprep.mubr.bf16.mxu0 0
      %1643 = vmatmul.mubr.bf16.gmra.mrb[0].mxu0 %v1454
      %v1644 = vpop.f32.mrb[0].mxu0
      %v1645 = vadd.f32 0.0, %v1644
      %v1646 = vpop.f32.mrb[0].mxu0
      %v1647 = vpop.f32.mrb[0].mxu0
      %v1648 = vadd.f32 0.0, %v1647
      %v1649 = vpop.f32.mrb[0].mxu0
      %1650 = vmatprep.mubr.bf16.mxu0 0
      %1651 = vmatmul.mubr.bf16.gmra.mrb[0].mxu0 %v1457
      %v1652 = vpop.f32.mrb[0].mxu0
      %v1653 = vadd.f32 0.0, %v1652
      %v1654 = vpop.f32.mrb[0].mxu0
      %v1655 = vpop.f32.mrb[0].mxu0
      %v1656 = vadd.f32 0.0, %v1655
      %v1657 = vpop.f32.mrb[0].mxu0
      %1658 = vmatprep.mubr.bf16.mxu0 0
      %1659 = vmatmul.mubr.bf16.gmra.mrb[0].mxu0 %v1460
      %v1660 = vpop.f32.mrb[0].mxu0
      %v1661 = vadd.f32 0.0, %v1660
      %v1662 = vpop.f32.mrb[0].mxu0
      %v1663 = vpop.f32.mrb[0].mxu0
      %v1664 = vadd.f32 0.0, %v1663
      %v1665 = vpop.f32.mrb[0].mxu0
      %1666 = vmatprep.mubr.bf16.mxu0 0
      %1667 = vmatmul.mubr.bf16.gmra.mrb[0].mxu0 %v1463
      %v1668 = vpop.f32.mrb[0].mxu0
      %v1669 = vadd.f32 0.0, %v1668
      %v1670 = vpop.f32.mrb[0].mxu0
      %v1671 = vpop.f32.mrb[0].mxu0
      %v1672 = vadd.f32 0.0, %v1671
      %v1673 = vpop.f32.mrb[0].mxu0
      %1674 = vmatprep.mubr.bf16.mxu0 0
      %1675 = vmatmul.mubr.bf16.gmra.mrb[0].mxu0 %v1466
      %v1676 = vpop.f32.mrb[0].mxu0
      %v1677 = vadd.f32 0.0, %v1676
      %v1678 = vpop.f32.mrb[0].mxu0
      %v1679 = vpop.f32.mrb[0].mxu0
      %v1680 = vadd.f32 0.0, %v1679
      %v1681 = vpop.f32.mrb[0].mxu0
      %1682 = vmatprep.mubr.bf16.mxu0 0
      %1683 = vmatmul.mubr.bf16.gmra.mrb[0].mxu0 %v1469
      %v1684 = vpop.f32.mrb[0].mxu0
      %v1685 = vadd.f32 0.0, %v1684
      %v1686 = vpop.f32.mrb[0].mxu0
      %v1687 = vpop.f32.mrb[0].mxu0
      %v1688 = vadd.f32 0.0, %v1687
      %v1689 = vpop.f32.mrb[0].mxu0
      %1690 = vmatprep.mubr.bf16.mxu0 0
      %1691 = vmatmul.mubr.bf16.gmra.mrb[0].mxu0 %v1472
      %v1692 = vpop.f32.mrb[0].mxu0
      %v1693 = vadd.f32 0.0, %v1692
      %v1694 = vpop.f32.mrb[0].mxu0
      %v1695 = vpop.f32.mrb[0].mxu0
      %v1696 = vadd.f32 0.0, %v1695
      %v1697 = vpop.f32.mrb[0].mxu0
      %1698 = vmatprep.mubr.bf16.mxu0 0
      %1699 = vmatmul.mubr.bf16.gmra.mrb[0].mxu0 %v1475
      %v1700 = vpop.f32.mrb[0].mxu0
      %v1701 = vadd.f32 0.0, %v1700
      %v1702 = vpop.f32.mrb[0].mxu0
      %v1703 = vpop.f32.mrb[0].mxu0
      %v1704 = vadd.f32 0.0, %v1703
      %v1705 = vpop.f32.mrb[0].mxu0
      %1706 = vmatprep.mubr.bf16.mxu0 0
      %1707 = vmatmul.mubr.bf16.gmra.mrb[0].mxu0 %v1478
      %v1708 = vpop.f32.mrb[0].mxu0
      %v1709 = vadd.f32 0.0, %v1708
      %v1710 = vpop.f32.mrb[0].mxu0
      %v1711 = vpop.f32.mrb[0].mxu0
      %v1712 = vadd.f32 0.0, %v1711
      %v1713 = vpop.f32.mrb[0].mxu0
      %1714 = vmatprep.mubr.bf16.mxu0 0
      %1715 = vmatmul.mubr.bf16.gmra.mrb[0].mxu0 %v1481
      %v1716 = vpop.f32.mrb[0].mxu0
      %v1717 = vadd.f32 0.0, %v1716
      %v1718 = vpop.f32.mrb[0].mxu0
      %v1719 = vpop.f32.mrb[0].mxu0
      %v1720 = vadd.f32 0.0, %v1719
      %v1721 = vpop.f32.mrb[0].mxu0
      %1722 = vdwg.mxu0
      %v1723 = vadd.f32 %v1259, %v1597
      %v1724 = vadd.f32 %v1262, %v1600
      %v1725 = vadd.f32 %v1267, %v1605
      %v1726 = vadd.f32 %v1270, %v1608
      %v1727 = vadd.f32 %v1275, %v1613
      %v1728 = vadd.f32 %v1278, %v1616
      %v1729 = vadd.f32 %v1283, %v1621
      %v1730 = vadd.f32 %v1286, %v1624
      %v1731 = vadd.f32 %v1291, %v1629
      %v1732 = vadd.f32 %v1294, %v1632
      %v1733 = vadd.f32 %v1299, %v1637
      %v1734 = vadd.f32 %v1302, %v1640
      %v1735 = vadd.f32 %v1307, %v1645
      %v1736 = vadd.f32 %v1310, %v1648
      %v1737 = vadd.f32 %v1315, %v1653
      %v1738 = vadd.f32 %v1318, %v1656
      %v1739 = vadd.f32 %v1323, %v1661
      %v1740 = vadd.f32 %v1326, %v1664
      %v1741 = vadd.f32 %v1331, %v1669
      %v1742 = vadd.f32 %v1334, %v1672
      %v1743 = vadd.f32 %v1339, %v1677
      %v1744 = vadd.f32 %v1342, %v1680
      %v1745 = vadd.f32 %v1347, %v1685
      %v1746 = vadd.f32 %v1350, %v1688
      %v1747 = vadd.f32 %v1355, %v1693
      %v1748 = vadd.f32 %v1358, %v1696
      %v1749 = vadd.f32 %v1363, %v1701
      %v1750 = vadd.f32 %v1366, %v1704
      %v1751 = vadd.f32 %v1371, %v1709
      %v1752 = vadd.f32 %v1374, %v1712
      %v1753 = vadd.f32 %v1379, %v1717
      %v1754 = vadd.f32 %v1382, %v1720
      %v1755 = vld [vmem:[%s595] sm:$0xff]
      %v1756 = vld [vmem:[%s595 + $0x10] sm:$0xff]
      %v1757 = vld [vmem:[%s595 + $0x20] sm:$0xff]
      %v1758 = vld [vmem:[%s595 + $0x30] sm:$0xff]
      %v1759 = vld [vmem:[%s595 + $0x40] sm:$0xff]
      %v1760 = vld [vmem:[%s595 + $0x50] sm:$0xff]
      %v1761 = vld [vmem:[%s595 + $0x60] sm:$0xff]
      %v1762 = vld [vmem:[%s595 + $0x70] sm:$0xff]
      %v1763 = vld [vmem:[%s595 + $0x80] sm:$0xff]
      %v1764 = vld [vmem:[%s595 + $0x90] sm:$0xff]
      %v1765 = vld [vmem:[%s595 + $0xa0] sm:$0xff]
      %v1766 = vld [vmem:[%s595 + $0xb0] sm:$0xff]
      %v1767 = vld [vmem:[%s595 + $0xc0] sm:$0xff]
      %v1768 = vld [vmem:[%s595 + $0xd0] sm:$0xff]
      %v1769 = vld [vmem:[%s595 + $0xe0] sm:$0xff]
      %v1770 = vld [vmem:[%s595 + $0xf0] sm:$0xff]
      %v1771 = vld [vmem:[%s1 + $0xc0] sm:$0xf]
      %v1772 = vld [vmem:[%s1 + $0xc4] sm:$0xf]
      %v1773 = vld [vmem:[%s1 + $0xc8] sm:$0xf]
      %v1774 = vld [vmem:[%s1 + $0xcc] sm:$0xf]
      %v1775 = vld [vmem:[%s1 + $0xd0] sm:$0xf]
      %v1776 = vld [vmem:[%s1 + $0xd4] sm:$0xf]
      %v1777 = vld [vmem:[%s1 + $0xd8] sm:$0xf]
      %v1778 = vld [vmem:[%s1 + $0xdc] sm:$0xf]
      %v1779 = vld [vmem:[%s1 + $0xe0] sm:$0xf]
      %v1780 = vld [vmem:[%s1 + $0xe4] sm:$0xf]
      %v1781 = vld [vmem:[%s1 + $0xe8] sm:$0xf]
      %v1782 = vld [vmem:[%s1 + $0xec] sm:$0xf]
      %v1783 = vld [vmem:[%s1 + $0xf0] sm:$0xf]
      %v1784 = vld [vmem:[%s1 + $0xf4] sm:$0xf]
      %v1785 = vld [vmem:[%s1 + $0xf8] sm:$0xf]
      %v1786 = vld [vmem:[%s1 + $0xfc] sm:$0xf]
      %v1803 = vunpack.c.l.b16 %v1771
      %v1804 = vunpack.c.l.b16 %v1772
      %v1805 = vunpack.c.l.b16 %v1773
      %v1806 = vunpack.c.l.b16 %v1774
      %v1807 = vunpack.c.l.b16 %v1775
      %v1808 = vunpack.c.l.b16 %v1776
      %v1809 = vunpack.c.l.b16 %v1777
      %v1810 = vunpack.c.l.b16 %v1778
      %v1811 = vunpack.c.l.b16 %v1779
      %v1812 = vunpack.c.l.b16 %v1780
      %v1813 = vunpack.c.l.b16 %v1781
      %v1814 = vunpack.c.l.b16 %v1782
      %v1815 = vunpack.c.l.b16 %v1783
      %v1816 = vunpack.c.l.b16 %v1784
      %v1817 = vunpack.c.l.b16 %v1785
      %v1818 = vunpack.c.l.b16 %v1786
      %v1819 = vpack.c.b16 %v1804, %v1803
      %v1820 = vpack.c.b16 %v1806, %v1805
      %v1821 = vpack.c.b16 %v1808, %v1807
      %v1822 = vpack.c.b16 %v1810, %v1809
      %v1823 = vpack.c.b16 %v1812, %v1811
      %v1824 = vpack.c.b16 %v1814, %v1813
      %v1825 = vpack.c.b16 %v1816, %v1815
      %v1826 = vpack.c.b16 %v1818, %v1817
      %1835 = vmatprep.subr.bf16.mxu0 0
      %1836 = vmatpush1.bf16.msra.mxu0 %v1819
      %1837 = vmatprep.subr.bf16.mxu0 0
      %1838 = vmatpush1.bf16.msra.mxu0 %v1820
      %1839 = vmatprep.subr.bf16.mxu0 0
      %1840 = vmatpush1.bf16.msra.mxu0 %v1821
      %1841 = vmatprep.subr.bf16.mxu0 0
      %1842 = vmatpush1.bf16.msra.mxu0 %v1822
      %1843 = vmatprep.subr.bf16.mxu0 0
      %1844 = vmatpush1.bf16.msra.mxu0 %v1823
      %1845 = vmatprep.subr.bf16.mxu0 0
      %1846 = vmatpush1.bf16.msra.mxu0 %v1824
      %1847 = vmatprep.subr.bf16.mxu0 0
      %1848 = vmatpush1.bf16.msra.mxu0 %v1825
      %1849 = vmatprep.subr.bf16.mxu0 0
      %1850 = vmatpush1.bf16.msra.mxu0 %v1826
      %1851 = vmatprep.subr.bf16.mxu0 0
      %1852 = vmatpush1.bf16.msra.mxu0 0
      %1853 = vmatprep.subr.bf16.mxu0 0
      %1854 = vmatpush1.bf16.msra.mxu0 0
      %1855 = vmatprep.subr.bf16.mxu0 0
      %1856 = vmatpush1.bf16.msra.mxu0 0
      %1857 = vmatprep.subr.bf16.mxu0 0
      %1858 = vmatpush1.bf16.msra.mxu0 0
      %1859 = vmatprep.subr.bf16.mxu0 0
      %1860 = vmatpush1.bf16.msra.mxu0 0
      %1861 = vmatprep.subr.bf16.mxu0 0
      %1862 = vmatpush1.bf16.msra.mxu0 0
      %1863 = vmatprep.subr.bf16.mxu0 0
      %1864 = vmatpush1.bf16.msra.mxu0 0
      %1865 = vmatprep.subr.bf16.mxu0 0
      %1866 = vmatpush1.bf16.msra.mxu0 0
      %1867 = vmatprep.mubr.bf16.mxu0 0
      %1868 = vmatmul.mubr.bf16.gmra.mrb[0].mxu0 %v1755
      %v1869 = vpop.f32.mrb[0].mxu0
      %v1870 = vadd.f32 0.0, %v1869
      %v1871 = vpop.f32.mrb[0].mxu0
      %v1872 = vpop.f32.mrb[0].mxu0
      %v1873 = vadd.f32 0.0, %v1872
      %v1874 = vpop.f32.mrb[0].mxu0
      %1875 = vmatprep.mubr.bf16.mxu0 0
      %1876 = vmatmul.mubr.bf16.gmra.mrb[0].mxu0 %v1756
      %v1877 = vpop.f32.mrb[0].mxu0
      %v1878 = vadd.f32 0.0, %v1877
      %v1879 = vpop.f32.mrb[0].mxu0
      %v1880 = vpop.f32.mrb[0].mxu0
      %v1881 = vadd.f32 0.0, %v1880
      %v1882 = vpop.f32.mrb[0].mxu0
      %1883 = vmatprep.mubr.bf16.mxu0 0
      %1884 = vmatmul.mubr.bf16.gmra.mrb[0].mxu0 %v1757
      %v1885 = vpop.f32.mrb[0].mxu0
      %v1886 = vadd.f32 0.0, %v1885
      %v1887 = vpop.f32.mrb[0].mxu0
      %v1888 = vpop.f32.mrb[0].mxu0
      %v1889 = vadd.f32 0.0, %v1888
      %v1890 = vpop.f32.mrb[0].mxu0
      %1891 = vmatprep.mubr.bf16.mxu0 0
      %1892 = vmatmul.mubr.bf16.gmra.mrb[0].mxu0 %v1758
      %v1893 = vpop.f32.mrb[0].mxu0
      %v1894 = vadd.f32 0.0, %v1893
      %v1895 = vpop.f32.mrb[0].mxu0
      %v1896 = vpop.f32.mrb[0].mxu0
      %v1897 = vadd.f32 0.0, %v1896
      %v1898 = vpop.f32.mrb[0].mxu0
      %1899 = vmatprep.mubr.bf16.mxu0 0
      %1900 = vmatmul.mubr.bf16.gmra.mrb[0].mxu0 %v1759
      %v1901 = vpop.f32.mrb[0].mxu0
      %v1902 = vadd.f32 0.0, %v1901
      %v1903 = vpop.f32.mrb[0].mxu0
      %v1904 = vpop.f32.mrb[0].mxu0
      %v1905 = vadd.f32 0.0, %v1904
      %v1906 = vpop.f32.mrb[0].mxu0
      %1907 = vmatprep.mubr.bf16.mxu0 0
      %1908 = vmatmul.mubr.bf16.gmra.mrb[0].mxu0 %v1760
      %v1909 = vpop.f32.mrb[0].mxu0
      %v1910 = vadd.f32 0.0, %v1909
      %v1911 = vpop.f32.mrb[0].mxu0
      %v1912 = vpop.f32.mrb[0].mxu0
      %v1913 = vadd.f32 0.0, %v1912
      %v1914 = vpop.f32.mrb[0].mxu0
      %1915 = vmatprep.mubr.bf16.mxu0 0
      %1916 = vmatmul.mubr.bf16.gmra.mrb[0].mxu0 %v1761
      %v1917 = vpop.f32.mrb[0].mxu0
      %v1918 = vadd.f32 0.0, %v1917
      %v1919 = vpop.f32.mrb[0].mxu0
      %v1920 = vpop.f32.mrb[0].mxu0
      %v1921 = vadd.f32 0.0, %v1920
      %v1922 = vpop.f32.mrb[0].mxu0
      %1923 = vmatprep.mubr.bf16.mxu0 0
      %1924 = vmatmul.mubr.bf16.gmra.mrb[0].mxu0 %v1762
      %v1925 = vpop.f32.mrb[0].mxu0
      %v1926 = vadd.f32 0.0, %v1925
      %v1927 = vpop.f32.mrb[0].mxu0
      %v1928 = vpop.f32.mrb[0].mxu0
      %v1929 = vadd.f32 0.0, %v1928
      %v1930 = vpop.f32.mrb[0].mxu0
      %1931 = vmatprep.mubr.bf16.mxu0 0
      %1932 = vmatmul.mubr.bf16.gmra.mrb[0].mxu0 %v1763
      %v1933 = vpop.f32.mrb[0].mxu0
      %v1934 = vadd.f32 0.0, %v1933
      %v1935 = vpop.f32.mrb[0].mxu0
      %v1936 = vpop.f32.mrb[0].mxu0
      %v1937 = vadd.f32 0.0, %v1936
      %v1938 = vpop.f32.mrb[0].mxu0
      %1939 = vmatprep.mubr.bf16.mxu0 0
      %1940 = vmatmul.mubr.bf16.gmra.mrb[0].mxu0 %v1764
      %v1941 = vpop.f32.mrb[0].mxu0
      %v1942 = vadd.f32 0.0, %v1941
      %v1943 = vpop.f32.mrb[0].mxu0
      %v1944 = vpop.f32.mrb[0].mxu0
      %v1945 = vadd.f32 0.0, %v1944
      %v1946 = vpop.f32.mrb[0].mxu0
      %1947 = vmatprep.mubr.bf16.mxu0 0
      %1948 = vmatmul.mubr.bf16.gmra.mrb[0].mxu0 %v1765
      %v1949 = vpop.f32.mrb[0].mxu0
      %v1950 = vadd.f32 0.0, %v1949
      %v1951 = vpop.f32.mrb[0].mxu0
      %v1952 = vpop.f32.mrb[0].mxu0
      %v1953 = vadd.f32 0.0, %v1952
      %v1954 = vpop.f32.mrb[0].mxu0
      %1955 = vmatprep.mubr.bf16.mxu0 0
      %1956 = vmatmul.mubr.bf16.gmra.mrb[0].mxu0 %v1766
      %v1957 = vpop.f32.mrb[0].mxu0
      %v1958 = vadd.f32 0.0, %v1957
      %v1959 = vpop.f32.mrb[0].mxu0
      %v1960 = vpop.f32.mrb[0].mxu0
      %v1961 = vadd.f32 0.0, %v1960
      %v1962 = vpop.f32.mrb[0].mxu0
      %1963 = vmatprep.mubr.bf16.mxu0 0
      %1964 = vmatmul.mubr.bf16.gmra.mrb[0].mxu0 %v1767
      %v1965 = vpop.f32.mrb[0].mxu0
      %v1966 = vadd.f32 0.0, %v1965
      %v1967 = vpop.f32.mrb[0].mxu0
      %v1968 = vpop.f32.mrb[0].mxu0
      %v1969 = vadd.f32 0.0, %v1968
      %v1970 = vpop.f32.mrb[0].mxu0
      %1971 = vmatprep.mubr.bf16.mxu0 0
      %1972 = vmatmul.mubr.bf16.gmra.mrb[0].mxu0 %v1768
      %v1973 = vpop.f32.mrb[0].mxu0
      %v1974 = vadd.f32 0.0, %v1973
      %v1975 = vpop.f32.mrb[0].mxu0
      %v1976 = vpop.f32.mrb[0].mxu0
      %v1977 = vadd.f32 0.0, %v1976
      %v1978 = vpop.f32.mrb[0].mxu0
      %1979 = vmatprep.mubr.bf16.mxu0 0
      %1980 = vmatmul.mubr.bf16.gmra.mrb[0].mxu0 %v1769
      %v1981 = vpop.f32.mrb[0].mxu0
      %v1982 = vadd.f32 0.0, %v1981
      %v1983 = vpop.f32.mrb[0].mxu0
      %v1984 = vpop.f32.mrb[0].mxu0
      %v1985 = vadd.f32 0.0, %v1984
      %v1986 = vpop.f32.mrb[0].mxu0
      %1987 = vmatprep.mubr.bf16.mxu0 0
      %1988 = vmatmul.mubr.bf16.gmra.mrb[0].mxu0 %v1770
      %v1989 = vpop.f32.mrb[0].mxu0
      %v1990 = vadd.f32 0.0, %v1989
      %v1991 = vpop.f32.mrb[0].mxu0
      %v1992 = vpop.f32.mrb[0].mxu0
      %v1993 = vadd.f32 0.0, %v1992
      %v1994 = vpop.f32.mrb[0].mxu0
      %1995 = vdwg.mxu0
      %v1996 = vadd.f32 %v1723, %v1870
      %v1997 = vadd.f32 %v1724, %v1873
      %v1998 = vadd.f32 %v1725, %v1878
      %v1999 = vadd.f32 %v1726, %v1881
      %v2000 = vadd.f32 %v1727, %v1886
      %v2001 = vadd.f32 %v1728, %v1889
      %v2002 = vadd.f32 %v1729, %v1894
      %v2003 = vadd.f32 %v1730, %v1897
      %v2004 = vadd.f32 %v1731, %v1902
      %v2005 = vadd.f32 %v1732, %v1905
      %v2006 = vadd.f32 %v1733, %v1910
      %v2007 = vadd.f32 %v1734, %v1913
      %v2008 = vadd.f32 %v1735, %v1918
      %v2009 = vadd.f32 %v1736, %v1921
      %v2010 = vadd.f32 %v1737, %v1926
      %v2011 = vadd.f32 %v1738, %v1929
      %v2012 = vadd.f32 %v1739, %v1934
      %v2013 = vadd.f32 %v1740, %v1937
      %v2014 = vadd.f32 %v1741, %v1942
      %v2015 = vadd.f32 %v1742, %v1945
      %v2016 = vadd.f32 %v1743, %v1950
      %v2017 = vadd.f32 %v1744, %v1953
      %v2018 = vadd.f32 %v1745, %v1958
      %v2019 = vadd.f32 %v1746, %v1961
      %v2020 = vadd.f32 %v1747, %v1966
      %v2021 = vadd.f32 %v1748, %v1969
      %v2022 = vadd.f32 %v1749, %v1974
      %v2023 = vadd.f32 %v1750, %v1977
      %v2024 = vadd.f32 %v1751, %v1982
      %v2025 = vadd.f32 %v1752, %v1985
      %v2026 = vadd.f32 %v1753, %v1990
      %v2027 = vadd.f32 %v1754, %v1993
      %v2028 = vld [vmem:[%s595] sm:$0xff]
      %v2029 = vld [vmem:[%s595 + $0x8] sm:$0x1]
      %v2030 = vld [vmem:[%s595 + $0x10] sm:$0xff]
      %v2031 = vld [vmem:[%s595 + $0x18] sm:$0x1]
      %v2032 = vld [vmem:[%s595 + $0x20] sm:$0xff]
      %v2033 = vld [vmem:[%s595 + $0x28] sm:$0x1]
      %v2034 = vld [vmem:[%s595 + $0x30] sm:$0xff]
      %v2035 = vld [vmem:[%s595 + $0x38] sm:$0x1]
      %v2036 = vld [vmem:[%s595 + $0x40] sm:$0xff]
      %v2037 = vld [vmem:[%s595 + $0x48] sm:$0x1]
      %v2038 = vld [vmem:[%s595 + $0x50] sm:$0xff]
      %v2039 = vld [vmem:[%s595 + $0x58] sm:$0x1]
      %v2040 = vld [vmem:[%s595 + $0x60] sm:$0xff]
      %v2041 = vld [vmem:[%s595 + $0x68] sm:$0x1]
      %v2042 = vld [vmem:[%s595 + $0x70] sm:$0xff]
      %v2043 = vld [vmem:[%s595 + $0x78] sm:$0x1]
      %v2044 = vld [vmem:[%s595 + $0x80] sm:$0xff]
      %v2045 = vld [vmem:[%s595 + $0x88] sm:$0x1]
      %v2046 = vld [vmem:[%s595 + $0x90] sm:$0xff]
      %v2047 = vld [vmem:[%s595 + $0x98] sm:$0x1]
      %v2048 = vld [vmem:[%s595 + $0xa0] sm:$0xff]
      %v2049 = vld [vmem:[%s595 + $0xa8] sm:$0x1]
      %v2050 = vld [vmem:[%s595 + $0xb0] sm:$0xff]
      %v2051 = vld [vmem:[%s595 + $0xb8] sm:$0x1]
      %v2052 = vld [vmem:[%s595 + $0xc0] sm:$0xff]
      %v2053 = vld [vmem:[%s595 + $0xc8] sm:$0x1]
      %v2054 = vld [vmem:[%s595 + $0xd0] sm:$0xff]
      %v2055 = vld [vmem:[%s595 + $0xd8] sm:$0x1]
      %v2056 = vld [vmem:[%s595 + $0xe0] sm:$0xff]
      %v2057 = vld [vmem:[%s595 + $0xe8] sm:$0x1]
      %v2058 = vld [vmem:[%s595 + $0xf0] sm:$0xff]
      %v2059 = vld [vmem:[%s595 + $0xf8] sm:$0x1]
      %v2061 = vshrl.u32 %v2028, 16
      %v2063 = vshll.u32 %v2028, 16
      %v2065 = vrot.slane %v2063, 1
      %v2066 = vor.u32 %v2061, %v2065
      %v2068 = vshll.u32 %v2029, 16
      %v2070 = vrot.slane %v2068, 1
      %v2071 = vsel %vm742, %v2066, %v2070
      %v2073 = vshrl.u32 %v2030, 16
      %v2075 = vshll.u32 %v2030, 16
      %v2077 = vrot.slane %v2075, 1
      %v2078 = vor.u32 %v2073, %v2077
      %v2080 = vshll.u32 %v2031, 16
      %v2082 = vrot.slane %v2080, 1
      %v2083 = vsel %vm742, %v2078, %v2082
      %v2085 = vshrl.u32 %v2032, 16
      %v2087 = vshll.u32 %v2032, 16
      %v2089 = vrot.slane %v2087, 1
      %v2090 = vor.u32 %v2085, %v2089
      %v2092 = vshll.u32 %v2033, 16
      %v2094 = vrot.slane %v2092, 1
      %v2095 = vsel %vm742, %v2090, %v2094
      %v2097 = vshrl.u32 %v2034, 16
      %v2099 = vshll.u32 %v2034, 16
      %v2101 = vrot.slane %v2099, 1
      %v2102 = vor.u32 %v2097, %v2101
      %v2104 = vshll.u32 %v2035, 16
      %v2106 = vrot.slane %v2104, 1
      %v2107 = vsel %vm742, %v2102, %v2106
      %v2109 = vshrl.u32 %v2036, 16
      %v2111 = vshll.u32 %v2036, 16
      %v2113 = vrot.slane %v2111, 1
      %v2114 = vor.u32 %v2109, %v2113
      %v2116 = vshll.u32 %v2037, 16
      %v2118 = vrot.slane %v2116, 1
      %v2119 = vsel %vm742, %v2114, %v2118
      %v2121 = vshrl.u32 %v2038, 16
      %v2123 = vshll.u32 %v2038, 16
      %v2125 = vrot.slane %v2123, 1
      %v2126 = vor.u32 %v2121, %v2125
      %v2128 = vshll.u32 %v2039, 16
      %v2130 = vrot.slane %v2128, 1
      %v2131 = vsel %vm742, %v2126, %v2130
      %v2133 = vshrl.u32 %v2040, 16
      %v2135 = vshll.u32 %v2040, 16
      %v2137 = vrot.slane %v2135, 1
      %v2138 = vor.u32 %v2133, %v2137
      %v2140 = vshll.u32 %v2041, 16
      %v2142 = vrot.slane %v2140, 1
      %v2143 = vsel %vm742, %v2138, %v2142
      %v2145 = vshrl.u32 %v2042, 16
      %v2147 = vshll.u32 %v2042, 16
      %v2149 = vrot.slane %v2147, 1
      %v2150 = vor.u32 %v2145, %v2149
      %v2152 = vshll.u32 %v2043, 16
      %v2154 = vrot.slane %v2152, 1
      %v2155 = vsel %vm742, %v2150, %v2154
      %v2157 = vshrl.u32 %v2044, 16
      %v2159 = vshll.u32 %v2044, 16
      %v2161 = vrot.slane %v2159, 1
      %v2162 = vor.u32 %v2157, %v2161
      %v2164 = vshll.u32 %v2045, 16
      %v2166 = vrot.slane %v2164, 1
      %v2167 = vsel %vm742, %v2162, %v2166
      %v2169 = vshrl.u32 %v2046, 16
      %v2171 = vshll.u32 %v2046, 16
      %v2173 = vrot.slane %v2171, 1
      %v2174 = vor.u32 %v2169, %v2173
      %v2176 = vshll.u32 %v2047, 16
      %v2178 = vrot.slane %v2176, 1
      %v2179 = vsel %vm742, %v2174, %v2178
      %v2181 = vshrl.u32 %v2048, 16
      %v2183 = vshll.u32 %v2048, 16
      %v2185 = vrot.slane %v2183, 1
      %v2186 = vor.u32 %v2181, %v2185
      %v2188 = vshll.u32 %v2049, 16
      %v2190 = vrot.slane %v2188, 1
      %v2191 = vsel %vm742, %v2186, %v2190
      %v2193 = vshrl.u32 %v2050, 16
      %v2195 = vshll.u32 %v2050, 16
      %v2197 = vrot.slane %v2195, 1
      %v2198 = vor.u32 %v2193, %v2197
      %v2200 = vshll.u32 %v2051, 16
      %v2202 = vrot.slane %v2200, 1
      %v2203 = vsel %vm742, %v2198, %v2202
      %v2205 = vshrl.u32 %v2052, 16
      %v2207 = vshll.u32 %v2052, 16
      %v2209 = vrot.slane %v2207, 1
      %v2210 = vor.u32 %v2205, %v2209
      %v2212 = vshll.u32 %v2053, 16
      %v2214 = vrot.slane %v2212, 1
      %v2215 = vsel %vm742, %v2210, %v2214
      %v2217 = vshrl.u32 %v2054, 16
      %v2219 = vshll.u32 %v2054, 16
      %v2221 = vrot.slane %v2219, 1
      %v2222 = vor.u32 %v2217, %v2221
      %v2224 = vshll.u32 %v2055, 16
      %v2226 = vrot.slane %v2224, 1
      %v2227 = vsel %vm742, %v2222, %v2226
      %v2229 = vshrl.u32 %v2056, 16
      %v2231 = vshll.u32 %v2056, 16
      %v2233 = vrot.slane %v2231, 1
      %v2234 = vor.u32 %v2229, %v2233
      %v2236 = vshll.u32 %v2057, 16
      %v2238 = vrot.slane %v2236, 1
      %v2239 = vsel %vm742, %v2234, %v2238
      %v2241 = vshrl.u32 %v2058, 16
      %v2243 = vshll.u32 %v2058, 16
      %v2245 = vrot.slane %v2243, 1
      %v2246 = vor.u32 %v2241, %v2245
      %v2248 = vshll.u32 %v2059, 16
      %v2250 = vrot.slane %v2248, 1
      %v2251 = vsel %vm742, %v2246, %v2250
      %v2268 = vld [vmem:[%s1 + $0x100] sm:$0xf]
      %v2269 = vld [vmem:[%s1 + $0x104] sm:$0xf]
      %v2270 = vld [vmem:[%s1 + $0x108] sm:$0xf]
      %v2271 = vld [vmem:[%s1 + $0x10c] sm:$0xf]
      %v2272 = vld [vmem:[%s1 + $0x110] sm:$0xf]
      %v2273 = vld [vmem:[%s1 + $0x114] sm:$0xf]
      %v2274 = vld [vmem:[%s1 + $0x118] sm:$0xf]
      %v2275 = vld [vmem:[%s1 + $0x11c] sm:$0xf]
      %v2276 = vld [vmem:[%s1 + $0x120] sm:$0xf]
      %v2277 = vld [vmem:[%s1 + $0x124] sm:$0xf]
      %v2278 = vld [vmem:[%s1 + $0x128] sm:$0xf]
      %v2279 = vld [vmem:[%s1 + $0x12c] sm:$0xf]
      %v2280 = vld [vmem:[%s1 + $0x130] sm:$0xf]
      %v2281 = vld [vmem:[%s1 + $0x134] sm:$0xf]
      %v2282 = vld [vmem:[%s1 + $0x138] sm:$0xf]
      %v2283 = vld [vmem:[%s1 + $0x13c] sm:$0xf]
      %v2300 = vunpack.c.l.b16 %v2268
      %v2301 = vunpack.c.l.b16 %v2269
      %v2302 = vunpack.c.l.b16 %v2270
      %v2303 = vunpack.c.l.b16 %v2271
      %v2304 = vunpack.c.l.b16 %v2272
      %v2305 = vunpack.c.l.b16 %v2273
      %v2306 = vunpack.c.l.b16 %v2274
      %v2307 = vunpack.c.l.b16 %v2275
      %v2308 = vunpack.c.l.b16 %v2276
      %v2309 = vunpack.c.l.b16 %v2277
      %v2310 = vunpack.c.l.b16 %v2278
      %v2311 = vunpack.c.l.b16 %v2279
      %v2312 = vunpack.c.l.b16 %v2280
      %v2313 = vunpack.c.l.b16 %v2281
      %v2314 = vunpack.c.l.b16 %v2282
      %v2315 = vunpack.c.l.b16 %v2283
      %v2316 = vpack.c.b16 %v2301, %v2300
      %v2317 = vpack.c.b16 %v2303, %v2302
      %v2318 = vpack.c.b16 %v2305, %v2304
      %v2319 = vpack.c.b16 %v2307, %v2306
      %v2320 = vpack.c.b16 %v2309, %v2308
      %v2321 = vpack.c.b16 %v2311, %v2310
      %v2322 = vpack.c.b16 %v2313, %v2312
      %v2323 = vpack.c.b16 %v2315, %v2314
      %2332 = vmatprep.subr.bf16.mxu0 0
      %2333 = vmatpush1.bf16.msra.mxu0 %v2316
      %2334 = vmatprep.subr.bf16.mxu0 0
      %2335 = vmatpush1.bf16.msra.mxu0 %v2317
      %2336 = vmatprep.subr.bf16.mxu0 0
      %2337 = vmatpush1.bf16.msra.mxu0 %v2318
      %2338 = vmatprep.subr.bf16.mxu0 0
      %2339 = vmatpush1.bf16.msra.mxu0 %v2319
      %2340 = vmatprep.subr.bf16.mxu0 0
      %2341 = vmatpush1.bf16.msra.mxu0 %v2320
      %2342 = vmatprep.subr.bf16.mxu0 0
      %2343 = vmatpush1.bf16.msra.mxu0 %v2321
      %2344 = vmatprep.subr.bf16.mxu0 0
      %2345 = vmatpush1.bf16.msra.mxu0 %v2322
      %2346 = vmatprep.subr.bf16.mxu0 0
      %2347 = vmatpush1.bf16.msra.mxu0 %v2323
      %2348 = vmatprep.subr.bf16.mxu0 0
      %2349 = vmatpush1.bf16.msra.mxu0 0
      %2350 = vmatprep.subr.bf16.mxu0 0
      %2351 = vmatpush1.bf16.msra.mxu0 0
      %2352 = vmatprep.subr.bf16.mxu0 0
      %2353 = vmatpush1.bf16.msra.mxu0 0
      %2354 = vmatprep.subr.bf16.mxu0 0
      %2355 = vmatpush1.bf16.msra.mxu0 0
      %2356 = vmatprep.subr.bf16.mxu0 0
      %2357 = vmatpush1.bf16.msra.mxu0 0
      %2358 = vmatprep.subr.bf16.mxu0 0
      %2359 = vmatpush1.bf16.msra.mxu0 0
      %2360 = vmatprep.subr.bf16.mxu0 0
      %2361 = vmatpush1.bf16.msra.mxu0 0
      %2362 = vmatprep.subr.bf16.mxu0 0
      %2363 = vmatpush1.bf16.msra.mxu0 0
      %2364 = vmatprep.mubr.bf16.mxu0 0
      %2365 = vmatmul.mubr.bf16.gmra.mrb[0].mxu0 %v2071
      %v2366 = vpop.f32.mrb[0].mxu0
      %v2367 = vadd.f32 0.0, %v2366
      %v2368 = vpop.f32.mrb[0].mxu0
      %v2369 = vpop.f32.mrb[0].mxu0
      %v2370 = vadd.f32 0.0, %v2369
      %v2371 = vpop.f32.mrb[0].mxu0
      %2372 = vmatprep.mubr.bf16.mxu0 0
      %2373 = vmatmul.mubr.bf16.gmra.mrb[0].mxu0 %v2083
      %v2374 = vpop.f32.mrb[0].mxu0
      %v2375 = vadd.f32 0.0, %v2374
      %v2376 = vpop.f32.mrb[0].mxu0
      %v2377 = vpop.f32.mrb[0].mxu0
      %v2378 = vadd.f32 0.0, %v2377
      %v2379 = vpop.f32.mrb[0].mxu0
      %2380 = vmatprep.mubr.bf16.mxu0 0
      %2381 = vmatmul.mubr.bf16.gmra.mrb[0].mxu0 %v2095
      %v2382 = vpop.f32.mrb[0].mxu0
      %v2383 = vadd.f32 0.0, %v2382
      %v2384 = vpop.f32.mrb[0].mxu0
      %v2385 = vpop.f32.mrb[0].mxu0
      %v2386 = vadd.f32 0.0, %v2385
      %v2387 = vpop.f32.mrb[0].mxu0
      %2388 = vmatprep.mubr.bf16.mxu0 0
      %2389 = vmatmul.mubr.bf16.gmra.mrb[0].mxu0 %v2107
      %v2390 = vpop.f32.mrb[0].mxu0
      %v2391 = vadd.f32 0.0, %v2390
      %v2392 = vpop.f32.mrb[0].mxu0
      %v2393 = vpop.f32.mrb[0].mxu0
      %v2394 = vadd.f32 0.0, %v2393
      %v2395 = vpop.f32.mrb[0].mxu0
      %2396 = vmatprep.mubr.bf16.mxu0 0
      %2397 = vmatmul.mubr.bf16.gmra.mrb[0].mxu0 %v2119
      %v2398 = vpop.f32.mrb[0].mxu0
      %v2399 = vadd.f32 0.0, %v2398
      %v2400 = vpop.f32.mrb[0].mxu0
      %v2401 = vpop.f32.mrb[0].mxu0
      %v2402 = vadd.f32 0.0, %v2401
      %v2403 = vpop.f32.mrb[0].mxu0
      %2404 = vmatprep.mubr.bf16.mxu0 0
      %2405 = vmatmul.mubr.bf16.gmra.mrb[0].mxu0 %v2131
      %v2406 = vpop.f32.mrb[0].mxu0
      %v2407 = vadd.f32 0.0, %v2406
      %v2408 = vpop.f32.mrb[0].mxu0
      %v2409 = vpop.f32.mrb[0].mxu0
      %v2410 = vadd.f32 0.0, %v2409
      %v2411 = vpop.f32.mrb[0].mxu0
      %2412 = vmatprep.mubr.bf16.mxu0 0
      %2413 = vmatmul.mubr.bf16.gmra.mrb[0].mxu0 %v2143
      %v2414 = vpop.f32.mrb[0].mxu0
      %v2415 = vadd.f32 0.0, %v2414
      %v2416 = vpop.f32.mrb[0].mxu0
      %v2417 = vpop.f32.mrb[0].mxu0
      %v2418 = vadd.f32 0.0, %v2417
      %v2419 = vpop.f32.mrb[0].mxu0
      %2420 = vmatprep.mubr.bf16.mxu0 0
      %2421 = vmatmul.mubr.bf16.gmra.mrb[0].mxu0 %v2155
      %v2422 = vpop.f32.mrb[0].mxu0
      %v2423 = vadd.f32 0.0, %v2422
      %v2424 = vpop.f32.mrb[0].mxu0
      %v2425 = vpop.f32.mrb[0].mxu0
      %v2426 = vadd.f32 0.0, %v2425
      %v2427 = vpop.f32.mrb[0].mxu0
      %2428 = vmatprep.mubr.bf16.mxu0 0
      %2429 = vmatmul.mubr.bf16.gmra.mrb[0].mxu0 %v2167
      %v2430 = vpop.f32.mrb[0].mxu0
      %v2431 = vadd.f32 0.0, %v2430
      %v2432 = vpop.f32.mrb[0].mxu0
      %v2433 = vpop.f32.mrb[0].mxu0
      %v2434 = vadd.f32 0.0, %v2433
      %v2435 = vpop.f32.mrb[0].mxu0
      %2436 = vmatprep.mubr.bf16.mxu0 0
      %2437 = vmatmul.mubr.bf16.gmra.mrb[0].mxu0 %v2179
      %v2438 = vpop.f32.mrb[0].mxu0
      %v2439 = vadd.f32 0.0, %v2438
      %v2440 = vpop.f32.mrb[0].mxu0
      %v2441 = vpop.f32.mrb[0].mxu0
      %v2442 = vadd.f32 0.0, %v2441
      %v2443 = vpop.f32.mrb[0].mxu0
      %2444 = vmatprep.mubr.bf16.mxu0 0
      %2445 = vmatmul.mubr.bf16.gmra.mrb[0].mxu0 %v2191
      %v2446 = vpop.f32.mrb[0].mxu0
      %v2447 = vadd.f32 0.0, %v2446
      %v2448 = vpop.f32.mrb[0].mxu0
      %v2449 = vpop.f32.mrb[0].mxu0
      %v2450 = vadd.f32 0.0, %v2449
      %v2451 = vpop.f32.mrb[0].mxu0
      %2452 = vmatprep.mubr.bf16.mxu0 0
      %2453 = vmatmul.mubr.bf16.gmra.mrb[0].mxu0 %v2203
      %v2454 = vpop.f32.mrb[0].mxu0
      %v2455 = vadd.f32 0.0, %v2454
      %v2456 = vpop.f32.mrb[0].mxu0
      %v2457 = vpop.f32.mrb[0].mxu0
      %v2458 = vadd.f32 0.0, %v2457
      %v2459 = vpop.f32.mrb[0].mxu0
      %2460 = vmatprep.mubr.bf16.mxu0 0
      %2461 = vmatmul.mubr.bf16.gmra.mrb[0].mxu0 %v2215
      %v2462 = vpop.f32.mrb[0].mxu0
      %v2463 = vadd.f32 0.0, %v2462
      %v2464 = vpop.f32.mrb[0].mxu0
      %v2465 = vpop.f32.mrb[0].mxu0
      %v2466 = vadd.f32 0.0, %v2465
      %v2467 = vpop.f32.mrb[0].mxu0
      %2468 = vmatprep.mubr.bf16.mxu0 0
      %2469 = vmatmul.mubr.bf16.gmra.mrb[0].mxu0 %v2227
      %v2470 = vpop.f32.mrb[0].mxu0
      %v2471 = vadd.f32 0.0, %v2470
      %v2472 = vpop.f32.mrb[0].mxu0
      %v2473 = vpop.f32.mrb[0].mxu0
      %v2474 = vadd.f32 0.0, %v2473
      %v2475 = vpop.f32.mrb[0].mxu0
      %2476 = vmatprep.mubr.bf16.mxu0 0
      %2477 = vmatmul.mubr.bf16.gmra.mrb[0].mxu0 %v2239
      %v2478 = vpop.f32.mrb[0].mxu0
      %v2479 = vadd.f32 0.0, %v2478
      %v2480 = vpop.f32.mrb[0].mxu0
      %v2481 = vpop.f32.mrb[0].mxu0
      %v2482 = vadd.f32 0.0, %v2481
      %v2483 = vpop.f32.mrb[0].mxu0
      %2484 = vmatprep.mubr.bf16.mxu0 0
      %2485 = vmatmul.mubr.bf16.gmra.mrb[0].mxu0 %v2251
      %v2486 = vpop.f32.mrb[0].mxu0
      %v2487 = vadd.f32 0.0, %v2486
      %v2488 = vpop.f32.mrb[0].mxu0
      %v2489 = vpop.f32.mrb[0].mxu0
      %v2490 = vadd.f32 0.0, %v2489
      %v2491 = vpop.f32.mrb[0].mxu0
      %2492 = vdwg.mxu0
      %v2493 = vadd.f32 %v1996, %v2367
      %v2494 = vadd.f32 %v1997, %v2370
      %v2495 = vadd.f32 %v1998, %v2375
      %v2496 = vadd.f32 %v1999, %v2378
      %v2497 = vadd.f32 %v2000, %v2383
      %v2498 = vadd.f32 %v2001, %v2386
      %v2499 = vadd.f32 %v2002, %v2391
      %v2500 = vadd.f32 %v2003, %v2394
      %v2501 = vadd.f32 %v2004, %v2399
      %v2502 = vadd.f32 %v2005, %v2402
      %v2503 = vadd.f32 %v2006, %v2407
      %v2504 = vadd.f32 %v2007, %v2410
      %v2505 = vadd.f32 %v2008, %v2415
      %v2506 = vadd.f32 %v2009, %v2418
      %v2507 = vadd.f32 %v2010, %v2423
      %v2508 = vadd.f32 %v2011, %v2426
      %v2509 = vadd.f32 %v2012, %v2431
      %v2510 = vadd.f32 %v2013, %v2434
      %v2511 = vadd.f32 %v2014, %v2439
      %v2512 = vadd.f32 %v2015, %v2442
      %v2513 = vadd.f32 %v2016, %v2447
      %v2514 = vadd.f32 %v2017, %v2450
      %v2515 = vadd.f32 %v2018, %v2455
      %v2516 = vadd.f32 %v2019, %v2458
      %v2517 = vadd.f32 %v2020, %v2463
      %v2518 = vadd.f32 %v2021, %v2466
      %v2519 = vadd.f32 %v2022, %v2471
      %v2520 = vadd.f32 %v2023, %v2474
      %v2521 = vadd.f32 %v2024, %v2479
      %v2522 = vadd.f32 %v2025, %v2482
      %v2523 = vadd.f32 %v2026, %v2487
      %v2524 = vadd.f32 %v2027, %v2490
      %v2525 = vld [vmem:[%s595] sm:$0xfe]
      %v2526 = vld [vmem:[%s595 + $0x10] sm:$0xfe]
      %v2527 = vld [vmem:[%s595 + $0x20] sm:$0xfe]
      %v2528 = vld [vmem:[%s595 + $0x30] sm:$0xfe]
      %v2529 = vld [vmem:[%s595 + $0x40] sm:$0xfe]
      %v2530 = vld [vmem:[%s595 + $0x50] sm:$0xfe]
      %v2531 = vld [vmem:[%s595 + $0x60] sm:$0xfe]
      %v2532 = vld [vmem:[%s595 + $0x70] sm:$0xfe]
      %v2533 = vld [vmem:[%s595 + $0x80] sm:$0xfe]
      %v2534 = vld [vmem:[%s595 + $0x90] sm:$0xfe]
      %v2535 = vld [vmem:[%s595 + $0xa0] sm:$0xfe]
      %v2536 = vld [vmem:[%s595 + $0xb0] sm:$0xfe]
      %v2537 = vld [vmem:[%s595 + $0xc0] sm:$0xfe]
      %v2538 = vld [vmem:[%s595 + $0xd0] sm:$0xfe]
      %v2539 = vld [vmem:[%s595 + $0xe0] sm:$0xfe]
      %v2540 = vld [vmem:[%s595 + $0xf0] sm:$0xfe]
      %v2573 = vrot.slane %v2525, 1
      %v2574 = vrot.slane %v2029, 1
      %v2575 = vsel %vm1433, %v2573, %v2574
      %v2576 = vrot.slane %v2526, 1
      %v2577 = vrot.slane %v2031, 1
      %v2578 = vsel %vm1433, %v2576, %v2577
      %v2579 = vrot.slane %v2527, 1
      %v2580 = vrot.slane %v2033, 1
      %v2581 = vsel %vm1433, %v2579, %v2580
      %v2582 = vrot.slane %v2528, 1
      %v2583 = vrot.slane %v2035, 1
      %v2584 = vsel %vm1433, %v2582, %v2583
      %v2585 = vrot.slane %v2529, 1
      %v2586 = vrot.slane %v2037, 1
      %v2587 = vsel %vm1433, %v2585, %v2586
      %v2588 = vrot.slane %v2530, 1
      %v2589 = vrot.slane %v2039, 1
      %v2590 = vsel %vm1433, %v2588, %v2589
      %v2591 = vrot.slane %v2531, 1
      %v2592 = vrot.slane %v2041, 1
      %v2593 = vsel %vm1433, %v2591, %v2592
      %v2594 = vrot.slane %v2532, 1
      %v2595 = vrot.slane %v2043, 1
      %v2596 = vsel %vm1433, %v2594, %v2595
      %v2597 = vrot.slane %v2533, 1
      %v2598 = vrot.slane %v2045, 1
      %v2599 = vsel %vm1433, %v2597, %v2598
      %v2600 = vrot.slane %v2534, 1
      %v2601 = vrot.slane %v2047, 1
      %v2602 = vsel %vm1433, %v2600, %v2601
      %v2603 = vrot.slane %v2535, 1
      %v2604 = vrot.slane %v2049, 1
      %v2605 = vsel %vm1433, %v2603, %v2604
      %v2606 = vrot.slane %v2536, 1
      %v2607 = vrot.slane %v2051, 1
      %v2608 = vsel %vm1433, %v2606, %v2607
      %v2609 = vrot.slane %v2537, 1
      %v2610 = vrot.slane %v2053, 1
      %v2611 = vsel %vm1433, %v2609, %v2610
      %v2612 = vrot.slane %v2538, 1
      %v2613 = vrot.slane %v2055, 1
      %v2614 = vsel %vm1433, %v2612, %v2613
      %v2615 = vrot.slane %v2539, 1
      %v2616 = vrot.slane %v2057, 1
      %v2617 = vsel %vm1433, %v2615, %v2616
      %v2618 = vrot.slane %v2540, 1
      %v2619 = vrot.slane %v2059, 1
      %v2620 = vsel %vm1433, %v2618, %v2619
      %v2637 = vld [vmem:[%s1 + $0x140] sm:$0xf]
      %v2638 = vld [vmem:[%s1 + $0x144] sm:$0xf]
      %v2639 = vld [vmem:[%s1 + $0x148] sm:$0xf]
      %v2640 = vld [vmem:[%s1 + $0x14c] sm:$0xf]
      %v2641 = vld [vmem:[%s1 + $0x150] sm:$0xf]
      %v2642 = vld [vmem:[%s1 + $0x154] sm:$0xf]
      %v2643 = vld [vmem:[%s1 + $0x158] sm:$0xf]
      %v2644 = vld [vmem:[%s1 + $0x15c] sm:$0xf]
      %v2645 = vld [vmem:[%s1 + $0x160] sm:$0xf]
      %v2646 = vld [vmem:[%s1 + $0x164] sm:$0xf]
      %v2647 = vld [vmem:[%s1 + $0x168] sm:$0xf]
      %v2648 = vld [vmem:[%s1 + $0x16c] sm:$0xf]
      %v2649 = vld [vmem:[%s1 + $0x170] sm:$0xf]
      %v2650 = vld [vmem:[%s1 + $0x174] sm:$0xf]
      %v2651 = vld [vmem:[%s1 + $0x178] sm:$0xf]
      %v2652 = vld [vmem:[%s1 + $0x17c] sm:$0xf]
      %v2669 = vunpack.c.l.b16 %v2637
      %v2670 = vunpack.c.l.b16 %v2638
      %v2671 = vunpack.c.l.b16 %v2639
      %v2672 = vunpack.c.l.b16 %v2640
      %v2673 = vunpack.c.l.b16 %v2641
      %v2674 = vunpack.c.l.b16 %v2642
      %v2675 = vunpack.c.l.b16 %v2643
      %v2676 = vunpack.c.l.b16 %v2644
      %v2677 = vunpack.c.l.b16 %v2645
      %v2678 = vunpack.c.l.b16 %v2646
      %v2679 = vunpack.c.l.b16 %v2647
      %v2680 = vunpack.c.l.b16 %v2648
      %v2681 = vunpack.c.l.b16 %v2649
      %v2682 = vunpack.c.l.b16 %v2650
      %v2683 = vunpack.c.l.b16 %v2651
      %v2684 = vunpack.c.l.b16 %v2652
      %v2685 = vpack.c.b16 %v2670, %v2669
      %v2686 = vpack.c.b16 %v2672, %v2671
      %v2687 = vpack.c.b16 %v2674, %v2673
      %v2688 = vpack.c.b16 %v2676, %v2675
      %v2689 = vpack.c.b16 %v2678, %v2677
      %v2690 = vpack.c.b16 %v2680, %v2679
      %v2691 = vpack.c.b16 %v2682, %v2681
      %v2692 = vpack.c.b16 %v2684, %v2683
      %2701 = vmatprep.subr.bf16.mxu0 0
      %2702 = vmatpush1.bf16.msra.mxu0 %v2685
      %2703 = vmatprep.subr.bf16.mxu0 0
      %2704 = vmatpush1.bf16.msra.mxu0 %v2686
      %2705 = vmatprep.subr.bf16.mxu0 0
      %2706 = vmatpush1.bf16.msra.mxu0 %v2687
      %2707 = vmatprep.subr.bf16.mxu0 0
      %2708 = vmatpush1.bf16.msra.mxu0 %v2688
      %2709 = vmatprep.subr.bf16.mxu0 0
      %2710 = vmatpush1.bf16.msra.mxu0 %v2689
      %2711 = vmatprep.subr.bf16.mxu0 0
      %2712 = vmatpush1.bf16.msra.mxu0 %v2690
      %2713 = vmatprep.subr.bf16.mxu0 0
      %2714 = vmatpush1.bf16.msra.mxu0 %v2691
      %2715 = vmatprep.subr.bf16.mxu0 0
      %2716 = vmatpush1.bf16.msra.mxu0 %v2692
      %2717 = vmatprep.subr.bf16.mxu0 0
      %2718 = vmatpush1.bf16.msra.mxu0 0
      %2719 = vmatprep.subr.bf16.mxu0 0
      %2720 = vmatpush1.bf16.msra.mxu0 0
      %2721 = vmatprep.subr.bf16.mxu0 0
      %2722 = vmatpush1.bf16.msra.mxu0 0
      %2723 = vmatprep.subr.bf16.mxu0 0
      %2724 = vmatpush1.bf16.msra.mxu0 0
      %2725 = vmatprep.subr.bf16.mxu0 0
      %2726 = vmatpush1.bf16.msra.mxu0 0
      %2727 = vmatprep.subr.bf16.mxu0 0
      %2728 = vmatpush1.bf16.msra.mxu0 0
      %2729 = vmatprep.subr.bf16.mxu0 0
      %2730 = vmatpush1.bf16.msra.mxu0 0
      %2731 = vmatprep.subr.bf16.mxu0 0
      %2732 = vmatpush1.bf16.msra.mxu0 0
      %2733 = vmatprep.mubr.bf16.mxu0 0
      %2734 = vmatmul.mubr.bf16.gmra.mrb[0].mxu0 %v2575
      %v2735 = vpop.f32.mrb[0].mxu0
      %v2736 = vadd.f32 0.0, %v2735
      %v2737 = vpop.f32.mrb[0].mxu0
      %v2738 = vpop.f32.mrb[0].mxu0
      %v2739 = vadd.f32 0.0, %v2738
      %v2740 = vpop.f32.mrb[0].mxu0
      %2741 = vmatprep.mubr.bf16.mxu0 0
      %2742 = vmatmul.mubr.bf16.gmra.mrb[0].mxu0 %v2578
      %v2743 = vpop.f32.mrb[0].mxu0
      %v2744 = vadd.f32 0.0, %v2743
      %v2745 = vpop.f32.mrb[0].mxu0
      %v2746 = vpop.f32.mrb[0].mxu0
      %v2747 = vadd.f32 0.0, %v2746
      %v2748 = vpop.f32.mrb[0].mxu0
      %2749 = vmatprep.mubr.bf16.mxu0 0
      %2750 = vmatmul.mubr.bf16.gmra.mrb[0].mxu0 %v2581
      %v2751 = vpop.f32.mrb[0].mxu0
      %v2752 = vadd.f32 0.0, %v2751
      %v2753 = vpop.f32.mrb[0].mxu0
      %v2754 = vpop.f32.mrb[0].mxu0
      %v2755 = vadd.f32 0.0, %v2754
      %v2756 = vpop.f32.mrb[0].mxu0
      %2757 = vmatprep.mubr.bf16.mxu0 0
      %2758 = vmatmul.mubr.bf16.gmra.mrb[0].mxu0 %v2584
      %v2759 = vpop.f32.mrb[0].mxu0
      %v2760 = vadd.f32 0.0, %v2759
      %v2761 = vpop.f32.mrb[0].mxu0
      %v2762 = vpop.f32.mrb[0].mxu0
      %v2763 = vadd.f32 0.0, %v2762
      %v2764 = vpop.f32.mrb[0].mxu0
      %2765 = vmatprep.mubr.bf16.mxu0 0
      %2766 = vmatmul.mubr.bf16.gmra.mrb[0].mxu0 %v2587
      %v2767 = vpop.f32.mrb[0].mxu0
      %v2768 = vadd.f32 0.0, %v2767
      %v2769 = vpop.f32.mrb[0].mxu0
      %v2770 = vpop.f32.mrb[0].mxu0
      %v2771 = vadd.f32 0.0, %v2770
      %v2772 = vpop.f32.mrb[0].mxu0
      %2773 = vmatprep.mubr.bf16.mxu0 0
      %2774 = vmatmul.mubr.bf16.gmra.mrb[0].mxu0 %v2590
      %v2775 = vpop.f32.mrb[0].mxu0
      %v2776 = vadd.f32 0.0, %v2775
      %v2777 = vpop.f32.mrb[0].mxu0
      %v2778 = vpop.f32.mrb[0].mxu0
      %v2779 = vadd.f32 0.0, %v2778
      %v2780 = vpop.f32.mrb[0].mxu0
      %2781 = vmatprep.mubr.bf16.mxu0 0
      %2782 = vmatmul.mubr.bf16.gmra.mrb[0].mxu0 %v2593
      %v2783 = vpop.f32.mrb[0].mxu0
      %v2784 = vadd.f32 0.0, %v2783
      %v2785 = vpop.f32.mrb[0].mxu0
      %v2786 = vpop.f32.mrb[0].mxu0
      %v2787 = vadd.f32 0.0, %v2786
      %v2788 = vpop.f32.mrb[0].mxu0
      %2789 = vmatprep.mubr.bf16.mxu0 0
      %2790 = vmatmul.mubr.bf16.gmra.mrb[0].mxu0 %v2596
      %v2791 = vpop.f32.mrb[0].mxu0
      %v2792 = vadd.f32 0.0, %v2791
      %v2793 = vpop.f32.mrb[0].mxu0
      %v2794 = vpop.f32.mrb[0].mxu0
      %v2795 = vadd.f32 0.0, %v2794
      %v2796 = vpop.f32.mrb[0].mxu0
      %2797 = vmatprep.mubr.bf16.mxu0 0
      %2798 = vmatmul.mubr.bf16.gmra.mrb[0].mxu0 %v2599
      %v2799 = vpop.f32.mrb[0].mxu0
      %v2800 = vadd.f32 0.0, %v2799
      %v2801 = vpop.f32.mrb[0].mxu0
      %v2802 = vpop.f32.mrb[0].mxu0
      %v2803 = vadd.f32 0.0, %v2802
      %v2804 = vpop.f32.mrb[0].mxu0
      %2805 = vmatprep.mubr.bf16.mxu0 0
      %2806 = vmatmul.mubr.bf16.gmra.mrb[0].mxu0 %v2602
      %v2807 = vpop.f32.mrb[0].mxu0
      %v2808 = vadd.f32 0.0, %v2807
      %v2809 = vpop.f32.mrb[0].mxu0
      %v2810 = vpop.f32.mrb[0].mxu0
      %v2811 = vadd.f32 0.0, %v2810
      %v2812 = vpop.f32.mrb[0].mxu0
      %2813 = vmatprep.mubr.bf16.mxu0 0
      %2814 = vmatmul.mubr.bf16.gmra.mrb[0].mxu0 %v2605
      %v2815 = vpop.f32.mrb[0].mxu0
      %v2816 = vadd.f32 0.0, %v2815
      %v2817 = vpop.f32.mrb[0].mxu0
      %v2818 = vpop.f32.mrb[0].mxu0
      %v2819 = vadd.f32 0.0, %v2818
      %v2820 = vpop.f32.mrb[0].mxu0
      %2821 = vmatprep.mubr.bf16.mxu0 0
      %2822 = vmatmul.mubr.bf16.gmra.mrb[0].mxu0 %v2608
      %v2823 = vpop.f32.mrb[0].mxu0
      %v2824 = vadd.f32 0.0, %v2823
      %v2825 = vpop.f32.mrb[0].mxu0
      %v2826 = vpop.f32.mrb[0].mxu0
      %v2827 = vadd.f32 0.0, %v2826
      %v2828 = vpop.f32.mrb[0].mxu0
      %2829 = vmatprep.mubr.bf16.mxu0 0
      %2830 = vmatmul.mubr.bf16.gmra.mrb[0].mxu0 %v2611
      %v2831 = vpop.f32.mrb[0].mxu0
      %v2832 = vadd.f32 0.0, %v2831
      %v2833 = vpop.f32.mrb[0].mxu0
      %v2834 = vpop.f32.mrb[0].mxu0
      %v2835 = vadd.f32 0.0, %v2834
      %v2836 = vpop.f32.mrb[0].mxu0
      %2837 = vmatprep.mubr.bf16.mxu0 0
      %2838 = vmatmul.mubr.bf16.gmra.mrb[0].mxu0 %v2614
      %v2839 = vpop.f32.mrb[0].mxu0
      %v2840 = vadd.f32 0.0, %v2839
      %v2841 = vpop.f32.mrb[0].mxu0
      %v2842 = vpop.f32.mrb[0].mxu0
      %v2843 = vadd.f32 0.0, %v2842
      %v2844 = vpop.f32.mrb[0].mxu0
      %2845 = vmatprep.mubr.bf16.mxu0 0
      %2846 = vmatmul.mubr.bf16.gmra.mrb[0].mxu0 %v2617
      %v2847 = vpop.f32.mrb[0].mxu0
      %v2848 = vadd.f32 0.0, %v2847
      %v2849 = vpop.f32.mrb[0].mxu0
      %v2850 = vpop.f32.mrb[0].mxu0
      %v2851 = vadd.f32 0.0, %v2850
      %v2852 = vpop.f32.mrb[0].mxu0
      %2853 = vmatprep.mubr.bf16.mxu0 0
      %2854 = vmatmul.mubr.bf16.gmra.mrb[0].mxu0 %v2620
      %v2855 = vpop.f32.mrb[0].mxu0
      %v2856 = vadd.f32 0.0, %v2855
      %v2857 = vpop.f32.mrb[0].mxu0
      %v2858 = vpop.f32.mrb[0].mxu0
      %v2859 = vadd.f32 0.0, %v2858
      %v2860 = vpop.f32.mrb[0].mxu0
      %2861 = vdwg.mxu0
      %v2862 = vadd.f32 %v2493, %v2736
      %v2863 = vadd.f32 %v2494, %v2739
      %v2864 = vadd.f32 %v2495, %v2744
      %v2865 = vadd.f32 %v2496, %v2747
      %v2866 = vadd.f32 %v2497, %v2752
      %v2867 = vadd.f32 %v2498, %v2755
      %v2868 = vadd.f32 %v2499, %v2760
      %v2869 = vadd.f32 %v2500, %v2763
      %v2870 = vadd.f32 %v2501, %v2768
      %v2871 = vadd.f32 %v2502, %v2771
      %v2872 = vadd.f32 %v2503, %v2776
      %v2873 = vadd.f32 %v2504, %v2779
      %v2874 = vadd.f32 %v2505, %v2784
      %v2875 = vadd.f32 %v2506, %v2787
      %v2876 = vadd.f32 %v2507, %v2792
      %v2877 = vadd.f32 %v2508, %v2795
      %v2878 = vadd.f32 %v2509, %v2800
      %v2879 = vadd.f32 %v2510, %v2803
      %v2880 = vadd.f32 %v2511, %v2808
      %v2881 = vadd.f32 %v2512, %v2811
      %v2882 = vadd.f32 %v2513, %v2816
      %v2883 = vadd.f32 %v2514, %v2819
      %v2884 = vadd.f32 %v2515, %v2824
      %v2885 = vadd.f32 %v2516, %v2827
      %v2886 = vadd.f32 %v2517, %v2832
      %v2887 = vadd.f32 %v2518, %v2835
      %v2888 = vadd.f32 %v2519, %v2840
      %v2889 = vadd.f32 %v2520, %v2843
      %v2890 = vadd.f32 %v2521, %v2848
      %v2891 = vadd.f32 %v2522, %v2851
      %v2892 = vadd.f32 %v2523, %v2856
      %v2893 = vadd.f32 %v2524, %v2859
      %s2894 = scalar_lea.vmem [#allocation2], 32
      %v2895 = vld [vmem:[%s2894] sm:$0xff]
      %v2896 = vld [vmem:[%s2894 + $0x10] sm:$0xff]
      %v2897 = vld [vmem:[%s2894 + $0x20] sm:$0xff]
      %v2898 = vld [vmem:[%s2894 + $0x30] sm:$0xff]
      %v2899 = vld [vmem:[%s2894 + $0x40] sm:$0xff]
      %v2900 = vld [vmem:[%s2894 + $0x50] sm:$0xff]
      %v2901 = vld [vmem:[%s2894 + $0x60] sm:$0xff]
      %v2902 = vld [vmem:[%s2894 + $0x70] sm:$0xff]
      %v2903 = vld [vmem:[%s2894 + $0x80] sm:$0xff]
      %v2904 = vld [vmem:[%s2894 + $0x90] sm:$0xff]
      %v2905 = vld [vmem:[%s2894 + $0xa0] sm:$0xff]
      %v2906 = vld [vmem:[%s2894 + $0xb0] sm:$0xff]
      %v2907 = vld [vmem:[%s2894 + $0xc0] sm:$0xff]
      %v2908 = vld [vmem:[%s2894 + $0xd0] sm:$0xff]
      %v2909 = vld [vmem:[%s2894 + $0xe0] sm:$0xff]
      %v2910 = vld [vmem:[%s2894 + $0xf0] sm:$0xff]
      %v2911 = vld [vmem:[%s1 + $0x180] sm:$0xf]
      %v2912 = vld [vmem:[%s1 + $0x184] sm:$0xf]
      %v2913 = vld [vmem:[%s1 + $0x188] sm:$0xf]
      %v2914 = vld [vmem:[%s1 + $0x18c] sm:$0xf]
      %v2915 = vld [vmem:[%s1 + $0x190] sm:$0xf]
      %v2916 = vld [vmem:[%s1 + $0x194] sm:$0xf]
      %v2917 = vld [vmem:[%s1 + $0x198] sm:$0xf]
      %v2918 = vld [vmem:[%s1 + $0x19c] sm:$0xf]
      %v2919 = vld [vmem:[%s1 + $0x1a0] sm:$0xf]
      %v2920 = vld [vmem:[%s1 + $0x1a4] sm:$0xf]
      %v2921 = vld [vmem:[%s1 + $0x1a8] sm:$0xf]
      %v2922 = vld [vmem:[%s1 + $0x1ac] sm:$0xf]
      %v2923 = vld [vmem:[%s1 + $0x1b0] sm:$0xf]
      %v2924 = vld [vmem:[%s1 + $0x1b4] sm:$0xf]
      %v2925 = vld [vmem:[%s1 + $0x1b8] sm:$0xf]
      %v2926 = vld [vmem:[%s1 + $0x1bc] sm:$0xf]
      %v2943 = vunpack.c.l.b16 %v2911
      %v2944 = vunpack.c.l.b16 %v2912
      %v2945 = vunpack.c.l.b16 %v2913
      %v2946 = vunpack.c.l.b16 %v2914
      %v2947 = vunpack.c.l.b16 %v2915
      %v2948 = vunpack.c.l.b16 %v2916
      %v2949 = vunpack.c.l.b16 %v2917
      %v2950 = vunpack.c.l.b16 %v2918
      %v2951 = vunpack.c.l.b16 %v2919
      %v2952 = vunpack.c.l.b16 %v2920
      %v2953 = vunpack.c.l.b16 %v2921
      %v2954 = vunpack.c.l.b16 %v2922
      %v2955 = vunpack.c.l.b16 %v2923
      %v2956 = vunpack.c.l.b16 %v2924
      %v2957 = vunpack.c.l.b16 %v2925
      %v2958 = vunpack.c.l.b16 %v2926
      %v2959 = vpack.c.b16 %v2944, %v2943
      %v2960 = vpack.c.b16 %v2946, %v2945
      %v2961 = vpack.c.b16 %v2948, %v2947
      %v2962 = vpack.c.b16 %v2950, %v2949
      %v2963 = vpack.c.b16 %v2952, %v2951
      %v2964 = vpack.c.b16 %v2954, %v2953
      %v2965 = vpack.c.b16 %v2956, %v2955
      %v2966 = vpack.c.b16 %v2958, %v2957
      %2975 = vmatprep.subr.bf16.mxu0 0
      %2976 = vmatpush1.bf16.msra.mxu0 %v2959
      %2977 = vmatprep.subr.bf16.mxu0 0
      %2978 = vmatpush1.bf16.msra.mxu0 %v2960
      %2979 = vmatprep.subr.bf16.mxu0 0
      %2980 = vmatpush1.bf16.msra.mxu0 %v2961
      %2981 = vmatprep.subr.bf16.mxu0 0
      %2982 = vmatpush1.bf16.msra.mxu0 %v2962
      %2983 = vmatprep.subr.bf16.mxu0 0
      %2984 = vmatpush1.bf16.msra.mxu0 %v2963
      %2985 = vmatprep.subr.bf16.mxu0 0
      %2986 = vmatpush1.bf16.msra.mxu0 %v2964
      %2987 = vmatprep.subr.bf16.mxu0 0
      %2988 = vmatpush1.bf16.msra.mxu0 %v2965
      %2989 = vmatprep.subr.bf16.mxu0 0
      %2990 = vmatpush1.bf16.msra.mxu0 %v2966
      %2991 = vmatprep.subr.bf16.mxu0 0
      %2992 = vmatpush1.bf16.msra.mxu0 0
      %2993 = vmatprep.subr.bf16.mxu0 0
      %2994 = vmatpush1.bf16.msra.mxu0 0
      %2995 = vmatprep.subr.bf16.mxu0 0
      %2996 = vmatpush1.bf16.msra.mxu0 0
      %2997 = vmatprep.subr.bf16.mxu0 0
      %2998 = vmatpush1.bf16.msra.mxu0 0
      %2999 = vmatprep.subr.bf16.mxu0 0
      %3000 = vmatpush1.bf16.msra.mxu0 0
      %3001 = vmatprep.subr.bf16.mxu0 0
      %3002 = vmatpush1.bf16.msra.mxu0 0
      %3003 = vmatprep.subr.bf16.mxu0 0
      %3004 = vmatpush1.bf16.msra.mxu0 0
      %3005 = vmatprep.subr.bf16.mxu0 0
      %3006 = vmatpush1.bf16.msra.mxu0 0
      %3007 = vmatprep.mubr.bf16.mxu0 0
      %3008 = vmatmul.mubr.bf16.gmra.mrb[0].mxu0 %v2895
      %v3009 = vpop.f32.mrb[0].mxu0
      %v3010 = vadd.f32 0.0, %v3009
      %v3011 = vpop.f32.mrb[0].mxu0
      %v3012 = vpop.f32.mrb[0].mxu0
      %v3013 = vadd.f32 0.0, %v3012
      %v3014 = vpop.f32.mrb[0].mxu0
      %3015 = vmatprep.mubr.bf16.mxu0 0
      %3016 = vmatmul.mubr.bf16.gmra.mrb[0].mxu0 %v2896
      %v3017 = vpop.f32.mrb[0].mxu0
      %v3018 = vadd.f32 0.0, %v3017
      %v3019 = vpop.f32.mrb[0].mxu0
      %v3020 = vpop.f32.mrb[0].mxu0
      %v3021 = vadd.f32 0.0, %v3020
      %v3022 = vpop.f32.mrb[0].mxu0
      %3023 = vmatprep.mubr.bf16.mxu0 0
      %3024 = vmatmul.mubr.bf16.gmra.mrb[0].mxu0 %v2897
      %v3025 = vpop.f32.mrb[0].mxu0
      %v3026 = vadd.f32 0.0, %v3025
      %v3027 = vpop.f32.mrb[0].mxu0
      %v3028 = vpop.f32.mrb[0].mxu0
      %v3029 = vadd.f32 0.0, %v3028
      %v3030 = vpop.f32.mrb[0].mxu0
      %3031 = vmatprep.mubr.bf16.mxu0 0
      %3032 = vmatmul.mubr.bf16.gmra.mrb[0].mxu0 %v2898
      %v3033 = vpop.f32.mrb[0].mxu0
      %v3034 = vadd.f32 0.0, %v3033
      %v3035 = vpop.f32.mrb[0].mxu0
      %v3036 = vpop.f32.mrb[0].mxu0
      %v3037 = vadd.f32 0.0, %v3036
      %v3038 = vpop.f32.mrb[0].mxu0
      %3039 = vmatprep.mubr.bf16.mxu0 0
      %3040 = vmatmul.mubr.bf16.gmra.mrb[0].mxu0 %v2899
      %v3041 = vpop.f32.mrb[0].mxu0
      %v3042 = vadd.f32 0.0, %v3041
      %v3043 = vpop.f32.mrb[0].mxu0
      %v3044 = vpop.f32.mrb[0].mxu0
      %v3045 = vadd.f32 0.0, %v3044
      %v3046 = vpop.f32.mrb[0].mxu0
      %3047 = vmatprep.mubr.bf16.mxu0 0
      %3048 = vmatmul.mubr.bf16.gmra.mrb[0].mxu0 %v2900
      %v3049 = vpop.f32.mrb[0].mxu0
      %v3050 = vadd.f32 0.0, %v3049
      %v3051 = vpop.f32.mrb[0].mxu0
      %v3052 = vpop.f32.mrb[0].mxu0
      %v3053 = vadd.f32 0.0, %v3052
      %v3054 = vpop.f32.mrb[0].mxu0
      %3055 = vmatprep.mubr.bf16.mxu0 0
      %3056 = vmatmul.mubr.bf16.gmra.mrb[0].mxu0 %v2901
      %v3057 = vpop.f32.mrb[0].mxu0
      %v3058 = vadd.f32 0.0, %v3057
      %v3059 = vpop.f32.mrb[0].mxu0
      %v3060 = vpop.f32.mrb[0].mxu0
      %v3061 = vadd.f32 0.0, %v3060
      %v3062 = vpop.f32.mrb[0].mxu0
      %3063 = vmatprep.mubr.bf16.mxu0 0
      %3064 = vmatmul.mubr.bf16.gmra.mrb[0].mxu0 %v2902
      %v3065 = vpop.f32.mrb[0].mxu0
      %v3066 = vadd.f32 0.0, %v3065
      %v3067 = vpop.f32.mrb[0].mxu0
      %v3068 = vpop.f32.mrb[0].mxu0
      %v3069 = vadd.f32 0.0, %v3068
      %v3070 = vpop.f32.mrb[0].mxu0
      %3071 = vmatprep.mubr.bf16.mxu0 0
      %3072 = vmatmul.mubr.bf16.gmra.mrb[0].mxu0 %v2903
      %v3073 = vpop.f32.mrb[0].mxu0
      %v3074 = vadd.f32 0.0, %v3073
      %v3075 = vpop.f32.mrb[0].mxu0
      %v3076 = vpop.f32.mrb[0].mxu0
      %v3077 = vadd.f32 0.0, %v3076
      %v3078 = vpop.f32.mrb[0].mxu0
      %3079 = vmatprep.mubr.bf16.mxu0 0
      %3080 = vmatmul.mubr.bf16.gmra.mrb[0].mxu0 %v2904
      %v3081 = vpop.f32.mrb[0].mxu0
      %v3082 = vadd.f32 0.0, %v3081
      %v3083 = vpop.f32.mrb[0].mxu0
      %v3084 = vpop.f32.mrb[0].mxu0
      %v3085 = vadd.f32 0.0, %v3084
      %v3086 = vpop.f32.mrb[0].mxu0
      %3087 = vmatprep.mubr.bf16.mxu0 0
      %3088 = vmatmul.mubr.bf16.gmra.mrb[0].mxu0 %v2905
      %v3089 = vpop.f32.mrb[0].mxu0
      %v3090 = vadd.f32 0.0, %v3089
      %v3091 = vpop.f32.mrb[0].mxu0
      %v3092 = vpop.f32.mrb[0].mxu0
      %v3093 = vadd.f32 0.0, %v3092
      %v3094 = vpop.f32.mrb[0].mxu0
      %3095 = vmatprep.mubr.bf16.mxu0 0
      %3096 = vmatmul.mubr.bf16.gmra.mrb[0].mxu0 %v2906
      %v3097 = vpop.f32.mrb[0].mxu0
      %v3098 = vadd.f32 0.0, %v3097
      %v3099 = vpop.f32.mrb[0].mxu0
      %v3100 = vpop.f32.mrb[0].mxu0
      %v3101 = vadd.f32 0.0, %v3100
      %v3102 = vpop.f32.mrb[0].mxu0
      %3103 = vmatprep.mubr.bf16.mxu0 0
      %3104 = vmatmul.mubr.bf16.gmra.mrb[0].mxu0 %v2907
      %v3105 = vpop.f32.mrb[0].mxu0
      %v3106 = vadd.f32 0.0, %v3105
      %v3107 = vpop.f32.mrb[0].mxu0
      %v3108 = vpop.f32.mrb[0].mxu0
      %v3109 = vadd.f32 0.0, %v3108
      %v3110 = vpop.f32.mrb[0].mxu0
      %3111 = vmatprep.mubr.bf16.mxu0 0
      %3112 = vmatmul.mubr.bf16.gmra.mrb[0].mxu0 %v2908
      %v3113 = vpop.f32.mrb[0].mxu0
      %v3114 = vadd.f32 0.0, %v3113
      %v3115 = vpop.f32.mrb[0].mxu0
      %v3116 = vpop.f32.mrb[0].mxu0
      %v3117 = vadd.f32 0.0, %v3116
      %v3118 = vpop.f32.mrb[0].mxu0
      %3119 = vmatprep.mubr.bf16.mxu0 0
      %3120 = vmatmul.mubr.bf16.gmra.mrb[0].mxu0 %v2909
      %v3121 = vpop.f32.mrb[0].mxu0
      %v3122 = vadd.f32 0.0, %v3121
      %v3123 = vpop.f32.mrb[0].mxu0
      %v3124 = vpop.f32.mrb[0].mxu0
      %v3125 = vadd.f32 0.0, %v3124
      %v3126 = vpop.f32.mrb[0].mxu0
      %3127 = vmatprep.mubr.bf16.mxu0 0
      %3128 = vmatmul.mubr.bf16.gmra.mrb[0].mxu0 %v2910
      %v3129 = vpop.f32.mrb[0].mxu0
      %v3130 = vadd.f32 0.0, %v3129
      %v3131 = vpop.f32.mrb[0].mxu0
      %v3132 = vpop.f32.mrb[0].mxu0
      %v3133 = vadd.f32 0.0, %v3132
      %v3134 = vpop.f32.mrb[0].mxu0
      %3135 = vdwg.mxu0
      %v3136 = vadd.f32 %v2862, %v3010
      %v3137 = vadd.f32 %v2863, %v3013
      %v3138 = vadd.f32 %v2864, %v3018
      %v3139 = vadd.f32 %v2865, %v3021
      %v3140 = vadd.f32 %v2866, %v3026
      %v3141 = vadd.f32 %v2867, %v3029
      %v3142 = vadd.f32 %v2868, %v3034
      %v3143 = vadd.f32 %v2869, %v3037
      %v3144 = vadd.f32 %v2870, %v3042
      %v3145 = vadd.f32 %v2871, %v3045
      %v3146 = vadd.f32 %v2872, %v3050
      %v3147 = vadd.f32 %v2873, %v3053
      %v3148 = vadd.f32 %v2874, %v3058
      %v3149 = vadd.f32 %v2875, %v3061
      %v3150 = vadd.f32 %v2876, %v3066
      %v3151 = vadd.f32 %v2877, %v3069
      %v3152 = vadd.f32 %v2878, %v3074
      %v3153 = vadd.f32 %v2879, %v3077
      %v3154 = vadd.f32 %v2880, %v3082
      %v3155 = vadd.f32 %v2881, %v3085
      %v3156 = vadd.f32 %v2882, %v3090
      %v3157 = vadd.f32 %v2883, %v3093
      %v3158 = vadd.f32 %v2884, %v3098
      %v3159 = vadd.f32 %v2885, %v3101
      %v3160 = vadd.f32 %v2886, %v3106
      %v3161 = vadd.f32 %v2887, %v3109
      %v3162 = vadd.f32 %v2888, %v3114
      %v3163 = vadd.f32 %v2889, %v3117
      %v3164 = vadd.f32 %v2890, %v3122
      %v3165 = vadd.f32 %v2891, %v3125
      %v3166 = vadd.f32 %v2892, %v3130
      %v3167 = vadd.f32 %v2893, %v3133
      %v3168 = vld [vmem:[%s2894] sm:$0xff]
      %v3169 = vld [vmem:[%s2894 + $0x8] sm:$0x1]
      %v3170 = vld [vmem:[%s2894 + $0x10] sm:$0xff]
      %v3171 = vld [vmem:[%s2894 + $0x18] sm:$0x1]
      %v3172 = vld [vmem:[%s2894 + $0x20] sm:$0xff]
      %v3173 = vld [vmem:[%s2894 + $0x28] sm:$0x1]
      %v3174 = vld [vmem:[%s2894 + $0x30] sm:$0xff]
      %v3175 = vld [vmem:[%s2894 + $0x38] sm:$0x1]
      %v3176 = vld [vmem:[%s2894 + $0x40] sm:$0xff]
      %v3177 = vld [vmem:[%s2894 + $0x48] sm:$0x1]
      %v3178 = vld [vmem:[%s2894 + $0x50] sm:$0xff]
      %v3179 = vld [vmem:[%s2894 + $0x58] sm:$0x1]
      %v3180 = vld [vmem:[%s2894 + $0x60] sm:$0xff]
      %v3181 = vld [vmem:[%s2894 + $0x68] sm:$0x1]
      %v3182 = vld [vmem:[%s2894 + $0x70] sm:$0xff]
      %v3183 = vld [vmem:[%s2894 + $0x78] sm:$0x1]
      %v3184 = vld [vmem:[%s2894 + $0x80] sm:$0xff]
      %v3185 = vld [vmem:[%s2894 + $0x88] sm:$0x1]
      %v3186 = vld [vmem:[%s2894 + $0x90] sm:$0xff]
      %v3187 = vld [vmem:[%s2894 + $0x98] sm:$0x1]
      %v3188 = vld [vmem:[%s2894 + $0xa0] sm:$0xff]
      %v3189 = vld [vmem:[%s2894 + $0xa8] sm:$0x1]
      %v3190 = vld [vmem:[%s2894 + $0xb0] sm:$0xff]
      %v3191 = vld [vmem:[%s2894 + $0xb8] sm:$0x1]
      %v3192 = vld [vmem:[%s2894 + $0xc0] sm:$0xff]
      %v3193 = vld [vmem:[%s2894 + $0xc8] sm:$0x1]
      %v3194 = vld [vmem:[%s2894 + $0xd0] sm:$0xff]
      %v3195 = vld [vmem:[%s2894 + $0xd8] sm:$0x1]
      %v3196 = vld [vmem:[%s2894 + $0xe0] sm:$0xff]
      %v3197 = vld [vmem:[%s2894 + $0xe8] sm:$0x1]
      %v3198 = vld [vmem:[%s2894 + $0xf0] sm:$0xff]
      %v3199 = vld [vmem:[%s2894 + $0xf8] sm:$0x1]
      %v3201 = vshrl.u32 %v3168, 16
      %v3203 = vshll.u32 %v3168, 16
      %v3205 = vrot.slane %v3203, 1
      %v3206 = vor.u32 %v3201, %v3205
      %v3208 = vshll.u32 %v3169, 16
      %v3210 = vrot.slane %v3208, 1
      %v3211 = vsel %vm742, %v3206, %v3210
      %v3213 = vshrl.u32 %v3170, 16
      %v3215 = vshll.u32 %v3170, 16
      %v3217 = vrot.slane %v3215, 1
      %v3218 = vor.u32 %v3213, %v3217
      %v3220 = vshll.u32 %v3171, 16
      %v3222 = vrot.slane %v3220, 1
      %v3223 = vsel %vm742, %v3218, %v3222
      %v3225 = vshrl.u32 %v3172, 16
      %v3227 = vshll.u32 %v3172, 16
      %v3229 = vrot.slane %v3227, 1
      %v3230 = vor.u32 %v3225, %v3229
      %v3232 = vshll.u32 %v3173, 16
      %v3234 = vrot.slane %v3232, 1
      %v3235 = vsel %vm742, %v3230, %v3234
      %v3237 = vshrl.u32 %v3174, 16
      %v3239 = vshll.u32 %v3174, 16
      %v3241 = vrot.slane %v3239, 1
      %v3242 = vor.u32 %v3237, %v3241
      %v3244 = vshll.u32 %v3175, 16
      %v3246 = vrot.slane %v3244, 1
      %v3247 = vsel %vm742, %v3242, %v3246
      %v3249 = vshrl.u32 %v3176, 16
      %v3251 = vshll.u32 %v3176, 16
      %v3253 = vrot.slane %v3251, 1
      %v3254 = vor.u32 %v3249, %v3253
      %v3256 = vshll.u32 %v3177, 16
      %v3258 = vrot.slane %v3256, 1
      %v3259 = vsel %vm742, %v3254, %v3258
      %v3261 = vshrl.u32 %v3178, 16
      %v3263 = vshll.u32 %v3178, 16
      %v3265 = vrot.slane %v3263, 1
      %v3266 = vor.u32 %v3261, %v3265
      %v3268 = vshll.u32 %v3179, 16
      %v3270 = vrot.slane %v3268, 1
      %v3271 = vsel %vm742, %v3266, %v3270
      %v3273 = vshrl.u32 %v3180, 16
      %v3275 = vshll.u32 %v3180, 16
      %v3277 = vrot.slane %v3275, 1
      %v3278 = vor.u32 %v3273, %v3277
      %v3280 = vshll.u32 %v3181, 16
      %v3282 = vrot.slane %v3280, 1
      %v3283 = vsel %vm742, %v3278, %v3282
      %v3285 = vshrl.u32 %v3182, 16
      %v3287 = vshll.u32 %v3182, 16
      %v3289 = vrot.slane %v3287, 1
      %v3290 = vor.u32 %v3285, %v3289
      %v3292 = vshll.u32 %v3183, 16
      %v3294 = vrot.slane %v3292, 1
      %v3295 = vsel %vm742, %v3290, %v3294
      %v3297 = vshrl.u32 %v3184, 16
      %v3299 = vshll.u32 %v3184, 16
      %v3301 = vrot.slane %v3299, 1
      %v3302 = vor.u32 %v3297, %v3301
      %v3304 = vshll.u32 %v3185, 16
      %v3306 = vrot.slane %v3304, 1
      %v3307 = vsel %vm742, %v3302, %v3306
      %v3309 = vshrl.u32 %v3186, 16
      %v3311 = vshll.u32 %v3186, 16
      %v3313 = vrot.slane %v3311, 1
      %v3314 = vor.u32 %v3309, %v3313
      %v3316 = vshll.u32 %v3187, 16
      %v3318 = vrot.slane %v3316, 1
      %v3319 = vsel %vm742, %v3314, %v3318
      %v3321 = vshrl.u32 %v3188, 16
      %v3323 = vshll.u32 %v3188, 16
      %v3325 = vrot.slane %v3323, 1
      %v3326 = vor.u32 %v3321, %v3325
      %v3328 = vshll.u32 %v3189, 16
      %v3330 = vrot.slane %v3328, 1
      %v3331 = vsel %vm742, %v3326, %v3330
      %v3333 = vshrl.u32 %v3190, 16
      %v3335 = vshll.u32 %v3190, 16
      %v3337 = vrot.slane %v3335, 1
      %v3338 = vor.u32 %v3333, %v3337
      %v3340 = vshll.u32 %v3191, 16
      %v3342 = vrot.slane %v3340, 1
      %v3343 = vsel %vm742, %v3338, %v3342
      %v3345 = vshrl.u32 %v3192, 16
      %v3347 = vshll.u32 %v3192, 16
      %v3349 = vrot.slane %v3347, 1
      %v3350 = vor.u32 %v3345, %v3349
      %v3352 = vshll.u32 %v3193, 16
      %v3354 = vrot.slane %v3352, 1
      %v3355 = vsel %vm742, %v3350, %v3354
      %v3357 = vshrl.u32 %v3194, 16
      %v3359 = vshll.u32 %v3194, 16
      %v3361 = vrot.slane %v3359, 1
      %v3362 = vor.u32 %v3357, %v3361
      %v3364 = vshll.u32 %v3195, 16
      %v3366 = vrot.slane %v3364, 1
      %v3367 = vsel %vm742, %v3362, %v3366
      %v3369 = vshrl.u32 %v3196, 16
      %v3371 = vshll.u32 %v3196, 16
      %v3373 = vrot.slane %v3371, 1
      %v3374 = vor.u32 %v3369, %v3373
      %v3376 = vshll.u32 %v3197, 16
      %v3378 = vrot.slane %v3376, 1
      %v3379 = vsel %vm742, %v3374, %v3378
      %v3381 = vshrl.u32 %v3198, 16
      %v3383 = vshll.u32 %v3198, 16
      %v3385 = vrot.slane %v3383, 1
      %v3386 = vor.u32 %v3381, %v3385
      %v3388 = vshll.u32 %v3199, 16
      %v3390 = vrot.slane %v3388, 1
      %v3391 = vsel %vm742, %v3386, %v3390
      %v3408 = vld [vmem:[%s1 + $0x1c0] sm:$0xf]
      %v3409 = vld [vmem:[%s1 + $0x1c4] sm:$0xf]
      %v3410 = vld [vmem:[%s1 + $0x1c8] sm:$0xf]
      %v3411 = vld [vmem:[%s1 + $0x1cc] sm:$0xf]
      %v3412 = vld [vmem:[%s1 + $0x1d0] sm:$0xf]
      %v3413 = vld [vmem:[%s1 + $0x1d4] sm:$0xf]
      %v3414 = vld [vmem:[%s1 + $0x1d8] sm:$0xf]
      %v3415 = vld [vmem:[%s1 + $0x1dc] sm:$0xf]
      %v3416 = vld [vmem:[%s1 + $0x1e0] sm:$0xf]
      %v3417 = vld [vmem:[%s1 + $0x1e4] sm:$0xf]
      %v3418 = vld [vmem:[%s1 + $0x1e8] sm:$0xf]
      %v3419 = vld [vmem:[%s1 + $0x1ec] sm:$0xf]
      %v3420 = vld [vmem:[%s1 + $0x1f0] sm:$0xf]
      %v3421 = vld [vmem:[%s1 + $0x1f4] sm:$0xf]
      %v3422 = vld [vmem:[%s1 + $0x1f8] sm:$0xf]
      %v3423 = vld [vmem:[%s1 + $0x1fc] sm:$0xf]
      %v3440 = vunpack.c.l.b16 %v3408
      %v3441 = vunpack.c.l.b16 %v3409
      %v3442 = vunpack.c.l.b16 %v3410
      %v3443 = vunpack.c.l.b16 %v3411
      %v3444 = vunpack.c.l.b16 %v3412
      %v3445 = vunpack.c.l.b16 %v3413
      %v3446 = vunpack.c.l.b16 %v3414
      %v3447 = vunpack.c.l.b16 %v3415
      %v3448 = vunpack.c.l.b16 %v3416
      %v3449 = vunpack.c.l.b16 %v3417
      %v3450 = vunpack.c.l.b16 %v3418
      %v3451 = vunpack.c.l.b16 %v3419
      %v3452 = vunpack.c.l.b16 %v3420
      %v3453 = vunpack.c.l.b16 %v3421
      %v3454 = vunpack.c.l.b16 %v3422
      %v3455 = vunpack.c.l.b16 %v3423
      %v3456 = vpack.c.b16 %v3441, %v3440
      %v3457 = vpack.c.b16 %v3443, %v3442
      %v3458 = vpack.c.b16 %v3445, %v3444
      %v3459 = vpack.c.b16 %v3447, %v3446
      %v3460 = vpack.c.b16 %v3449, %v3448
      %v3461 = vpack.c.b16 %v3451, %v3450
      %v3462 = vpack.c.b16 %v3453, %v3452
      %v3463 = vpack.c.b16 %v3455, %v3454
      %3472 = vmatprep.subr.bf16.mxu0 0
      %3473 = vmatpush1.bf16.msra.mxu0 %v3456
      %3474 = vmatprep.subr.bf16.mxu0 0
      %3475 = vmatpush1.bf16.msra.mxu0 %v3457
      %3476 = vmatprep.subr.bf16.mxu0 0
      %3477 = vmatpush1.bf16.msra.mxu0 %v3458
      %3478 = vmatprep.subr.bf16.mxu0 0
      %3479 = vmatpush1.bf16.msra.mxu0 %v3459
      %3480 = vmatprep.subr.bf16.mxu0 0
      %3481 = vmatpush1.bf16.msra.mxu0 %v3460
      %3482 = vmatprep.subr.bf16.mxu0 0
      %3483 = vmatpush1.bf16.msra.mxu0 %v3461
      %3484 = vmatprep.subr.bf16.mxu0 0
      %3485 = vmatpush1.bf16.msra.mxu0 %v3462
      %3486 = vmatprep.subr.bf16.mxu0 0
      %3487 = vmatpush1.bf16.msra.mxu0 %v3463
      %3488 = vmatprep.subr.bf16.mxu0 0
      %3489 = vmatpush1.bf16.msra.mxu0 0
      %3490 = vmatprep.subr.bf16.mxu0 0
      %3491 = vmatpush1.bf16.msra.mxu0 0
      %3492 = vmatprep.subr.bf16.mxu0 0
      %3493 = vmatpush1.bf16.msra.mxu0 0
      %3494 = vmatprep.subr.bf16.mxu0 0
      %3495 = vmatpush1.bf16.msra.mxu0 0
      %3496 = vmatprep.subr.bf16.mxu0 0
      %3497 = vmatpush1.bf16.msra.mxu0 0
      %3498 = vmatprep.subr.bf16.mxu0 0
      %3499 = vmatpush1.bf16.msra.mxu0 0
      %3500 = vmatprep.subr.bf16.mxu0 0
      %3501 = vmatpush1.bf16.msra.mxu0 0
      %3502 = vmatprep.subr.bf16.mxu0 0
      %3503 = vmatpush1.bf16.msra.mxu0 0
      %3504 = vmatprep.mubr.bf16.mxu0 0
      %3505 = vmatmul.mubr.bf16.gmra.mrb[0].mxu0 %v3211
      %v3506 = vpop.f32.mrb[0].mxu0
      %v3507 = vadd.f32 0.0, %v3506
      %v3508 = vpop.f32.mrb[0].mxu0
      %v3509 = vpop.f32.mrb[0].mxu0
      %v3510 = vadd.f32 0.0, %v3509
      %v3511 = vpop.f32.mrb[0].mxu0
      %3512 = vmatprep.mubr.bf16.mxu0 0
      %3513 = vmatmul.mubr.bf16.gmra.mrb[0].mxu0 %v3223
      %v3514 = vpop.f32.mrb[0].mxu0
      %v3515 = vadd.f32 0.0, %v3514
      %v3516 = vpop.f32.mrb[0].mxu0
      %v3517 = vpop.f32.mrb[0].mxu0
      %v3518 = vadd.f32 0.0, %v3517
      %v3519 = vpop.f32.mrb[0].mxu0
      %3520 = vmatprep.mubr.bf16.mxu0 0
      %3521 = vmatmul.mubr.bf16.gmra.mrb[0].mxu0 %v3235
      %v3522 = vpop.f32.mrb[0].mxu0
      %v3523 = vadd.f32 0.0, %v3522
      %v3524 = vpop.f32.mrb[0].mxu0
      %v3525 = vpop.f32.mrb[0].mxu0
      %v3526 = vadd.f32 0.0, %v3525
      %v3527 = vpop.f32.mrb[0].mxu0
      %3528 = vmatprep.mubr.bf16.mxu0 0
      %3529 = vmatmul.mubr.bf16.gmra.mrb[0].mxu0 %v3247
      %v3530 = vpop.f32.mrb[0].mxu0
      %v3531 = vadd.f32 0.0, %v3530
      %v3532 = vpop.f32.mrb[0].mxu0
      %v3533 = vpop.f32.mrb[0].mxu0
      %v3534 = vadd.f32 0.0, %v3533
      %v3535 = vpop.f32.mrb[0].mxu0
      %3536 = vmatprep.mubr.bf16.mxu0 0
      %3537 = vmatmul.mubr.bf16.gmra.mrb[0].mxu0 %v3259
      %v3538 = vpop.f32.mrb[0].mxu0
      %v3539 = vadd.f32 0.0, %v3538
      %v3540 = vpop.f32.mrb[0].mxu0
      %v3541 = vpop.f32.mrb[0].mxu0
      %v3542 = vadd.f32 0.0, %v3541
      %v3543 = vpop.f32.mrb[0].mxu0
      %3544 = vmatprep.mubr.bf16.mxu0 0
      %3545 = vmatmul.mubr.bf16.gmra.mrb[0].mxu0 %v3271
      %v3546 = vpop.f32.mrb[0].mxu0
      %v3547 = vadd.f32 0.0, %v3546
      %v3548 = vpop.f32.mrb[0].mxu0
      %v3549 = vpop.f32.mrb[0].mxu0
      %v3550 = vadd.f32 0.0, %v3549
      %v3551 = vpop.f32.mrb[0].mxu0
      %3552 = vmatprep.mubr.bf16.mxu0 0
      %3553 = vmatmul.mubr.bf16.gmra.mrb[0].mxu0 %v3283
      %v3554 = vpop.f32.mrb[0].mxu0
      %v3555 = vadd.f32 0.0, %v3554
      %v3556 = vpop.f32.mrb[0].mxu0
      %v3557 = vpop.f32.mrb[0].mxu0
      %v3558 = vadd.f32 0.0, %v3557
      %v3559 = vpop.f32.mrb[0].mxu0
      %3560 = vmatprep.mubr.bf16.mxu0 0
      %3561 = vmatmul.mubr.bf16.gmra.mrb[0].mxu0 %v3295
      %v3562 = vpop.f32.mrb[0].mxu0
      %v3563 = vadd.f32 0.0, %v3562
      %v3564 = vpop.f32.mrb[0].mxu0
      %v3565 = vpop.f32.mrb[0].mxu0
      %v3566 = vadd.f32 0.0, %v3565
      %v3567 = vpop.f32.mrb[0].mxu0
      %3568 = vmatprep.mubr.bf16.mxu0 0
      %3569 = vmatmul.mubr.bf16.gmra.mrb[0].mxu0 %v3307
      %v3570 = vpop.f32.mrb[0].mxu0
      %v3571 = vadd.f32 0.0, %v3570
      %v3572 = vpop.f32.mrb[0].mxu0
      %v3573 = vpop.f32.mrb[0].mxu0
      %v3574 = vadd.f32 0.0, %v3573
      %v3575 = vpop.f32.mrb[0].mxu0
      %3576 = vmatprep.mubr.bf16.mxu0 0
      %3577 = vmatmul.mubr.bf16.gmra.mrb[0].mxu0 %v3319
      %v3578 = vpop.f32.mrb[0].mxu0
      %v3579 = vadd.f32 0.0, %v3578
      %v3580 = vpop.f32.mrb[0].mxu0
      %v3581 = vpop.f32.mrb[0].mxu0
      %v3582 = vadd.f32 0.0, %v3581
      %v3583 = vpop.f32.mrb[0].mxu0
      %3584 = vmatprep.mubr.bf16.mxu0 0
      %3585 = vmatmul.mubr.bf16.gmra.mrb[0].mxu0 %v3331
      %v3586 = vpop.f32.mrb[0].mxu0
      %v3587 = vadd.f32 0.0, %v3586
      %v3588 = vpop.f32.mrb[0].mxu0
      %v3589 = vpop.f32.mrb[0].mxu0
      %v3590 = vadd.f32 0.0, %v3589
      %v3591 = vpop.f32.mrb[0].mxu0
      %3592 = vmatprep.mubr.bf16.mxu0 0
      %3593 = vmatmul.mubr.bf16.gmra.mrb[0].mxu0 %v3343
      %v3594 = vpop.f32.mrb[0].mxu0
      %v3595 = vadd.f32 0.0, %v3594
      %v3596 = vpop.f32.mrb[0].mxu0
      %v3597 = vpop.f32.mrb[0].mxu0
      %v3598 = vadd.f32 0.0, %v3597
      %v3599 = vpop.f32.mrb[0].mxu0
      %3600 = vmatprep.mubr.bf16.mxu0 0
      %3601 = vmatmul.mubr.bf16.gmra.mrb[0].mxu0 %v3355
      %v3602 = vpop.f32.mrb[0].mxu0
      %v3603 = vadd.f32 0.0, %v3602
      %v3604 = vpop.f32.mrb[0].mxu0
      %v3605 = vpop.f32.mrb[0].mxu0
      %v3606 = vadd.f32 0.0, %v3605
      %v3607 = vpop.f32.mrb[0].mxu0
      %3608 = vmatprep.mubr.bf16.mxu0 0
      %3609 = vmatmul.mubr.bf16.gmra.mrb[0].mxu0 %v3367
      %v3610 = vpop.f32.mrb[0].mxu0
      %v3611 = vadd.f32 0.0, %v3610
      %v3612 = vpop.f32.mrb[0].mxu0
      %v3613 = vpop.f32.mrb[0].mxu0
      %v3614 = vadd.f32 0.0, %v3613
      %v3615 = vpop.f32.mrb[0].mxu0
      %3616 = vmatprep.mubr.bf16.mxu0 0
      %3617 = vmatmul.mubr.bf16.gmra.mrb[0].mxu0 %v3379
      %v3618 = vpop.f32.mrb[0].mxu0
      %v3619 = vadd.f32 0.0, %v3618
      %v3620 = vpop.f32.mrb[0].mxu0
      %v3621 = vpop.f32.mrb[0].mxu0
      %v3622 = vadd.f32 0.0, %v3621
      %v3623 = vpop.f32.mrb[0].mxu0
      %3624 = vmatprep.mubr.bf16.mxu0 0
      %3625 = vmatmul.mubr.bf16.gmra.mrb[0].mxu0 %v3391
      %v3626 = vpop.f32.mrb[0].mxu0
      %v3627 = vadd.f32 0.0, %v3626
      %v3628 = vpop.f32.mrb[0].mxu0
      %v3629 = vpop.f32.mrb[0].mxu0
      %v3630 = vadd.f32 0.0, %v3629
      %v3631 = vpop.f32.mrb[0].mxu0
      %3632 = vdwg.mxu0
      %v3633 = vadd.f32 %v3136, %v3507
      %v3634 = vadd.f32 %v3137, %v3510
      %v3635 = vadd.f32 %v3138, %v3515
      %v3636 = vadd.f32 %v3139, %v3518
      %v3637 = vadd.f32 %v3140, %v3523
      %v3638 = vadd.f32 %v3141, %v3526
      %v3639 = vadd.f32 %v3142, %v3531
      %v3640 = vadd.f32 %v3143, %v3534
      %v3641 = vadd.f32 %v3144, %v3539
      %v3642 = vadd.f32 %v3145, %v3542
      %v3643 = vadd.f32 %v3146, %v3547
      %v3644 = vadd.f32 %v3147, %v3550
      %v3645 = vadd.f32 %v3148, %v3555
      %v3646 = vadd.f32 %v3149, %v3558
      %v3647 = vadd.f32 %v3150, %v3563
      %v3648 = vadd.f32 %v3151, %v3566
      %v3649 = vadd.f32 %v3152, %v3571
      %v3650 = vadd.f32 %v3153, %v3574
      %v3651 = vadd.f32 %v3154, %v3579
      %v3652 = vadd.f32 %v3155, %v3582
      %v3653 = vadd.f32 %v3156, %v3587
      %v3654 = vadd.f32 %v3157, %v3590
      %v3655 = vadd.f32 %v3158, %v3595
      %v3656 = vadd.f32 %v3159, %v3598
      %v3657 = vadd.f32 %v3160, %v3603
      %v3658 = vadd.f32 %v3161, %v3606
      %v3659 = vadd.f32 %v3162, %v3611
      %v3660 = vadd.f32 %v3163, %v3614
      %v3661 = vadd.f32 %v3164, %v3619
      %v3662 = vadd.f32 %v3165, %v3622
      %v3663 = vadd.f32 %v3166, %v3627
      %v3664 = vadd.f32 %v3167, %v3630
      %v3665 = vld [vmem:[%s2894] sm:$0xfe]
      %v3666 = vld [vmem:[%s2894 + $0x10] sm:$0xfe]
      %v3667 = vld [vmem:[%s2894 + $0x20] sm:$0xfe]
      %v3668 = vld [vmem:[%s2894 + $0x30] sm:$0xfe]
      %v3669 = vld [vmem:[%s2894 + $0x40] sm:$0xfe]
      %v3670 = vld [vmem:[%s2894 + $0x50] sm:$0xfe]
      %v3671 = vld [vmem:[%s2894 + $0x60] sm:$0xfe]
      %v3672 = vld [vmem:[%s2894 + $0x70] sm:$0xfe]
      %v3673 = vld [vmem:[%s2894 + $0x80] sm:$0xfe]
      %v3674 = vld [vmem:[%s2894 + $0x90] sm:$0xfe]
      %v3675 = vld [vmem:[%s2894 + $0xa0] sm:$0xfe]
      %v3676 = vld [vmem:[%s2894 + $0xb0] sm:$0xfe]
      %v3677 = vld [vmem:[%s2894 + $0xc0] sm:$0xfe]
      %v3678 = vld [vmem:[%s2894 + $0xd0] sm:$0xfe]
      %v3679 = vld [vmem:[%s2894 + $0xe0] sm:$0xfe]
      %v3680 = vld [vmem:[%s2894 + $0xf0] sm:$0xfe]
      %v3713 = vrot.slane %v3665, 1
      %v3714 = vrot.slane %v3169, 1
      %v3715 = vsel %vm1433, %v3713, %v3714
      %v3716 = vrot.slane %v3666, 1
      %v3717 = vrot.slane %v3171, 1
      %v3718 = vsel %vm1433, %v3716, %v3717
      %v3719 = vrot.slane %v3667, 1
      %v3720 = vrot.slane %v3173, 1
      %v3721 = vsel %vm1433, %v3719, %v3720
      %v3722 = vrot.slane %v3668, 1
      %v3723 = vrot.slane %v3175, 1
      %v3724 = vsel %vm1433, %v3722, %v3723
      %v3725 = vrot.slane %v3669, 1
      %v3726 = vrot.slane %v3177, 1
      %v3727 = vsel %vm1433, %v3725, %v3726
      %v3728 = vrot.slane %v3670, 1
      %v3729 = vrot.slane %v3179, 1
      %v3730 = vsel %vm1433, %v3728, %v3729
      %v3731 = vrot.slane %v3671, 1
      %v3732 = vrot.slane %v3181, 1
      %v3733 = vsel %vm1433, %v3731, %v3732
      %v3734 = vrot.slane %v3672, 1
      %v3735 = vrot.slane %v3183, 1
      %v3736 = vsel %vm1433, %v3734, %v3735
      %v3737 = vrot.slane %v3673, 1
      %v3738 = vrot.slane %v3185, 1
      %v3739 = vsel %vm1433, %v3737, %v3738
      %v3740 = vrot.slane %v3674, 1
      %v3741 = vrot.slane %v3187, 1
      %v3742 = vsel %vm1433, %v3740, %v3741
      %v3743 = vrot.slane %v3675, 1
      %v3744 = vrot.slane %v3189, 1
      %v3745 = vsel %vm1433, %v3743, %v3744
      %v3746 = vrot.slane %v3676, 1
      %v3747 = vrot.slane %v3191, 1
      %v3748 = vsel %vm1433, %v3746, %v3747
      %v3749 = vrot.slane %v3677, 1
      %v3750 = vrot.slane %v3193, 1
      %v3751 = vsel %vm1433, %v3749, %v3750
      %v3752 = vrot.slane %v3678, 1
      %v3753 = vrot.slane %v3195, 1
      %v3754 = vsel %vm1433, %v3752, %v3753
      %v3755 = vrot.slane %v3679, 1
      %v3756 = vrot.slane %v3197, 1
      %v3757 = vsel %vm1433, %v3755, %v3756
      %v3758 = vrot.slane %v3680, 1
      %v3759 = vrot.slane %v3199, 1
      %v3760 = vsel %vm1433, %v3758, %v3759
      %v3777 = vld [vmem:[%s1 + $0x200] sm:$0xf]
      %v3778 = vld [vmem:[%s1 + $0x204] sm:$0xf]
      %v3779 = vld [vmem:[%s1 + $0x208] sm:$0xf]
      %v3780 = vld [vmem:[%s1 + $0x20c] sm:$0xf]
      %v3781 = vld [vmem:[%s1 + $0x210] sm:$0xf]
      %v3782 = vld [vmem:[%s1 + $0x214] sm:$0xf]
      %v3783 = vld [vmem:[%s1 + $0x218] sm:$0xf]
      %v3784 = vld [vmem:[%s1 + $0x21c] sm:$0xf]
      %v3785 = vld [vmem:[%s1 + $0x220] sm:$0xf]
      %v3786 = vld [vmem:[%s1 + $0x224] sm:$0xf]
      %v3787 = vld [vmem:[%s1 + $0x228] sm:$0xf]
      %v3788 = vld [vmem:[%s1 + $0x22c] sm:$0xf]
      %v3789 = vld [vmem:[%s1 + $0x230] sm:$0xf]
      %v3790 = vld [vmem:[%s1 + $0x234] sm:$0xf]
      %v3791 = vld [vmem:[%s1 + $0x238] sm:$0xf]
      %v3792 = vld [vmem:[%s1 + $0x23c] sm:$0xf]
      %v3809 = vunpack.c.l.b16 %v3777
      %v3810 = vunpack.c.l.b16 %v3778
      %v3811 = vunpack.c.l.b16 %v3779
      %v3812 = vunpack.c.l.b16 %v3780
      %v3813 = vunpack.c.l.b16 %v3781
      %v3814 = vunpack.c.l.b16 %v3782
      %v3815 = vunpack.c.l.b16 %v3783
      %v3816 = vunpack.c.l.b16 %v3784
      %v3817 = vunpack.c.l.b16 %v3785
      %v3818 = vunpack.c.l.b16 %v3786
      %v3819 = vunpack.c.l.b16 %v3787
      %v3820 = vunpack.c.l.b16 %v3788
      %v3821 = vunpack.c.l.b16 %v3789
      %v3822 = vunpack.c.l.b16 %v3790
      %v3823 = vunpack.c.l.b16 %v3791
      %v3824 = vunpack.c.l.b16 %v3792
      %v3825 = vpack.c.b16 %v3810, %v3809
      %v3826 = vpack.c.b16 %v3812, %v3811
      %v3827 = vpack.c.b16 %v3814, %v3813
      %v3828 = vpack.c.b16 %v3816, %v3815
      %v3829 = vpack.c.b16 %v3818, %v3817
      %v3830 = vpack.c.b16 %v3820, %v3819
      %v3831 = vpack.c.b16 %v3822, %v3821
      %v3832 = vpack.c.b16 %v3824, %v3823
      %3841 = vmatprep.subr.bf16.mxu0 0
      %3842 = vmatpush1.bf16.msra.mxu0 %v3825
      %3843 = vmatprep.subr.bf16.mxu0 0
      %3844 = vmatpush1.bf16.msra.mxu0 %v3826
      %3845 = vmatprep.subr.bf16.mxu0 0
      %3846 = vmatpush1.bf16.msra.mxu0 %v3827
      %3847 = vmatprep.subr.bf16.mxu0 0
      %3848 = vmatpush1.bf16.msra.mxu0 %v3828
      %3849 = vmatprep.subr.bf16.mxu0 0
      %3850 = vmatpush1.bf16.msra.mxu0 %v3829
      %3851 = vmatprep.subr.bf16.mxu0 0
      %3852 = vmatpush1.bf16.msra.mxu0 %v3830
      %3853 = vmatprep.subr.bf16.mxu0 0
      %3854 = vmatpush1.bf16.msra.mxu0 %v3831
      %3855 = vmatprep.subr.bf16.mxu0 0
      %3856 = vmatpush1.bf16.msra.mxu0 %v3832
      %3857 = vmatprep.subr.bf16.mxu0 0
      %3858 = vmatpush1.bf16.msra.mxu0 0
      %3859 = vmatprep.subr.bf16.mxu0 0
      %3860 = vmatpush1.bf16.msra.mxu0 0
      %3861 = vmatprep.subr.bf16.mxu0 0
      %3862 = vmatpush1.bf16.msra.mxu0 0
      %3863 = vmatprep.subr.bf16.mxu0 0
      %3864 = vmatpush1.bf16.msra.mxu0 0
      %3865 = vmatprep.subr.bf16.mxu0 0
      %3866 = vmatpush1.bf16.msra.mxu0 0
      %3867 = vmatprep.subr.bf16.mxu0 0
      %3868 = vmatpush1.bf16.msra.mxu0 0
      %3869 = vmatprep.subr.bf16.mxu0 0
      %3870 = vmatpush1.bf16.msra.mxu0 0
      %3871 = vmatprep.subr.bf16.mxu0 0
      %3872 = vmatpush1.bf16.msra.mxu0 0
      %3873 = vmatprep.mubr.bf16.mxu0 0
      %3874 = vmatmul.mubr.bf16.gmra.mrb[0].mxu0 %v3715
      %v3875 = vpop.f32.mrb[0].mxu0
      %v3876 = vadd.f32 0.0, %v3875
      %v3877 = vpop.f32.mrb[0].mxu0
      %v3878 = vpop.f32.mrb[0].mxu0
      %v3879 = vadd.f32 0.0, %v3878
      %v3880 = vpop.f32.mrb[0].mxu0
      %3881 = vmatprep.mubr.bf16.mxu0 0
      %3882 = vmatmul.mubr.bf16.gmra.mrb[0].mxu0 %v3718
      %v3883 = vpop.f32.mrb[0].mxu0
      %v3884 = vadd.f32 0.0, %v3883
      %v3885 = vpop.f32.mrb[0].mxu0
      %v3886 = vpop.f32.mrb[0].mxu0
      %v3887 = vadd.f32 0.0, %v3886
      %v3888 = vpop.f32.mrb[0].mxu0
      %3889 = vmatprep.mubr.bf16.mxu0 0
      %3890 = vmatmul.mubr.bf16.gmra.mrb[0].mxu0 %v3721
      %v3891 = vpop.f32.mrb[0].mxu0
      %v3892 = vadd.f32 0.0, %v3891
      %v3893 = vpop.f32.mrb[0].mxu0
      %v3894 = vpop.f32.mrb[0].mxu0
      %v3895 = vadd.f32 0.0, %v3894
      %v3896 = vpop.f32.mrb[0].mxu0
      %3897 = vmatprep.mubr.bf16.mxu0 0
      %3898 = vmatmul.mubr.bf16.gmra.mrb[0].mxu0 %v3724
      %v3899 = vpop.f32.mrb[0].mxu0
      %v3900 = vadd.f32 0.0, %v3899
      %v3901 = vpop.f32.mrb[0].mxu0
      %v3902 = vpop.f32.mrb[0].mxu0
      %v3903 = vadd.f32 0.0, %v3902
      %v3904 = vpop.f32.mrb[0].mxu0
      %3905 = vmatprep.mubr.bf16.mxu0 0
      %3906 = vmatmul.mubr.bf16.gmra.mrb[0].mxu0 %v3727
      %v3907 = vpop.f32.mrb[0].mxu0
      %v3908 = vadd.f32 0.0, %v3907
      %v3909 = vpop.f32.mrb[0].mxu0
      %v3910 = vpop.f32.mrb[0].mxu0
      %v3911 = vadd.f32 0.0, %v3910
      %v3912 = vpop.f32.mrb[0].mxu0
      %3913 = vmatprep.mubr.bf16.mxu0 0
      %3914 = vmatmul.mubr.bf16.gmra.mrb[0].mxu0 %v3730
      %v3915 = vpop.f32.mrb[0].mxu0
      %v3916 = vadd.f32 0.0, %v3915
      %v3917 = vpop.f32.mrb[0].mxu0
      %v3918 = vpop.f32.mrb[0].mxu0
      %v3919 = vadd.f32 0.0, %v3918
      %v3920 = vpop.f32.mrb[0].mxu0
      %3921 = vmatprep.mubr.bf16.mxu0 0
      %3922 = vmatmul.mubr.bf16.gmra.mrb[0].mxu0 %v3733
      %v3923 = vpop.f32.mrb[0].mxu0
      %v3924 = vadd.f32 0.0, %v3923
      %v3925 = vpop.f32.mrb[0].mxu0
      %v3926 = vpop.f32.mrb[0].mxu0
      %v3927 = vadd.f32 0.0, %v3926
      %v3928 = vpop.f32.mrb[0].mxu0
      %3929 = vmatprep.mubr.bf16.mxu0 0
      %3930 = vmatmul.mubr.bf16.gmra.mrb[0].mxu0 %v3736
      %v3931 = vpop.f32.mrb[0].mxu0
      %v3932 = vadd.f32 0.0, %v3931
      %v3933 = vpop.f32.mrb[0].mxu0
      %v3934 = vpop.f32.mrb[0].mxu0
      %v3935 = vadd.f32 0.0, %v3934
      %v3936 = vpop.f32.mrb[0].mxu0
      %3937 = vmatprep.mubr.bf16.mxu0 0
      %3938 = vmatmul.mubr.bf16.gmra.mrb[0].mxu0 %v3739
      %v3939 = vpop.f32.mrb[0].mxu0
      %v3940 = vadd.f32 0.0, %v3939
      %v3941 = vpop.f32.mrb[0].mxu0
      %v3942 = vpop.f32.mrb[0].mxu0
      %v3943 = vadd.f32 0.0, %v3942
      %v3944 = vpop.f32.mrb[0].mxu0
      %3945 = vmatprep.mubr.bf16.mxu0 0
      %3946 = vmatmul.mubr.bf16.gmra.mrb[0].mxu0 %v3742
      %v3947 = vpop.f32.mrb[0].mxu0
      %v3948 = vadd.f32 0.0, %v3947
      %v3949 = vpop.f32.mrb[0].mxu0
      %v3950 = vpop.f32.mrb[0].mxu0
      %v3951 = vadd.f32 0.0, %v3950
      %v3952 = vpop.f32.mrb[0].mxu0
      %3953 = vmatprep.mubr.bf16.mxu0 0
      %3954 = vmatmul.mubr.bf16.gmra.mrb[0].mxu0 %v3745
      %v3955 = vpop.f32.mrb[0].mxu0
      %v3956 = vadd.f32 0.0, %v3955
      %v3957 = vpop.f32.mrb[0].mxu0
      %v3958 = vpop.f32.mrb[0].mxu0
      %v3959 = vadd.f32 0.0, %v3958
      %v3960 = vpop.f32.mrb[0].mxu0
      %3961 = vmatprep.mubr.bf16.mxu0 0
      %3962 = vmatmul.mubr.bf16.gmra.mrb[0].mxu0 %v3748
      %v3963 = vpop.f32.mrb[0].mxu0
      %v3964 = vadd.f32 0.0, %v3963
      %v3965 = vpop.f32.mrb[0].mxu0
      %v3966 = vpop.f32.mrb[0].mxu0
      %v3967 = vadd.f32 0.0, %v3966
      %v3968 = vpop.f32.mrb[0].mxu0
      %3969 = vmatprep.mubr.bf16.mxu0 0
      %3970 = vmatmul.mubr.bf16.gmra.mrb[0].mxu0 %v3751
      %v3971 = vpop.f32.mrb[0].mxu0
      %v3972 = vadd.f32 0.0, %v3971
      %v3973 = vpop.f32.mrb[0].mxu0
      %v3974 = vpop.f32.mrb[0].mxu0
      %v3975 = vadd.f32 0.0, %v3974
      %v3976 = vpop.f32.mrb[0].mxu0
      %3977 = vmatprep.mubr.bf16.mxu0 0
      %3978 = vmatmul.mubr.bf16.gmra.mrb[0].mxu0 %v3754
      %v3979 = vpop.f32.mrb[0].mxu0
      %v3980 = vadd.f32 0.0, %v3979
      %v3981 = vpop.f32.mrb[0].mxu0
      %v3982 = vpop.f32.mrb[0].mxu0
      %v3983 = vadd.f32 0.0, %v3982
      %v3984 = vpop.f32.mrb[0].mxu0
      %3985 = vmatprep.mubr.bf16.mxu0 0
      %3986 = vmatmul.mubr.bf16.gmra.mrb[0].mxu0 %v3757
      %v3987 = vpop.f32.mrb[0].mxu0
      %v3988 = vadd.f32 0.0, %v3987
      %v3989 = vpop.f32.mrb[0].mxu0
      %v3990 = vpop.f32.mrb[0].mxu0
      %v3991 = vadd.f32 0.0, %v3990
      %v3992 = vpop.f32.mrb[0].mxu0
      %3993 = vmatprep.mubr.bf16.mxu0 0
      %3994 = vmatmul.mubr.bf16.gmra.mrb[0].mxu0 %v3760
      %v3995 = vpop.f32.mrb[0].mxu0
      %v3996 = vadd.f32 0.0, %v3995
      %v3997 = vpop.f32.mrb[0].mxu0
      %v3998 = vpop.f32.mrb[0].mxu0
      %v3999 = vadd.f32 0.0, %v3998
      %v4000 = vpop.f32.mrb[0].mxu0
      %4001 = vdwg.mxu0
      %v4002 = vadd.f32 %v3633, %v3876
      %v4003 = vadd.f32 %v3634, %v3879
      %v4004 = vadd.f32 %v3635, %v3884
      %v4005 = vadd.f32 %v3636, %v3887
      %v4006 = vadd.f32 %v3637, %v3892
      %v4007 = vadd.f32 %v3638, %v3895
      %v4008 = vadd.f32 %v3639, %v3900
      %v4009 = vadd.f32 %v3640, %v3903
      %v4010 = vadd.f32 %v3641, %v3908
      %v4011 = vadd.f32 %v3642, %v3911
      %v4012 = vadd.f32 %v3643, %v3916
      %v4013 = vadd.f32 %v3644, %v3919
      %v4014 = vadd.f32 %v3645, %v3924
      %v4015 = vadd.f32 %v3646, %v3927
      %v4016 = vadd.f32 %v3647, %v3932
      %v4017 = vadd.f32 %v3648, %v3935
      %v4018 = vadd.f32 %v3649, %v3940
      %v4019 = vadd.f32 %v3650, %v3943
      %v4020 = vadd.f32 %v3651, %v3948
      %v4021 = vadd.f32 %v3652, %v3951
      %v4022 = vadd.f32 %v3653, %v3956
      %v4023 = vadd.f32 %v3654, %v3959
      %v4024 = vadd.f32 %v3655, %v3964
      %v4025 = vadd.f32 %v3656, %v3967
      %v4026 = vadd.f32 %v3657, %v3972
      %v4027 = vadd.f32 %v3658, %v3975
      %v4028 = vadd.f32 %v3659, %v3980
      %v4029 = vadd.f32 %v3660, %v3983
      %v4030 = vadd.f32 %v3661, %v3988
      %v4031 = vadd.f32 %v3662, %v3991
      %v4032 = vadd.f32 %v3663, %v3996
      %v4033 = vadd.f32 %v3664, %v3999
      %v4034 = vadd.f32 %v4002, %v4003
      %v4035 = vadd.f32 %v4034, %v4004
      %v4036 = vadd.f32 %v4035, %v4005
      %v4037 = vadd.f32 %v4036, %v4006
      %v4038 = vadd.f32 %v4037, %v4007
      %v4039 = vadd.f32 %v4038, %v4008
      %v4040 = vadd.f32 %v4039, %v4009
      %v4041 = vadd.f32 %v4040, %v4010
      %v4042 = vadd.f32 %v4041, %v4011
      %v4043 = vadd.f32 %v4042, %v4012
      %v4044 = vadd.f32 %v4043, %v4013
      %v4045 = vadd.f32 %v4044, %v4014
      %v4046 = vadd.f32 %v4045, %v4015
      %v4047 = vadd.f32 %v4046, %v4016
      %v4048 = vadd.f32 %v4047, %v4017
      %v4049 = vadd.f32 %v4048, %v4018
      %v4050 = vadd.f32 %v4049, %v4019
      %v4051 = vadd.f32 %v4050, %v4020
      %v4052 = vadd.f32 %v4051, %v4021
      %v4053 = vadd.f32 %v4052, %v4022
      %v4054 = vadd.f32 %v4053, %v4023
      %v4055 = vadd.f32 %v4054, %v4024
      %v4056 = vadd.f32 %v4055, %v4025
      %v4057 = vadd.f32 %v4056, %v4026
      %v4058 = vadd.f32 %v4057, %v4027
      %v4059 = vadd.f32 %v4058, %v4028
      %v4060 = vadd.f32 %v4059, %v4029
      %v4061 = vadd.f32 %v4060, %v4030
      %v4062 = vadd.f32 %v4061, %v4031
      %v4063 = vadd.f32 %v4062, %v4032
      %v4064 = vadd.f32 %v4063, %v4033
      %4065 = vst [vmem:[%s215] sm:$0xff] %v4064
      %v4066 = vmul.f32 %v4002, %v4002
      %v4067 = vmul.f32 %v4003, %v4003
      %v4068 = vmul.f32 %v4004, %v4004
      %v4069 = vmul.f32 %v4005, %v4005
      %v4070 = vmul.f32 %v4006, %v4006
      %v4071 = vmul.f32 %v4007, %v4007
      %v4072 = vmul.f32 %v4008, %v4008
      %v4073 = vmul.f32 %v4009, %v4009
      %v4074 = vmul.f32 %v4010, %v4010
      %v4075 = vmul.f32 %v4011, %v4011
      %v4076 = vmul.f32 %v4012, %v4012
      %v4077 = vmul.f32 %v4013, %v4013
      %v4078 = vmul.f32 %v4014, %v4014
      %v4079 = vmul.f32 %v4015, %v4015
      %v4080 = vmul.f32 %v4016, %v4016
      %v4081 = vmul.f32 %v4017, %v4017
      %v4082 = vmul.f32 %v4018, %v4018
      %v4083 = vmul.f32 %v4019, %v4019
      %v4084 = vmul.f32 %v4020, %v4020
      %v4085 = vmul.f32 %v4021, %v4021
      %v4086 = vmul.f32 %v4022, %v4022
      %v4087 = vmul.f32 %v4023, %v4023
      %v4088 = vmul.f32 %v4024, %v4024
      %v4089 = vmul.f32 %v4025, %v4025
      %v4090 = vmul.f32 %v4026, %v4026
      %v4091 = vmul.f32 %v4027, %v4027
      %v4092 = vmul.f32 %v4028, %v4028
      %v4093 = vmul.f32 %v4029, %v4029
      %v4094 = vmul.f32 %v4030, %v4030
      %v4095 = vmul.f32 %v4031, %v4031
      %v4096 = vmul.f32 %v4032, %v4032
      %v4097 = vmul.f32 %v4033, %v4033
      %v4098 = vadd.f32 %v4066, %v4067
      %v4099 = vadd.f32 %v4098, %v4068
      %v4100 = vadd.f32 %v4099, %v4069
      %v4101 = vadd.f32 %v4100, %v4070
      %v4102 = vadd.f32 %v4101, %v4071
      %v4103 = vadd.f32 %v4102, %v4072
      %v4104 = vadd.f32 %v4103, %v4073
      %v4105 = vadd.f32 %v4104, %v4074
      %v4106 = vadd.f32 %v4105, %v4075
      %v4107 = vadd.f32 %v4106, %v4076
      %v4108 = vadd.f32 %v4107, %v4077
      %v4109 = vadd.f32 %v4108, %v4078
      %v4110 = vadd.f32 %v4109, %v4079
      %v4111 = vadd.f32 %v4110, %v4080
      %v4112 = vadd.f32 %v4111, %v4081
      %v4113 = vadd.f32 %v4112, %v4082
      %v4114 = vadd.f32 %v4113, %v4083
      %v4115 = vadd.f32 %v4114, %v4084
      %v4116 = vadd.f32 %v4115, %v4085
      %v4117 = vadd.f32 %v4116, %v4086
      %v4118 = vadd.f32 %v4117, %v4087
      %v4119 = vadd.f32 %v4118, %v4088
      %v4120 = vadd.f32 %v4119, %v4089
      %v4121 = vadd.f32 %v4120, %v4090
      %v4122 = vadd.f32 %v4121, %v4091
      %v4123 = vadd.f32 %v4122, %v4092
      %v4124 = vadd.f32 %v4123, %v4093
      %v4125 = vadd.f32 %v4124, %v4094
      %v4126 = vadd.f32 %v4125, %v4095
      %v4127 = vadd.f32 %v4126, %v4096
      %v4128 = vadd.f32 %v4127, %v4097
      %4129 = vst [vmem:[%s219] sm:$0xff] %v4128
      %v4130 = vpack.c.bf16 %v4003, %v4002
      %v4131 = vpack.c.bf16 %v4005, %v4004
      %v4132 = vpack.c.bf16 %v4007, %v4006
      %v4133 = vpack.c.bf16 %v4009, %v4008
      %v4134 = vpack.c.bf16 %v4011, %v4010
      %v4135 = vpack.c.bf16 %v4013, %v4012
      %v4136 = vpack.c.bf16 %v4015, %v4014
      %v4137 = vpack.c.bf16 %v4017, %v4016
      %v4138 = vpack.c.bf16 %v4019, %v4018
      %v4139 = vpack.c.bf16 %v4021, %v4020
      %v4140 = vpack.c.bf16 %v4023, %v4022
      %v4141 = vpack.c.bf16 %v4025, %v4024
      %v4142 = vpack.c.bf16 %v4027, %v4026
      %v4143 = vpack.c.bf16 %v4029, %v4028
      %v4144 = vpack.c.bf16 %v4031, %v4030
      %v4145 = vpack.c.bf16 %v4033, %v4032
      %v4162 = vunpack.c.l.b16 %v4130
      %v4163 = vunpack.c.h.b16 %v4130
      %v4164 = vunpack.c.l.b16 %v4131
      %v4165 = vunpack.c.h.b16 %v4131
      %v4166 = vunpack.c.l.b16 %v4132
      %v4167 = vunpack.c.h.b16 %v4132
      %v4168 = vunpack.c.l.b16 %v4133
      %v4169 = vunpack.c.h.b16 %v4133
      %v4170 = vunpack.c.l.b16 %v4134
      %v4171 = vunpack.c.h.b16 %v4134
      %v4172 = vunpack.c.l.b16 %v4135
      %v4173 = vunpack.c.h.b16 %v4135
      %v4174 = vunpack.c.l.b16 %v4136
      %v4175 = vunpack.c.h.b16 %v4136
      %v4176 = vunpack.c.l.b16 %v4137
      %v4177 = vunpack.c.h.b16 %v4137
      %v4178 = vunpack.c.l.b16 %v4138
      %v4179 = vunpack.c.h.b16 %v4138
      %v4180 = vunpack.c.l.b16 %v4139
      %v4181 = vunpack.c.h.b16 %v4139
      %v4182 = vunpack.c.l.b16 %v4140
      %v4183 = vunpack.c.h.b16 %v4140
      %v4184 = vunpack.c.l.b16 %v4141
      %v4185 = vunpack.c.h.b16 %v4141
      %v4186 = vunpack.c.l.b16 %v4142
      %v4187 = vunpack.c.h.b16 %v4142
      %v4188 = vunpack.c.l.b16 %v4143
      %v4189 = vunpack.c.h.b16 %v4143
      %v4190 = vunpack.c.l.b16 %v4144
      %v4191 = vunpack.c.h.b16 %v4144
      %v4192 = vunpack.c.l.b16 %v4145
      %v4193 = vunpack.c.h.b16 %v4145
      %v4194 = vpack.c.b16 %v4162, %v4162
      %v4195 = vpack.c.b16 %v4163, %v4163
      %v4196 = vpack.c.b16 %v4164, %v4164
      %v4197 = vpack.c.b16 %v4165, %v4165
      %v4198 = vpack.c.b16 %v4166, %v4166
      %v4199 = vpack.c.b16 %v4167, %v4167
      %v4200 = vpack.c.b16 %v4168, %v4168
      %v4201 = vpack.c.b16 %v4169, %v4169
      %v4202 = vpack.c.b16 %v4170, %v4170
      %v4203 = vpack.c.b16 %v4171, %v4171
      %v4204 = vpack.c.b16 %v4172, %v4172
      %v4205 = vpack.c.b16 %v4173, %v4173
      %v4206 = vpack.c.b16 %v4174, %v4174
      %v4207 = vpack.c.b16 %v4175, %v4175
      %v4208 = vpack.c.b16 %v4176, %v4176
      %v4209 = vpack.c.b16 %v4177, %v4177
      %v4210 = vpack.c.b16 %v4178, %v4178
      %v4211 = vpack.c.b16 %v4179, %v4179
      %v4212 = vpack.c.b16 %v4180, %v4180
      %v4213 = vpack.c.b16 %v4181, %v4181
      %v4214 = vpack.c.b16 %v4182, %v4182
      %v4215 = vpack.c.b16 %v4183, %v4183
      %v4216 = vpack.c.b16 %v4184, %v4184
      %v4217 = vpack.c.b16 %v4185, %v4185
      %v4218 = vpack.c.b16 %v4186, %v4186
      %v4219 = vpack.c.b16 %v4187, %v4187
      %v4220 = vpack.c.b16 %v4188, %v4188
      %v4221 = vpack.c.b16 %v4189, %v4189
      %v4222 = vpack.c.b16 %v4190, %v4190
      %v4223 = vpack.c.b16 %v4191, %v4191
      %v4224 = vpack.c.b16 %v4192, %v4192
      %v4225 = vpack.c.b16 %v4193, %v4193
      %4258 = vst [vmem:[%s210] sm:$0xf] %v4194
      %4259 = vst [vmem:[%s210 + $0x4] sm:$0xf] %v4195
      %4260 = vst [vmem:[%s210 + $0x8] sm:$0xf] %v4196
      %4261 = vst [vmem:[%s210 + $0xc] sm:$0xf] %v4197
      %4262 = vst [vmem:[%s210 + $0x10] sm:$0xf] %v4198
      %4263 = vst [vmem:[%s210 + $0x14] sm:$0xf] %v4199
      %4264 = vst [vmem:[%s210 + $0x18] sm:$0xf] %v4200
      %4265 = vst [vmem:[%s210 + $0x1c] sm:$0xf] %v4201
      %4266 = vst [vmem:[%s210 + $0x20] sm:$0xf] %v4202
      %4267 = vst [vmem:[%s210 + $0x24] sm:$0xf] %v4203
      %4268 = vst [vmem:[%s210 + $0x28] sm:$0xf] %v4204
      %4269 = vst [vmem:[%s210 + $0x2c] sm:$0xf] %v4205
      %4270 = vst [vmem:[%s210 + $0x30] sm:$0xf] %v4206
      %4271 = vst [vmem:[%s210 + $0x34] sm:$0xf] %v4207
      %4272 = vst [vmem:[%s210 + $0x38] sm:$0xf] %v4208
      %4273 = vst [vmem:[%s210 + $0x3c] sm:$0xf] %v4209
      %4274 = vst [vmem:[%s210 + $0x40] sm:$0xf] %v4210
      %4275 = vst [vmem:[%s210 + $0x44] sm:$0xf] %v4211
      %4276 = vst [vmem:[%s210 + $0x48] sm:$0xf] %v4212
      %4277 = vst [vmem:[%s210 + $0x4c] sm:$0xf] %v4213
      %4278 = vst [vmem:[%s210 + $0x50] sm:$0xf] %v4214
      %4279 = vst [vmem:[%s210 + $0x54] sm:$0xf] %v4215
      %4280 = vst [vmem:[%s210 + $0x58] sm:$0xf] %v4216
      %4281 = vst [vmem:[%s210 + $0x5c] sm:$0xf] %v4217
      %4282 = vst [vmem:[%s210 + $0x60] sm:$0xf] %v4218
      %4283 = vst [vmem:[%s210 + $0x64] sm:$0xf] %v4219
      %4284 = vst [vmem:[%s210 + $0x68] sm:$0xf] %v4220
      %4285 = vst [vmem:[%s210 + $0x6c] sm:$0xf] %v4221
      %4286 = vst [vmem:[%s210 + $0x70] sm:$0xf] %v4222
      %4287 = vst [vmem:[%s210 + $0x74] sm:$0xf] %v4223
      %4288 = vst [vmem:[%s210 + $0x78] sm:$0xf] %v4224
      %4289 = vst [vmem:[%s210 + $0x7c] sm:$0xf] %v4225
      %s4290 = smul.u32 32, %s16
      %p4291 = scmp.lt.s32.totalorder %s4290, 63
      %s4292 = scalar_select %p4291, %s4290, 63
      %s4293 = smul.addr %s4292, 4
      %s4294 = scalar_lea.vmem %s2, %s4293
      %p4295 = scmp.lt.s32.totalorder %s16, 1
      %s4296 = scalar_select %p4295, %s16, 1
      %s4297 = smul.addr %s4296, 8
      %s4298 = scalar_lea.vmem %s3, %s4297
      %p4299 = scmp.lt.s32.totalorder %s16, 1
      %s4300 = scalar_select %p4299, %s16, 1
      %s4301 = smul.addr %s4300, 8
      %s4302 = scalar_lea.vmem %s4, %s4301
      // Predicated region
      $region29: #{basic_block_forward.3} parent=27 // pred_check
        %p4303 = pneg %p81
      $region30: #{basic_block_forward.3} parent=27 // pred_check_branch
        %4305 = sbr.rel (%p4303) target = $region32
      $region31: #{basic_block_forward.3} parent=27 // pred_region
        %s4306 = smul.u32 32, %s16
      $region32: #{basic_block_forward.3} parent=27 // pred_fallthru
        _
      // Predicated region
      $region33: #{basic_block_forward.3} parent=27 // pred_check
        %p4307 = pneg %p107
      $region34: #{basic_block_forward.3} parent=27 // pred_check_branch
        %4309 = sbr.rel (%p4307) target = $region36
      $region35: #{basic_block_forward.3} parent=27 // pred_region
        _
      $region36: #{basic_block_forward.3} parent=27 // pred_fallthru
        _
      // Predicated region
      $region37: #{basic_block_forward.3} parent=27 // pred_check
        %p4310 = pneg %p133
      $region38: #{basic_block_forward.3} parent=27 // pred_check_branch
        %4312 = sbr.rel (%p4310) target = $region40
      $region39: #{basic_block_forward.3} parent=27 // pred_region
        _
      $region40: #{basic_block_forward.3} parent=27 // pred_fallthru
        _
    $region28: #{basic_block_forward.3} parent=5 // pred_fallthru
      _
    %p4313 = scmp.le.s32.totalorder 2, %s11
    // Predicated region
    $region41: #{basic_block_forward.3} parent=5 // pred_check
      %p4314 = pneg %p4313
    $region42: #{basic_block_forward.3} parent=5 // pred_check_branch
      %4316 = sbr.rel (%p4314) target = $region44
    $region43: #{basic_block_forward.3} parent=5 // pred_region
      %s4317 = ssub.s32 %s11, 2
      // Predicated region
      $region45: #{basic_block_forward.3} parent=43 // pred_check
        %p4318 = pneg %p87
      $region46: #{basic_block_forward.3} parent=43 // pred_check_branch
        %4320 = sbr.rel (%p4318) target = $region48
      $region47: #{basic_block_forward.3} parent=43 // pred_region
        %s4321 = smul.u32 32, %s17
        %p4322 = scmp.lt.s32.totalorder %s4321, 63
        %s4323 = scalar_select %p4322, %s4321, 63
        %s4324 = smul.addr %s4323, 4
        %s4325 = scalar_lea.vmem %s2, %s4324
      $region48: #{basic_block_forward.3} parent=43 // pred_fallthru
        _
      // Predicated region
      $region49: #{basic_block_forward.3} parent=43 // pred_check
        %p4326 = pneg %p113
      $region50: #{basic_block_forward.3} parent=43 // pred_check_branch
        %4328 = sbr.rel (%p4326) target = $region52
      $region51: #{basic_block_forward.3} parent=43 // pred_region
        %p4329 = scmp.lt.s32.totalorder %s17, 1
        %s4330 = scalar_select %p4329, %s17, 1
        %s4331 = smul.addr %s4330, 8
        %s4332 = scalar_lea.vmem %s3, %s4331
      $region52: #{basic_block_forward.3} parent=43 // pred_fallthru
        _
      // Predicated region
      $region53: #{basic_block_forward.3} parent=43 // pred_check
        %p4333 = pneg %p139
      $region54: #{basic_block_forward.3} parent=43 // pred_check_branch
        %4335 = sbr.rel (%p4333) target = $region56
      $region55: #{basic_block_forward.3} parent=43 // pred_region
        %p4336 = scmp.lt.s32.totalorder %s17, 1
        %s4337 = scalar_select %p4336, %s17, 1
        %s4338 = smul.addr %s4337, 8
        %s4339 = scalar_lea.vmem %s4, %s4338
      $region56: #{basic_block_forward.3} parent=43 // pred_fallthru
        _
    $region44: #{basic_block_forward.3} parent=5 // pred_fallthru
      _
  $region6: #{basic_block_forward.3} parent=0 // loop_footer
    %s15 = sadd.s32 1, %s11
  $region7: #{basic_block_forward.3} parent=0 // loop_footer_branch
    %10 = sbr.rel target = $region3
  $region8: #{basic_block_forward.3} parent=0 // loop_exit
    _

</llo_original>
